<compile_context>
chip_gen: v7x
topology: tpu7x:2x2x1
jax: 0.10.0
libtpu: 0.0.40
codegen_flags: <defaults>
</compile_context>

<pallas_src>
import math

import numpy as np
import jax
import jax.numpy as jnp
from jax.experimental import pallas as pl
from jax.experimental.pallas import tpu as pltpu

EPS = 1e-5
_TAPS = tuple((oy, ox) for oy in (-1, 0, 1) for ox in (-1, 0, 1))

CONFIG = dict(growth_rate=8, block_config=(2, 2, 2, 2), num_init_features=16,
              bn_size=2, drop_rate=0.0, num_classes=10)

_CPARAMS = pltpu.CompilerParams(vmem_limit_bytes=32 * 1024 * 1024)


# ---------------------------------------------------------------------------
# Compile-time constant helpers (numpy -> baked into the executable)
# ---------------------------------------------------------------------------

def conv3x3_masks(n, h, w):
    """[9, P] float32 validity masks for the 9 (dy,dx) taps of a 3x3/pad-1 window."""
    p = np.arange(n * h * w)
    hh = (p // w) % h
    ww = p % w
    out = []
    for oy, ox in _TAPS:
        m = (hh + oy >= 0) & (hh + oy < h) & (ww + ox >= 0) & (ww + ox < w)
        out.append(m.astype(np.float32))
    return jnp.asarray(np.stack(out))


def conv3x3_shift_mats(n, h, w):
    """[9, P, P] 0/1 matrices S with (x @ S)[:, q] = x[:, neighbor(q)] (0 if padded)."""
    pix = n * h * w
    p = np.arange(pix)
    nn, hh, ww = p // (h * w), (p // w) % h, p % w
    mats = []
    for oy, ox in _TAPS:
        valid = (hh + oy >= 0) & (hh + oy < h) & (ww + ox >= 0) & (ww + ox < w)
        src = nn * h * w + (hh + oy) * w + (ww + ox)
        s = np.zeros((pix, pix), np.float32)
        q = np.nonzero(valid)[0]
        s[src[q], q] = 1.0
        mats.append(s)
    return jnp.asarray(np.stack(mats))


def stem_pool_masks(n, hh, wh):
    """[9, N*hh*wh] validity masks for the phase-decomposed MaxPool(3,2,1) taps."""
    q = np.arange(n * hh * wh)
    row = (q // wh) % hh
    col = q % wh
    out = []
    for dy, dx in _TAPS:
        m = np.ones(q.shape, np.float32)
        if dy == -1:
            m = m * (row >= 1)
        if dx == -1:
            m = m * (col >= 1)
        out.append(m.astype(np.float32))
    return jnp.asarray(np.stack(out))


def avgpool2x2_matrix(n, h, w):
    """[P, P/4] matrix: right-multiplying a [C, P] slab performs AvgPool2d(2,2)."""
    pix = n * h * w
    ho, wo = h // 2, w // 2
    p = np.arange(pix)
    nn, hh, ww = p // (h * w), (p // w) % h, p % w
    q = nn * ho * wo + (hh // 2) * wo + (ww // 2)
    a = np.zeros((pix, n * ho * wo), np.float32)
    a[p, q] = 0.25
    return jnp.asarray(a)


def global_avgpool_matrix(n, h, w):
    """[P, N] matrix: right-multiplying a [C, P] slab gives per-image channel means."""
    pix = n * h * w
    a = np.zeros((pix, n), np.float32)
    a[np.arange(pix), np.arange(pix) // (h * w)] = 1.0 / (h * w)
    return jnp.asarray(a)


def im2col_phase_T(x_nhwc, kh, kw, stride, pad):
    """Patches of a kh x kw / stride conv, columns grouped by output-pixel parity.

    Returns [kh*kw*C, N*Ho*Wo] with the four (row,col)-parity phases of the
    output grid as contiguous lane chunks (each ordered (n, oh//2, ow//2)),
    so the in-kernel stride-2 max-pool reduces to lane rolls.
    """
    # TODO(synk): the 7x7/stride-2 patch extraction is still plain-JAX im2col;
    # a stride-2 gather is not expressible with in-kernel lane rolls.
    n, h, w, c = x_nhwc.shape
    xp = jnp.pad(x_nhwc, ((0, 0), (pad, pad), (pad, pad), (0, 0)))
    ho = (h + 2 * pad - kh) // stride + 1
    wo = (w + 2 * pad - kw) // stride + 1
    taps = []
    for dy in range(kh):
        for dx in range(kw):
            taps.append(xp[:, dy:dy + stride * (ho - 1) + 1:stride,
                           dx:dx + stride * (wo - 1) + 1:stride, :])
    t = jnp.stack(taps, axis=0)                       # [kh*kw, N, Ho, Wo, C]
    t = jnp.moveaxis(t, -1, 1)                        # [kh*kw, C, N, Ho, Wo]
    t = t.reshape(kh * kw * c, n, ho // 2, 2, wo // 2, 2)
    t = jnp.transpose(t, (0, 3, 5, 1, 2, 4))          # [K, py, px, N, Ho/2, Wo/2]
    return t.reshape(kh * kw * c, n * ho * wo), ho, wo


# ---------------------------------------------------------------------------
# In-kernel building blocks
# ---------------------------------------------------------------------------

def _bn_relu(x, gamma, beta, eps):
    # Training-mode BatchNorm2d (batch stats over the pixel/lane axis, biased
    # variance) folded into a per-channel affine, followed by ReLU.
    # One-pass stats (var = E[x^2] - E[x]^2) halve the cross-lane reductions.
    mu = jnp.mean(x, axis=1, keepdims=True)
    ex2 = jnp.mean(x * x, axis=1, keepdims=True)
    var = ex2 - mu * mu
    scale = gamma * jax.lax.rsqrt(var + eps)
    return jnp.maximum(x * scale + (beta - mu * scale), 0.0)


def _stem_maxpool(y, mask_ref, half_width):
    """MaxPool2d(3, 2, 1) on phase-ordered, post-ReLU conv0 activations.

    `y` is [C0, 4*Ph] with the four parity phases of the full-res grid as
    contiguous lane chunks; the stride-2 pool then becomes 9 lane rolls on
    half-resolution slabs.  Zero-masking invalid taps is exact ONLY because
    `y` >= 0 (post-ReLU) and the centre tap is always valid.
    """
    ph = y.shape[1] // 4
    phases = [y[:, k * ph:(k + 1) * ph] for k in range(4)]
    pooled = None
    for ti, (dy, dx) in enumerate(_TAPS):
        slab = phases[(0 if dy == 0 else 1) * 2 + (0 if dx == 0 else 1)]
        off = (-1 if dy == -1 else 0) * half_width + (-1 if dx == -1 else 0)
        r = slab if off == 0 else pltpu.roll(slab, (-off) % ph, 1)
        if dy == -1 or dx == -1:
            r = r * mask_ref[ti:ti + 1, :]
        pooled = r if pooled is None else jnp.maximum(pooled, r)
    return pooled


def _dense_layer(x, g1, b1, w1, g2, b2, w2cat, aux_ref, width, use_roll, eps):
    """norm1+relu1 -> conv1(1x1) -> norm2+relu2 -> conv2(3x3, pad 1).

    The nine 3x3 taps are gathered with lane rolls + validity masks (lane-tile
    aligned stages) or tiny 0/1 shift-matrix matmuls (deep stages, P < 128),
    concatenated along sublanes, and contracted against the tap-concatenated
    weight in a single K = 9*Cmid bf16 matmul (one MXU push instead of nine).
    """
    y1 = _bn_relu(x, g1, b1, eps)                         # [Cin, P]
    t = jnp.dot(w1, y1.astype(w1.dtype), preferred_element_type=jnp.float32)
    y2 = _bn_relu(t, g2, b2, eps)                         # [Cmid, P] >= 0
    pixels = y2.shape[1]
    taps = []
    for ti, (oy, ox) in enumerate(_TAPS):
        off = oy * width + ox
        if use_roll:
            if off == 0:
                r = y2                                    # centre tap, always valid
            else:
                # lane roll + zero-mask of cross-boundary pixels == zero padding
                r = pltpu.roll(y2, (-off) % pixels, 1) * aux_ref[ti:ti + 1, :]
        else:
            # tiny 0/1 shift+mask matrix (deep blocks, P < 128)
            r = jnp.dot(y2, aux_ref[ti], preferred_element_type=jnp.float32)
        taps.append(r.astype(w2cat.dtype))
    r_cat = jnp.concatenate(taps, axis=0)                 # [9*Cmid, P]
    return jnp.dot(w2cat, r_cat, preferred_element_type=jnp.float32)  # [G, P]


def _make_stage_kernel(plan, eps):
    """Build one fused stage kernel from a static plan.

    Plan ops consume the kernel's input refs left-to-right; every intermediate
    (including the growing DenseNet feature slab) stays in VMEM/vregs and only
    the final stage result is stored to the output ref.
    """
    def kernel(*refs):
        o_ref = refs[-1]
        it = iter(refs[:-1])
        feats = None
        for op in plan:
            kind = op[0]
            if kind == "input":                        # resume from a prior stage
                feats = next(it)[...]
            elif kind == "stem":                       # conv0+norm0+relu0+maxpool0
                half_width = op[1]
                p_ref, w_ref = next(it), next(it)
                g, b = next(it)[...], next(it)[...]
                mask_ref = next(it)
                conv = jnp.dot(w_ref[...], p_ref[...],
                               preferred_element_type=jnp.float32)
                feats = _stem_maxpool(_bn_relu(conv, g, b, eps),
                                      mask_ref, half_width)
            elif kind == "block":                      # _DenseBlock (all layers)
                _, n_layers, width, use_roll = op
                aux_ref = next(it)
                for _ in range(n_layers):
                    g1, b1 = next(it)[...], next(it)[...]
                    w1 = next(it)[...]
                    g2, b2 = next(it)[...], next(it)[...]
                    w2 = next(it)[...]
                    new = _dense_layer(feats, g1, b1, w1, g2, b2, w2,
                                       aux_ref, width, use_roll, eps)
                    feats = jnp.concatenate([feats, new], axis=0)
            elif kind == "trans":                      # _Transition
                g, b = next(it)[...], next(it)[...]
                wt = next(it)[...]
                pool = next(it)[...]
                y = _bn_relu(feats, g, b, eps)
                t = jnp.dot(wt, y.astype(wt.dtype),
                            preferred_element_type=jnp.float32)
                feats = jnp.dot(t, pool, preferred_element_type=jnp.float32)
            else:                                      # "head": norm5 + GAP + fc
                g, b = next(it)[...], next(it)[...]
                gpool = next(it)[...]
                wc, bc = next(it)[...], next(it)[...]
                y = _bn_relu(feats, g, b, eps)
                pooled = jnp.dot(y, gpool, preferred_element_type=jnp.float32)
                feats = jnp.dot(wc, pooled,
                                preferred_element_type=jnp.float32) + bc
        o_ref[...] = feats
    return kernel


# ---------------------------------------------------------------------------
# Model: parameters + forward
# ---------------------------------------------------------------------------

def init_params(key, cfg):
    keys = iter(jax.random.split(key, 256))

    def conv_w(cout, cin, kh, kw):      # kaiming normal, PyTorch layout
        fan_in = cin * kh * kw
        return (jax.random.normal(next(keys), (cout, cin, kh, kw), jnp.float32)
                * math.sqrt(2.0 / fan_in))

    def bn_p(c):
        return dict(gamma=jnp.ones((c, 1), jnp.float32),
                    beta=jnp.zeros((c, 1), jnp.float32))

    p = {}
    nif = cfg["num_init_features"]
    w0 = conv_w(nif, 3, 7, 7)
    p["conv0"] = (jnp.transpose(w0, (0, 2, 3, 1)).reshape(nif, 7 * 7 * 3)
                  .astype(jnp.bfloat16))
    p["norm0"] = bn_p(nif)

    num_features = nif
    gr, bn_size = cfg["growth_rate"], cfg["bn_size"]
    cmid = bn_size * gr
    blocks = []
    for bi, nl in enumerate(cfg["block_config"]):
        layers = []
        for li in range(nl):
            cin = num_features + li * gr
            w1 = conv_w(cmid, cin, 1, 1).reshape(cmid, cin).astype(jnp.bfloat16)
            w2 = conv_w(gr, cmid, 3, 3)
            # tap-concatenated conv2 weight: [G, 9*Cmid], tap-major / channel-minor
            w2 = (jnp.transpose(w2, (0, 2, 3, 1)).reshape(gr, 9 * cmid)
                  .astype(jnp.bfloat16))
            layers.append(dict(norm1=bn_p(cin), w1=w1, norm2=bn_p(cmid), w2=w2))
        num_features += nl * gr
        blk = dict(layers=layers)
        if bi != len(cfg["block_config"]) - 1:
            blk["trans"] = dict(
                norm=bn_p(num_features),
                w=conv_w(num_features // 2, num_features, 1, 1)
                    .reshape(num_features // 2, num_features).astype(jnp.bfloat16))
            num_features //= 2
        blocks.append(blk)
    p["blocks"] = blocks
    p["norm5"] = bn_p(num_features)
    bound = 1.0 / math.sqrt(num_features)
    p["classifier"] = dict(
        w=jax.random.uniform(next(keys), (cfg["num_classes"], num_features),
                             jnp.float32, -bound, bound),
        b=jnp.zeros((cfg["num_classes"], 1), jnp.float32))
    return p


def densenet_forward(params, x_nchw, cfg=CONFIG):
    n = x_nchw.shape[0]
    x = jnp.transpose(x_nchw, (0, 2, 3, 1)).astype(jnp.float32)   # NCHW -> NHWC

    def run_stage(plan, extra, out_shape):
        return pl.pallas_call(
            _make_stage_kernel(tuple(plan), EPS),
            out_shape=jax.ShapeDtypeStruct(out_shape, jnp.float32),
            compiler_params=_CPARAMS,
        )(*extra)

    # ---- stem inputs (fused with dense block 1 below) ----
    patches, ho_full, wo_full = im2col_phase_T(x, 7, 7, 2, 3)     # [147, N*32*32]
    hh, wh = ho_full // 2, wo_full // 2                           # grid after MaxPool
    p_half = n * hh * wh
    assert p_half % 128 == 0, "stem roll-based MaxPool needs a lane-aligned half grid"
    c0 = cfg["num_init_features"]
    plan = [("stem", wh)]
    extra = [patches.astype(jnp.bfloat16), params["conv0"],
             params["norm0"]["gamma"], params["norm0"]["beta"],
             stem_pool_masks(n, hh, wh)]

    feats = None
    c, h, w = c0, hh, wh
    gr = cfg["growth_rate"]
    prev_big = False
    # Fusion grouping: each lane-dense (P >= 128) block (+ its transition) gets
    # its own call fused with whatever preceded it; all lane-sparse deep blocks
    # and the head are absorbed into the last call.
    for blk in params["blocks"]:
        pixels = n * h * w
        if prev_big:
            feats = run_stage(plan, extra, (c, pixels))
            plan, extra = [("input",)], [feats]
        use_roll = (pixels % 128 == 0)            # lane rolls when lane-tile aligned
        aux = conv3x3_masks(n, h, w) if use_roll else conv3x3_shift_mats(n, h, w)
        plan.append(("block", len(blk["layers"]), w, use_roll))
        extra.append(aux)
        for lp in blk["layers"]:
            extra += [lp["norm1"]["gamma"], lp["norm1"]["beta"], lp["w1"],
                      lp["norm2"]["gamma"], lp["norm2"]["beta"], lp["w2"]]
        c += len(blk["layers"]) * gr
        if "trans" in blk:
            t = blk["trans"]
            plan.append(("trans",))
            extra += [t["norm"]["gamma"], t["norm"]["beta"], t["w"],
                      avgpool2x2_matrix(n, h, w)]
            c //= 2
            h, w = h // 2, w // 2
        prev_big = pixels >= 128

    # ---- head joins the last pending group ----
    plan.append(("head",))
    extra += [params["norm5"]["gamma"], params["norm5"]["beta"],
              global_avgpool_matrix(n, h, w),
              params["classifier"]["w"], params["classifier"]["b"]]
    logits_t = run_stage(plan, extra, (cfg["num_classes"], n))
    return logits_t.T                                             # [N, num_classes]


if __name__ == "__main__":
    key = jax.random.PRNGKey(0)
    pkey, xkey = jax.random.split(key)
    params = init_params(pkey, CONFIG)
    x = jax.random.normal(xkey, (2, 3, 64, 64), jnp.float32)      # NCHW, like PyTorch
    fwd = jax.jit(densenet_forward)
    out = jax.block_until_ready(fwd(params, x))
    assert out.shape == (2, CONFIG["num_classes"]), out.shape
    assert bool(jnp.all(jnp.isfinite(out)))
    print("KERNEL_OK")
</pallas_src>

<mosaic_0001>
module attributes {stable_mosaic.version = 11 : i64} {
  func.func @kernel(%arg0: memref<147x2048xbf16, #tpu.memory_space<vmem>>, %arg1: memref<16x147xbf16, #tpu.memory_space<vmem>>, %arg2: memref<16x1xf32, #tpu.memory_space<vmem>>, %arg3: memref<16x1xf32, #tpu.memory_space<vmem>>, %arg4: memref<9x512xf32, #tpu.memory_space<vmem>>, %arg5: memref<9x512xf32, #tpu.memory_space<vmem>>, %arg6: memref<16x1xf32, #tpu.memory_space<vmem>>, %arg7: memref<16x1xf32, #tpu.memory_space<vmem>>, %arg8: memref<16x16xbf16, #tpu.memory_space<vmem>>, %arg9: memref<16x1xf32, #tpu.memory_space<vmem>>, %arg10: memref<16x1xf32, #tpu.memory_space<vmem>>, %arg11: memref<8x144xbf16, #tpu.memory_space<vmem>>, %arg12: memref<24x1xf32, #tpu.memory_space<vmem>>, %arg13: memref<24x1xf32, #tpu.memory_space<vmem>>, %arg14: memref<16x24xbf16, #tpu.memory_space<vmem>>, %arg15: memref<16x1xf32, #tpu.memory_space<vmem>>, %arg16: memref<16x1xf32, #tpu.memory_space<vmem>>, %arg17: memref<8x144xbf16, #tpu.memory_space<vmem>>, %arg18: memref<32x1xf32, #tpu.memory_space<vmem>>, %arg19: memref<32x1xf32, #tpu.memory_space<vmem>>, %arg20: memref<16x32xbf16, #tpu.memory_space<vmem>>, %arg21: memref<512x128xf32, #tpu.memory_space<vmem>>, %arg22: memref<16x128xf32, #tpu.memory_space<vmem>>) attributes {dimension_semantics = [], scalar_prefetch = 0 : i64, scratch_operands = 0 : i64, tpu.core_type = #tpu.core_type<tc>} {
    %c0 = arith.constant 0 : index
    %c0_0 = arith.constant 0 : index
    %0 = vector.load %arg2[%c0, %c0_0] : memref<16x1xf32, #tpu.memory_space<vmem>>, vector<16x1xf32>
    %c0_1 = arith.constant 0 : index
    %c0_2 = arith.constant 0 : index
    %1 = vector.load %arg3[%c0_1, %c0_2] : memref<16x1xf32, #tpu.memory_space<vmem>>, vector<16x1xf32>
    %c0_3 = arith.constant 0 : index
    %c0_4 = arith.constant 0 : index
    %2 = vector.load %arg1[%c0_3, %c0_4] : memref<16x147xbf16, #tpu.memory_space<vmem>>, vector<16x147xbf16>
    %c0_5 = arith.constant 0 : index
    %c0_6 = arith.constant 0 : index
    %3 = vector.load %arg0[%c0_5, %c0_6] : memref<147x2048xbf16, #tpu.memory_space<vmem>>, vector<147x2048xbf16>
    %cst = arith.constant dense<0.000000e+00> : vector<16x2048xf32>
    %4 = tpu.matmul %2, %3, %cst {dimension_numbers = #tpu.dot_dimension_numbers<[1], [0], [0], [1], [0, 0, 1, 1], [], []>} : vector<16x147xbf16>, vector<147x2048xbf16>, vector<16x2048xf32> -> vector<16x2048xf32>
    %cst_7 = arith.constant dense<0.000000e+00> : vector<16xf32>
    %5 = vector.multi_reduction <add>, %4, %cst_7 [1] : vector<16x2048xf32> to vector<16xf32>
    %6 = vector.shape_cast %5 : vector<16xf32> to vector<16x1xf32>
    %cst_8 = arith.constant 2.048000e+03 : f32
    %7 = vector.broadcast %cst_8 : f32 to vector<16x1xf32>
    %8 = arith.divf %6, %7 : vector<16x1xf32>
    %9 = arith.mulf %4, %4 : vector<16x2048xf32>
    %cst_9 = arith.constant dense<0.000000e+00> : vector<16xf32>
    %10 = vector.multi_reduction <add>, %9, %cst_9 [1] : vector<16x2048xf32> to vector<16xf32>
    %11 = vector.shape_cast %10 : vector<16xf32> to vector<16x1xf32>
    %cst_10 = arith.constant 2.048000e+03 : f32
    %12 = vector.broadcast %cst_10 : f32 to vector<16x1xf32>
    %13 = arith.divf %11, %12 : vector<16x1xf32>
    %14 = arith.mulf %8, %8 : vector<16x1xf32>
    %15 = arith.subf %13, %14 : vector<16x1xf32>
    %cst_11 = arith.constant 9.99999974E-6 : f32
    %16 = vector.broadcast %cst_11 : f32 to vector<16x1xf32>
    %17 = arith.addf %15, %16 : vector<16x1xf32>
    %18 = math.rsqrt %17 : vector<16x1xf32>
    %19 = arith.mulf %0, %18 : vector<16x1xf32>
    %20 = vector.broadcast %19 : vector<16x1xf32> to vector<16x2048xf32>
    %21 = arith.mulf %4, %20 : vector<16x2048xf32>
    %22 = arith.mulf %8, %19 : vector<16x1xf32>
    %23 = arith.subf %1, %22 : vector<16x1xf32>
    %24 = vector.broadcast %23 : vector<16x1xf32> to vector<16x2048xf32>
    %25 = arith.addf %21, %24 : vector<16x2048xf32>
    %cst_12 = arith.constant 0.000000e+00 : f32
    %26 = vector.broadcast %cst_12 : f32 to vector<16x2048xf32>
    %27 = arith.maximumf %25, %26 : vector<16x2048xf32>
    %28 = vector.extract_strided_slice %27 {offsets = [0, 0], sizes = [16, 512], strides = [1, 1]} : vector<16x2048xf32> to vector<16x512xf32>
    %29 = vector.extract_strided_slice %27 {offsets = [0, 512], sizes = [16, 512], strides = [1, 1]} : vector<16x2048xf32> to vector<16x512xf32>
    %30 = vector.extract_strided_slice %27 {offsets = [0, 1024], sizes = [16, 512], strides = [1, 1]} : vector<16x2048xf32> to vector<16x512xf32>
    %31 = vector.extract_strided_slice %27 {offsets = [0, 1536], sizes = [16, 512], strides = [1, 1]} : vector<16x2048xf32> to vector<16x512xf32>
    %c17_i32 = arith.constant 17 : i32
    %32 = tpu.dynamic_rotate %31 by %c17_i32 dim 1 : vector<16x512xf32>, i32 -> vector<16x512xf32>
    %c0_13 = arith.constant 0 : index
    %c0_14 = arith.constant 0 : index
    %33 = vector.load %arg4[%c0_13, %c0_14] : memref<9x512xf32, #tpu.memory_space<vmem>>, vector<1x512xf32>
    %34 = vector.broadcast %33 : vector<1x512xf32> to vector<16x512xf32>
    %35 = arith.mulf %32, %34 : vector<16x512xf32>
    %c16_i32 = arith.constant 16 : i32
    %36 = tpu.dynamic_rotate %30 by %c16_i32 dim 1 : vector<16x512xf32>, i32 -> vector<16x512xf32>
    %c1 = arith.constant 1 : index
    %c0_15 = arith.constant 0 : index
    %37 = vector.load %arg4[%c1, %c0_15] : memref<9x512xf32, #tpu.memory_space<vmem>>, vector<1x512xf32>
    %38 = vector.broadcast %37 : vector<1x512xf32> to vector<16x512xf32>
    %39 = arith.mulf %36, %38 : vector<16x512xf32>
    %40 = arith.maximumf %35, %39 : vector<16x512xf32>
    %c16_i32_16 = arith.constant 16 : i32
    %41 = tpu.dynamic_rotate %31 by %c16_i32_16 dim 1 : vector<16x512xf32>, i32 -> vector<16x512xf32>
    %c2 = arith.constant 2 : index
    %c0_17 = arith.constant 0 : index
    %42 = vector.load %arg4[%c2, %c0_17] : memref<9x512xf32, #tpu.memory_space<vmem>>, vector<1x512xf32>
    %43 = vector.broadcast %42 : vector<1x512xf32> to vector<16x512xf32>
    %44 = arith.mulf %41, %43 : vector<16x512xf32>
    %45 = arith.maximumf %40, %44 : vector<16x512xf32>
    %c1_i32 = arith.constant 1 : i32
    %46 = tpu.dynamic_rotate %29 by %c1_i32 dim 1 : vector<16x512xf32>, i32 -> vector<16x512xf32>
    %c3 = arith.constant 3 : index
    %c0_18 = arith.constant 0 : index
    %47 = vector.load %arg4[%c3, %c0_18] : memref<9x512xf32, #tpu.memory_space<vmem>>, vector<1x512xf32>
    %48 = vector.broadcast %47 : vector<1x512xf32> to vector<16x512xf32>
    %49 = arith.mulf %46, %48 : vector<16x512xf32>
    %50 = arith.maximumf %45, %49 : vector<16x512xf32>
    %51 = arith.maximumf %50, %28 : vector<16x512xf32>
    %52 = arith.maximumf %51, %29 : vector<16x512xf32>
    %c1_i32_19 = arith.constant 1 : i32
    %53 = tpu.dynamic_rotate %31 by %c1_i32_19 dim 1 : vector<16x512xf32>, i32 -> vector<16x512xf32>
    %c6 = arith.constant 6 : index
    %c0_20 = arith.constant 0 : index
    %54 = vector.load %arg4[%c6, %c0_20] : memref<9x512xf32, #tpu.memory_space<vmem>>, vector<1x512xf32>
    %55 = vector.broadcast %54 : vector<1x512xf32> to vector<16x512xf32>
    %56 = arith.mulf %53, %55 : vector<16x512xf32>
    %57 = arith.maximumf %52, %56 : vector<16x512xf32>
    %58 = arith.maximumf %57, %30 : vector<16x512xf32>
    %59 = arith.maximumf %58, %31 : vector<16x512xf32>
    %c0_21 = arith.constant 0 : index
    %c0_22 = arith.constant 0 : index
    %60 = vector.load %arg6[%c0_21, %c0_22] : memref<16x1xf32, #tpu.memory_space<vmem>>, vector<16x1xf32>
    %c0_23 = arith.constant 0 : index
    %c0_24 = arith.constant 0 : index
    %61 = vector.load %arg7[%c0_23, %c0_24] : memref<16x1xf32, #tpu.memory_space<vmem>>, vector<16x1xf32>
    %c0_25 = arith.constant 0 : index
    %c0_26 = arith.constant 0 : index
    %62 = vector.load %arg8[%c0_25, %c0_26] : memref<16x16xbf16, #tpu.memory_space<vmem>>, vector<16x16xbf16>
    %c0_27 = arith.constant 0 : index
    %c0_28 = arith.constant 0 : index
    %63 = vector.load %arg9[%c0_27, %c0_28] : memref<16x1xf32, #tpu.memory_space<vmem>>, vector<16x1xf32>
    %c0_29 = arith.constant 0 : index
    %c0_30 = arith.constant 0 : index
    %64 = vector.load %arg10[%c0_29, %c0_30] : memref<16x1xf32, #tpu.memory_space<vmem>>, vector<16x1xf32>
    %c0_31 = arith.constant 0 : index
    %c0_32 = arith.constant 0 : index
    %65 = vector.load %arg11[%c0_31, %c0_32] : memref<8x144xbf16, #tpu.memory_space<vmem>>, vector<8x144xbf16>
    %cst_33 = arith.constant dense<0.000000e+00> : vector<16xf32>
    %66 = vector.multi_reduction <add>, %59, %cst_33 [1] : vector<16x512xf32> to vector<16xf32>
    %67 = vector.shape_cast %66 : vector<16xf32> to vector<16x1xf32>
    %cst_34 = arith.constant 5.120000e+02 : f32
    %68 = vector.broadcast %cst_34 : f32 to vector<16x1xf32>
    %69 = arith.divf %67, %68 : vector<16x1xf32>
    %70 = arith.mulf %59, %59 : vector<16x512xf32>
    %cst_35 = arith.constant dense<0.000000e+00> : vector<16xf32>
    %71 = vector.multi_reduction <add>, %70, %cst_35 [1] : vector<16x512xf32> to vector<16xf32>
    %72 = vector.shape_cast %71 : vector<16xf32> to vector<16x1xf32>
    %cst_36 = arith.constant 5.120000e+02 : f32
    %73 = vector.broadcast %cst_36 : f32 to vector<16x1xf32>
    %74 = arith.divf %72, %73 : vector<16x1xf32>
    %75 = arith.mulf %69, %69 : vector<16x1xf32>
    %76 = arith.subf %74, %75 : vector<16x1xf32>
    %cst_37 = arith.constant 9.99999974E-6 : f32
    %77 = vector.broadcast %cst_37 : f32 to vector<16x1xf32>
    %78 = arith.addf %76, %77 : vector<16x1xf32>
    %79 = math.rsqrt %78 : vector<16x1xf32>
    %80 = arith.mulf %60, %79 : vector<16x1xf32>
    %81 = vector.broadcast %80 : vector<16x1xf32> to vector<16x512xf32>
    %82 = arith.mulf %59, %81 : vector<16x512xf32>
    %83 = arith.mulf %69, %80 : vector<16x1xf32>
    %84 = arith.subf %61, %83 : vector<16x1xf32>
    %85 = vector.broadcast %84 : vector<16x1xf32> to vector<16x512xf32>
    %86 = arith.addf %82, %85 : vector<16x512xf32>
    %cst_38 = arith.constant 0.000000e+00 : f32
    %87 = vector.broadcast %cst_38 : f32 to vector<16x512xf32>
    %88 = arith.maximumf %86, %87 : vector<16x512xf32>
    %89 = arith.truncf %88 : vector<16x512xf32> to vector<16x512xbf16>
    %cst_39 = arith.constant dense<0.000000e+00> : vector<16x512xf32>
    %90 = tpu.matmul %62, %89, %cst_39 {dimension_numbers = #tpu.dot_dimension_numbers<[1], [0], [0], [1], [0, 0, 1, 1], [], []>} : vector<16x16xbf16>, vector<16x512xbf16>, vector<16x512xf32> -> vector<16x512xf32>
    %cst_40 = arith.constant dense<0.000000e+00> : vector<16xf32>
    %91 = vector.multi_reduction <add>, %90, %cst_40 [1] : vector<16x512xf32> to vector<16xf32>
    %92 = vector.shape_cast %91 : vector<16xf32> to vector<16x1xf32>
    %cst_41 = arith.constant 5.120000e+02 : f32
    %93 = vector.broadcast %cst_41 : f32 to vector<16x1xf32>
    %94 = arith.divf %92, %93 : vector<16x1xf32>
    %95 = arith.mulf %90, %90 : vector<16x512xf32>
    %cst_42 = arith.constant dense<0.000000e+00> : vector<16xf32>
    %96 = vector.multi_reduction <add>, %95, %cst_42 [1] : vector<16x512xf32> to vector<16xf32>
    %97 = vector.shape_cast %96 : vector<16xf32> to vector<16x1xf32>
    %cst_43 = arith.constant 5.120000e+02 : f32
    %98 = vector.broadcast %cst_43 : f32 to vector<16x1xf32>
    %99 = arith.divf %97, %98 : vector<16x1xf32>
    %100 = arith.mulf %94, %94 : vector<16x1xf32>
    %101 = arith.subf %99, %100 : vector<16x1xf32>
    %cst_44 = arith.constant 9.99999974E-6 : f32
    %102 = vector.broadcast %cst_44 : f32 to vector<16x1xf32>
    %103 = arith.addf %101, %102 : vector<16x1xf32>
    %104 = math.rsqrt %103 : vector<16x1xf32>
    %105 = arith.mulf %63, %104 : vector<16x1xf32>
    %106 = vector.broadcast %105 : vector<16x1xf32> to vector<16x512xf32>
    %107 = arith.mulf %90, %106 : vector<16x512xf32>
    %108 = arith.mulf %94, %105 : vector<16x1xf32>
    %109 = arith.subf %64, %108 : vector<16x1xf32>
    %110 = vector.broadcast %109 : vector<16x1xf32> to vector<16x512xf32>
    %111 = arith.addf %107, %110 : vector<16x512xf32>
    %cst_45 = arith.constant 0.000000e+00 : f32
    %112 = vector.broadcast %cst_45 : f32 to vector<16x512xf32>
    %113 = arith.maximumf %111, %112 : vector<16x512xf32>
    %c17_i32_46 = arith.constant 17 : i32
    %114 = tpu.dynamic_rotate %113 by %c17_i32_46 dim 1 : vector<16x512xf32>, i32 -> vector<16x512xf32>
    %c0_47 = arith.constant 0 : index
    %c0_48 = arith.constant 0 : index
    %115 = vector.load %arg5[%c0_47, %c0_48] : memref<9x512xf32, #tpu.memory_space<vmem>>, vector<1x512xf32>
    %116 = vector.broadcast %115 : vector<1x512xf32> to vector<16x512xf32>
    %117 = arith.mulf %114, %116 : vector<16x512xf32>
    %118 = arith.truncf %117 : vector<16x512xf32> to vector<16x512xbf16>
    %c16_i32_49 = arith.constant 16 : i32
    %119 = tpu.dynamic_rotate %113 by %c16_i32_49 dim 1 : vector<16x512xf32>, i32 -> vector<16x512xf32>
    %c1_50 = arith.constant 1 : index
    %c0_51 = arith.constant 0 : index
    %120 = vector.load %arg5[%c1_50, %c0_51] : memref<9x512xf32, #tpu.memory_space<vmem>>, vector<1x512xf32>
    %121 = vector.broadcast %120 : vector<1x512xf32> to vector<16x512xf32>
    %122 = arith.mulf %119, %121 : vector<16x512xf32>
    %123 = arith.truncf %122 : vector<16x512xf32> to vector<16x512xbf16>
    %c15_i32 = arith.constant 15 : i32
    %124 = tpu.dynamic_rotate %113 by %c15_i32 dim 1 : vector<16x512xf32>, i32 -> vector<16x512xf32>
    %c2_52 = arith.constant 2 : index
    %c0_53 = arith.constant 0 : index
    %125 = vector.load %arg5[%c2_52, %c0_53] : memref<9x512xf32, #tpu.memory_space<vmem>>, vector<1x512xf32>
    %126 = vector.broadcast %125 : vector<1x512xf32> to vector<16x512xf32>
    %127 = arith.mulf %124, %126 : vector<16x512xf32>
    %128 = arith.truncf %127 : vector<16x512xf32> to vector<16x512xbf16>
    %c1_i32_54 = arith.constant 1 : i32
    %129 = tpu.dynamic_rotate %113 by %c1_i32_54 dim 1 : vector<16x512xf32>, i32 -> vector<16x512xf32>
    %c3_55 = arith.constant 3 : index
    %c0_56 = arith.constant 0 : index
    %130 = vector.load %arg5[%c3_55, %c0_56] : memref<9x512xf32, #tpu.memory_space<vmem>>, vector<1x512xf32>
    %131 = vector.broadcast %130 : vector<1x512xf32> to vector<16x512xf32>
    %132 = arith.mulf %129, %131 : vector<16x512xf32>
    %133 = arith.truncf %132 : vector<16x512xf32> to vector<16x512xbf16>
    %134 = arith.truncf %113 : vector<16x512xf32> to vector<16x512xbf16>
    %c511_i32 = arith.constant 511 : i32
    %135 = tpu.dynamic_rotate %113 by %c511_i32 dim 1 : vector<16x512xf32>, i32 -> vector<16x512xf32>
    %c5 = arith.constant 5 : index
    %c0_57 = arith.constant 0 : index
    %136 = vector.load %arg5[%c5, %c0_57] : memref<9x512xf32, #tpu.memory_space<vmem>>, vector<1x512xf32>
    %137 = vector.broadcast %136 : vector<1x512xf32> to vector<16x512xf32>
    %138 = arith.mulf %135, %137 : vector<16x512xf32>
    %139 = arith.truncf %138 : vector<16x512xf32> to vector<16x512xbf16>
    %c497_i32 = arith.constant 497 : i32
    %140 = tpu.dynamic_rotate %113 by %c497_i32 dim 1 : vector<16x512xf32>, i32 -> vector<16x512xf32>
    %c6_58 = arith.constant 6 : index
    %c0_59 = arith.constant 0 : index
    %141 = vector.load %arg5[%c6_58, %c0_59] : memref<9x512xf32, #tpu.memory_space<vmem>>, vector<1x512xf32>
    %142 = vector.broadcast %141 : vector<1x512xf32> to vector<16x512xf32>
    %143 = arith.mulf %140, %142 : vector<16x512xf32>
    %144 = arith.truncf %143 : vector<16x512xf32> to vector<16x512xbf16>
    %c496_i32 = arith.constant 496 : i32
    %145 = tpu.dynamic_rotate %113 by %c496_i32 dim 1 : vector<16x512xf32>, i32 -> vector<16x512xf32>
    %c7 = arith.constant 7 : index
    %c0_60 = arith.constant 0 : index
    %146 = vector.load %arg5[%c7, %c0_60] : memref<9x512xf32, #tpu.memory_space<vmem>>, vector<1x512xf32>
    %147 = vector.broadcast %146 : vector<1x512xf32> to vector<16x512xf32>
    %148 = arith.mulf %145, %147 : vector<16x512xf32>
    %149 = arith.truncf %148 : vector<16x512xf32> to vector<16x512xbf16>
    %c495_i32 = arith.constant 495 : i32
    %150 = tpu.dynamic_rotate %113 by %c495_i32 dim 1 : vector<16x512xf32>, i32 -> vector<16x512xf32>
    %c8 = arith.constant 8 : index
    %c0_61 = arith.constant 0 : index
    %151 = vector.load %arg5[%c8, %c0_61] : memref<9x512xf32, #tpu.memory_space<vmem>>, vector<1x512xf32>
    %152 = vector.broadcast %151 : vector<1x512xf32> to vector<16x512xf32>
    %153 = arith.mulf %150, %152 : vector<16x512xf32>
    %154 = arith.truncf %153 : vector<16x512xf32> to vector<16x512xbf16>
    %155 = tpu.concatenate %118, %123, %128, %133, %134, %139, %144, %149, %154 in 0 : vector<16x512xbf16>, vector<16x512xbf16>, vector<16x512xbf16>, vector<16x512xbf16>, vector<16x512xbf16>, vector<16x512xbf16>, vector<16x512xbf16>, vector<16x512xbf16>, vector<16x512xbf16> -> vector<144x512xbf16>
    %cst_62 = arith.constant dense<0.000000e+00> : vector<8x512xf32>
    %156 = tpu.matmul %65, %155, %cst_62 {dimension_numbers = #tpu.dot_dimension_numbers<[1], [0], [0], [1], [0, 0, 1, 1], [], []>} : vector<8x144xbf16>, vector<144x512xbf16>, vector<8x512xf32> -> vector<8x512xf32>
    %157 = tpu.concatenate %59, %156 in 0 : vector<16x512xf32>, vector<8x512xf32> -> vector<24x512xf32>
    %c0_63 = arith.constant 0 : index
    %c0_64 = arith.constant 0 : index
    %158 = vector.load %arg12[%c0_63, %c0_64] : memref<24x1xf32, #tpu.memory_space<vmem>>, vector<24x1xf32>
    %c0_65 = arith.constant 0 : index
    %c0_66 = arith.constant 0 : index
    %159 = vector.load %arg13[%c0_65, %c0_66] : memref<24x1xf32, #tpu.memory_space<vmem>>, vector<24x1xf32>
    %c0_67 = arith.constant 0 : index
    %c0_68 = arith.constant 0 : index
    %160 = vector.load %arg14[%c0_67, %c0_68] : memref<16x24xbf16, #tpu.memory_space<vmem>>, vector<16x24xbf16>
    %c0_69 = arith.constant 0 : index
    %c0_70 = arith.constant 0 : index
    %161 = vector.load %arg15[%c0_69, %c0_70] : memref<16x1xf32, #tpu.memory_space<vmem>>, vector<16x1xf32>
    %c0_71 = arith.constant 0 : index
    %c0_72 = arith.constant 0 : index
    %162 = vector.load %arg16[%c0_71, %c0_72] : memref<16x1xf32, #tpu.memory_space<vmem>>, vector<16x1xf32>
    %c0_73 = arith.constant 0 : index
    %c0_74 = arith.constant 0 : index
    %163 = vector.load %arg17[%c0_73, %c0_74] : memref<8x144xbf16, #tpu.memory_space<vmem>>, vector<8x144xbf16>
    %cst_75 = arith.constant dense<0.000000e+00> : vector<24xf32>
    %164 = vector.multi_reduction <add>, %157, %cst_75 [1] : vector<24x512xf32> to vector<24xf32>
    %165 = vector.shape_cast %164 : vector<24xf32> to vector<24x1xf32>
    %cst_76 = arith.constant 5.120000e+02 : f32
    %166 = vector.broadcast %cst_76 : f32 to vector<24x1xf32>
    %167 = arith.divf %165, %166 : vector<24x1xf32>
    %168 = arith.mulf %157, %157 : vector<24x512xf32>
    %cst_77 = arith.constant dense<0.000000e+00> : vector<24xf32>
    %169 = vector.multi_reduction <add>, %168, %cst_77 [1] : vector<24x512xf32> to vector<24xf32>
    %170 = vector.shape_cast %169 : vector<24xf32> to vector<24x1xf32>
    %cst_78 = arith.constant 5.120000e+02 : f32
    %171 = vector.broadcast %cst_78 : f32 to vector<24x1xf32>
    %172 = arith.divf %170, %171 : vector<24x1xf32>
    %173 = arith.mulf %167, %167 : vector<24x1xf32>
    %174 = arith.subf %172, %173 : vector<24x1xf32>
    %cst_79 = arith.constant 9.99999974E-6 : f32
    %175 = vector.broadcast %cst_79 : f32 to vector<24x1xf32>
    %176 = arith.addf %174, %175 : vector<24x1xf32>
    %177 = math.rsqrt %176 : vector<24x1xf32>
    %178 = arith.mulf %158, %177 : vector<24x1xf32>
    %179 = vector.broadcast %178 : vector<24x1xf32> to vector<24x512xf32>
    %180 = arith.mulf %157, %179 : vector<24x512xf32>
    %181 = arith.mulf %167, %178 : vector<24x1xf32>
    %182 = arith.subf %159, %181 : vector<24x1xf32>
    %183 = vector.broadcast %182 : vector<24x1xf32> to vector<24x512xf32>
    %184 = arith.addf %180, %183 : vector<24x512xf32>
    %cst_80 = arith.constant 0.000000e+00 : f32
    %185 = vector.broadcast %cst_80 : f32 to vector<24x512xf32>
    %186 = arith.maximumf %184, %185 : vector<24x512xf32>
    %187 = arith.truncf %186 : vector<24x512xf32> to vector<24x512xbf16>
    %cst_81 = arith.constant dense<0.000000e+00> : vector<16x512xf32>
    %188 = tpu.matmul %160, %187, %cst_81 {dimension_numbers = #tpu.dot_dimension_numbers<[1], [0], [0], [1], [0, 0, 1, 1], [], []>} : vector<16x24xbf16>, vector<24x512xbf16>, vector<16x512xf32> -> vector<16x512xf32>
    %cst_82 = arith.constant dense<0.000000e+00> : vector<16xf32>
    %189 = vector.multi_reduction <add>, %188, %cst_82 [1] : vector<16x512xf32> to vector<16xf32>
    %190 = vector.shape_cast %189 : vector<16xf32> to vector<16x1xf32>
    %cst_83 = arith.constant 5.120000e+02 : f32
    %191 = vector.broadcast %cst_83 : f32 to vector<16x1xf32>
    %192 = arith.divf %190, %191 : vector<16x1xf32>
    %193 = arith.mulf %188, %188 : vector<16x512xf32>
    %cst_84 = arith.constant dense<0.000000e+00> : vector<16xf32>
    %194 = vector.multi_reduction <add>, %193, %cst_84 [1] : vector<16x512xf32> to vector<16xf32>
    %195 = vector.shape_cast %194 : vector<16xf32> to vector<16x1xf32>
    %cst_85 = arith.constant 5.120000e+02 : f32
    %196 = vector.broadcast %cst_85 : f32 to vector<16x1xf32>
    %197 = arith.divf %195, %196 : vector<16x1xf32>
    %198 = arith.mulf %192, %192 : vector<16x1xf32>
    %199 = arith.subf %197, %198 : vector<16x1xf32>
    %cst_86 = arith.constant 9.99999974E-6 : f32
    %200 = vector.broadcast %cst_86 : f32 to vector<16x1xf32>
    %201 = arith.addf %199, %200 : vector<16x1xf32>
    %202 = math.rsqrt %201 : vector<16x1xf32>
    %203 = arith.mulf %161, %202 : vector<16x1xf32>
    %204 = vector.broadcast %203 : vector<16x1xf32> to vector<16x512xf32>
    %205 = arith.mulf %188, %204 : vector<16x512xf32>
    %206 = arith.mulf %192, %203 : vector<16x1xf32>
    %207 = arith.subf %162, %206 : vector<16x1xf32>
    %208 = vector.broadcast %207 : vector<16x1xf32> to vector<16x512xf32>
    %209 = arith.addf %205, %208 : vector<16x512xf32>
    %cst_87 = arith.constant 0.000000e+00 : f32
    %210 = vector.broadcast %cst_87 : f32 to vector<16x512xf32>
    %211 = arith.maximumf %209, %210 : vector<16x512xf32>
    %c17_i32_88 = arith.constant 17 : i32
    %212 = tpu.dynamic_rotate %211 by %c17_i32_88 dim 1 : vector<16x512xf32>, i32 -> vector<16x512xf32>
    %c0_89 = arith.constant 0 : index
    %c0_90 = arith.constant 0 : index
    %213 = vector.load %arg5[%c0_89, %c0_90] : memref<9x512xf32, #tpu.memory_space<vmem>>, vector<1x512xf32>
    %214 = vector.broadcast %213 : vector<1x512xf32> to vector<16x512xf32>
    %215 = arith.mulf %212, %214 : vector<16x512xf32>
    %216 = arith.truncf %215 : vector<16x512xf32> to vector<16x512xbf16>
    %c16_i32_91 = arith.constant 16 : i32
    %217 = tpu.dynamic_rotate %211 by %c16_i32_91 dim 1 : vector<16x512xf32>, i32 -> vector<16x512xf32>
    %c1_92 = arith.constant 1 : index
    %c0_93 = arith.constant 0 : index
    %218 = vector.load %arg5[%c1_92, %c0_93] : memref<9x512xf32, #tpu.memory_space<vmem>>, vector<1x512xf32>
    %219 = vector.broadcast %218 : vector<1x512xf32> to vector<16x512xf32>
    %220 = arith.mulf %217, %219 : vector<16x512xf32>
    %221 = arith.truncf %220 : vector<16x512xf32> to vector<16x512xbf16>
    %c15_i32_94 = arith.constant 15 : i32
    %222 = tpu.dynamic_rotate %211 by %c15_i32_94 dim 1 : vector<16x512xf32>, i32 -> vector<16x512xf32>
    %c2_95 = arith.constant 2 : index
    %c0_96 = arith.constant 0 : index
    %223 = vector.load %arg5[%c2_95, %c0_96] : memref<9x512xf32, #tpu.memory_space<vmem>>, vector<1x512xf32>
    %224 = vector.broadcast %223 : vector<1x512xf32> to vector<16x512xf32>
    %225 = arith.mulf %222, %224 : vector<16x512xf32>
    %226 = arith.truncf %225 : vector<16x512xf32> to vector<16x512xbf16>
    %c1_i32_97 = arith.constant 1 : i32
    %227 = tpu.dynamic_rotate %211 by %c1_i32_97 dim 1 : vector<16x512xf32>, i32 -> vector<16x512xf32>
    %c3_98 = arith.constant 3 : index
    %c0_99 = arith.constant 0 : index
    %228 = vector.load %arg5[%c3_98, %c0_99] : memref<9x512xf32, #tpu.memory_space<vmem>>, vector<1x512xf32>
    %229 = vector.broadcast %228 : vector<1x512xf32> to vector<16x512xf32>
    %230 = arith.mulf %227, %229 : vector<16x512xf32>
    %231 = arith.truncf %230 : vector<16x512xf32> to vector<16x512xbf16>
    %232 = arith.truncf %211 : vector<16x512xf32> to vector<16x512xbf16>
    %c511_i32_100 = arith.constant 511 : i32
    %233 = tpu.dynamic_rotate %211 by %c511_i32_100 dim 1 : vector<16x512xf32>, i32 -> vector<16x512xf32>
    %c5_101 = arith.constant 5 : index
    %c0_102 = arith.constant 0 : index
    %234 = vector.load %arg5[%c5_101, %c0_102] : memref<9x512xf32, #tpu.memory_space<vmem>>, vector<1x512xf32>
    %235 = vector.broadcast %234 : vector<1x512xf32> to vector<16x512xf32>
    %236 = arith.mulf %233, %235 : vector<16x512xf32>
    %237 = arith.truncf %236 : vector<16x512xf32> to vector<16x512xbf16>
    %c497_i32_103 = arith.constant 497 : i32
    %238 = tpu.dynamic_rotate %211 by %c497_i32_103 dim 1 : vector<16x512xf32>, i32 -> vector<16x512xf32>
    %c6_104 = arith.constant 6 : index
    %c0_105 = arith.constant 0 : index
    %239 = vector.load %arg5[%c6_104, %c0_105] : memref<9x512xf32, #tpu.memory_space<vmem>>, vector<1x512xf32>
    %240 = vector.broadcast %239 : vector<1x512xf32> to vector<16x512xf32>
    %241 = arith.mulf %238, %240 : vector<16x512xf32>
    %242 = arith.truncf %241 : vector<16x512xf32> to vector<16x512xbf16>
    %c496_i32_106 = arith.constant 496 : i32
    %243 = tpu.dynamic_rotate %211 by %c496_i32_106 dim 1 : vector<16x512xf32>, i32 -> vector<16x512xf32>
    %c7_107 = arith.constant 7 : index
    %c0_108 = arith.constant 0 : index
    %244 = vector.load %arg5[%c7_107, %c0_108] : memref<9x512xf32, #tpu.memory_space<vmem>>, vector<1x512xf32>
    %245 = vector.broadcast %244 : vector<1x512xf32> to vector<16x512xf32>
    %246 = arith.mulf %243, %245 : vector<16x512xf32>
    %247 = arith.truncf %246 : vector<16x512xf32> to vector<16x512xbf16>
    %c495_i32_109 = arith.constant 495 : i32
    %248 = tpu.dynamic_rotate %211 by %c495_i32_109 dim 1 : vector<16x512xf32>, i32 -> vector<16x512xf32>
    %c8_110 = arith.constant 8 : index
    %c0_111 = arith.constant 0 : index
    %249 = vector.load %arg5[%c8_110, %c0_111] : memref<9x512xf32, #tpu.memory_space<vmem>>, vector<1x512xf32>
    %250 = vector.broadcast %249 : vector<1x512xf32> to vector<16x512xf32>
    %251 = arith.mulf %248, %250 : vector<16x512xf32>
    %252 = arith.truncf %251 : vector<16x512xf32> to vector<16x512xbf16>
    %253 = tpu.concatenate %216, %221, %226, %231, %232, %237, %242, %247, %252 in 0 : vector<16x512xbf16>, vector<16x512xbf16>, vector<16x512xbf16>, vector<16x512xbf16>, vector<16x512xbf16>, vector<16x512xbf16>, vector<16x512xbf16>, vector<16x512xbf16>, vector<16x512xbf16> -> vector<144x512xbf16>
    %cst_112 = arith.constant dense<0.000000e+00> : vector<8x512xf32>
    %254 = tpu.matmul %163, %253, %cst_112 {dimension_numbers = #tpu.dot_dimension_numbers<[1], [0], [0], [1], [0, 0, 1, 1], [], []>} : vector<8x144xbf16>, vector<144x512xbf16>, vector<8x512xf32> -> vector<8x512xf32>
    %255 = tpu.concatenate %157, %254 in 0 : vector<24x512xf32>, vector<8x512xf32> -> vector<32x512xf32>
    %c0_113 = arith.constant 0 : index
    %c0_114 = arith.constant 0 : index
    %256 = vector.load %arg18[%c0_113, %c0_114] : memref<32x1xf32, #tpu.memory_space<vmem>>, vector<32x1xf32>
    %c0_115 = arith.constant 0 : index
    %c0_116 = arith.constant 0 : index
    %257 = vector.load %arg19[%c0_115, %c0_116] : memref<32x1xf32, #tpu.memory_space<vmem>>, vector<32x1xf32>
    %c0_117 = arith.constant 0 : index
    %c0_118 = arith.constant 0 : index
    %258 = vector.load %arg20[%c0_117, %c0_118] : memref<16x32xbf16, #tpu.memory_space<vmem>>, vector<16x32xbf16>
    %c0_119 = arith.constant 0 : index
    %c0_120 = arith.constant 0 : index
    %259 = vector.load %arg21[%c0_119, %c0_120] : memref<512x128xf32, #tpu.memory_space<vmem>>, vector<512x128xf32>
    %cst_121 = arith.constant dense<0.000000e+00> : vector<32xf32>
    %260 = vector.multi_reduction <add>, %255, %cst_121 [1] : vector<32x512xf32> to vector<32xf32>
    %261 = vector.shape_cast %260 : vector<32xf32> to vector<32x1xf32>
    %cst_122 = arith.constant 5.120000e+02 : f32
    %262 = vector.broadcast %cst_122 : f32 to vector<32x1xf32>
    %263 = arith.divf %261, %262 : vector<32x1xf32>
    %264 = arith.mulf %255, %255 : vector<32x512xf32>
    %cst_123 = arith.constant dense<0.000000e+00> : vector<32xf32>
    %265 = vector.multi_reduction <add>, %264, %cst_123 [1] : vector<32x512xf32> to vector<32xf32>
    %266 = vector.shape_cast %265 : vector<32xf32> to vector<32x1xf32>
    %cst_124 = arith.constant 5.120000e+02 : f32
    %267 = vector.broadcast %cst_124 : f32 to vector<32x1xf32>
    %268 = arith.divf %266, %267 : vector<32x1xf32>
    %269 = arith.mulf %263, %263 : vector<32x1xf32>
    %270 = arith.subf %268, %269 : vector<32x1xf32>
    %cst_125 = arith.constant 9.99999974E-6 : f32
    %271 = vector.broadcast %cst_125 : f32 to vector<32x1xf32>
    %272 = arith.addf %270, %271 : vector<32x1xf32>
    %273 = math.rsqrt %272 : vector<32x1xf32>
    %274 = arith.mulf %256, %273 : vector<32x1xf32>
    %275 = vector.broadcast %274 : vector<32x1xf32> to vector<32x512xf32>
    %276 = arith.mulf %255, %275 : vector<32x512xf32>
    %277 = arith.mulf %263, %274 : vector<32x1xf32>
    %278 = arith.subf %257, %277 : vector<32x1xf32>
    %279 = vector.broadcast %278 : vector<32x1xf32> to vector<32x512xf32>
    %280 = arith.addf %276, %279 : vector<32x512xf32>
    %cst_126 = arith.constant 0.000000e+00 : f32
    %281 = vector.broadcast %cst_126 : f32 to vector<32x512xf32>
    %282 = arith.maximumf %280, %281 : vector<32x512xf32>
    %283 = arith.truncf %282 : vector<32x512xf32> to vector<32x512xbf16>
    %cst_127 = arith.constant dense<0.000000e+00> : vector<16x512xf32>
    %284 = tpu.matmul %258, %283, %cst_127 {dimension_numbers = #tpu.dot_dimension_numbers<[1], [0], [0], [1], [0, 0, 1, 1], [], []>} : vector<16x32xbf16>, vector<32x512xbf16>, vector<16x512xf32> -> vector<16x512xf32>
    %cst_128 = arith.constant dense<0.000000e+00> : vector<16x128xf32>
    %285 = tpu.matmul %284, %259, %cst_128 {dimension_numbers = #tpu.dot_dimension_numbers<[1], [0], [0], [1], [0, 0, 1, 1], [], []>} : vector<16x512xf32>, vector<512x128xf32>, vector<16x128xf32> -> vector<16x128xf32>
    %c0_129 = arith.constant 0 : index
    %c0_130 = arith.constant 0 : index
    %286 = vector.load %arg22[%c0_129, %c0_130] : memref<16x128xf32, #tpu.memory_space<vmem>>, vector<16x128xf32>
    tpu.vector_store %arg22[%c0_129, %c0_130], %285 {strides = array<i32>} : memref<16x128xf32, #tpu.memory_space<vmem>>, vector<16x128xf32>,
    return
  }
}

module attributes {stable_mosaic.version = 11 : i64} {
  func.func @kernel(%arg0: memref<16x128xf32, #tpu.memory_space<vmem>>, %arg1: memref<9x128xf32, #tpu.memory_space<vmem>>, %arg2: memref<16x1xf32, #tpu.memory_space<vmem>>, %arg3: memref<16x1xf32, #tpu.memory_space<vmem>>, %arg4: memref<16x16xbf16, #tpu.memory_space<vmem>>, %arg5: memref<16x1xf32, #tpu.memory_space<vmem>>, %arg6: memref<16x1xf32, #tpu.memory_space<vmem>>, %arg7: memref<8x144xbf16, #tpu.memory_space<vmem>>, %arg8: memref<24x1xf32, #tpu.memory_space<vmem>>, %arg9: memref<24x1xf32, #tpu.memory_space<vmem>>, %arg10: memref<16x24xbf16, #tpu.memory_space<vmem>>, %arg11: memref<16x1xf32, #tpu.memory_space<vmem>>, %arg12: memref<16x1xf32, #tpu.memory_space<vmem>>, %arg13: memref<8x144xbf16, #tpu.memory_space<vmem>>, %arg14: memref<32x1xf32, #tpu.memory_space<vmem>>, %arg15: memref<32x1xf32, #tpu.memory_space<vmem>>, %arg16: memref<16x32xbf16, #tpu.memory_space<vmem>>, %arg17: memref<128x32xf32, #tpu.memory_space<vmem>>, %arg18: memref<16x32xf32, #tpu.memory_space<vmem>>) attributes {dimension_semantics = [], scalar_prefetch = 0 : i64, scratch_operands = 0 : i64, tpu.core_type = #tpu.core_type<tc>} {
    %c0 = arith.constant 0 : index
    %c0_0 = arith.constant 0 : index
    %0 = vector.load %arg0[%c0, %c0_0] : memref<16x128xf32, #tpu.memory_space<vmem>>, vector<16x128xf32>
    %c0_1 = arith.constant 0 : index
    %c0_2 = arith.constant 0 : index
    %1 = vector.load %arg2[%c0_1, %c0_2] : memref<16x1xf32, #tpu.memory_space<vmem>>, vector<16x1xf32>
    %c0_3 = arith.constant 0 : index
    %c0_4 = arith.constant 0 : index
    %2 = vector.load %arg3[%c0_3, %c0_4] : memref<16x1xf32, #tpu.memory_space<vmem>>, vector<16x1xf32>
    %c0_5 = arith.constant 0 : index
    %c0_6 = arith.constant 0 : index
    %3 = vector.load %arg4[%c0_5, %c0_6] : memref<16x16xbf16, #tpu.memory_space<vmem>>, vector<16x16xbf16>
    %c0_7 = arith.constant 0 : index
    %c0_8 = arith.constant 0 : index
    %4 = vector.load %arg5[%c0_7, %c0_8] : memref<16x1xf32, #tpu.memory_space<vmem>>, vector<16x1xf32>
    %c0_9 = arith.constant 0 : index
    %c0_10 = arith.constant 0 : index
    %5 = vector.load %arg6[%c0_9, %c0_10] : memref<16x1xf32, #tpu.memory_space<vmem>>, vector<16x1xf32>
    %c0_11 = arith.constant 0 : index
    %c0_12 = arith.constant 0 : index
    %6 = vector.load %arg7[%c0_11, %c0_12] : memref<8x144xbf16, #tpu.memory_space<vmem>>, vector<8x144xbf16>
    %cst = arith.constant dense<0.000000e+00> : vector<16xf32>
    %7 = vector.multi_reduction <add>, %0, %cst [1] : vector<16x128xf32> to vector<16xf32>
    %8 = vector.shape_cast %7 : vector<16xf32> to vector<16x1xf32>
    %cst_13 = arith.constant 1.280000e+02 : f32
    %9 = vector.broadcast %cst_13 : f32 to vector<16x1xf32>
    %10 = arith.divf %8, %9 : vector<16x1xf32>
    %11 = arith.mulf %0, %0 : vector<16x128xf32>
    %cst_14 = arith.constant dense<0.000000e+00> : vector<16xf32>
    %12 = vector.multi_reduction <add>, %11, %cst_14 [1] : vector<16x128xf32> to vector<16xf32>
    %13 = vector.shape_cast %12 : vector<16xf32> to vector<16x1xf32>
    %cst_15 = arith.constant 1.280000e+02 : f32
    %14 = vector.broadcast %cst_15 : f32 to vector<16x1xf32>
    %15 = arith.divf %13, %14 : vector<16x1xf32>
    %16 = arith.mulf %10, %10 : vector<16x1xf32>
    %17 = arith.subf %15, %16 : vector<16x1xf32>
    %cst_16 = arith.constant 9.99999974E-6 : f32
    %18 = vector.broadcast %cst_16 : f32 to vector<16x1xf32>
    %19 = arith.addf %17, %18 : vector<16x1xf32>
    %20 = math.rsqrt %19 : vector<16x1xf32>
    %21 = arith.mulf %1, %20 : vector<16x1xf32>
    %22 = vector.broadcast %21 : vector<16x1xf32> to vector<16x128xf32>
    %23 = arith.mulf %0, %22 : vector<16x128xf32>
    %24 = arith.mulf %10, %21 : vector<16x1xf32>
    %25 = arith.subf %2, %24 : vector<16x1xf32>
    %26 = vector.broadcast %25 : vector<16x1xf32> to vector<16x128xf32>
    %27 = arith.addf %23, %26 : vector<16x128xf32>
    %cst_17 = arith.constant 0.000000e+00 : f32
    %28 = vector.broadcast %cst_17 : f32 to vector<16x128xf32>
    %29 = arith.maximumf %27, %28 : vector<16x128xf32>
    %30 = arith.truncf %29 : vector<16x128xf32> to vector<16x128xbf16>
    %cst_18 = arith.constant dense<0.000000e+00> : vector<16x128xf32>
    %31 = tpu.matmul %3, %30, %cst_18 {dimension_numbers = #tpu.dot_dimension_numbers<[1], [0], [0], [1], [0, 0, 1, 1], [], []>} : vector<16x16xbf16>, vector<16x128xbf16>, vector<16x128xf32> -> vector<16x128xf32>
    %cst_19 = arith.constant dense<0.000000e+00> : vector<16xf32>
    %32 = vector.multi_reduction <add>, %31, %cst_19 [1] : vector<16x128xf32> to vector<16xf32>
    %33 = vector.shape_cast %32 : vector<16xf32> to vector<16x1xf32>
    %cst_20 = arith.constant 1.280000e+02 : f32
    %34 = vector.broadcast %cst_20 : f32 to vector<16x1xf32>
    %35 = arith.divf %33, %34 : vector<16x1xf32>
    %36 = arith.mulf %31, %31 : vector<16x128xf32>
    %cst_21 = arith.constant dense<0.000000e+00> : vector<16xf32>
    %37 = vector.multi_reduction <add>, %36, %cst_21 [1] : vector<16x128xf32> to vector<16xf32>
    %38 = vector.shape_cast %37 : vector<16xf32> to vector<16x1xf32>
    %cst_22 = arith.constant 1.280000e+02 : f32
    %39 = vector.broadcast %cst_22 : f32 to vector<16x1xf32>
    %40 = arith.divf %38, %39 : vector<16x1xf32>
    %41 = arith.mulf %35, %35 : vector<16x1xf32>
    %42 = arith.subf %40, %41 : vector<16x1xf32>
    %cst_23 = arith.constant 9.99999974E-6 : f32
    %43 = vector.broadcast %cst_23 : f32 to vector<16x1xf32>
    %44 = arith.addf %42, %43 : vector<16x1xf32>
    %45 = math.rsqrt %44 : vector<16x1xf32>
    %46 = arith.mulf %4, %45 : vector<16x1xf32>
    %47 = vector.broadcast %46 : vector<16x1xf32> to vector<16x128xf32>
    %48 = arith.mulf %31, %47 : vector<16x128xf32>
    %49 = arith.mulf %35, %46 : vector<16x1xf32>
    %50 = arith.subf %5, %49 : vector<16x1xf32>
    %51 = vector.broadcast %50 : vector<16x1xf32> to vector<16x128xf32>
    %52 = arith.addf %48, %51 : vector<16x128xf32>
    %cst_24 = arith.constant 0.000000e+00 : f32
    %53 = vector.broadcast %cst_24 : f32 to vector<16x128xf32>
    %54 = arith.maximumf %52, %53 : vector<16x128xf32>
    %c9_i32 = arith.constant 9 : i32
    %55 = tpu.dynamic_rotate %54 by %c9_i32 dim 1 : vector<16x128xf32>, i32 -> vector<16x128xf32>
    %c0_25 = arith.constant 0 : index
    %c0_26 = arith.constant 0 : index
    %56 = vector.load %arg1[%c0_25, %c0_26] : memref<9x128xf32, #tpu.memory_space<vmem>>, vector<1x128xf32>
    %57 = vector.broadcast %56 : vector<1x128xf32> to vector<16x128xf32>
    %58 = arith.mulf %55, %57 : vector<16x128xf32>
    %59 = arith.truncf %58 : vector<16x128xf32> to vector<16x128xbf16>
    %c8_i32 = arith.constant 8 : i32
    %60 = tpu.dynamic_rotate %54 by %c8_i32 dim 1 : vector<16x128xf32>, i32 -> vector<16x128xf32>
    %c1 = arith.constant 1 : index
    %c0_27 = arith.constant 0 : index
    %61 = vector.load %arg1[%c1, %c0_27] : memref<9x128xf32, #tpu.memory_space<vmem>>, vector<1x128xf32>
    %62 = vector.broadcast %61 : vector<1x128xf32> to vector<16x128xf32>
    %63 = arith.mulf %60, %62 : vector<16x128xf32>
    %64 = arith.truncf %63 : vector<16x128xf32> to vector<16x128xbf16>
    %c7_i32 = arith.constant 7 : i32
    %65 = tpu.dynamic_rotate %54 by %c7_i32 dim 1 : vector<16x128xf32>, i32 -> vector<16x128xf32>
    %c2 = arith.constant 2 : index
    %c0_28 = arith.constant 0 : index
    %66 = vector.load %arg1[%c2, %c0_28] : memref<9x128xf32, #tpu.memory_space<vmem>>, vector<1x128xf32>
    %67 = vector.broadcast %66 : vector<1x128xf32> to vector<16x128xf32>
    %68 = arith.mulf %65, %67 : vector<16x128xf32>
    %69 = arith.truncf %68 : vector<16x128xf32> to vector<16x128xbf16>
    %c1_i32 = arith.constant 1 : i32
    %70 = tpu.dynamic_rotate %54 by %c1_i32 dim 1 : vector<16x128xf32>, i32 -> vector<16x128xf32>
    %c3 = arith.constant 3 : index
    %c0_29 = arith.constant 0 : index
    %71 = vector.load %arg1[%c3, %c0_29] : memref<9x128xf32, #tpu.memory_space<vmem>>, vector<1x128xf32>
    %72 = vector.broadcast %71 : vector<1x128xf32> to vector<16x128xf32>
    %73 = arith.mulf %70, %72 : vector<16x128xf32>
    %74 = arith.truncf %73 : vector<16x128xf32> to vector<16x128xbf16>
    %75 = arith.truncf %54 : vector<16x128xf32> to vector<16x128xbf16>
    %c127_i32 = arith.constant 127 : i32
    %76 = tpu.dynamic_rotate %54 by %c127_i32 dim 1 : vector<16x128xf32>, i32 -> vector<16x128xf32>
    %c5 = arith.constant 5 : index
    %c0_30 = arith.constant 0 : index
    %77 = vector.load %arg1[%c5, %c0_30] : memref<9x128xf32, #tpu.memory_space<vmem>>, vector<1x128xf32>
    %78 = vector.broadcast %77 : vector<1x128xf32> to vector<16x128xf32>
    %79 = arith.mulf %76, %78 : vector<16x128xf32>
    %80 = arith.truncf %79 : vector<16x128xf32> to vector<16x128xbf16>
    %c121_i32 = arith.constant 121 : i32
    %81 = tpu.dynamic_rotate %54 by %c121_i32 dim 1 : vector<16x128xf32>, i32 -> vector<16x128xf32>
    %c6 = arith.constant 6 : index
    %c0_31 = arith.constant 0 : index
    %82 = vector.load %arg1[%c6, %c0_31] : memref<9x128xf32, #tpu.memory_space<vmem>>, vector<1x128xf32>
    %83 = vector.broadcast %82 : vector<1x128xf32> to vector<16x128xf32>
    %84 = arith.mulf %81, %83 : vector<16x128xf32>
    %85 = arith.truncf %84 : vector<16x128xf32> to vector<16x128xbf16>
    %c120_i32 = arith.constant 120 : i32
    %86 = tpu.dynamic_rotate %54 by %c120_i32 dim 1 : vector<16x128xf32>, i32 -> vector<16x128xf32>
    %c7 = arith.constant 7 : index
    %c0_32 = arith.constant 0 : index
    %87 = vector.load %arg1[%c7, %c0_32] : memref<9x128xf32, #tpu.memory_space<vmem>>, vector<1x128xf32>
    %88 = vector.broadcast %87 : vector<1x128xf32> to vector<16x128xf32>
    %89 = arith.mulf %86, %88 : vector<16x128xf32>
    %90 = arith.truncf %89 : vector<16x128xf32> to vector<16x128xbf16>
    %c119_i32 = arith.constant 119 : i32
    %91 = tpu.dynamic_rotate %54 by %c119_i32 dim 1 : vector<16x128xf32>, i32 -> vector<16x128xf32>
    %c8 = arith.constant 8 : index
    %c0_33 = arith.constant 0 : index
    %92 = vector.load %arg1[%c8, %c0_33] : memref<9x128xf32, #tpu.memory_space<vmem>>, vector<1x128xf32>
    %93 = vector.broadcast %92 : vector<1x128xf32> to vector<16x128xf32>
    %94 = arith.mulf %91, %93 : vector<16x128xf32>
    %95 = arith.truncf %94 : vector<16x128xf32> to vector<16x128xbf16>
    %96 = tpu.concatenate %59, %64, %69, %74, %75, %80, %85, %90, %95 in 0 : vector<16x128xbf16>, vector<16x128xbf16>, vector<16x128xbf16>, vector<16x128xbf16>, vector<16x128xbf16>, vector<16x128xbf16>, vector<16x128xbf16>, vector<16x128xbf16>, vector<16x128xbf16> -> vector<144x128xbf16>
    %cst_34 = arith.constant dense<0.000000e+00> : vector<8x128xf32>
    %97 = tpu.matmul %6, %96, %cst_34 {dimension_numbers = #tpu.dot_dimension_numbers<[1], [0], [0], [1], [0, 0, 1, 1], [], []>} : vector<8x144xbf16>, vector<144x128xbf16>, vector<8x128xf32> -> vector<8x128xf32>
    %98 = tpu.concatenate %0, %97 in 0 : vector<16x128xf32>, vector<8x128xf32> -> vector<24x128xf32>
    %c0_35 = arith.constant 0 : index
    %c0_36 = arith.constant 0 : index
    %99 = vector.load %arg8[%c0_35, %c0_36] : memref<24x1xf32, #tpu.memory_space<vmem>>, vector<24x1xf32>
    %c0_37 = arith.constant 0 : index
    %c0_38 = arith.constant 0 : index
    %100 = vector.load %arg9[%c0_37, %c0_38] : memref<24x1xf32, #tpu.memory_space<vmem>>, vector<24x1xf32>
    %c0_39 = arith.constant 0 : index
    %c0_40 = arith.constant 0 : index
    %101 = vector.load %arg10[%c0_39, %c0_40] : memref<16x24xbf16, #tpu.memory_space<vmem>>, vector<16x24xbf16>
    %c0_41 = arith.constant 0 : index
    %c0_42 = arith.constant 0 : index
    %102 = vector.load %arg11[%c0_41, %c0_42] : memref<16x1xf32, #tpu.memory_space<vmem>>, vector<16x1xf32>
    %c0_43 = arith.constant 0 : index
    %c0_44 = arith.constant 0 : index
    %103 = vector.load %arg12[%c0_43, %c0_44] : memref<16x1xf32, #tpu.memory_space<vmem>>, vector<16x1xf32>
    %c0_45 = arith.constant 0 : index
    %c0_46 = arith.constant 0 : index
    %104 = vector.load %arg13[%c0_45, %c0_46] : memref<8x144xbf16, #tpu.memory_space<vmem>>, vector<8x144xbf16>
    %cst_47 = arith.constant dense<0.000000e+00> : vector<24xf32>
    %105 = vector.multi_reduction <add>, %98, %cst_47 [1] : vector<24x128xf32> to vector<24xf32>
    %106 = vector.shape_cast %105 : vector<24xf32> to vector<24x1xf32>
    %cst_48 = arith.constant 1.280000e+02 : f32
    %107 = vector.broadcast %cst_48 : f32 to vector<24x1xf32>
    %108 = arith.divf %106, %107 : vector<24x1xf32>
    %109 = arith.mulf %98, %98 : vector<24x128xf32>
    %cst_49 = arith.constant dense<0.000000e+00> : vector<24xf32>
    %110 = vector.multi_reduction <add>, %109, %cst_49 [1] : vector<24x128xf32> to vector<24xf32>
    %111 = vector.shape_cast %110 : vector<24xf32> to vector<24x1xf32>
    %cst_50 = arith.constant 1.280000e+02 : f32
    %112 = vector.broadcast %cst_50 : f32 to vector<24x1xf32>
    %113 = arith.divf %111, %112 : vector<24x1xf32>
    %114 = arith.mulf %108, %108 : vector<24x1xf32>
    %115 = arith.subf %113, %114 : vector<24x1xf32>
    %cst_51 = arith.constant 9.99999974E-6 : f32
    %116 = vector.broadcast %cst_51 : f32 to vector<24x1xf32>
    %117 = arith.addf %115, %116 : vector<24x1xf32>
    %118 = math.rsqrt %117 : vector<24x1xf32>
    %119 = arith.mulf %99, %118 : vector<24x1xf32>
    %120 = vector.broadcast %119 : vector<24x1xf32> to vector<24x128xf32>
    %121 = arith.mulf %98, %120 : vector<24x128xf32>
    %122 = arith.mulf %108, %119 : vector<24x1xf32>
    %123 = arith.subf %100, %122 : vector<24x1xf32>
    %124 = vector.broadcast %123 : vector<24x1xf32> to vector<24x128xf32>
    %125 = arith.addf %121, %124 : vector<24x128xf32>
    %cst_52 = arith.constant 0.000000e+00 : f32
    %126 = vector.broadcast %cst_52 : f32 to vector<24x128xf32>
    %127 = arith.maximumf %125, %126 : vector<24x128xf32>
    %128 = arith.truncf %127 : vector<24x128xf32> to vector<24x128xbf16>
    %cst_53 = arith.constant dense<0.000000e+00> : vector<16x128xf32>
    %129 = tpu.matmul %101, %128, %cst_53 {dimension_numbers = #tpu.dot_dimension_numbers<[1], [0], [0], [1], [0, 0, 1, 1], [], []>} : vector<16x24xbf16>, vector<24x128xbf16>, vector<16x128xf32> -> vector<16x128xf32>
    %cst_54 = arith.constant dense<0.000000e+00> : vector<16xf32>
    %130 = vector.multi_reduction <add>, %129, %cst_54 [1] : vector<16x128xf32> to vector<16xf32>
    %131 = vector.shape_cast %130 : vector<16xf32> to vector<16x1xf32>
    %cst_55 = arith.constant 1.280000e+02 : f32
    %132 = vector.broadcast %cst_55 : f32 to vector<16x1xf32>
    %133 = arith.divf %131, %132 : vector<16x1xf32>
    %134 = arith.mulf %129, %129 : vector<16x128xf32>
    %cst_56 = arith.constant dense<0.000000e+00> : vector<16xf32>
    %135 = vector.multi_reduction <add>, %134, %cst_56 [1] : vector<16x128xf32> to vector<16xf32>
    %136 = vector.shape_cast %135 : vector<16xf32> to vector<16x1xf32>
    %cst_57 = arith.constant 1.280000e+02 : f32
    %137 = vector.broadcast %cst_57 : f32 to vector<16x1xf32>
    %138 = arith.divf %136, %137 : vector<16x1xf32>
    %139 = arith.mulf %133, %133 : vector<16x1xf32>
    %140 = arith.subf %138, %139 : vector<16x1xf32>
    %cst_58 = arith.constant 9.99999974E-6 : f32
    %141 = vector.broadcast %cst_58 : f32 to vector<16x1xf32>
    %142 = arith.addf %140, %141 : vector<16x1xf32>
    %143 = math.rsqrt %142 : vector<16x1xf32>
    %144 = arith.mulf %102, %143 : vector<16x1xf32>
    %145 = vector.broadcast %144 : vector<16x1xf32> to vector<16x128xf32>
    %146 = arith.mulf %129, %145 : vector<16x128xf32>
    %147 = arith.mulf %133, %144 : vector<16x1xf32>
    %148 = arith.subf %103, %147 : vector<16x1xf32>
    %149 = vector.broadcast %148 : vector<16x1xf32> to vector<16x128xf32>
    %150 = arith.addf %146, %149 : vector<16x128xf32>
    %cst_59 = arith.constant 0.000000e+00 : f32
    %151 = vector.broadcast %cst_59 : f32 to vector<16x128xf32>
    %152 = arith.maximumf %150, %151 : vector<16x128xf32>
    %c9_i32_60 = arith.constant 9 : i32
    %153 = tpu.dynamic_rotate %152 by %c9_i32_60 dim 1 : vector<16x128xf32>, i32 -> vector<16x128xf32>
    %c0_61 = arith.constant 0 : index
    %c0_62 = arith.constant 0 : index
    %154 = vector.load %arg1[%c0_61, %c0_62] : memref<9x128xf32, #tpu.memory_space<vmem>>, vector<1x128xf32>
    %155 = vector.broadcast %154 : vector<1x128xf32> to vector<16x128xf32>
    %156 = arith.mulf %153, %155 : vector<16x128xf32>
    %157 = arith.truncf %156 : vector<16x128xf32> to vector<16x128xbf16>
    %c8_i32_63 = arith.constant 8 : i32
    %158 = tpu.dynamic_rotate %152 by %c8_i32_63 dim 1 : vector<16x128xf32>, i32 -> vector<16x128xf32>
    %c1_64 = arith.constant 1 : index
    %c0_65 = arith.constant 0 : index
    %159 = vector.load %arg1[%c1_64, %c0_65] : memref<9x128xf32, #tpu.memory_space<vmem>>, vector<1x128xf32>
    %160 = vector.broadcast %159 : vector<1x128xf32> to vector<16x128xf32>
    %161 = arith.mulf %158, %160 : vector<16x128xf32>
    %162 = arith.truncf %161 : vector<16x128xf32> to vector<16x128xbf16>
    %c7_i32_66 = arith.constant 7 : i32
    %163 = tpu.dynamic_rotate %152 by %c7_i32_66 dim 1 : vector<16x128xf32>, i32 -> vector<16x128xf32>
    %c2_67 = arith.constant 2 : index
    %c0_68 = arith.constant 0 : index
    %164 = vector.load %arg1[%c2_67, %c0_68] : memref<9x128xf32, #tpu.memory_space<vmem>>, vector<1x128xf32>
    %165 = vector.broadcast %164 : vector<1x128xf32> to vector<16x128xf32>
    %166 = arith.mulf %163, %165 : vector<16x128xf32>
    %167 = arith.truncf %166 : vector<16x128xf32> to vector<16x128xbf16>
    %c1_i32_69 = arith.constant 1 : i32
    %168 = tpu.dynamic_rotate %152 by %c1_i32_69 dim 1 : vector<16x128xf32>, i32 -> vector<16x128xf32>
    %c3_70 = arith.constant 3 : index
    %c0_71 = arith.constant 0 : index
    %169 = vector.load %arg1[%c3_70, %c0_71] : memref<9x128xf32, #tpu.memory_space<vmem>>, vector<1x128xf32>
    %170 = vector.broadcast %169 : vector<1x128xf32> to vector<16x128xf32>
    %171 = arith.mulf %168, %170 : vector<16x128xf32>
    %172 = arith.truncf %171 : vector<16x128xf32> to vector<16x128xbf16>
    %173 = arith.truncf %152 : vector<16x128xf32> to vector<16x128xbf16>
    %c127_i32_72 = arith.constant 127 : i32
    %174 = tpu.dynamic_rotate %152 by %c127_i32_72 dim 1 : vector<16x128xf32>, i32 -> vector<16x128xf32>
    %c5_73 = arith.constant 5 : index
    %c0_74 = arith.constant 0 : index
    %175 = vector.load %arg1[%c5_73, %c0_74] : memref<9x128xf32, #tpu.memory_space<vmem>>, vector<1x128xf32>
    %176 = vector.broadcast %175 : vector<1x128xf32> to vector<16x128xf32>
    %177 = arith.mulf %174, %176 : vector<16x128xf32>
    %178 = arith.truncf %177 : vector<16x128xf32> to vector<16x128xbf16>
    %c121_i32_75 = arith.constant 121 : i32
    %179 = tpu.dynamic_rotate %152 by %c121_i32_75 dim 1 : vector<16x128xf32>, i32 -> vector<16x128xf32>
    %c6_76 = arith.constant 6 : index
    %c0_77 = arith.constant 0 : index
    %180 = vector.load %arg1[%c6_76, %c0_77] : memref<9x128xf32, #tpu.memory_space<vmem>>, vector<1x128xf32>
    %181 = vector.broadcast %180 : vector<1x128xf32> to vector<16x128xf32>
    %182 = arith.mulf %179, %181 : vector<16x128xf32>
    %183 = arith.truncf %182 : vector<16x128xf32> to vector<16x128xbf16>
    %c120_i32_78 = arith.constant 120 : i32
    %184 = tpu.dynamic_rotate %152 by %c120_i32_78 dim 1 : vector<16x128xf32>, i32 -> vector<16x128xf32>
    %c7_79 = arith.constant 7 : index
    %c0_80 = arith.constant 0 : index
    %185 = vector.load %arg1[%c7_79, %c0_80] : memref<9x128xf32, #tpu.memory_space<vmem>>, vector<1x128xf32>
    %186 = vector.broadcast %185 : vector<1x128xf32> to vector<16x128xf32>
    %187 = arith.mulf %184, %186 : vector<16x128xf32>
    %188 = arith.truncf %187 : vector<16x128xf32> to vector<16x128xbf16>
    %c119_i32_81 = arith.constant 119 : i32
    %189 = tpu.dynamic_rotate %152 by %c119_i32_81 dim 1 : vector<16x128xf32>, i32 -> vector<16x128xf32>
    %c8_82 = arith.constant 8 : index
    %c0_83 = arith.constant 0 : index
    %190 = vector.load %arg1[%c8_82, %c0_83] : memref<9x128xf32, #tpu.memory_space<vmem>>, vector<1x128xf32>
    %191 = vector.broadcast %190 : vector<1x128xf32> to vector<16x128xf32>
    %192 = arith.mulf %189, %191 : vector<16x128xf32>
    %193 = arith.truncf %192 : vector<16x128xf32> to vector<16x128xbf16>
    %194 = tpu.concatenate %157, %162, %167, %172, %173, %178, %183, %188, %193 in 0 : vector<16x128xbf16>, vector<16x128xbf16>, vector<16x128xbf16>, vector<16x128xbf16>, vector<16x128xbf16>, vector<16x128xbf16>, vector<16x128xbf16>, vector<16x128xbf16>, vector<16x128xbf16> -> vector<144x128xbf16>
    %cst_84 = arith.constant dense<0.000000e+00> : vector<8x128xf32>
    %195 = tpu.matmul %104, %194, %cst_84 {dimension_numbers = #tpu.dot_dimension_numbers<[1], [0], [0], [1], [0, 0, 1, 1], [], []>} : vector<8x144xbf16>, vector<144x128xbf16>, vector<8x128xf32> -> vector<8x128xf32>
    %196 = tpu.concatenate %98, %195 in 0 : vector<24x128xf32>, vector<8x128xf32> -> vector<32x128xf32>
    %c0_85 = arith.constant 0 : index
    %c0_86 = arith.constant 0 : index
    %197 = vector.load %arg14[%c0_85, %c0_86] : memref<32x1xf32, #tpu.memory_space<vmem>>, vector<32x1xf32>
    %c0_87 = arith.constant 0 : index
    %c0_88 = arith.constant 0 : index
    %198 = vector.load %arg15[%c0_87, %c0_88] : memref<32x1xf32, #tpu.memory_space<vmem>>, vector<32x1xf32>
    %c0_89 = arith.constant 0 : index
    %c0_90 = arith.constant 0 : index
    %199 = vector.load %arg16[%c0_89, %c0_90] : memref<16x32xbf16, #tpu.memory_space<vmem>>, vector<16x32xbf16>
    %c0_91 = arith.constant 0 : index
    %c0_92 = arith.constant 0 : index
    %200 = vector.load %arg17[%c0_91, %c0_92] : memref<128x32xf32, #tpu.memory_space<vmem>>, vector<128x32xf32>
    %cst_93 = arith.constant dense<0.000000e+00> : vector<32xf32>
    %201 = vector.multi_reduction <add>, %196, %cst_93 [1] : vector<32x128xf32> to vector<32xf32>
    %202 = vector.shape_cast %201 : vector<32xf32> to vector<32x1xf32>
    %cst_94 = arith.constant 1.280000e+02 : f32
    %203 = vector.broadcast %cst_94 : f32 to vector<32x1xf32>
    %204 = arith.divf %202, %203 : vector<32x1xf32>
    %205 = arith.mulf %196, %196 : vector<32x128xf32>
    %cst_95 = arith.constant dense<0.000000e+00> : vector<32xf32>
    %206 = vector.multi_reduction <add>, %205, %cst_95 [1] : vector<32x128xf32> to vector<32xf32>
    %207 = vector.shape_cast %206 : vector<32xf32> to vector<32x1xf32>
    %cst_96 = arith.constant 1.280000e+02 : f32
    %208 = vector.broadcast %cst_96 : f32 to vector<32x1xf32>
    %209 = arith.divf %207, %208 : vector<32x1xf32>
    %210 = arith.mulf %204, %204 : vector<32x1xf32>
    %211 = arith.subf %209, %210 : vector<32x1xf32>
    %cst_97 = arith.constant 9.99999974E-6 : f32
    %212 = vector.broadcast %cst_97 : f32 to vector<32x1xf32>
    %213 = arith.addf %211, %212 : vector<32x1xf32>
    %214 = math.rsqrt %213 : vector<32x1xf32>
    %215 = arith.mulf %197, %214 : vector<32x1xf32>
    %216 = vector.broadcast %215 : vector<32x1xf32> to vector<32x128xf32>
    %217 = arith.mulf %196, %216 : vector<32x128xf32>
    %218 = arith.mulf %204, %215 : vector<32x1xf32>
    %219 = arith.subf %198, %218 : vector<32x1xf32>
    %220 = vector.broadcast %219 : vector<32x1xf32> to vector<32x128xf32>
    %221 = arith.addf %217, %220 : vector<32x128xf32>
    %cst_98 = arith.constant 0.000000e+00 : f32
    %222 = vector.broadcast %cst_98 : f32 to vector<32x128xf32>
    %223 = arith.maximumf %221, %222 : vector<32x128xf32>
    %224 = arith.truncf %223 : vector<32x128xf32> to vector<32x128xbf16>
    %cst_99 = arith.constant dense<0.000000e+00> : vector<16x128xf32>
    %225 = tpu.matmul %199, %224, %cst_99 {dimension_numbers = #tpu.dot_dimension_numbers<[1], [0], [0], [1], [0, 0, 1, 1], [], []>} : vector<16x32xbf16>, vector<32x128xbf16>, vector<16x128xf32> -> vector<16x128xf32>
    %cst_100 = arith.constant dense<0.000000e+00> : vector<16x32xf32>
    %226 = tpu.matmul %225, %200, %cst_100 {dimension_numbers = #tpu.dot_dimension_numbers<[1], [0], [0], [1], [0, 0, 1, 1], [], []>} : vector<16x128xf32>, vector<128x32xf32>, vector<16x32xf32> -> vector<16x32xf32>
    %c0_101 = arith.constant 0 : index
    %c0_102 = arith.constant 0 : index
    %227 = vector.load %arg18[%c0_101, %c0_102] : memref<16x32xf32, #tpu.memory_space<vmem>>, vector<16x32xf32>
    tpu.vector_store %arg18[%c0_101, %c0_102], %226 {strides = array<i32>} : memref<16x32xf32, #tpu.memory_space<vmem>>, vector<16x32xf32>,
    return
  }
}

module attributes {stable_mosaic.version = 11 : i64} {
  func.func @kernel(%arg0: memref<16x32xf32, #tpu.memory_space<vmem>>, %arg1: memref<9x32x32xf32, #tpu.memory_space<vmem>>, %arg2: memref<16x1xf32, #tpu.memory_space<vmem>>, %arg3: memref<16x1xf32, #tpu.memory_space<vmem>>, %arg4: memref<16x16xbf16, #tpu.memory_space<vmem>>, %arg5: memref<16x1xf32, #tpu.memory_space<vmem>>, %arg6: memref<16x1xf32, #tpu.memory_space<vmem>>, %arg7: memref<8x144xbf16, #tpu.memory_space<vmem>>, %arg8: memref<24x1xf32, #tpu.memory_space<vmem>>, %arg9: memref<24x1xf32, #tpu.memory_space<vmem>>, %arg10: memref<16x24xbf16, #tpu.memory_space<vmem>>, %arg11: memref<16x1xf32, #tpu.memory_space<vmem>>, %arg12: memref<16x1xf32, #tpu.memory_space<vmem>>, %arg13: memref<8x144xbf16, #tpu.memory_space<vmem>>, %arg14: memref<32x1xf32, #tpu.memory_space<vmem>>, %arg15: memref<32x1xf32, #tpu.memory_space<vmem>>, %arg16: memref<16x32xbf16, #tpu.memory_space<vmem>>, %arg17: memref<32x8xf32, #tpu.memory_space<vmem>>, %arg18: memref<9x8x8xf32, #tpu.memory_space<vmem>>, %arg19: memref<16x1xf32, #tpu.memory_space<vmem>>, %arg20: memref<16x1xf32, #tpu.memory_space<vmem>>, %arg21: memref<16x16xbf16, #tpu.memory_space<vmem>>, %arg22: memref<16x1xf32, #tpu.memory_space<vmem>>, %arg23: memref<16x1xf32, #tpu.memory_space<vmem>>, %arg24: memref<8x144xbf16, #tpu.memory_space<vmem>>, %arg25: memref<24x1xf32, #tpu.memory_space<vmem>>, %arg26: memref<24x1xf32, #tpu.memory_space<vmem>>, %arg27: memref<16x24xbf16, #tpu.memory_space<vmem>>, %arg28: memref<16x1xf32, #tpu.memory_space<vmem>>, %arg29: memref<16x1xf32, #tpu.memory_space<vmem>>, %arg30: memref<8x144xbf16, #tpu.memory_space<vmem>>, %arg31: memref<32x1xf32, #tpu.memory_space<vmem>>, %arg32: memref<32x1xf32, #tpu.memory_space<vmem>>, %arg33: memref<8x2xf32, #tpu.memory_space<vmem>>, %arg34: memref<10x32xf32, #tpu.memory_space<vmem>>, %arg35: memref<10x1xf32, #tpu.memory_space<vmem>>, %arg36: memref<10x2xf32, #tpu.memory_space<vmem>>) attributes {dimension_semantics = [], scalar_prefetch = 0 : i64, scratch_operands = 0 : i64, tpu.core_type = #tpu.core_type<tc>} {
    %c0 = arith.constant 0 : index
    %c0_0 = arith.constant 0 : index
    %0 = vector.load %arg0[%c0, %c0_0] : memref<16x32xf32, #tpu.memory_space<vmem>>, vector<16x32xf32>
    %c0_1 = arith.constant 0 : index
    %c0_2 = arith.constant 0 : index
    %1 = vector.load %arg2[%c0_1, %c0_2] : memref<16x1xf32, #tpu.memory_space<vmem>>, vector<16x1xf32>
    %c0_3 = arith.constant 0 : index
    %c0_4 = arith.constant 0 : index
    %2 = vector.load %arg3[%c0_3, %c0_4] : memref<16x1xf32, #tpu.memory_space<vmem>>, vector<16x1xf32>
    %c0_5 = arith.constant 0 : index
    %c0_6 = arith.constant 0 : index
    %3 = vector.load %arg4[%c0_5, %c0_6] : memref<16x16xbf16, #tpu.memory_space<vmem>>, vector<16x16xbf16>
    %c0_7 = arith.constant 0 : index
    %c0_8 = arith.constant 0 : index
    %4 = vector.load %arg5[%c0_7, %c0_8] : memref<16x1xf32, #tpu.memory_space<vmem>>, vector<16x1xf32>
    %c0_9 = arith.constant 0 : index
    %c0_10 = arith.constant 0 : index
    %5 = vector.load %arg6[%c0_9, %c0_10] : memref<16x1xf32, #tpu.memory_space<vmem>>, vector<16x1xf32>
    %c0_11 = arith.constant 0 : index
    %c0_12 = arith.constant 0 : index
    %6 = vector.load %arg7[%c0_11, %c0_12] : memref<8x144xbf16, #tpu.memory_space<vmem>>, vector<8x144xbf16>
    %cst = arith.constant dense<0.000000e+00> : vector<16xf32>
    %7 = vector.multi_reduction <add>, %0, %cst [1] : vector<16x32xf32> to vector<16xf32>
    %8 = vector.shape_cast %7 : vector<16xf32> to vector<16x1xf32>
    %cst_13 = arith.constant 3.200000e+01 : f32
    %9 = vector.broadcast %cst_13 : f32 to vector<16x1xf32>
    %10 = arith.divf %8, %9 : vector<16x1xf32>
    %11 = arith.mulf %0, %0 : vector<16x32xf32>
    %cst_14 = arith.constant dense<0.000000e+00> : vector<16xf32>
    %12 = vector.multi_reduction <add>, %11, %cst_14 [1] : vector<16x32xf32> to vector<16xf32>
    %13 = vector.shape_cast %12 : vector<16xf32> to vector<16x1xf32>
    %cst_15 = arith.constant 3.200000e+01 : f32
    %14 = vector.broadcast %cst_15 : f32 to vector<16x1xf32>
    %15 = arith.divf %13, %14 : vector<16x1xf32>
    %16 = arith.mulf %10, %10 : vector<16x1xf32>
    %17 = arith.subf %15, %16 : vector<16x1xf32>
    %cst_16 = arith.constant 9.99999974E-6 : f32
    %18 = vector.broadcast %cst_16 : f32 to vector<16x1xf32>
    %19 = arith.addf %17, %18 : vector<16x1xf32>
    %20 = math.rsqrt %19 : vector<16x1xf32>
    %21 = arith.mulf %1, %20 : vector<16x1xf32>
    %22 = vector.broadcast %21 : vector<16x1xf32> to vector<16x32xf32>
    %23 = arith.mulf %0, %22 : vector<16x32xf32>
    %24 = arith.mulf %10, %21 : vector<16x1xf32>
    %25 = arith.subf %2, %24 : vector<16x1xf32>
    %26 = vector.broadcast %25 : vector<16x1xf32> to vector<16x32xf32>
    %27 = arith.addf %23, %26 : vector<16x32xf32>
    %cst_17 = arith.constant 0.000000e+00 : f32
    %28 = vector.broadcast %cst_17 : f32 to vector<16x32xf32>
    %29 = arith.maximumf %27, %28 : vector<16x32xf32>
    %30 = arith.truncf %29 : vector<16x32xf32> to vector<16x32xbf16>
    %cst_18 = arith.constant dense<0.000000e+00> : vector<16x32xf32>
    %31 = tpu.matmul %3, %30, %cst_18 {dimension_numbers = #tpu.dot_dimension_numbers<[1], [0], [0], [1], [0, 0, 1, 1], [], []>} : vector<16x16xbf16>, vector<16x32xbf16>, vector<16x32xf32> -> vector<16x32xf32>
    %cst_19 = arith.constant dense<0.000000e+00> : vector<16xf32>
    %32 = vector.multi_reduction <add>, %31, %cst_19 [1] : vector<16x32xf32> to vector<16xf32>
    %33 = vector.shape_cast %32 : vector<16xf32> to vector<16x1xf32>
    %cst_20 = arith.constant 3.200000e+01 : f32
    %34 = vector.broadcast %cst_20 : f32 to vector<16x1xf32>
    %35 = arith.divf %33, %34 : vector<16x1xf32>
    %36 = arith.mulf %31, %31 : vector<16x32xf32>
    %cst_21 = arith.constant dense<0.000000e+00> : vector<16xf32>
    %37 = vector.multi_reduction <add>, %36, %cst_21 [1] : vector<16x32xf32> to vector<16xf32>
    %38 = vector.shape_cast %37 : vector<16xf32> to vector<16x1xf32>
    %cst_22 = arith.constant 3.200000e+01 : f32
    %39 = vector.broadcast %cst_22 : f32 to vector<16x1xf32>
    %40 = arith.divf %38, %39 : vector<16x1xf32>
    %41 = arith.mulf %35, %35 : vector<16x1xf32>
    %42 = arith.subf %40, %41 : vector<16x1xf32>
    %cst_23 = arith.constant 9.99999974E-6 : f32
    %43 = vector.broadcast %cst_23 : f32 to vector<16x1xf32>
    %44 = arith.addf %42, %43 : vector<16x1xf32>
    %45 = math.rsqrt %44 : vector<16x1xf32>
    %46 = arith.mulf %4, %45 : vector<16x1xf32>
    %47 = vector.broadcast %46 : vector<16x1xf32> to vector<16x32xf32>
    %48 = arith.mulf %31, %47 : vector<16x32xf32>
    %49 = arith.mulf %35, %46 : vector<16x1xf32>
    %50 = arith.subf %5, %49 : vector<16x1xf32>
    %51 = vector.broadcast %50 : vector<16x1xf32> to vector<16x32xf32>
    %52 = arith.addf %48, %51 : vector<16x32xf32>
    %cst_24 = arith.constant 0.000000e+00 : f32
    %53 = vector.broadcast %cst_24 : f32 to vector<16x32xf32>
    %54 = arith.maximumf %52, %53 : vector<16x32xf32>
    %c0_25 = arith.constant 0 : index
    %c0_26 = arith.constant 0 : index
    %c0_27 = arith.constant 0 : index
    %55 = vector.load %arg1[%c0_25, %c0_26, %c0_27] : memref<9x32x32xf32, #tpu.memory_space<vmem>>, vector<1x32x32xf32>
    %56 = vector.shape_cast %55 : vector<1x32x32xf32> to vector<32x32xf32>
    %cst_28 = arith.constant dense<0.000000e+00> : vector<16x32xf32>
    %57 = tpu.matmul %54, %56, %cst_28 {dimension_numbers = #tpu.dot_dimension_numbers<[1], [0], [0], [1], [0, 0, 1, 1], [], []>} : vector<16x32xf32>, vector<32x32xf32>, vector<16x32xf32> -> vector<16x32xf32>
    %58 = arith.truncf %57 : vector<16x32xf32> to vector<16x32xbf16>
    %c1 = arith.constant 1 : index
    %c0_29 = arith.constant 0 : index
    %c0_30 = arith.constant 0 : index
    %59 = vector.load %arg1[%c1, %c0_29, %c0_30] : memref<9x32x32xf32, #tpu.memory_space<vmem>>, vector<1x32x32xf32>
    %60 = vector.shape_cast %59 : vector<1x32x32xf32> to vector<32x32xf32>
    %cst_31 = arith.constant dense<0.000000e+00> : vector<16x32xf32>
    %61 = tpu.matmul %54, %60, %cst_31 {dimension_numbers = #tpu.dot_dimension_numbers<[1], [0], [0], [1], [0, 0, 1, 1], [], []>} : vector<16x32xf32>, vector<32x32xf32>, vector<16x32xf32> -> vector<16x32xf32>
    %62 = arith.truncf %61 : vector<16x32xf32> to vector<16x32xbf16>
    %c2 = arith.constant 2 : index
    %c0_32 = arith.constant 0 : index
    %c0_33 = arith.constant 0 : index
    %63 = vector.load %arg1[%c2, %c0_32, %c0_33] : memref<9x32x32xf32, #tpu.memory_space<vmem>>, vector<1x32x32xf32>
    %64 = vector.shape_cast %63 : vector<1x32x32xf32> to vector<32x32xf32>
    %cst_34 = arith.constant dense<0.000000e+00> : vector<16x32xf32>
    %65 = tpu.matmul %54, %64, %cst_34 {dimension_numbers = #tpu.dot_dimension_numbers<[1], [0], [0], [1], [0, 0, 1, 1], [], []>} : vector<16x32xf32>, vector<32x32xf32>, vector<16x32xf32> -> vector<16x32xf32>
    %66 = arith.truncf %65 : vector<16x32xf32> to vector<16x32xbf16>
    %c3 = arith.constant 3 : index
    %c0_35 = arith.constant 0 : index
    %c0_36 = arith.constant 0 : index
    %67 = vector.load %arg1[%c3, %c0_35, %c0_36] : memref<9x32x32xf32, #tpu.memory_space<vmem>>, vector<1x32x32xf32>
    %68 = vector.shape_cast %67 : vector<1x32x32xf32> to vector<32x32xf32>
    %cst_37 = arith.constant dense<0.000000e+00> : vector<16x32xf32>
    %69 = tpu.matmul %54, %68, %cst_37 {dimension_numbers = #tpu.dot_dimension_numbers<[1], [0], [0], [1], [0, 0, 1, 1], [], []>} : vector<16x32xf32>, vector<32x32xf32>, vector<16x32xf32> -> vector<16x32xf32>
    %70 = arith.truncf %69 : vector<16x32xf32> to vector<16x32xbf16>
    %c4 = arith.constant 4 : index
    %c0_38 = arith.constant 0 : index
    %c0_39 = arith.constant 0 : index
    %71 = vector.load %arg1[%c4, %c0_38, %c0_39] : memref<9x32x32xf32, #tpu.memory_space<vmem>>, vector<1x32x32xf32>
    %72 = vector.shape_cast %71 : vector<1x32x32xf32> to vector<32x32xf32>
    %cst_40 = arith.constant dense<0.000000e+00> : vector<16x32xf32>
    %73 = tpu.matmul %54, %72, %cst_40 {dimension_numbers = #tpu.dot_dimension_numbers<[1], [0], [0], [1], [0, 0, 1, 1], [], []>} : vector<16x32xf32>, vector<32x32xf32>, vector<16x32xf32> -> vector<16x32xf32>
    %74 = arith.truncf %73 : vector<16x32xf32> to vector<16x32xbf16>
    %c5 = arith.constant 5 : index
    %c0_41 = arith.constant 0 : index
    %c0_42 = arith.constant 0 : index
    %75 = vector.load %arg1[%c5, %c0_41, %c0_42] : memref<9x32x32xf32, #tpu.memory_space<vmem>>, vector<1x32x32xf32>
    %76 = vector.shape_cast %75 : vector<1x32x32xf32> to vector<32x32xf32>
    %cst_43 = arith.constant dense<0.000000e+00> : vector<16x32xf32>
    %77 = tpu.matmul %54, %76, %cst_43 {dimension_numbers = #tpu.dot_dimension_numbers<[1], [0], [0], [1], [0, 0, 1, 1], [], []>} : vector<16x32xf32>, vector<32x32xf32>, vector<16x32xf32> -> vector<16x32xf32>
    %78 = arith.truncf %77 : vector<16x32xf32> to vector<16x32xbf16>
    %c6 = arith.constant 6 : index
    %c0_44 = arith.constant 0 : index
    %c0_45 = arith.constant 0 : index
    %79 = vector.load %arg1[%c6, %c0_44, %c0_45] : memref<9x32x32xf32, #tpu.memory_space<vmem>>, vector<1x32x32xf32>
    %80 = vector.shape_cast %79 : vector<1x32x32xf32> to vector<32x32xf32>
    %cst_46 = arith.constant dense<0.000000e+00> : vector<16x32xf32>
    %81 = tpu.matmul %54, %80, %cst_46 {dimension_numbers = #tpu.dot_dimension_numbers<[1], [0], [0], [1], [0, 0, 1, 1], [], []>} : vector<16x32xf32>, vector<32x32xf32>, vector<16x32xf32> -> vector<16x32xf32>
    %82 = arith.truncf %81 : vector<16x32xf32> to vector<16x32xbf16>
    %c7 = arith.constant 7 : index
    %c0_47 = arith.constant 0 : index
    %c0_48 = arith.constant 0 : index
    %83 = vector.load %arg1[%c7, %c0_47, %c0_48] : memref<9x32x32xf32, #tpu.memory_space<vmem>>, vector<1x32x32xf32>
    %84 = vector.shape_cast %83 : vector<1x32x32xf32> to vector<32x32xf32>
    %cst_49 = arith.constant dense<0.000000e+00> : vector<16x32xf32>
    %85 = tpu.matmul %54, %84, %cst_49 {dimension_numbers = #tpu.dot_dimension_numbers<[1], [0], [0], [1], [0, 0, 1, 1], [], []>} : vector<16x32xf32>, vector<32x32xf32>, vector<16x32xf32> -> vector<16x32xf32>
    %86 = arith.truncf %85 : vector<16x32xf32> to vector<16x32xbf16>
    %c8 = arith.constant 8 : index
    %c0_50 = arith.constant 0 : index
    %c0_51 = arith.constant 0 : index
    %87 = vector.load %arg1[%c8, %c0_50, %c0_51] : memref<9x32x32xf32, #tpu.memory_space<vmem>>, vector<1x32x32xf32>
    %88 = vector.shape_cast %87 : vector<1x32x32xf32> to vector<32x32xf32>
    %cst_52 = arith.constant dense<0.000000e+00> : vector<16x32xf32>
    %89 = tpu.matmul %54, %88, %cst_52 {dimension_numbers = #tpu.dot_dimension_numbers<[1], [0], [0], [1], [0, 0, 1, 1], [], []>} : vector<16x32xf32>, vector<32x32xf32>, vector<16x32xf32> -> vector<16x32xf32>
    %90 = arith.truncf %89 : vector<16x32xf32> to vector<16x32xbf16>
    %91 = tpu.concatenate %58, %62, %66, %70, %74, %78, %82, %86, %90 in 0 : vector<16x32xbf16>, vector<16x32xbf16>, vector<16x32xbf16>, vector<16x32xbf16>, vector<16x32xbf16>, vector<16x32xbf16>, vector<16x32xbf16>, vector<16x32xbf16>, vector<16x32xbf16> -> vector<144x32xbf16>
    %cst_53 = arith.constant dense<0.000000e+00> : vector<8x32xf32>
    %92 = tpu.matmul %6, %91, %cst_53 {dimension_numbers = #tpu.dot_dimension_numbers<[1], [0], [0], [1], [0, 0, 1, 1], [], []>} : vector<8x144xbf16>, vector<144x32xbf16>, vector<8x32xf32> -> vector<8x32xf32>
    %93 = tpu.concatenate %0, %92 in 0 : vector<16x32xf32>, vector<8x32xf32> -> vector<24x32xf32>
    %c0_54 = arith.constant 0 : index
    %c0_55 = arith.constant 0 : index
    %94 = vector.load %arg8[%c0_54, %c0_55] : memref<24x1xf32, #tpu.memory_space<vmem>>, vector<24x1xf32>
    %c0_56 = arith.constant 0 : index
    %c0_57 = arith.constant 0 : index
    %95 = vector.load %arg9[%c0_56, %c0_57] : memref<24x1xf32, #tpu.memory_space<vmem>>, vector<24x1xf32>
    %c0_58 = arith.constant 0 : index
    %c0_59 = arith.constant 0 : index
    %96 = vector.load %arg10[%c0_58, %c0_59] : memref<16x24xbf16, #tpu.memory_space<vmem>>, vector<16x24xbf16>
    %c0_60 = arith.constant 0 : index
    %c0_61 = arith.constant 0 : index
    %97 = vector.load %arg11[%c0_60, %c0_61] : memref<16x1xf32, #tpu.memory_space<vmem>>, vector<16x1xf32>
    %c0_62 = arith.constant 0 : index
    %c0_63 = arith.constant 0 : index
    %98 = vector.load %arg12[%c0_62, %c0_63] : memref<16x1xf32, #tpu.memory_space<vmem>>, vector<16x1xf32>
    %c0_64 = arith.constant 0 : index
    %c0_65 = arith.constant 0 : index
    %99 = vector.load %arg13[%c0_64, %c0_65] : memref<8x144xbf16, #tpu.memory_space<vmem>>, vector<8x144xbf16>
    %cst_66 = arith.constant dense<0.000000e+00> : vector<24xf32>
    %100 = vector.multi_reduction <add>, %93, %cst_66 [1] : vector<24x32xf32> to vector<24xf32>
    %101 = vector.shape_cast %100 : vector<24xf32> to vector<24x1xf32>
    %cst_67 = arith.constant 3.200000e+01 : f32
    %102 = vector.broadcast %cst_67 : f32 to vector<24x1xf32>
    %103 = arith.divf %101, %102 : vector<24x1xf32>
    %104 = arith.mulf %93, %93 : vector<24x32xf32>
    %cst_68 = arith.constant dense<0.000000e+00> : vector<24xf32>
    %105 = vector.multi_reduction <add>, %104, %cst_68 [1] : vector<24x32xf32> to vector<24xf32>
    %106 = vector.shape_cast %105 : vector<24xf32> to vector<24x1xf32>
    %cst_69 = arith.constant 3.200000e+01 : f32
    %107 = vector.broadcast %cst_69 : f32 to vector<24x1xf32>
    %108 = arith.divf %106, %107 : vector<24x1xf32>
    %109 = arith.mulf %103, %103 : vector<24x1xf32>
    %110 = arith.subf %108, %109 : vector<24x1xf32>
    %cst_70 = arith.constant 9.99999974E-6 : f32
    %111 = vector.broadcast %cst_70 : f32 to vector<24x1xf32>
    %112 = arith.addf %110, %111 : vector<24x1xf32>
    %113 = math.rsqrt %112 : vector<24x1xf32>
    %114 = arith.mulf %94, %113 : vector<24x1xf32>
    %115 = vector.broadcast %114 : vector<24x1xf32> to vector<24x32xf32>
    %116 = arith.mulf %93, %115 : vector<24x32xf32>
    %117 = arith.mulf %103, %114 : vector<24x1xf32>
    %118 = arith.subf %95, %117 : vector<24x1xf32>
    %119 = vector.broadcast %118 : vector<24x1xf32> to vector<24x32xf32>
    %120 = arith.addf %116, %119 : vector<24x32xf32>
    %cst_71 = arith.constant 0.000000e+00 : f32
    %121 = vector.broadcast %cst_71 : f32 to vector<24x32xf32>
    %122 = arith.maximumf %120, %121 : vector<24x32xf32>
    %123 = arith.truncf %122 : vector<24x32xf32> to vector<24x32xbf16>
    %cst_72 = arith.constant dense<0.000000e+00> : vector<16x32xf32>
    %124 = tpu.matmul %96, %123, %cst_72 {dimension_numbers = #tpu.dot_dimension_numbers<[1], [0], [0], [1], [0, 0, 1, 1], [], []>} : vector<16x24xbf16>, vector<24x32xbf16>, vector<16x32xf32> -> vector<16x32xf32>
    %cst_73 = arith.constant dense<0.000000e+00> : vector<16xf32>
    %125 = vector.multi_reduction <add>, %124, %cst_73 [1] : vector<16x32xf32> to vector<16xf32>
    %126 = vector.shape_cast %125 : vector<16xf32> to vector<16x1xf32>
    %cst_74 = arith.constant 3.200000e+01 : f32
    %127 = vector.broadcast %cst_74 : f32 to vector<16x1xf32>
    %128 = arith.divf %126, %127 : vector<16x1xf32>
    %129 = arith.mulf %124, %124 : vector<16x32xf32>
    %cst_75 = arith.constant dense<0.000000e+00> : vector<16xf32>
    %130 = vector.multi_reduction <add>, %129, %cst_75 [1] : vector<16x32xf32> to vector<16xf32>
    %131 = vector.shape_cast %130 : vector<16xf32> to vector<16x1xf32>
    %cst_76 = arith.constant 3.200000e+01 : f32
    %132 = vector.broadcast %cst_76 : f32 to vector<16x1xf32>
    %133 = arith.divf %131, %132 : vector<16x1xf32>
    %134 = arith.mulf %128, %128 : vector<16x1xf32>
    %135 = arith.subf %133, %134 : vector<16x1xf32>
    %cst_77 = arith.constant 9.99999974E-6 : f32
    %136 = vector.broadcast %cst_77 : f32 to vector<16x1xf32>
    %137 = arith.addf %135, %136 : vector<16x1xf32>
    %138 = math.rsqrt %137 : vector<16x1xf32>
    %139 = arith.mulf %97, %138 : vector<16x1xf32>
    %140 = vector.broadcast %139 : vector<16x1xf32> to vector<16x32xf32>
    %141 = arith.mulf %124, %140 : vector<16x32xf32>
    %142 = arith.mulf %128, %139 : vector<16x1xf32>
    %143 = arith.subf %98, %142 : vector<16x1xf32>
    %144 = vector.broadcast %143 : vector<16x1xf32> to vector<16x32xf32>
    %145 = arith.addf %141, %144 : vector<16x32xf32>
    %cst_78 = arith.constant 0.000000e+00 : f32
    %146 = vector.broadcast %cst_78 : f32 to vector<16x32xf32>
    %147 = arith.maximumf %145, %146 : vector<16x32xf32>
    %c0_79 = arith.constant 0 : index
    %c0_80 = arith.constant 0 : index
    %c0_81 = arith.constant 0 : index
    %148 = vector.load %arg1[%c0_79, %c0_80, %c0_81] : memref<9x32x32xf32, #tpu.memory_space<vmem>>, vector<1x32x32xf32>
    %149 = vector.shape_cast %148 : vector<1x32x32xf32> to vector<32x32xf32>
    %cst_82 = arith.constant dense<0.000000e+00> : vector<16x32xf32>
    %150 = tpu.matmul %147, %149, %cst_82 {dimension_numbers = #tpu.dot_dimension_numbers<[1], [0], [0], [1], [0, 0, 1, 1], [], []>} : vector<16x32xf32>, vector<32x32xf32>, vector<16x32xf32> -> vector<16x32xf32>
    %151 = arith.truncf %150 : vector<16x32xf32> to vector<16x32xbf16>
    %c1_83 = arith.constant 1 : index
    %c0_84 = arith.constant 0 : index
    %c0_85 = arith.constant 0 : index
    %152 = vector.load %arg1[%c1_83, %c0_84, %c0_85] : memref<9x32x32xf32, #tpu.memory_space<vmem>>, vector<1x32x32xf32>
    %153 = vector.shape_cast %152 : vector<1x32x32xf32> to vector<32x32xf32>
    %cst_86 = arith.constant dense<0.000000e+00> : vector<16x32xf32>
    %154 = tpu.matmul %147, %153, %cst_86 {dimension_numbers = #tpu.dot_dimension_numbers<[1], [0], [0], [1], [0, 0, 1, 1], [], []>} : vector<16x32xf32>, vector<32x32xf32>, vector<16x32xf32> -> vector<16x32xf32>
    %155 = arith.truncf %154 : vector<16x32xf32> to vector<16x32xbf16>
    %c2_87 = arith.constant 2 : index
    %c0_88 = arith.constant 0 : index
    %c0_89 = arith.constant 0 : index
    %156 = vector.load %arg1[%c2_87, %c0_88, %c0_89] : memref<9x32x32xf32, #tpu.memory_space<vmem>>, vector<1x32x32xf32>
    %157 = vector.shape_cast %156 : vector<1x32x32xf32> to vector<32x32xf32>
    %cst_90 = arith.constant dense<0.000000e+00> : vector<16x32xf32>
    %158 = tpu.matmul %147, %157, %cst_90 {dimension_numbers = #tpu.dot_dimension_numbers<[1], [0], [0], [1], [0, 0, 1, 1], [], []>} : vector<16x32xf32>, vector<32x32xf32>, vector<16x32xf32> -> vector<16x32xf32>
    %159 = arith.truncf %158 : vector<16x32xf32> to vector<16x32xbf16>
    %c3_91 = arith.constant 3 : index
    %c0_92 = arith.constant 0 : index
    %c0_93 = arith.constant 0 : index
    %160 = vector.load %arg1[%c3_91, %c0_92, %c0_93] : memref<9x32x32xf32, #tpu.memory_space<vmem>>, vector<1x32x32xf32>
    %161 = vector.shape_cast %160 : vector<1x32x32xf32> to vector<32x32xf32>
    %cst_94 = arith.constant dense<0.000000e+00> : vector<16x32xf32>
    %162 = tpu.matmul %147, %161, %cst_94 {dimension_numbers = #tpu.dot_dimension_numbers<[1], [0], [0], [1], [0, 0, 1, 1], [], []>} : vector<16x32xf32>, vector<32x32xf32>, vector<16x32xf32> -> vector<16x32xf32>
    %163 = arith.truncf %162 : vector<16x32xf32> to vector<16x32xbf16>
    %c4_95 = arith.constant 4 : index
    %c0_96 = arith.constant 0 : index
    %c0_97 = arith.constant 0 : index
    %164 = vector.load %arg1[%c4_95, %c0_96, %c0_97] : memref<9x32x32xf32, #tpu.memory_space<vmem>>, vector<1x32x32xf32>
    %165 = vector.shape_cast %164 : vector<1x32x32xf32> to vector<32x32xf32>
    %cst_98 = arith.constant dense<0.000000e+00> : vector<16x32xf32>
    %166 = tpu.matmul %147, %165, %cst_98 {dimension_numbers = #tpu.dot_dimension_numbers<[1], [0], [0], [1], [0, 0, 1, 1], [], []>} : vector<16x32xf32>, vector<32x32xf32>, vector<16x32xf32> -> vector<16x32xf32>
    %167 = arith.truncf %166 : vector<16x32xf32> to vector<16x32xbf16>
    %c5_99 = arith.constant 5 : index
    %c0_100 = arith.constant 0 : index
    %c0_101 = arith.constant 0 : index
    %168 = vector.load %arg1[%c5_99, %c0_100, %c0_101] : memref<9x32x32xf32, #tpu.memory_space<vmem>>, vector<1x32x32xf32>
    %169 = vector.shape_cast %168 : vector<1x32x32xf32> to vector<32x32xf32>
    %cst_102 = arith.constant dense<0.000000e+00> : vector<16x32xf32>
    %170 = tpu.matmul %147, %169, %cst_102 {dimension_numbers = #tpu.dot_dimension_numbers<[1], [0], [0], [1], [0, 0, 1, 1], [], []>} : vector<16x32xf32>, vector<32x32xf32>, vector<16x32xf32> -> vector<16x32xf32>
    %171 = arith.truncf %170 : vector<16x32xf32> to vector<16x32xbf16>
    %c6_103 = arith.constant 6 : index
    %c0_104 = arith.constant 0 : index
    %c0_105 = arith.constant 0 : index
    %172 = vector.load %arg1[%c6_103, %c0_104, %c0_105] : memref<9x32x32xf32, #tpu.memory_space<vmem>>, vector<1x32x32xf32>
    %173 = vector.shape_cast %172 : vector<1x32x32xf32> to vector<32x32xf32>
    %cst_106 = arith.constant dense<0.000000e+00> : vector<16x32xf32>
    %174 = tpu.matmul %147, %173, %cst_106 {dimension_numbers = #tpu.dot_dimension_numbers<[1], [0], [0], [1], [0, 0, 1, 1], [], []>} : vector<16x32xf32>, vector<32x32xf32>, vector<16x32xf32> -> vector<16x32xf32>
    %175 = arith.truncf %174 : vector<16x32xf32> to vector<16x32xbf16>
    %c7_107 = arith.constant 7 : index
    %c0_108 = arith.constant 0 : index
    %c0_109 = arith.constant 0 : index
    %176 = vector.load %arg1[%c7_107, %c0_108, %c0_109] : memref<9x32x32xf32, #tpu.memory_space<vmem>>, vector<1x32x32xf32>
    %177 = vector.shape_cast %176 : vector<1x32x32xf32> to vector<32x32xf32>
    %cst_110 = arith.constant dense<0.000000e+00> : vector<16x32xf32>
    %178 = tpu.matmul %147, %177, %cst_110 {dimension_numbers = #tpu.dot_dimension_numbers<[1], [0], [0], [1], [0, 0, 1, 1], [], []>} : vector<16x32xf32>, vector<32x32xf32>, vector<16x32xf32> -> vector<16x32xf32>
    %179 = arith.truncf %178 : vector<16x32xf32> to vector<16x32xbf16>
    %c8_111 = arith.constant 8 : index
    %c0_112 = arith.constant 0 : index
    %c0_113 = arith.constant 0 : index
    %180 = vector.load %arg1[%c8_111, %c0_112, %c0_113] : memref<9x32x32xf32, #tpu.memory_space<vmem>>, vector<1x32x32xf32>
    %181 = vector.shape_cast %180 : vector<1x32x32xf32> to vector<32x32xf32>
    %cst_114 = arith.constant dense<0.000000e+00> : vector<16x32xf32>
    %182 = tpu.matmul %147, %181, %cst_114 {dimension_numbers = #tpu.dot_dimension_numbers<[1], [0], [0], [1], [0, 0, 1, 1], [], []>} : vector<16x32xf32>, vector<32x32xf32>, vector<16x32xf32> -> vector<16x32xf32>
    %183 = arith.truncf %182 : vector<16x32xf32> to vector<16x32xbf16>
    %184 = tpu.concatenate %151, %155, %159, %163, %167, %171, %175, %179, %183 in 0 : vector<16x32xbf16>, vector<16x32xbf16>, vector<16x32xbf16>, vector<16x32xbf16>, vector<16x32xbf16>, vector<16x32xbf16>, vector<16x32xbf16>, vector<16x32xbf16>, vector<16x32xbf16> -> vector<144x32xbf16>
    %cst_115 = arith.constant dense<0.000000e+00> : vector<8x32xf32>
    %185 = tpu.matmul %99, %184, %cst_115 {dimension_numbers = #tpu.dot_dimension_numbers<[1], [0], [0], [1], [0, 0, 1, 1], [], []>} : vector<8x144xbf16>, vector<144x32xbf16>, vector<8x32xf32> -> vector<8x32xf32>
    %186 = tpu.concatenate %93, %185 in 0 : vector<24x32xf32>, vector<8x32xf32> -> vector<32x32xf32>
    %c0_116 = arith.constant 0 : index
    %c0_117 = arith.constant 0 : index
    %187 = vector.load %arg14[%c0_116, %c0_117] : memref<32x1xf32, #tpu.memory_space<vmem>>, vector<32x1xf32>
    %c0_118 = arith.constant 0 : index
    %c0_119 = arith.constant 0 : index
    %188 = vector.load %arg15[%c0_118, %c0_119] : memref<32x1xf32, #tpu.memory_space<vmem>>, vector<32x1xf32>
    %c0_120 = arith.constant 0 : index
    %c0_121 = arith.constant 0 : index
    %189 = vector.load %arg16[%c0_120, %c0_121] : memref<16x32xbf16, #tpu.memory_space<vmem>>, vector<16x32xbf16>
    %c0_122 = arith.constant 0 : index
    %c0_123 = arith.constant 0 : index
    %190 = vector.load %arg17[%c0_122, %c0_123] : memref<32x8xf32, #tpu.memory_space<vmem>>, vector<32x8xf32>
    %cst_124 = arith.constant dense<0.000000e+00> : vector<32xf32>
    %191 = vector.multi_reduction <add>, %186, %cst_124 [1] : vector<32x32xf32> to vector<32xf32>
    %192 = vector.shape_cast %191 : vector<32xf32> to vector<32x1xf32>
    %cst_125 = arith.constant 3.200000e+01 : f32
    %193 = vector.broadcast %cst_125 : f32 to vector<32x1xf32>
    %194 = arith.divf %192, %193 : vector<32x1xf32>
    %195 = arith.mulf %186, %186 : vector<32x32xf32>
    %cst_126 = arith.constant dense<0.000000e+00> : vector<32xf32>
    %196 = vector.multi_reduction <add>, %195, %cst_126 [1] : vector<32x32xf32> to vector<32xf32>
    %197 = vector.shape_cast %196 : vector<32xf32> to vector<32x1xf32>
    %cst_127 = arith.constant 3.200000e+01 : f32
    %198 = vector.broadcast %cst_127 : f32 to vector<32x1xf32>
    %199 = arith.divf %197, %198 : vector<32x1xf32>
    %200 = arith.mulf %194, %194 : vector<32x1xf32>
    %201 = arith.subf %199, %200 : vector<32x1xf32>
    %cst_128 = arith.constant 9.99999974E-6 : f32
    %202 = vector.broadcast %cst_128 : f32 to vector<32x1xf32>
    %203 = arith.addf %201, %202 : vector<32x1xf32>
    %204 = math.rsqrt %203 : vector<32x1xf32>
    %205 = arith.mulf %187, %204 : vector<32x1xf32>
    %206 = vector.broadcast %205 : vector<32x1xf32> to vector<32x32xf32>
    %207 = arith.mulf %186, %206 : vector<32x32xf32>
    %208 = arith.mulf %194, %205 : vector<32x1xf32>
    %209 = arith.subf %188, %208 : vector<32x1xf32>
    %210 = vector.broadcast %209 : vector<32x1xf32> to vector<32x32xf32>
    %211 = arith.addf %207, %210 : vector<32x32xf32>
    %cst_129 = arith.constant 0.000000e+00 : f32
    %212 = vector.broadcast %cst_129 : f32 to vector<32x32xf32>
    %213 = arith.maximumf %211, %212 : vector<32x32xf32>
    %214 = arith.truncf %213 : vector<32x32xf32> to vector<32x32xbf16>
    %cst_130 = arith.constant dense<0.000000e+00> : vector<16x32xf32>
    %215 = tpu.matmul %189, %214, %cst_130 {dimension_numbers = #tpu.dot_dimension_numbers<[1], [0], [0], [1], [0, 0, 1, 1], [], []>} : vector<16x32xbf16>, vector<32x32xbf16>, vector<16x32xf32> -> vector<16x32xf32>
    %cst_131 = arith.constant dense<0.000000e+00> : vector<16x8xf32>
    %216 = tpu.matmul %215, %190, %cst_131 {dimension_numbers = #tpu.dot_dimension_numbers<[1], [0], [0], [1], [0, 0, 1, 1], [], []>} : vector<16x32xf32>, vector<32x8xf32>, vector<16x8xf32> -> vector<16x8xf32>
    %c0_132 = arith.constant 0 : index
    %c0_133 = arith.constant 0 : index
    %217 = vector.load %arg19[%c0_132, %c0_133] : memref<16x1xf32, #tpu.memory_space<vmem>>, vector<16x1xf32>
    %c0_134 = arith.constant 0 : index
    %c0_135 = arith.constant 0 : index
    %218 = vector.load %arg20[%c0_134, %c0_135] : memref<16x1xf32, #tpu.memory_space<vmem>>, vector<16x1xf32>
    %c0_136 = arith.constant 0 : index
    %c0_137 = arith.constant 0 : index
    %219 = vector.load %arg21[%c0_136, %c0_137] : memref<16x16xbf16, #tpu.memory_space<vmem>>, vector<16x16xbf16>
    %c0_138 = arith.constant 0 : index
    %c0_139 = arith.constant 0 : index
    %220 = vector.load %arg22[%c0_138, %c0_139] : memref<16x1xf32, #tpu.memory_space<vmem>>, vector<16x1xf32>
    %c0_140 = arith.constant 0 : index
    %c0_141 = arith.constant 0 : index
    %221 = vector.load %arg23[%c0_140, %c0_141] : memref<16x1xf32, #tpu.memory_space<vmem>>, vector<16x1xf32>
    %c0_142 = arith.constant 0 : index
    %c0_143 = arith.constant 0 : index
    %222 = vector.load %arg24[%c0_142, %c0_143] : memref<8x144xbf16, #tpu.memory_space<vmem>>, vector<8x144xbf16>
    %cst_144 = arith.constant dense<0.000000e+00> : vector<16xf32>
    %223 = vector.multi_reduction <add>, %216, %cst_144 [1] : vector<16x8xf32> to vector<16xf32>
    %224 = vector.shape_cast %223 : vector<16xf32> to vector<16x1xf32>
    %cst_145 = arith.constant 8.000000e+00 : f32
    %225 = vector.broadcast %cst_145 : f32 to vector<16x1xf32>
    %226 = arith.divf %224, %225 : vector<16x1xf32>
    %227 = arith.mulf %216, %216 : vector<16x8xf32>
    %cst_146 = arith.constant dense<0.000000e+00> : vector<16xf32>
    %228 = vector.multi_reduction <add>, %227, %cst_146 [1] : vector<16x8xf32> to vector<16xf32>
    %229 = vector.shape_cast %228 : vector<16xf32> to vector<16x1xf32>
    %cst_147 = arith.constant 8.000000e+00 : f32
    %230 = vector.broadcast %cst_147 : f32 to vector<16x1xf32>
    %231 = arith.divf %229, %230 : vector<16x1xf32>
    %232 = arith.mulf %226, %226 : vector<16x1xf32>
    %233 = arith.subf %231, %232 : vector<16x1xf32>
    %cst_148 = arith.constant 9.99999974E-6 : f32
    %234 = vector.broadcast %cst_148 : f32 to vector<16x1xf32>
    %235 = arith.addf %233, %234 : vector<16x1xf32>
    %236 = math.rsqrt %235 : vector<16x1xf32>
    %237 = arith.mulf %217, %236 : vector<16x1xf32>
    %238 = vector.broadcast %237 : vector<16x1xf32> to vector<16x8xf32>
    %239 = arith.mulf %216, %238 : vector<16x8xf32>
    %240 = arith.mulf %226, %237 : vector<16x1xf32>
    %241 = arith.subf %218, %240 : vector<16x1xf32>
    %242 = vector.broadcast %241 : vector<16x1xf32> to vector<16x8xf32>
    %243 = arith.addf %239, %242 : vector<16x8xf32>
    %cst_149 = arith.constant 0.000000e+00 : f32
    %244 = vector.broadcast %cst_149 : f32 to vector<16x8xf32>
    %245 = arith.maximumf %243, %244 : vector<16x8xf32>
    %246 = arith.truncf %245 : vector<16x8xf32> to vector<16x8xbf16>
    %cst_150 = arith.constant dense<0.000000e+00> : vector<16x8xf32>
    %247 = tpu.matmul %219, %246, %cst_150 {dimension_numbers = #tpu.dot_dimension_numbers<[1], [0], [0], [1], [0, 0, 1, 1], [], []>} : vector<16x16xbf16>, vector<16x8xbf16>, vector<16x8xf32> -> vector<16x8xf32>
    %cst_151 = arith.constant dense<0.000000e+00> : vector<16xf32>
    %248 = vector.multi_reduction <add>, %247, %cst_151 [1] : vector<16x8xf32> to vector<16xf32>
    %249 = vector.shape_cast %248 : vector<16xf32> to vector<16x1xf32>
    %cst_152 = arith.constant 8.000000e+00 : f32
    %250 = vector.broadcast %cst_152 : f32 to vector<16x1xf32>
    %251 = arith.divf %249, %250 : vector<16x1xf32>
    %252 = arith.mulf %247, %247 : vector<16x8xf32>
    %cst_153 = arith.constant dense<0.000000e+00> : vector<16xf32>
    %253 = vector.multi_reduction <add>, %252, %cst_153 [1] : vector<16x8xf32> to vector<16xf32>
    %254 = vector.shape_cast %253 : vector<16xf32> to vector<16x1xf32>
    %cst_154 = arith.constant 8.000000e+00 : f32
    %255 = vector.broadcast %cst_154 : f32 to vector<16x1xf32>
    %256 = arith.divf %254, %255 : vector<16x1xf32>
    %257 = arith.mulf %251, %251 : vector<16x1xf32>
    %258 = arith.subf %256, %257 : vector<16x1xf32>
    %cst_155 = arith.constant 9.99999974E-6 : f32
    %259 = vector.broadcast %cst_155 : f32 to vector<16x1xf32>
    %260 = arith.addf %258, %259 : vector<16x1xf32>
    %261 = math.rsqrt %260 : vector<16x1xf32>
    %262 = arith.mulf %220, %261 : vector<16x1xf32>
    %263 = vector.broadcast %262 : vector<16x1xf32> to vector<16x8xf32>
    %264 = arith.mulf %247, %263 : vector<16x8xf32>
    %265 = arith.mulf %251, %262 : vector<16x1xf32>
    %266 = arith.subf %221, %265 : vector<16x1xf32>
    %267 = vector.broadcast %266 : vector<16x1xf32> to vector<16x8xf32>
    %268 = arith.addf %264, %267 : vector<16x8xf32>
    %cst_156 = arith.constant 0.000000e+00 : f32
    %269 = vector.broadcast %cst_156 : f32 to vector<16x8xf32>
    %270 = arith.maximumf %268, %269 : vector<16x8xf32>
    %c0_157 = arith.constant 0 : index
    %c0_158 = arith.constant 0 : index
    %c0_159 = arith.constant 0 : index
    %271 = vector.load %arg18[%c0_157, %c0_158, %c0_159] : memref<9x8x8xf32, #tpu.memory_space<vmem>>, vector<1x8x8xf32>
    %272 = vector.shape_cast %271 : vector<1x8x8xf32> to vector<8x8xf32>
    %cst_160 = arith.constant dense<0.000000e+00> : vector<16x8xf32>
    %273 = tpu.matmul %270, %272, %cst_160 {dimension_numbers = #tpu.dot_dimension_numbers<[1], [0], [0], [1], [0, 0, 1, 1], [], []>} : vector<16x8xf32>, vector<8x8xf32>, vector<16x8xf32> -> vector<16x8xf32>
    %274 = arith.truncf %273 : vector<16x8xf32> to vector<16x8xbf16>
    %c1_161 = arith.constant 1 : index
    %c0_162 = arith.constant 0 : index
    %c0_163 = arith.constant 0 : index
    %275 = vector.load %arg18[%c1_161, %c0_162, %c0_163] : memref<9x8x8xf32, #tpu.memory_space<vmem>>, vector<1x8x8xf32>
    %276 = vector.shape_cast %275 : vector<1x8x8xf32> to vector<8x8xf32>
    %cst_164 = arith.constant dense<0.000000e+00> : vector<16x8xf32>
    %277 = tpu.matmul %270, %276, %cst_164 {dimension_numbers = #tpu.dot_dimension_numbers<[1], [0], [0], [1], [0, 0, 1, 1], [], []>} : vector<16x8xf32>, vector<8x8xf32>, vector<16x8xf32> -> vector<16x8xf32>
    %278 = arith.truncf %277 : vector<16x8xf32> to vector<16x8xbf16>
    %c2_165 = arith.constant 2 : index
    %c0_166 = arith.constant 0 : index
    %c0_167 = arith.constant 0 : index
    %279 = vector.load %arg18[%c2_165, %c0_166, %c0_167] : memref<9x8x8xf32, #tpu.memory_space<vmem>>, vector<1x8x8xf32>
    %280 = vector.shape_cast %279 : vector<1x8x8xf32> to vector<8x8xf32>
    %cst_168 = arith.constant dense<0.000000e+00> : vector<16x8xf32>
    %281 = tpu.matmul %270, %280, %cst_168 {dimension_numbers = #tpu.dot_dimension_numbers<[1], [0], [0], [1], [0, 0, 1, 1], [], []>} : vector<16x8xf32>, vector<8x8xf32>, vector<16x8xf32> -> vector<16x8xf32>
    %282 = arith.truncf %281 : vector<16x8xf32> to vector<16x8xbf16>
    %c3_169 = arith.constant 3 : index
    %c0_170 = arith.constant 0 : index
    %c0_171 = arith.constant 0 : index
    %283 = vector.load %arg18[%c3_169, %c0_170, %c0_171] : memref<9x8x8xf32, #tpu.memory_space<vmem>>, vector<1x8x8xf32>
    %284 = vector.shape_cast %283 : vector<1x8x8xf32> to vector<8x8xf32>
    %cst_172 = arith.constant dense<0.000000e+00> : vector<16x8xf32>
    %285 = tpu.matmul %270, %284, %cst_172 {dimension_numbers = #tpu.dot_dimension_numbers<[1], [0], [0], [1], [0, 0, 1, 1], [], []>} : vector<16x8xf32>, vector<8x8xf32>, vector<16x8xf32> -> vector<16x8xf32>
    %286 = arith.truncf %285 : vector<16x8xf32> to vector<16x8xbf16>
    %c4_173 = arith.constant 4 : index
    %c0_174 = arith.constant 0 : index
    %c0_175 = arith.constant 0 : index
    %287 = vector.load %arg18[%c4_173, %c0_174, %c0_175] : memref<9x8x8xf32, #tpu.memory_space<vmem>>, vector<1x8x8xf32>
    %288 = vector.shape_cast %287 : vector<1x8x8xf32> to vector<8x8xf32>
    %cst_176 = arith.constant dense<0.000000e+00> : vector<16x8xf32>
    %289 = tpu.matmul %270, %288, %cst_176 {dimension_numbers = #tpu.dot_dimension_numbers<[1], [0], [0], [1], [0, 0, 1, 1], [], []>} : vector<16x8xf32>, vector<8x8xf32>, vector<16x8xf32> -> vector<16x8xf32>
    %290 = arith.truncf %289 : vector<16x8xf32> to vector<16x8xbf16>
    %c5_177 = arith.constant 5 : index
    %c0_178 = arith.constant 0 : index
    %c0_179 = arith.constant 0 : index
    %291 = vector.load %arg18[%c5_177, %c0_178, %c0_179] : memref<9x8x8xf32, #tpu.memory_space<vmem>>, vector<1x8x8xf32>
    %292 = vector.shape_cast %291 : vector<1x8x8xf32> to vector<8x8xf32>
    %cst_180 = arith.constant dense<0.000000e+00> : vector<16x8xf32>
    %293 = tpu.matmul %270, %292, %cst_180 {dimension_numbers = #tpu.dot_dimension_numbers<[1], [0], [0], [1], [0, 0, 1, 1], [], []>} : vector<16x8xf32>, vector<8x8xf32>, vector<16x8xf32> -> vector<16x8xf32>
    %294 = arith.truncf %293 : vector<16x8xf32> to vector<16x8xbf16>
    %c6_181 = arith.constant 6 : index
    %c0_182 = arith.constant 0 : index
    %c0_183 = arith.constant 0 : index
    %295 = vector.load %arg18[%c6_181, %c0_182, %c0_183] : memref<9x8x8xf32, #tpu.memory_space<vmem>>, vector<1x8x8xf32>
    %296 = vector.shape_cast %295 : vector<1x8x8xf32> to vector<8x8xf32>
    %cst_184 = arith.constant dense<0.000000e+00> : vector<16x8xf32>
    %297 = tpu.matmul %270, %296, %cst_184 {dimension_numbers = #tpu.dot_dimension_numbers<[1], [0], [0], [1], [0, 0, 1, 1], [], []>} : vector<16x8xf32>, vector<8x8xf32>, vector<16x8xf32> -> vector<16x8xf32>
    %298 = arith.truncf %297 : vector<16x8xf32> to vector<16x8xbf16>
    %c7_185 = arith.constant 7 : index
    %c0_186 = arith.constant 0 : index
    %c0_187 = arith.constant 0 : index
    %299 = vector.load %arg18[%c7_185, %c0_186, %c0_187] : memref<9x8x8xf32, #tpu.memory_space<vmem>>, vector<1x8x8xf32>
    %300 = vector.shape_cast %299 : vector<1x8x8xf32> to vector<8x8xf32>
    %cst_188 = arith.constant dense<0.000000e+00> : vector<16x8xf32>
    %301 = tpu.matmul %270, %300, %cst_188 {dimension_numbers = #tpu.dot_dimension_numbers<[1], [0], [0], [1], [0, 0, 1, 1], [], []>} : vector<16x8xf32>, vector<8x8xf32>, vector<16x8xf32> -> vector<16x8xf32>
    %302 = arith.truncf %301 : vector<16x8xf32> to vector<16x8xbf16>
    %c8_189 = arith.constant 8 : index
    %c0_190 = arith.constant 0 : index
    %c0_191 = arith.constant 0 : index
    %303 = vector.load %arg18[%c8_189, %c0_190, %c0_191] : memref<9x8x8xf32, #tpu.memory_space<vmem>>, vector<1x8x8xf32>
    %304 = vector.shape_cast %303 : vector<1x8x8xf32> to vector<8x8xf32>
    %cst_192 = arith.constant dense<0.000000e+00> : vector<16x8xf32>
    %305 = tpu.matmul %270, %304, %cst_192 {dimension_numbers = #tpu.dot_dimension_numbers<[1], [0], [0], [1], [0, 0, 1, 1], [], []>} : vector<16x8xf32>, vector<8x8xf32>, vector<16x8xf32> -> vector<16x8xf32>
    %306 = arith.truncf %305 : vector<16x8xf32> to vector<16x8xbf16>
    %307 = tpu.concatenate %274, %278, %282, %286, %290, %294, %298, %302, %306 in 0 : vector<16x8xbf16>, vector<16x8xbf16>, vector<16x8xbf16>, vector<16x8xbf16>, vector<16x8xbf16>, vector<16x8xbf16>, vector<16x8xbf16>, vector<16x8xbf16>, vector<16x8xbf16> -> vector<144x8xbf16>
    %cst_193 = arith.constant dense<0.000000e+00> : vector<8x8xf32>
    %308 = tpu.matmul %222, %307, %cst_193 {dimension_numbers = #tpu.dot_dimension_numbers<[1], [0], [0], [1], [0, 0, 1, 1], [], []>} : vector<8x144xbf16>, vector<144x8xbf16>, vector<8x8xf32> -> vector<8x8xf32>
    %309 = tpu.concatenate %216, %308 in 0 : vector<16x8xf32>, vector<8x8xf32> -> vector<24x8xf32>
    %c0_194 = arith.constant 0 : index
    %c0_195 = arith.constant 0 : index
    %310 = vector.load %arg25[%c0_194, %c0_195] : memref<24x1xf32, #tpu.memory_space<vmem>>, vector<24x1xf32>
    %c0_196 = arith.constant 0 : index
    %c0_197 = arith.constant 0 : index
    %311 = vector.load %arg26[%c0_196, %c0_197] : memref<24x1xf32, #tpu.memory_space<vmem>>, vector<24x1xf32>
    %c0_198 = arith.constant 0 : index
    %c0_199 = arith.constant 0 : index
    %312 = vector.load %arg27[%c0_198, %c0_199] : memref<16x24xbf16, #tpu.memory_space<vmem>>, vector<16x24xbf16>
    %c0_200 = arith.constant 0 : index
    %c0_201 = arith.constant 0 : index
    %313 = vector.load %arg28[%c0_200, %c0_201] : memref<16x1xf32, #tpu.memory_space<vmem>>, vector<16x1xf32>
    %c0_202 = arith.constant 0 : index
    %c0_203 = arith.constant 0 : index
    %314 = vector.load %arg29[%c0_202, %c0_203] : memref<16x1xf32, #tpu.memory_space<vmem>>, vector<16x1xf32>
    %c0_204 = arith.constant 0 : index
    %c0_205 = arith.constant 0 : index
    %315 = vector.load %arg30[%c0_204, %c0_205] : memref<8x144xbf16, #tpu.memory_space<vmem>>, vector<8x144xbf16>
    %cst_206 = arith.constant dense<0.000000e+00> : vector<24xf32>
    %316 = vector.multi_reduction <add>, %309, %cst_206 [1] : vector<24x8xf32> to vector<24xf32>
    %317 = vector.shape_cast %316 : vector<24xf32> to vector<24x1xf32>
    %cst_207 = arith.constant 8.000000e+00 : f32
    %318 = vector.broadcast %cst_207 : f32 to vector<24x1xf32>
    %319 = arith.divf %317, %318 : vector<24x1xf32>
    %320 = arith.mulf %309, %309 : vector<24x8xf32>
    %cst_208 = arith.constant dense<0.000000e+00> : vector<24xf32>
    %321 = vector.multi_reduction <add>, %320, %cst_208 [1] : vector<24x8xf32> to vector<24xf32>
    %322 = vector.shape_cast %321 : vector<24xf32> to vector<24x1xf32>
    %cst_209 = arith.constant 8.000000e+00 : f32
    %323 = vector.broadcast %cst_209 : f32 to vector<24x1xf32>
    %324 = arith.divf %322, %323 : vector<24x1xf32>
    %325 = arith.mulf %319, %319 : vector<24x1xf32>
    %326 = arith.subf %324, %325 : vector<24x1xf32>
    %cst_210 = arith.constant 9.99999974E-6 : f32
    %327 = vector.broadcast %cst_210 : f32 to vector<24x1xf32>
    %328 = arith.addf %326, %327 : vector<24x1xf32>
    %329 = math.rsqrt %328 : vector<24x1xf32>
    %330 = arith.mulf %310, %329 : vector<24x1xf32>
    %331 = vector.broadcast %330 : vector<24x1xf32> to vector<24x8xf32>
    %332 = arith.mulf %309, %331 : vector<24x8xf32>
    %333 = arith.mulf %319, %330 : vector<24x1xf32>
    %334 = arith.subf %311, %333 : vector<24x1xf32>
    %335 = vector.broadcast %334 : vector<24x1xf32> to vector<24x8xf32>
    %336 = arith.addf %332, %335 : vector<24x8xf32>
    %cst_211 = arith.constant 0.000000e+00 : f32
    %337 = vector.broadcast %cst_211 : f32 to vector<24x8xf32>
    %338 = arith.maximumf %336, %337 : vector<24x8xf32>
    %339 = arith.truncf %338 : vector<24x8xf32> to vector<24x8xbf16>
    %cst_212 = arith.constant dense<0.000000e+00> : vector<16x8xf32>
    %340 = tpu.matmul %312, %339, %cst_212 {dimension_numbers = #tpu.dot_dimension_numbers<[1], [0], [0], [1], [0, 0, 1, 1], [], []>} : vector<16x24xbf16>, vector<24x8xbf16>, vector<16x8xf32> -> vector<16x8xf32>
    %cst_213 = arith.constant dense<0.000000e+00> : vector<16xf32>
    %341 = vector.multi_reduction <add>, %340, %cst_213 [1] : vector<16x8xf32> to vector<16xf32>
    %342 = vector.shape_cast %341 : vector<16xf32> to vector<16x1xf32>
    %cst_214 = arith.constant 8.000000e+00 : f32
    %343 = vector.broadcast %cst_214 : f32 to vector<16x1xf32>
    %344 = arith.divf %342, %343 : vector<16x1xf32>
    %345 = arith.mulf %340, %340 : vector<16x8xf32>
    %cst_215 = arith.constant dense<0.000000e+00> : vector<16xf32>
    %346 = vector.multi_reduction <add>, %345, %cst_215 [1] : vector<16x8xf32> to vector<16xf32>
    %347 = vector.shape_cast %346 : vector<16xf32> to vector<16x1xf32>
    %cst_216 = arith.constant 8.000000e+00 : f32
    %348 = vector.broadcast %cst_216 : f32 to vector<16x1xf32>
    %349 = arith.divf %347, %348 : vector<16x1xf32>
    %350 = arith.mulf %344, %344 : vector<16x1xf32>
    %351 = arith.subf %349, %350 : vector<16x1xf32>
    %cst_217 = arith.constant 9.99999974E-6 : f32
    %352 = vector.broadcast %cst_217 : f32 to vector<16x1xf32>
    %353 = arith.addf %351, %352 : vector<16x1xf32>
    %354 = math.rsqrt %353 : vector<16x1xf32>
    %355 = arith.mulf %313, %354 : vector<16x1xf32>
    %356 = vector.broadcast %355 : vector<16x1xf32> to vector<16x8xf32>
    %357 = arith.mulf %340, %356 : vector<16x8xf32>
    %358 = arith.mulf %344, %355 : vector<16x1xf32>
    %359 = arith.subf %314, %358 : vector<16x1xf32>
    %360 = vector.broadcast %359 : vector<16x1xf32> to vector<16x8xf32>
    %361 = arith.addf %357, %360 : vector<16x8xf32>
    %cst_218 = arith.constant 0.000000e+00 : f32
    %362 = vector.broadcast %cst_218 : f32 to vector<16x8xf32>
    %363 = arith.maximumf %361, %362 : vector<16x8xf32>
    %c0_219 = arith.constant 0 : index
    %c0_220 = arith.constant 0 : index
    %c0_221 = arith.constant 0 : index
    %364 = vector.load %arg18[%c0_219, %c0_220, %c0_221] : memref<9x8x8xf32, #tpu.memory_space<vmem>>, vector<1x8x8xf32>
    %365 = vector.shape_cast %364 : vector<1x8x8xf32> to vector<8x8xf32>
    %cst_222 = arith.constant dense<0.000000e+00> : vector<16x8xf32>
    %366 = tpu.matmul %363, %365, %cst_222 {dimension_numbers = #tpu.dot_dimension_numbers<[1], [0], [0], [1], [0, 0, 1, 1], [], []>} : vector<16x8xf32>, vector<8x8xf32>, vector<16x8xf32> -> vector<16x8xf32>
    %367 = arith.truncf %366 : vector<16x8xf32> to vector<16x8xbf16>
    %c1_223 = arith.constant 1 : index
    %c0_224 = arith.constant 0 : index
    %c0_225 = arith.constant 0 : index
    %368 = vector.load %arg18[%c1_223, %c0_224, %c0_225] : memref<9x8x8xf32, #tpu.memory_space<vmem>>, vector<1x8x8xf32>
    %369 = vector.shape_cast %368 : vector<1x8x8xf32> to vector<8x8xf32>
    %cst_226 = arith.constant dense<0.000000e+00> : vector<16x8xf32>
    %370 = tpu.matmul %363, %369, %cst_226 {dimension_numbers = #tpu.dot_dimension_numbers<[1], [0], [0], [1], [0, 0, 1, 1], [], []>} : vector<16x8xf32>, vector<8x8xf32>, vector<16x8xf32> -> vector<16x8xf32>
    %371 = arith.truncf %370 : vector<16x8xf32> to vector<16x8xbf16>
    %c2_227 = arith.constant 2 : index
    %c0_228 = arith.constant 0 : index
    %c0_229 = arith.constant 0 : index
    %372 = vector.load %arg18[%c2_227, %c0_228, %c0_229] : memref<9x8x8xf32, #tpu.memory_space<vmem>>, vector<1x8x8xf32>
    %373 = vector.shape_cast %372 : vector<1x8x8xf32> to vector<8x8xf32>
    %cst_230 = arith.constant dense<0.000000e+00> : vector<16x8xf32>
    %374 = tpu.matmul %363, %373, %cst_230 {dimension_numbers = #tpu.dot_dimension_numbers<[1], [0], [0], [1], [0, 0, 1, 1], [], []>} : vector<16x8xf32>, vector<8x8xf32>, vector<16x8xf32> -> vector<16x8xf32>
    %375 = arith.truncf %374 : vector<16x8xf32> to vector<16x8xbf16>
    %c3_231 = arith.constant 3 : index
    %c0_232 = arith.constant 0 : index
    %c0_233 = arith.constant 0 : index
    %376 = vector.load %arg18[%c3_231, %c0_232, %c0_233] : memref<9x8x8xf32, #tpu.memory_space<vmem>>, vector<1x8x8xf32>
    %377 = vector.shape_cast %376 : vector<1x8x8xf32> to vector<8x8xf32>
    %cst_234 = arith.constant dense<0.000000e+00> : vector<16x8xf32>
    %378 = tpu.matmul %363, %377, %cst_234 {dimension_numbers = #tpu.dot_dimension_numbers<[1], [0], [0], [1], [0, 0, 1, 1], [], []>} : vector<16x8xf32>, vector<8x8xf32>, vector<16x8xf32> -> vector<16x8xf32>
    %379 = arith.truncf %378 : vector<16x8xf32> to vector<16x8xbf16>
    %c4_235 = arith.constant 4 : index
    %c0_236 = arith.constant 0 : index
    %c0_237 = arith.constant 0 : index
    %380 = vector.load %arg18[%c4_235, %c0_236, %c0_237] : memref<9x8x8xf32, #tpu.memory_space<vmem>>, vector<1x8x8xf32>
    %381 = vector.shape_cast %380 : vector<1x8x8xf32> to vector<8x8xf32>
    %cst_238 = arith.constant dense<0.000000e+00> : vector<16x8xf32>
    %382 = tpu.matmul %363, %381, %cst_238 {dimension_numbers = #tpu.dot_dimension_numbers<[1], [0], [0], [1], [0, 0, 1, 1], [], []>} : vector<16x8xf32>, vector<8x8xf32>, vector<16x8xf32> -> vector<16x8xf32>
    %383 = arith.truncf %382 : vector<16x8xf32> to vector<16x8xbf16>
    %c5_239 = arith.constant 5 : index
    %c0_240 = arith.constant 0 : index
    %c0_241 = arith.constant 0 : index
    %384 = vector.load %arg18[%c5_239, %c0_240, %c0_241] : memref<9x8x8xf32, #tpu.memory_space<vmem>>, vector<1x8x8xf32>
    %385 = vector.shape_cast %384 : vector<1x8x8xf32> to vector<8x8xf32>
    %cst_242 = arith.constant dense<0.000000e+00> : vector<16x8xf32>
    %386 = tpu.matmul %363, %385, %cst_242 {dimension_numbers = #tpu.dot_dimension_numbers<[1], [0], [0], [1], [0, 0, 1, 1], [], []>} : vector<16x8xf32>, vector<8x8xf32>, vector<16x8xf32> -> vector<16x8xf32>
    %387 = arith.truncf %386 : vector<16x8xf32> to vector<16x8xbf16>
    %c6_243 = arith.constant 6 : index
    %c0_244 = arith.constant 0 : index
    %c0_245 = arith.constant 0 : index
    %388 = vector.load %arg18[%c6_243, %c0_244, %c0_245] : memref<9x8x8xf32, #tpu.memory_space<vmem>>, vector<1x8x8xf32>
    %389 = vector.shape_cast %388 : vector<1x8x8xf32> to vector<8x8xf32>
    %cst_246 = arith.constant dense<0.000000e+00> : vector<16x8xf32>
    %390 = tpu.matmul %363, %389, %cst_246 {dimension_numbers = #tpu.dot_dimension_numbers<[1], [0], [0], [1], [0, 0, 1, 1], [], []>} : vector<16x8xf32>, vector<8x8xf32>, vector<16x8xf32> -> vector<16x8xf32>
    %391 = arith.truncf %390 : vector<16x8xf32> to vector<16x8xbf16>
    %c7_247 = arith.constant 7 : index
    %c0_248 = arith.constant 0 : index
    %c0_249 = arith.constant 0 : index
    %392 = vector.load %arg18[%c7_247, %c0_248, %c0_249] : memref<9x8x8xf32, #tpu.memory_space<vmem>>, vector<1x8x8xf32>
    %393 = vector.shape_cast %392 : vector<1x8x8xf32> to vector<8x8xf32>
    %cst_250 = arith.constant dense<0.000000e+00> : vector<16x8xf32>
    %394 = tpu.matmul %363, %393, %cst_250 {dimension_numbers = #tpu.dot_dimension_numbers<[1], [0], [0], [1], [0, 0, 1, 1], [], []>} : vector<16x8xf32>, vector<8x8xf32>, vector<16x8xf32> -> vector<16x8xf32>
    %395 = arith.truncf %394 : vector<16x8xf32> to vector<16x8xbf16>
    %c8_251 = arith.constant 8 : index
    %c0_252 = arith.constant 0 : index
    %c0_253 = arith.constant 0 : index
    %396 = vector.load %arg18[%c8_251, %c0_252, %c0_253] : memref<9x8x8xf32, #tpu.memory_space<vmem>>, vector<1x8x8xf32>
    %397 = vector.shape_cast %396 : vector<1x8x8xf32> to vector<8x8xf32>
    %cst_254 = arith.constant dense<0.000000e+00> : vector<16x8xf32>
    %398 = tpu.matmul %363, %397, %cst_254 {dimension_numbers = #tpu.dot_dimension_numbers<[1], [0], [0], [1], [0, 0, 1, 1], [], []>} : vector<16x8xf32>, vector<8x8xf32>, vector<16x8xf32> -> vector<16x8xf32>
    %399 = arith.truncf %398 : vector<16x8xf32> to vector<16x8xbf16>
    %400 = tpu.concatenate %367, %371, %375, %379, %383, %387, %391, %395, %399 in 0 : vector<16x8xbf16>, vector<16x8xbf16>, vector<16x8xbf16>, vector<16x8xbf16>, vector<16x8xbf16>, vector<16x8xbf16>, vector<16x8xbf16>, vector<16x8xbf16>, vector<16x8xbf16> -> vector<144x8xbf16>
    %cst_255 = arith.constant dense<0.000000e+00> : vector<8x8xf32>
    %401 = tpu.matmul %315, %400, %cst_255 {dimension_numbers = #tpu.dot_dimension_numbers<[1], [0], [0], [1], [0, 0, 1, 1], [], []>} : vector<8x144xbf16>, vector<144x8xbf16>, vector<8x8xf32> -> vector<8x8xf32>
    %402 = tpu.concatenate %309, %401 in 0 : vector<24x8xf32>, vector<8x8xf32> -> vector<32x8xf32>
    %c0_256 = arith.constant 0 : index
    %c0_257 = arith.constant 0 : index
    %403 = vector.load %arg31[%c0_256, %c0_257] : memref<32x1xf32, #tpu.memory_space<vmem>>, vector<32x1xf32>
    %c0_258 = arith.constant 0 : index
    %c0_259 = arith.constant 0 : index
    %404 = vector.load %arg32[%c0_258, %c0_259] : memref<32x1xf32, #tpu.memory_space<vmem>>, vector<32x1xf32>
    %c0_260 = arith.constant 0 : index
    %c0_261 = arith.constant 0 : index
    %405 = vector.load %arg33[%c0_260, %c0_261] : memref<8x2xf32, #tpu.memory_space<vmem>>, vector<8x2xf32>
    %c0_262 = arith.constant 0 : index
    %c0_263 = arith.constant 0 : index
    %406 = vector.load %arg34[%c0_262, %c0_263] : memref<10x32xf32, #tpu.memory_space<vmem>>, vector<10x32xf32>
    %c0_264 = arith.constant 0 : index
    %c0_265 = arith.constant 0 : index
    %407 = vector.load %arg35[%c0_264, %c0_265] : memref<10x1xf32, #tpu.memory_space<vmem>>, vector<10x1xf32>
    %cst_266 = arith.constant dense<0.000000e+00> : vector<32xf32>
    %408 = vector.multi_reduction <add>, %402, %cst_266 [1] : vector<32x8xf32> to vector<32xf32>
    %409 = vector.shape_cast %408 : vector<32xf32> to vector<32x1xf32>
    %cst_267 = arith.constant 8.000000e+00 : f32
    %410 = vector.broadcast %cst_267 : f32 to vector<32x1xf32>
    %411 = arith.divf %409, %410 : vector<32x1xf32>
    %412 = arith.mulf %402, %402 : vector<32x8xf32>
    %cst_268 = arith.constant dense<0.000000e+00> : vector<32xf32>
    %413 = vector.multi_reduction <add>, %412, %cst_268 [1] : vector<32x8xf32> to vector<32xf32>
    %414 = vector.shape_cast %413 : vector<32xf32> to vector<32x1xf32>
    %cst_269 = arith.constant 8.000000e+00 : f32
    %415 = vector.broadcast %cst_269 : f32 to vector<32x1xf32>
    %416 = arith.divf %414, %415 : vector<32x1xf32>
    %417 = arith.mulf %411, %411 : vector<32x1xf32>
    %418 = arith.subf %416, %417 : vector<32x1xf32>
    %cst_270 = arith.constant 9.99999974E-6 : f32
    %419 = vector.broadcast %cst_270 : f32 to vector<32x1xf32>
    %420 = arith.addf %418, %419 : vector<32x1xf32>
    %421 = math.rsqrt %420 : vector<32x1xf32>
    %422 = arith.mulf %403, %421 : vector<32x1xf32>
    %423 = vector.broadcast %422 : vector<32x1xf32> to vector<32x8xf32>
    %424 = arith.mulf %402, %423 : vector<32x8xf32>
    %425 = arith.mulf %411, %422 : vector<32x1xf32>
    %426 = arith.subf %404, %425 : vector<32x1xf32>
    %427 = vector.broadcast %426 : vector<32x1xf32> to vector<32x8xf32>
    %428 = arith.addf %424, %427 : vector<32x8xf32>
    %cst_271 = arith.constant 0.000000e+00 : f32
    %429 = vector.broadcast %cst_271 : f32 to vector<32x8xf32>
    %430 = arith.maximumf %428, %429 : vector<32x8xf32>
    %cst_272 = arith.constant dense<0.000000e+00> : vector<32x2xf32>
    %431 = tpu.matmul %430, %405, %cst_272 {dimension_numbers = #tpu.dot_dimension_numbers<[1], [0], [0], [1], [0, 0, 1, 1], [], []>} : vector<32x8xf32>, vector<8x2xf32>, vector<32x2xf32> -> vector<32x2xf32>
    %cst_273 = arith.constant dense<0.000000e+00> : vector<10x2xf32>
    %432 = tpu.matmul %406, %431, %cst_273 {dimension_numbers = #tpu.dot_dimension_numbers<[1], [0], [0], [1], [0, 0, 1, 1], [], []>} : vector<10x32xf32>, vector<32x2xf32>, vector<10x2xf32> -> vector<10x2xf32>
    %433 = vector.broadcast %407 : vector<10x1xf32> to vector<10x2xf32>
    %434 = arith.addf %432, %433 : vector<10x2xf32>
    %c0_274 = arith.constant 0 : index
    %c0_275 = arith.constant 0 : index
    %435 = vector.load %arg36[%c0_274, %c0_275] : memref<10x2xf32, #tpu.memory_space<vmem>>, vector<10x2xf32>
    tpu.vector_store %arg36[%c0_274, %c0_275], %434 {strides = array<i32>} : memref<10x2xf32, #tpu.memory_space<vmem>>, vector<10x2xf32>,
    return
  }
}

</mosaic_0001>

<llo_original>
// kernel: densenet_forward.4
$region0: #{densenet_forward.4}
  #allocation0 [shape = 'u32[]', space=smem, size = 0x4, offset = 0x4, fixed_abs, tag = 'smem constant byte address 0x4 - core index']
  #allocation1 [shape = 'u32[144,128]{1,0:T(1,128)}', space=vmem, size = 0x12000, scoped, tag = 'internal scratch']
  %s0 = inlined_call_operand.vmem [shape: f32[16,128], index: 0, kind: input, shape index: {}]
  %s1 = inlined_call_operand.vmem [shape: f32[9,128], index: 1, kind: input, shape index: {}]
  %s2 = inlined_call_operand.vmem [shape: f32[16,1], index: 2, kind: input, shape index: {}]
  %s3 = inlined_call_operand.vmem [shape: f32[16,1], index: 3, kind: input, shape index: {}]
  %s4 = inlined_call_operand.vmem [shape: bf16[16,16], index: 4, kind: input, shape index: {}]
  %s5 = inlined_call_operand.vmem [shape: f32[16,1], index: 5, kind: input, shape index: {}]
  %s6 = inlined_call_operand.vmem [shape: f32[16,1], index: 6, kind: input, shape index: {}]
  %s7 = inlined_call_operand.vmem [shape: bf16[8,144], index: 7, kind: input, shape index: {}]
  %s8 = inlined_call_operand.vmem [shape: f32[24,1], index: 8, kind: input, shape index: {}]
  %s9 = inlined_call_operand.vmem [shape: f32[24,1], index: 9, kind: input, shape index: {}]
  %s10 = inlined_call_operand.vmem [shape: bf16[16,24], index: 10, kind: input, shape index: {}]
  %s11 = inlined_call_operand.vmem [shape: f32[16,1], index: 11, kind: input, shape index: {}]
  %s12 = inlined_call_operand.vmem [shape: f32[16,1], index: 12, kind: input, shape index: {}]
  %s13 = inlined_call_operand.vmem [shape: bf16[8,144], index: 13, kind: input, shape index: {}]
  %s14 = inlined_call_operand.vmem [shape: f32[32,1], index: 14, kind: input, shape index: {}]
  %s15 = inlined_call_operand.vmem [shape: f32[32,1], index: 15, kind: input, shape index: {}]
  %s16 = inlined_call_operand.vmem [shape: bf16[16,32], index: 16, kind: input, shape index: {}]
  %s17 = inlined_call_operand.vmem [shape: f32[128,32], index: 17, kind: input, shape index: {}]
  %s18 = inlined_call_operand.vmem [shape: f32[16,32], index: 18, kind: output, shape index: {}]
  %s19 = sld [smem:[#allocation0]]
  $region82: #{densenet_forward.4} parent=0
    _
  %s21 = ssub.s32 1, %s19
  %s22 = scalar_select 0, %s21, %s19
  // Predicated region
  $region2: #{densenet_forward.4} parent=0 // pred_check
    _
  $region3: #{densenet_forward.4} parent=0 // pred_check_branch
    %24 = sbr.rel (0) target = $region5
  $region4: #{densenet_forward.4} parent=0 // pred_region
    _
  $region5: #{densenet_forward.4} parent=0 // pred_fallthru
    _
  // Predicated region
  $region6: #{densenet_forward.4} parent=0 // pred_check
    _
  $region7: #{densenet_forward.4} parent=0 // pred_check_branch
    %26 = sbr.rel (0) target = $region9
  $region8: #{densenet_forward.4} parent=0 // pred_region
    _
  $region9: #{densenet_forward.4} parent=0 // pred_fallthru
    _
  // Predicated region
  $region10: #{densenet_forward.4} parent=0 // pred_check
    _
  $region11: #{densenet_forward.4} parent=0 // pred_check_branch
    %28 = sbr.rel (0) target = $region13
  $region12: #{densenet_forward.4} parent=0 // pred_region
    _
  $region13: #{densenet_forward.4} parent=0 // pred_fallthru
    _
  // Predicated region
  $region14: #{densenet_forward.4} parent=0 // pred_check
    _
  $region15: #{densenet_forward.4} parent=0 // pred_check_branch
    %30 = sbr.rel (0) target = $region17
  $region16: #{densenet_forward.4} parent=0 // pred_region
    _
  $region17: #{densenet_forward.4} parent=0 // pred_fallthru
    _
  // Predicated region
  $region18: #{densenet_forward.4} parent=0 // pred_check
    _
  $region19: #{densenet_forward.4} parent=0 // pred_check_branch
    %32 = sbr.rel (0) target = $region21
  $region20: #{densenet_forward.4} parent=0 // pred_region
    _
  $region21: #{densenet_forward.4} parent=0 // pred_fallthru
    _
  // Predicated region
  $region22: #{densenet_forward.4} parent=0 // pred_check
    _
  $region23: #{densenet_forward.4} parent=0 // pred_check_branch
    %34 = sbr.rel (0) target = $region25
  $region24: #{densenet_forward.4} parent=0 // pred_region
    _
  $region25: #{densenet_forward.4} parent=0 // pred_fallthru
    _
  // Predicated region
  $region26: #{densenet_forward.4} parent=0 // pred_check
    _
  $region27: #{densenet_forward.4} parent=0 // pred_check_branch
    %36 = sbr.rel (0) target = $region29
  $region28: #{densenet_forward.4} parent=0 // pred_region
    _
  $region29: #{densenet_forward.4} parent=0 // pred_fallthru
    _
  // Predicated region
  $region30: #{densenet_forward.4} parent=0 // pred_check
    _
  $region31: #{densenet_forward.4} parent=0 // pred_check_branch
    %38 = sbr.rel (0) target = $region33
  $region32: #{densenet_forward.4} parent=0 // pred_region
    _
  $region33: #{densenet_forward.4} parent=0 // pred_fallthru
    _
  // Predicated region
  $region34: #{densenet_forward.4} parent=0 // pred_check
    _
  $region35: #{densenet_forward.4} parent=0 // pred_check_branch
    %40 = sbr.rel (0) target = $region37
  $region36: #{densenet_forward.4} parent=0 // pred_region
    _
  $region37: #{densenet_forward.4} parent=0 // pred_fallthru
    _
  // Predicated region
  $region38: #{densenet_forward.4} parent=0 // pred_check
    _
  $region39: #{densenet_forward.4} parent=0 // pred_check_branch
    %42 = sbr.rel (0) target = $region41
  $region40: #{densenet_forward.4} parent=0 // pred_region
    _
  $region41: #{densenet_forward.4} parent=0 // pred_fallthru
    _
  // Predicated region
  $region42: #{densenet_forward.4} parent=0 // pred_check
    _
  $region43: #{densenet_forward.4} parent=0 // pred_check_branch
    %44 = sbr.rel (0) target = $region45
  $region44: #{densenet_forward.4} parent=0 // pred_region
    _
  $region45: #{densenet_forward.4} parent=0 // pred_fallthru
    _
  // Predicated region
  $region46: #{densenet_forward.4} parent=0 // pred_check
    _
  $region47: #{densenet_forward.4} parent=0 // pred_check_branch
    %46 = sbr.rel (0) target = $region49
  $region48: #{densenet_forward.4} parent=0 // pred_region
    _
  $region49: #{densenet_forward.4} parent=0 // pred_fallthru
    _
  // Predicated region
  $region50: #{densenet_forward.4} parent=0 // pred_check
    _
  $region51: #{densenet_forward.4} parent=0 // pred_check_branch
    %48 = sbr.rel (0) target = $region53
  $region52: #{densenet_forward.4} parent=0 // pred_region
    _
  $region53: #{densenet_forward.4} parent=0 // pred_fallthru
    _
  // Predicated region
  $region54: #{densenet_forward.4} parent=0 // pred_check
    _
  $region55: #{densenet_forward.4} parent=0 // pred_check_branch
    %50 = sbr.rel (0) target = $region57
  $region56: #{densenet_forward.4} parent=0 // pred_region
    _
  $region57: #{densenet_forward.4} parent=0 // pred_fallthru
    _
  // Predicated region
  $region58: #{densenet_forward.4} parent=0 // pred_check
    _
  $region59: #{densenet_forward.4} parent=0 // pred_check_branch
    %52 = sbr.rel (0) target = $region61
  $region60: #{densenet_forward.4} parent=0 // pred_region
    _
  $region61: #{densenet_forward.4} parent=0 // pred_fallthru
    _
  // Predicated region
  $region62: #{densenet_forward.4} parent=0 // pred_check
    _
  $region63: #{densenet_forward.4} parent=0 // pred_check_branch
    %54 = sbr.rel (0) target = $region65
  $region64: #{densenet_forward.4} parent=0 // pred_region
    _
  $region65: #{densenet_forward.4} parent=0 // pred_fallthru
    _
  // Predicated region
  $region66: #{densenet_forward.4} parent=0 // pred_check
    _
  $region67: #{densenet_forward.4} parent=0 // pred_check_branch
    %56 = sbr.rel (0) target = $region69
  $region68: #{densenet_forward.4} parent=0 // pred_region
    _
  $region69: #{densenet_forward.4} parent=0 // pred_fallthru
    _
  // Predicated region
  $region70: #{densenet_forward.4} parent=0 // pred_check
    _
  $region71: #{densenet_forward.4} parent=0 // pred_check_branch
    %58 = sbr.rel (0) target = $region73
  $region72: #{densenet_forward.4} parent=0 // pred_region
    _
  $region73: #{densenet_forward.4} parent=0 // pred_fallthru
    _
  %v60 = vld [vmem:[%s0] sm:$0xff]
  %v61 = vld [vmem:[%s0 + $0x8] sm:$0xff]
  %v62 = vld [vmem:[%s2] sm:$0xff]
  %v63 = vld [vmem:[%s2 + $0x8] sm:$0xff]
  %v64 = vld [vmem:[%s3] sm:$0xff]
  %v65 = vld [vmem:[%s3 + $0x8] sm:$0xff]
  %v66 = vld [vmem:[%s4] sm:$0xf]
  %v67 = vld [vmem:[%s4 + $0x4] sm:$0xf]
  %v68 = vld [vmem:[%s5] sm:$0xff]
  %v69 = vld [vmem:[%s5 + $0x8] sm:$0xff]
  %v70 = vld [vmem:[%s6] sm:$0xff]
  %v71 = vld [vmem:[%s6 + $0x8] sm:$0xff]
  %v72 = vld [vmem:[%s7] sm:$0xff]
  %73 = vadd.xlane.f32.xlu0 %v60
  %v74 = vpop.xlane.xlu0 %73
  %75 = vadd.xlane.f32.xlu0 %v61
  %v76 = vpop.xlane.xlu0 %75
  %v77 = vrcp.pop 128.0
  %v78 = vmul.f32 %v74, %v77
  %v79 = vmul.f32 %v76, %v77
  %v80 = vmul.f32 %v60, %v60
  %v81 = vmul.f32 %v61, %v61
  %82 = vadd.xlane.f32.xlu0 %v80
  %v83 = vpop.xlane.xlu0 %82
  %84 = vadd.xlane.f32.xlu0 %v81
  %v85 = vpop.xlane.xlu0 %84
  %v86 = vmul.f32 %v83, %v77
  %v87 = vmul.f32 %v85, %v77
  %v88 = vmul.f32 %v78, %v78
  %v89 = vmul.f32 %v79, %v79
  %v90 = vsub.f32 %v86, %v88
  %v91 = vsub.f32 %v87, %v89
  %v92 = vadd.f32 %v90, 1e-05
  %v93 = vadd.f32 %v91, 1e-05
  %v94 = vrsqrt.pop %v92
  %v95 = vrsqrt.pop %v93
  %v96 = vmul.f32 %v62, %v94
  %v97 = vmul.f32 %v63, %v95
  %99 = vset.pattern.permute.xlu0 0
  %100 = vperm.xlu0 %99, %v96
  %v101 = vpop.permute.xlu0 %100
  %104 = vset.pattern.permute.xlu0 0
  %105 = vperm.xlu0 %104, %v97
  %v106 = vpop.permute.xlu0 %105
  %v108 = vmul.f32 %v60, %v101
  %v109 = vmul.f32 %v61, %v106
  %v110 = vmul.f32 %v78, %v96
  %v111 = vmul.f32 %v79, %v97
  %v112 = vsub.f32 %v64, %v110
  %v113 = vsub.f32 %v65, %v111
  %115 = vset.pattern.permute.xlu0 0
  %116 = vperm.xlu0 %115, %v112
  %v117 = vpop.permute.xlu0 %116
  %120 = vset.pattern.permute.xlu0 0
  %121 = vperm.xlu0 %120, %v113
  %v122 = vpop.permute.xlu0 %121
  %v124 = vadd.f32 %v108, %v117
  %v125 = vadd.f32 %v109, %v122
  %v126 = vmax.f32 %v124, 0.0
  %v127 = vmax.f32 %v125, 0.0
  %v128 = vpack.c.bf16 %v127, %v126
  %v131 = vunpack.c.l.b16 %v66
  %v132 = vunpack.c.l.b16 %v67
  %v133 = vpack.c.b16 %v132, %v131
  %vm134 = vcmask 130048
  %v136 = vsel %vm134, %v133, 0
  %138 = vmatprep.subr.bf16.mxu0 0
  %139 = vmatpush1.bf16.msra.mxu0 %v128
  %140 = vmatprep.subr.bf16.mxu0 0
  %141 = vmatpush1.bf16.msra.mxu0 0
  %142 = vmatprep.subr.bf16.mxu0 0
  %143 = vmatpush1.bf16.msra.mxu0 0
  %144 = vmatprep.subr.bf16.mxu0 0
  %145 = vmatpush1.bf16.msra.mxu0 0
  %146 = vmatprep.subr.bf16.mxu0 0
  %147 = vmatpush1.bf16.msra.mxu0 0
  %148 = vmatprep.subr.bf16.mxu0 0
  %149 = vmatpush1.bf16.msra.mxu0 0
  %150 = vmatprep.subr.bf16.mxu0 0
  %151 = vmatpush1.bf16.msra.mxu0 0
  %152 = vmatprep.subr.bf16.mxu0 0
  %153 = vmatpush1.bf16.msra.mxu0 0
  %154 = vmatprep.subr.bf16.mxu0 0
  %155 = vmatpush1.bf16.msra.mxu0 0
  %156 = vmatprep.subr.bf16.mxu0 0
  %157 = vmatpush1.bf16.msra.mxu0 0
  %158 = vmatprep.subr.bf16.mxu0 0
  %159 = vmatpush1.bf16.msra.mxu0 0
  %160 = vmatprep.subr.bf16.mxu0 0
  %161 = vmatpush1.bf16.msra.mxu0 0
  %162 = vmatprep.subr.bf16.mxu0 0
  %163 = vmatpush1.bf16.msra.mxu0 0
  %164 = vmatprep.subr.bf16.mxu0 0
  %165 = vmatpush1.bf16.msra.mxu0 0
  %166 = vmatprep.subr.bf16.mxu0 0
  %167 = vmatpush1.bf16.msra.mxu0 0
  %168 = vmatprep.subr.bf16.mxu0 0
  %169 = vmatpush1.bf16.msra.mxu0 0
  %170 = vmatprep.mubr.bf16.mxu0 0
  %171 = vmatmul.mubr.bf16.gmra.mrb[0].mxu0 %v136
  %v172 = vpop.f32.mrb[0].mxu0
  %v173 = vadd.f32 0.0, %v172
  %v174 = vpop.f32.mrb[0].mxu0
  %v175 = vpop.f32.mrb[0].mxu0
  %v176 = vadd.f32 0.0, %v175
  %v177 = vpop.f32.mrb[0].mxu0
  %178 = vdwg.mxu0
  %179 = vadd.xlane.f32.xlu0 %v173
  %v180 = vpop.xlane.xlu0 %179
  %181 = vadd.xlane.f32.xlu0 %v176
  %v182 = vpop.xlane.xlu0 %181
  %v183 = vmul.f32 %v180, %v77
  %v184 = vmul.f32 %v182, %v77
  %v185 = vmul.f32 %v173, %v173
  %v186 = vmul.f32 %v176, %v176
  %187 = vadd.xlane.f32.xlu0 %v185
  %v188 = vpop.xlane.xlu0 %187
  %189 = vadd.xlane.f32.xlu0 %v186
  %v190 = vpop.xlane.xlu0 %189
  %v191 = vmul.f32 %v188, %v77
  %v192 = vmul.f32 %v190, %v77
  %v193 = vmul.f32 %v183, %v183
  %v194 = vmul.f32 %v184, %v184
  %v195 = vsub.f32 %v191, %v193
  %v196 = vsub.f32 %v192, %v194
  %v197 = vadd.f32 %v195, 1e-05
  %v198 = vadd.f32 %v196, 1e-05
  %v199 = vrsqrt.pop %v197
  %v200 = vrsqrt.pop %v198
  %v201 = vmul.f32 %v68, %v199
  %v202 = vmul.f32 %v69, %v200
  %204 = vset.pattern.permute.xlu0 0
  %205 = vperm.xlu0 %204, %v201
  %v206 = vpop.permute.xlu0 %205
  %209 = vset.pattern.permute.xlu0 0
  %210 = vperm.xlu0 %209, %v202
  %v211 = vpop.permute.xlu0 %210
  %v213 = vmul.f32 %v173, %v206
  %v214 = vmul.f32 %v176, %v211
  %v215 = vmul.f32 %v183, %v201
  %v216 = vmul.f32 %v184, %v202
  %v217 = vsub.f32 %v70, %v215
  %v218 = vsub.f32 %v71, %v216
  %220 = vset.pattern.permute.xlu0 0
  %221 = vperm.xlu0 %220, %v217
  %v222 = vpop.permute.xlu0 %221
  %225 = vset.pattern.permute.xlu0 0
  %226 = vperm.xlu0 %225, %v218
  %v227 = vpop.permute.xlu0 %226
  %v229 = vadd.f32 %v213, %v222
  %v230 = vadd.f32 %v214, %v227
  %v231 = vmax.f32 %v229, 0.0
  %v232 = vmax.f32 %v230, 0.0
  %233 = vrot.lane.b32.xlu0 %v231, 9
  %v234 = vpop.permute.xlu0 %233
  %235 = vrot.lane.b32.xlu0 %v232, 9
  %v236 = vpop.permute.xlu0 %235
  %v237 = vld [vmem:[%s1] sm:$0x1]
  %v238 = vlaneseq
  %v239 = vshrl.u32 %v238, 7
  %v240 = vsub.s32 0, %v239
  %v241 = vrot.slane %v237, %v240
  %v242 = vmul.f32 %v234, %v241
  %v243 = vmul.f32 %v236, %v241
  %v244 = vpack.c.bf16 %v243, %v242
  %245 = vrot.lane.b32.xlu0 %v231, 8
  %v246 = vpop.permute.xlu0 %245
  %247 = vrot.lane.b32.xlu0 %v232, 8
  %v248 = vpop.permute.xlu0 %247
  %v249 = vld [vmem:[%s1 + $0x1] sm:$0x1]
  %v250 = vlaneseq
  %v251 = vshrl.u32 %v250, 7
  %v252 = vsub.s32 0, %v251
  %v253 = vrot.slane %v249, %v252
  %v254 = vmul.f32 %v246, %v253
  %v255 = vmul.f32 %v248, %v253
  %v256 = vpack.c.bf16 %v255, %v254
  %257 = vrot.lane.b32.xlu0 %v231, 7
  %v258 = vpop.permute.xlu0 %257
  %259 = vrot.lane.b32.xlu0 %v232, 7
  %v260 = vpop.permute.xlu0 %259
  %v261 = vld [vmem:[%s1 + $0x2] sm:$0x1]
  %v262 = vlaneseq
  %v263 = vshrl.u32 %v262, 7
  %v264 = vsub.s32 0, %v263
  %v265 = vrot.slane %v261, %v264
  %v266 = vmul.f32 %v258, %v265
  %v267 = vmul.f32 %v260, %v265
  %v268 = vpack.c.bf16 %v267, %v266
  %269 = vrot.lane.b32.xlu0 %v231, 1
  %v270 = vpop.permute.xlu0 %269
  %271 = vrot.lane.b32.xlu0 %v232, 1
  %v272 = vpop.permute.xlu0 %271
  %v273 = vld [vmem:[%s1 + $0x3] sm:$0x1]
  %v274 = vlaneseq
  %v275 = vshrl.u32 %v274, 7
  %v276 = vsub.s32 0, %v275
  %v277 = vrot.slane %v273, %v276
  %v278 = vmul.f32 %v270, %v277
  %v279 = vmul.f32 %v272, %v277
  %v280 = vpack.c.bf16 %v279, %v278
  %v281 = vpack.c.bf16 %v232, %v231
  %282 = vrot.lane.b32.xlu0 %v231, 127
  %v283 = vpop.permute.xlu0 %282
  %284 = vrot.lane.b32.xlu0 %v232, 127
  %v285 = vpop.permute.xlu0 %284
  %v286 = vld [vmem:[%s1 + $0x5] sm:$0x1]
  %v287 = vlaneseq
  %v288 = vshrl.u32 %v287, 7
  %v289 = vsub.s32 0, %v288
  %v290 = vrot.slane %v286, %v289
  %v291 = vmul.f32 %v283, %v290
  %v292 = vmul.f32 %v285, %v290
  %v293 = vpack.c.bf16 %v292, %v291
  %294 = vrot.lane.b32.xlu0 %v231, 121
  %v295 = vpop.permute.xlu0 %294
  %296 = vrot.lane.b32.xlu0 %v232, 121
  %v297 = vpop.permute.xlu0 %296
  %v298 = vld [vmem:[%s1 + $0x6] sm:$0x1]
  %v299 = vlaneseq
  %v300 = vshrl.u32 %v299, 7
  %v301 = vsub.s32 0, %v300
  %v302 = vrot.slane %v298, %v301
  %v303 = vmul.f32 %v295, %v302
  %v304 = vmul.f32 %v297, %v302
  %v305 = vpack.c.bf16 %v304, %v303
  %306 = vrot.lane.b32.xlu0 %v231, 120
  %v307 = vpop.permute.xlu0 %306
  %308 = vrot.lane.b32.xlu0 %v232, 120
  %v309 = vpop.permute.xlu0 %308
  %v310 = vld [vmem:[%s1 + $0x7] sm:$0x1]
  %v311 = vlaneseq
  %v312 = vshrl.u32 %v311, 7
  %v313 = vsub.s32 0, %v312
  %v314 = vrot.slane %v310, %v313
  %v315 = vmul.f32 %v307, %v314
  %v316 = vmul.f32 %v309, %v314
  %v317 = vpack.c.bf16 %v316, %v315
  %318 = vrot.lane.b32.xlu0 %v231, 119
  %v319 = vpop.permute.xlu0 %318
  %320 = vrot.lane.b32.xlu0 %v232, 119
  %v321 = vpop.permute.xlu0 %320
  %v322 = vld [vmem:[%s1 + $0x8] sm:$0x1]
  %v323 = vlaneseq
  %v324 = vshrl.u32 %v323, 7
  %v325 = vsub.s32 0, %v324
  %v326 = vrot.slane %v322, %v325
  %v327 = vmul.f32 %v319, %v326
  %v328 = vmul.f32 %v321, %v326
  %v329 = vpack.c.bf16 %v328, %v327
  %v331 = vunpack.c.l.b16 %v72
  %v332 = vunpack.c.h.b16 %v72
  %v333 = vpack.c.b16 %v331, %v331
  %v334 = vpack.c.b16 %v332, %v332
  %v337 = vsel %vm134, %v334, 0
  %339 = vmatprep.subr.bf16.mxu0 0
  %340 = vmatpush1.bf16.msra.mxu0 %v244
  %341 = vmatprep.subr.bf16.mxu0 0
  %342 = vmatpush1.bf16.msra.mxu0 %v256
  %343 = vmatprep.subr.bf16.mxu0 0
  %344 = vmatpush1.bf16.msra.mxu0 %v268
  %345 = vmatprep.subr.bf16.mxu0 0
  %346 = vmatpush1.bf16.msra.mxu0 %v280
  %347 = vmatprep.subr.bf16.mxu0 0
  %348 = vmatpush1.bf16.msra.mxu0 %v281
  %349 = vmatprep.subr.bf16.mxu0 0
  %350 = vmatpush1.bf16.msra.mxu0 %v293
  %351 = vmatprep.subr.bf16.mxu0 0
  %352 = vmatpush1.bf16.msra.mxu0 %v305
  %353 = vmatprep.subr.bf16.mxu0 0
  %354 = vmatpush1.bf16.msra.mxu0 %v317
  %355 = vmatprep.subr.bf16.mxu0 0
  %356 = vmatpush1.bf16.msra.mxu0 %v329
  %357 = vmatprep.subr.bf16.mxu0 0
  %358 = vmatpush1.bf16.msra.mxu0 0
  %359 = vmatprep.subr.bf16.mxu0 0
  %360 = vmatpush1.bf16.msra.mxu0 0
  %361 = vmatprep.subr.bf16.mxu0 0
  %362 = vmatpush1.bf16.msra.mxu0 0
  %363 = vmatprep.subr.bf16.mxu0 0
  %364 = vmatpush1.bf16.msra.mxu0 0
  %365 = vmatprep.subr.bf16.mxu0 0
  %366 = vmatpush1.bf16.msra.mxu0 0
  %367 = vmatprep.subr.bf16.mxu0 0
  %368 = vmatpush1.bf16.msra.mxu0 0
  %369 = vmatprep.subr.bf16.mxu0 0
  %370 = vmatpush1.bf16.msra.mxu0 0
  %371 = vmatprep.mubr.bf16.mxu0 %v337
  %372 = vmatmul.mubr.bf16.gmra.mrb[0].mxu0 %v333
  %v373 = vpop.f32.mrb[0].mxu0
  %v374 = vadd.f32 0.0, %v373
  %v375 = vpop.f32.mrb[0].mxu0
  %v376 = vpop.f32.mrb[0].mxu0
  %v377 = vpop.f32.mrb[0].mxu0
  %378 = vdwg.mxu0
  %v379 = vld [vmem:[%s8] sm:$0xff]
  %v380 = vld [vmem:[%s8 + $0x8] sm:$0xff]
  %v381 = vld [vmem:[%s8 + $0x10] sm:$0xff]
  %v382 = vld [vmem:[%s9] sm:$0xff]
  %v383 = vld [vmem:[%s9 + $0x8] sm:$0xff]
  %v384 = vld [vmem:[%s9 + $0x10] sm:$0xff]
  %v385 = vld [vmem:[%s10] sm:$0xf]
  %v386 = vld [vmem:[%s10 + $0x4] sm:$0xf]
  %v387 = vld [vmem:[%s11] sm:$0xff]
  %v388 = vld [vmem:[%s11 + $0x8] sm:$0xff]
  %v389 = vld [vmem:[%s12] sm:$0xff]
  %v390 = vld [vmem:[%s12 + $0x8] sm:$0xff]
  %v391 = vld [vmem:[%s13] sm:$0xff]
  %392 = vadd.xlane.f32.xlu0 %v374
  %v393 = vpop.xlane.xlu0 %392
  %v394 = vmul.f32 %v393, %v77
  %v395 = vmul.f32 %v374, %v374
  %396 = vadd.xlane.f32.xlu0 %v395
  %v397 = vpop.xlane.xlu0 %396
  %v398 = vmul.f32 %v397, %v77
  %v399 = vmul.f32 %v394, %v394
  %v400 = vsub.f32 %v398, %v399
  %v401 = vadd.f32 %v400, 1e-05
  %v402 = vrsqrt.pop %v401
  %v403 = vmul.f32 %v379, %v94
  %v404 = vmul.f32 %v380, %v95
  %v405 = vmul.f32 %v381, %v402
  %407 = vset.pattern.permute.xlu0 0
  %408 = vperm.xlu0 %407, %v403
  %v409 = vpop.permute.xlu0 %408
  %412 = vset.pattern.permute.xlu0 0
  %413 = vperm.xlu0 %412, %v404
  %v414 = vpop.permute.xlu0 %413
  %417 = vset.pattern.permute.xlu0 0
  %418 = vperm.xlu0 %417, %v405
  %v419 = vpop.permute.xlu0 %418
  %v421 = vmul.f32 %v60, %v409
  %v422 = vmul.f32 %v61, %v414
  %v423 = vmul.f32 %v374, %v419
  %v424 = vmul.f32 %v78, %v403
  %v425 = vmul.f32 %v79, %v404
  %v426 = vmul.f32 %v394, %v405
  %v427 = vsub.f32 %v382, %v424
  %v428 = vsub.f32 %v383, %v425
  %v429 = vsub.f32 %v384, %v426
  %431 = vset.pattern.permute.xlu0 0
  %432 = vperm.xlu0 %431, %v427
  %v433 = vpop.permute.xlu0 %432
  %436 = vset.pattern.permute.xlu0 0
  %437 = vperm.xlu0 %436, %v428
  %v438 = vpop.permute.xlu0 %437
  %441 = vset.pattern.permute.xlu0 0
  %442 = vperm.xlu0 %441, %v429
  %v443 = vpop.permute.xlu0 %442
  %v445 = vadd.f32 %v421, %v433
  %v446 = vadd.f32 %v422, %v438
  %v447 = vadd.f32 %v423, %v443
  %v448 = vmax.f32 %v445, 0.0
  %v449 = vmax.f32 %v446, 0.0
  %v450 = vmax.f32 %v447, 0.0
  %v451 = vpack.c.bf16 %v449, %v448
  %v452 = vpack.c.bf16 %v450, %v450
  %v455 = vunpack.c.l.b16 %v385
  %v456 = vunpack.c.l.b16 %v386
  %v457 = vpack.c.b16 %v456, %v455
  %vm458 = vcmask 195584
  %v460 = vsel %vm458, %v457, 0
  %vm462 = vcmask 1043456
  %v464 = vsel %vm462, %v452, 0
  %466 = vmatprep.subr.bf16.mxu0 0
  %467 = vmatpush1.bf16.msra.mxu0 %v451
  %468 = vmatprep.subr.bf16.mxu0 0
  %469 = vmatpush1.bf16.msra.mxu0 %v464
  %470 = vmatprep.subr.bf16.mxu0 0
  %471 = vmatpush1.bf16.msra.mxu0 0
  %472 = vmatprep.subr.bf16.mxu0 0
  %473 = vmatpush1.bf16.msra.mxu0 0
  %474 = vmatprep.subr.bf16.mxu0 0
  %475 = vmatpush1.bf16.msra.mxu0 0
  %476 = vmatprep.subr.bf16.mxu0 0
  %477 = vmatpush1.bf16.msra.mxu0 0
  %478 = vmatprep.subr.bf16.mxu0 0
  %479 = vmatpush1.bf16.msra.mxu0 0
  %480 = vmatprep.subr.bf16.mxu0 0
  %481 = vmatpush1.bf16.msra.mxu0 0
  %482 = vmatprep.subr.bf16.mxu0 0
  %483 = vmatpush1.bf16.msra.mxu0 0
  %484 = vmatprep.subr.bf16.mxu0 0
  %485 = vmatpush1.bf16.msra.mxu0 0
  %486 = vmatprep.subr.bf16.mxu0 0
  %487 = vmatpush1.bf16.msra.mxu0 0
  %488 = vmatprep.subr.bf16.mxu0 0
  %489 = vmatpush1.bf16.msra.mxu0 0
  %490 = vmatprep.subr.bf16.mxu0 0
  %491 = vmatpush1.bf16.msra.mxu0 0
  %492 = vmatprep.subr.bf16.mxu0 0
  %493 = vmatpush1.bf16.msra.mxu0 0
  %494 = vmatprep.subr.bf16.mxu0 0
  %495 = vmatpush1.bf16.msra.mxu0 0
  %496 = vmatprep.subr.bf16.mxu0 0
  %497 = vmatpush1.bf16.msra.mxu0 0
  %498 = vmatprep.mubr.bf16.mxu0 0
  %499 = vmatmul.mubr.bf16.gmra.mrb[0].mxu0 %v460
  %v500 = vpop.f32.mrb[0].mxu0
  %v501 = vadd.f32 0.0, %v500
  %v502 = vpop.f32.mrb[0].mxu0
  %v503 = vpop.f32.mrb[0].mxu0
  %v504 = vadd.f32 0.0, %v503
  %v505 = vpop.f32.mrb[0].mxu0
  %506 = vdwg.mxu0
  %507 = vadd.xlane.f32.xlu0 %v501
  %v508 = vpop.xlane.xlu0 %507
  %509 = vadd.xlane.f32.xlu0 %v504
  %v510 = vpop.xlane.xlu0 %509
  %v511 = vmul.f32 %v508, %v77
  %v512 = vmul.f32 %v510, %v77
  %v513 = vmul.f32 %v501, %v501
  %v514 = vmul.f32 %v504, %v504
  %515 = vadd.xlane.f32.xlu0 %v513
  %v516 = vpop.xlane.xlu0 %515
  %517 = vadd.xlane.f32.xlu0 %v514
  %v518 = vpop.xlane.xlu0 %517
  %v519 = vmul.f32 %v516, %v77
  %v520 = vmul.f32 %v518, %v77
  %v521 = vmul.f32 %v511, %v511
  %v522 = vmul.f32 %v512, %v512
  %v523 = vsub.f32 %v519, %v521
  %v524 = vsub.f32 %v520, %v522
  %v525 = vadd.f32 %v523, 1e-05
  %v526 = vadd.f32 %v524, 1e-05
  %v527 = vrsqrt.pop %v525
  %v528 = vrsqrt.pop %v526
  %v529 = vmul.f32 %v387, %v527
  %v530 = vmul.f32 %v388, %v528
  %532 = vset.pattern.permute.xlu0 0
  %533 = vperm.xlu0 %532, %v529
  %v534 = vpop.permute.xlu0 %533
  %537 = vset.pattern.permute.xlu0 0
  %538 = vperm.xlu0 %537, %v530
  %v539 = vpop.permute.xlu0 %538
  %v541 = vmul.f32 %v501, %v534
  %v542 = vmul.f32 %v504, %v539
  %v543 = vmul.f32 %v511, %v529
  %v544 = vmul.f32 %v512, %v530
  %v545 = vsub.f32 %v389, %v543
  %v546 = vsub.f32 %v390, %v544
  %548 = vset.pattern.permute.xlu0 0
  %549 = vperm.xlu0 %548, %v545
  %v550 = vpop.permute.xlu0 %549
  %553 = vset.pattern.permute.xlu0 0
  %554 = vperm.xlu0 %553, %v546
  %v555 = vpop.permute.xlu0 %554
  %v557 = vadd.f32 %v541, %v550
  %v558 = vadd.f32 %v542, %v555
  %v559 = vmax.f32 %v557, 0.0
  %v560 = vmax.f32 %v558, 0.0
  %561 = vrot.lane.b32.xlu0 %v559, 9
  %v562 = vpop.permute.xlu0 %561
  %563 = vrot.lane.b32.xlu0 %v560, 9
  %v564 = vpop.permute.xlu0 %563
  %v565 = vmul.f32 %v562, %v241
  %v566 = vmul.f32 %v564, %v241
  %v567 = vpack.c.bf16 %v566, %v565
  %568 = vrot.lane.b32.xlu0 %v559, 8
  %v569 = vpop.permute.xlu0 %568
  %570 = vrot.lane.b32.xlu0 %v560, 8
  %v571 = vpop.permute.xlu0 %570
  %v572 = vmul.f32 %v569, %v253
  %v573 = vmul.f32 %v571, %v253
  %v574 = vpack.c.bf16 %v573, %v572
  %575 = vrot.lane.b32.xlu0 %v559, 7
  %v576 = vpop.permute.xlu0 %575
  %577 = vrot.lane.b32.xlu0 %v560, 7
  %v578 = vpop.permute.xlu0 %577
  %v579 = vmul.f32 %v576, %v265
  %v580 = vmul.f32 %v578, %v265
  %v581 = vpack.c.bf16 %v580, %v579
  %582 = vrot.lane.b32.xlu0 %v559, 1
  %v583 = vpop.permute.xlu0 %582
  %584 = vrot.lane.b32.xlu0 %v560, 1
  %v585 = vpop.permute.xlu0 %584
  %v586 = vmul.f32 %v583, %v277
  %v587 = vmul.f32 %v585, %v277
  %v588 = vpack.c.bf16 %v587, %v586
  %v589 = vpack.c.bf16 %v560, %v559
  %590 = vrot.lane.b32.xlu0 %v559, 127
  %v591 = vpop.permute.xlu0 %590
  %592 = vrot.lane.b32.xlu0 %v560, 127
  %v593 = vpop.permute.xlu0 %592
  %v594 = vmul.f32 %v591, %v290
  %v595 = vmul.f32 %v593, %v290
  %v596 = vpack.c.bf16 %v595, %v594
  %597 = vrot.lane.b32.xlu0 %v559, 121
  %v598 = vpop.permute.xlu0 %597
  %599 = vrot.lane.b32.xlu0 %v560, 121
  %v600 = vpop.permute.xlu0 %599
  %v601 = vmul.f32 %v598, %v302
  %v602 = vmul.f32 %v600, %v302
  %v603 = vpack.c.bf16 %v602, %v601
  %604 = vrot.lane.b32.xlu0 %v559, 120
  %v605 = vpop.permute.xlu0 %604
  %606 = vrot.lane.b32.xlu0 %v560, 120
  %v607 = vpop.permute.xlu0 %606
  %v608 = vmul.f32 %v605, %v314
  %v609 = vmul.f32 %v607, %v314
  %v610 = vpack.c.bf16 %v609, %v608
  %611 = vrot.lane.b32.xlu0 %v559, 119
  %v612 = vpop.permute.xlu0 %611
  %613 = vrot.lane.b32.xlu0 %v560, 119
  %v614 = vpop.permute.xlu0 %613
  %v615 = vmul.f32 %v612, %v326
  %v616 = vmul.f32 %v614, %v326
  %v617 = vpack.c.bf16 %v616, %v615
  %v619 = vunpack.c.l.b16 %v391
  %v620 = vunpack.c.h.b16 %v391
  %v621 = vpack.c.b16 %v619, %v619
  %v622 = vpack.c.b16 %v620, %v620
  %v625 = vsel %vm134, %v622, 0
  %627 = vmatprep.subr.bf16.mxu0 0
  %628 = vmatpush1.bf16.msra.mxu0 %v567
  %629 = vmatprep.subr.bf16.mxu0 0
  %630 = vmatpush1.bf16.msra.mxu0 %v574
  %631 = vmatprep.subr.bf16.mxu0 0
  %632 = vmatpush1.bf16.msra.mxu0 %v581
  %633 = vmatprep.subr.bf16.mxu0 0
  %634 = vmatpush1.bf16.msra.mxu0 %v588
  %635 = vmatprep.subr.bf16.mxu0 0
  %636 = vmatpush1.bf16.msra.mxu0 %v589
  %637 = vmatprep.subr.bf16.mxu0 0
  %638 = vmatpush1.bf16.msra.mxu0 %v596
  %639 = vmatprep.subr.bf16.mxu0 0
  %640 = vmatpush1.bf16.msra.mxu0 %v603
  %641 = vmatprep.subr.bf16.mxu0 0
  %642 = vmatpush1.bf16.msra.mxu0 %v610
  %643 = vmatprep.subr.bf16.mxu0 0
  %644 = vmatpush1.bf16.msra.mxu0 %v617
  %645 = vmatprep.subr.bf16.mxu0 0
  %646 = vmatpush1.bf16.msra.mxu0 0
  %647 = vmatprep.subr.bf16.mxu0 0
  %648 = vmatpush1.bf16.msra.mxu0 0
  %649 = vmatprep.subr.bf16.mxu0 0
  %650 = vmatpush1.bf16.msra.mxu0 0
  %651 = vmatprep.subr.bf16.mxu0 0
  %652 = vmatpush1.bf16.msra.mxu0 0
  %653 = vmatprep.subr.bf16.mxu0 0
  %654 = vmatpush1.bf16.msra.mxu0 0
  %655 = vmatprep.subr.bf16.mxu0 0
  %656 = vmatpush1.bf16.msra.mxu0 0
  %657 = vmatprep.subr.bf16.mxu0 0
  %658 = vmatpush1.bf16.msra.mxu0 0
  %659 = vmatprep.mubr.bf16.mxu0 %v625
  %660 = vmatmul.mubr.bf16.gmra.mrb[0].mxu0 %v621
  %v661 = vpop.f32.mrb[0].mxu0
  %v662 = vadd.f32 0.0, %v661
  %v663 = vpop.f32.mrb[0].mxu0
  %v664 = vpop.f32.mrb[0].mxu0
  %v665 = vpop.f32.mrb[0].mxu0
  %666 = vdwg.mxu0
  %v667 = vld [vmem:[%s14] sm:$0xff]
  %v668 = vld [vmem:[%s14 + $0x8] sm:$0xff]
  %v669 = vld [vmem:[%s14 + $0x10] sm:$0xff]
  %v670 = vld [vmem:[%s14 + $0x18] sm:$0xff]
  %v671 = vld [vmem:[%s15] sm:$0xff]
  %v672 = vld [vmem:[%s15 + $0x8] sm:$0xff]
  %v673 = vld [vmem:[%s15 + $0x10] sm:$0xff]
  %v674 = vld [vmem:[%s15 + $0x18] sm:$0xff]
  %v675 = vld [vmem:[%s16] sm:$0xf]
  %v676 = vld [vmem:[%s16 + $0x4] sm:$0xf]
  %v677 = vld [vmem:[%s17] sm:$0xff]
  %v678 = vld [vmem:[%s17 + $0x8] sm:$0xff]
  %v679 = vld [vmem:[%s17 + $0x10] sm:$0xff]
  %v680 = vld [vmem:[%s17 + $0x18] sm:$0xff]
  %v681 = vld [vmem:[%s17 + $0x20] sm:$0xff]
  %v682 = vld [vmem:[%s17 + $0x28] sm:$0xff]
  %v683 = vld [vmem:[%s17 + $0x30] sm:$0xff]
  %v684 = vld [vmem:[%s17 + $0x38] sm:$0xff]
  %v685 = vld [vmem:[%s17 + $0x40] sm:$0xff]
  %v686 = vld [vmem:[%s17 + $0x48] sm:$0xff]
  %v687 = vld [vmem:[%s17 + $0x50] sm:$0xff]
  %v688 = vld [vmem:[%s17 + $0x58] sm:$0xff]
  %v689 = vld [vmem:[%s17 + $0x60] sm:$0xff]
  %v690 = vld [vmem:[%s17 + $0x68] sm:$0xff]
  %v691 = vld [vmem:[%s17 + $0x70] sm:$0xff]
  %v692 = vld [vmem:[%s17 + $0x78] sm:$0xff]
  %693 = vadd.xlane.f32.xlu0 %v662
  %v694 = vpop.xlane.xlu0 %693
  %v695 = vmul.f32 %v694, %v77
  %v696 = vmul.f32 %v662, %v662
  %697 = vadd.xlane.f32.xlu0 %v696
  %v698 = vpop.xlane.xlu0 %697
  %v699 = vmul.f32 %v698, %v77
  %v700 = vmul.f32 %v695, %v695
  %v701 = vsub.f32 %v699, %v700
  %v702 = vadd.f32 %v701, 1e-05
  %v703 = vrsqrt.pop %v702
  %v704 = vmul.f32 %v667, %v94
  %v705 = vmul.f32 %v668, %v95
  %v706 = vmul.f32 %v669, %v402
  %v707 = vmul.f32 %v670, %v703
  %709 = vset.pattern.permute.xlu0 0
  %710 = vperm.xlu0 %709, %v704
  %v711 = vpop.permute.xlu0 %710
  %714 = vset.pattern.permute.xlu0 0
  %715 = vperm.xlu0 %714, %v705
  %v716 = vpop.permute.xlu0 %715
  %719 = vset.pattern.permute.xlu0 0
  %720 = vperm.xlu0 %719, %v706
  %v721 = vpop.permute.xlu0 %720
  %724 = vset.pattern.permute.xlu0 0
  %725 = vperm.xlu0 %724, %v707
  %v726 = vpop.permute.xlu0 %725
  %v728 = vmul.f32 %v60, %v711
  %v729 = vmul.f32 %v61, %v716
  %v730 = vmul.f32 %v374, %v721
  %v731 = vmul.f32 %v662, %v726
  %v732 = vmul.f32 %v78, %v704
  %v733 = vmul.f32 %v79, %v705
  %v734 = vmul.f32 %v394, %v706
  %v735 = vmul.f32 %v695, %v707
  %v736 = vsub.f32 %v671, %v732
  %v737 = vsub.f32 %v672, %v733
  %v738 = vsub.f32 %v673, %v734
  %v739 = vsub.f32 %v674, %v735
  %741 = vset.pattern.permute.xlu0 0
  %742 = vperm.xlu0 %741, %v736
  %v743 = vpop.permute.xlu0 %742
  %746 = vset.pattern.permute.xlu0 0
  %747 = vperm.xlu0 %746, %v737
  %v748 = vpop.permute.xlu0 %747
  %751 = vset.pattern.permute.xlu0 0
  %752 = vperm.xlu0 %751, %v738
  %v753 = vpop.permute.xlu0 %752
  %756 = vset.pattern.permute.xlu0 0
  %757 = vperm.xlu0 %756, %v739
  %v758 = vpop.permute.xlu0 %757
  %v760 = vadd.f32 %v728, %v743
  %v761 = vadd.f32 %v729, %v748
  %v762 = vadd.f32 %v730, %v753
  %v763 = vadd.f32 %v731, %v758
  %v764 = vmax.f32 %v760, 0.0
  %v765 = vmax.f32 %v761, 0.0
  %v766 = vmax.f32 %v762, 0.0
  %v767 = vmax.f32 %v763, 0.0
  %v768 = vpack.c.bf16 %v765, %v764
  %v769 = vpack.c.bf16 %v767, %v766
  %v772 = vunpack.c.l.b16 %v675
  %v773 = vunpack.c.l.b16 %v676
  %v774 = vpack.c.b16 %v773, %v772
  %vm775 = vcmask 261120
  %v777 = vsel %vm775, %v774, 0
  %779 = vmatprep.subr.bf16.mxu0 0
  %780 = vmatpush1.bf16.msra.mxu0 %v768
  %781 = vmatprep.subr.bf16.mxu0 0
  %782 = vmatpush1.bf16.msra.mxu0 %v769
  %783 = vmatprep.subr.bf16.mxu0 0
  %784 = vmatpush1.bf16.msra.mxu0 0
  %785 = vmatprep.subr.bf16.mxu0 0
  %786 = vmatpush1.bf16.msra.mxu0 0
  %787 = vmatprep.subr.bf16.mxu0 0
  %788 = vmatpush1.bf16.msra.mxu0 0
  %789 = vmatprep.subr.bf16.mxu0 0
  %790 = vmatpush1.bf16.msra.mxu0 0
  %791 = vmatprep.subr.bf16.mxu0 0
  %792 = vmatpush1.bf16.msra.mxu0 0
  %793 = vmatprep.subr.bf16.mxu0 0
  %794 = vmatpush1.bf16.msra.mxu0 0
  %795 = vmatprep.subr.bf16.mxu0 0
  %796 = vmatpush1.bf16.msra.mxu0 0
  %797 = vmatprep.subr.bf16.mxu0 0
  %798 = vmatpush1.bf16.msra.mxu0 0
  %799 = vmatprep.subr.bf16.mxu0 0
  %800 = vmatpush1.bf16.msra.mxu0 0
  %801 = vmatprep.subr.bf16.mxu0 0
  %802 = vmatpush1.bf16.msra.mxu0 0
  %803 = vmatprep.subr.bf16.mxu0 0
  %804 = vmatpush1.bf16.msra.mxu0 0
  %805 = vmatprep.subr.bf16.mxu0 0
  %806 = vmatpush1.bf16.msra.mxu0 0
  %807 = vmatprep.subr.bf16.mxu0 0
  %808 = vmatpush1.bf16.msra.mxu0 0
  %809 = vmatprep.subr.bf16.mxu0 0
  %810 = vmatpush1.bf16.msra.mxu0 0
  %811 = vmatprep.mubr.bf16.mxu0 0
  %812 = vmatmul.mubr.bf16.gmra.mrb[0].mxu0 %v777
  %v813 = vpop.f32.mrb[0].mxu0
  %v814 = vadd.f32 0.0, %v813
  %v815 = vpop.f32.mrb[0].mxu0
  %v816 = vpop.f32.mrb[0].mxu0
  %v817 = vadd.f32 0.0, %v816
  %v818 = vpop.f32.mrb[0].mxu0
  %819 = vdwg.mxu0
  %820 = vmatprep.subr.mxu0 0.0
  %821 = vmatpush1.msra.mxu0 %v677
  %822 = vmatprep.subr.mxu0 0.0
  %823 = vmatpush1.msra.mxu0 %v678
  %824 = vmatprep.subr.mxu0 0.0
  %825 = vmatpush1.msra.mxu0 %v679
  %826 = vmatprep.subr.mxu0 0.0
  %827 = vmatpush1.msra.mxu0 %v680
  %828 = vmatprep.subr.mxu0 0.0
  %829 = vmatpush1.msra.mxu0 %v681
  %830 = vmatprep.subr.mxu0 0.0
  %831 = vmatpush1.msra.mxu0 %v682
  %832 = vmatprep.subr.mxu0 0.0
  %833 = vmatpush1.msra.mxu0 %v683
  %834 = vmatprep.subr.mxu0 0.0
  %835 = vmatpush1.msra.mxu0 %v684
  %836 = vmatprep.subr.mxu0 0.0
  %837 = vmatpush1.msra.mxu0 %v685
  %838 = vmatprep.subr.mxu0 0.0
  %839 = vmatpush1.msra.mxu0 %v686
  %840 = vmatprep.subr.mxu0 0.0
  %841 = vmatpush1.msra.mxu0 %v687
  %842 = vmatprep.subr.mxu0 0.0
  %843 = vmatpush1.msra.mxu0 %v688
  %844 = vmatprep.subr.mxu0 0.0
  %845 = vmatpush1.msra.mxu0 %v689
  %846 = vmatprep.subr.mxu0 0.0
  %847 = vmatpush1.msra.mxu0 %v690
  %848 = vmatprep.subr.mxu0 0.0
  %849 = vmatpush1.msra.mxu0 %v691
  %850 = vmatprep.subr.mxu0 0.0
  %851 = vmatpush1.msra.mxu0 %v692
  %852 = vmatprep.subr.mxu0 0.0
  %853 = vmatpush1.msra.mxu0 0.0
  %854 = vmatprep.subr.mxu0 0.0
  %855 = vmatpush1.msra.mxu0 0.0
  %856 = vmatprep.subr.mxu0 0.0
  %857 = vmatpush1.msra.mxu0 0.0
  %858 = vmatprep.subr.mxu0 0.0
  %859 = vmatpush1.msra.mxu0 0.0
  %860 = vmatprep.subr.mxu0 0.0
  %861 = vmatpush1.msra.mxu0 0.0
  %862 = vmatprep.subr.mxu0 0.0
  %863 = vmatpush1.msra.mxu0 0.0
  %864 = vmatprep.subr.mxu0 0.0
  %865 = vmatpush1.msra.mxu0 0.0
  %866 = vmatprep.subr.mxu0 0.0
  %867 = vmatpush1.msra.mxu0 0.0
  %868 = vmatprep.subr.mxu0 0.0
  %869 = vmatpush1.msra.mxu0 0.0
  %870 = vmatprep.subr.mxu0 0.0
  %871 = vmatpush1.msra.mxu0 0.0
  %872 = vmatprep.subr.mxu0 0.0
  %873 = vmatpush1.msra.mxu0 0.0
  %874 = vmatprep.subr.mxu0 0.0
  %875 = vmatpush1.msra.mxu0 0.0
  %876 = vmatprep.subr.mxu0 0.0
  %877 = vmatpush1.msra.mxu0 0.0
  %878 = vmatprep.subr.mxu0 0.0
  %879 = vmatpush1.msra.mxu0 0.0
  %880 = vmatprep.subr.mxu0 0.0
  %881 = vmatpush1.msra.mxu0 0.0
  %882 = vmatprep.subr.mxu0 0.0
  %883 = vmatpush1.msra.mxu0 0.0
  %884 = vmatprep.mubr.f32.mxu0 0.0
  %885 = vmatmul.mubr.f32.gmra.mrb[0].mxu0 %v814
  %v886 = vpop.f32.mrb[0].mxu0
  %v887 = vadd.f32 0.0, %v886
  %v888 = vpop.f32.mrb[0].mxu0
  %889 = vmatprep.mubr.f32.mxu0 0.0
  %890 = vmatmul.mubr.f32.gmra.mrb[0].mxu0 %v817
  %v891 = vpop.f32.mrb[0].mxu0
  %v892 = vadd.f32 0.0, %v891
  %v893 = vpop.f32.mrb[0].mxu0
  %894 = vdwg.mxu0
  %895 = vst.msk [vmem:[%s18] sm:$0xff] %vm775, %v887
  %896 = vst.msk [vmem:[%s18 + $0x8] sm:$0xff] %vm775, %v892
  // Predicated region
  $region74: #{densenet_forward.4} parent=0 // pred_check
    _
  $region75: #{densenet_forward.4} parent=0 // pred_check_branch
    %898 = sbr.rel (0) target = $region77
  $region76: #{densenet_forward.4} parent=0 // pred_region
    _
  $region77: #{densenet_forward.4} parent=0 // pred_fallthru
    _
  // Predicated region
  $region78: #{densenet_forward.4} parent=0 // pred_check
    _
  $region79: #{densenet_forward.4} parent=0 // pred_check_branch
    %900 = sbr.rel (0) target = $region81
  $region80: #{densenet_forward.4} parent=0 // pred_region
    _
  $region81: #{densenet_forward.4} parent=0 // pred_fallthru
    _

// kernel: densenet_forward.3
$region0: #{densenet_forward.3}
  #allocation0 [shape = 'u32[]', space=smem, size = 0x4, offset = 0x4, fixed_abs, tag = 'smem constant byte address 0x4 - core index']
  #allocation1 [shape = 'u32[144,128]{1,0:T(1,128)}', space=vmem, size = 0x12000, scoped, tag = 'internal scratch']
  %s0 = inlined_call_operand.vmem [shape: bf16[147,2048], index: 0, kind: input, shape index: {}]
  %s1 = inlined_call_operand.vmem [shape: bf16[16,147], index: 1, kind: input, shape index: {}]
  %s2 = inlined_call_operand.vmem [shape: f32[16,1], index: 2, kind: input, shape index: {}]
  %s3 = inlined_call_operand.vmem [shape: f32[16,1], index: 3, kind: input, shape index: {}]
  %s4 = inlined_call_operand.vmem [shape: f32[9,512], index: 4, kind: input, shape index: {}]
  %s5 = inlined_call_operand.vmem [shape: f32[9,512], index: 5, kind: input, shape index: {}]
  %s6 = inlined_call_operand.vmem [shape: f32[16,1], index: 6, kind: input, shape index: {}]
  %s7 = inlined_call_operand.vmem [shape: f32[16,1], index: 7, kind: input, shape index: {}]
  %s8 = inlined_call_operand.vmem [shape: bf16[16,16], index: 8, kind: input, shape index: {}]
  %s9 = inlined_call_operand.vmem [shape: f32[16,1], index: 9, kind: input, shape index: {}]
  %s10 = inlined_call_operand.vmem [shape: f32[16,1], index: 10, kind: input, shape index: {}]
  %s11 = inlined_call_operand.vmem [shape: bf16[8,144], index: 11, kind: input, shape index: {}]
  %s12 = inlined_call_operand.vmem [shape: f32[24,1], index: 12, kind: input, shape index: {}]
  %s13 = inlined_call_operand.vmem [shape: f32[24,1], index: 13, kind: input, shape index: {}]
  %s14 = inlined_call_operand.vmem [shape: bf16[16,24], index: 14, kind: input, shape index: {}]
  %s15 = inlined_call_operand.vmem [shape: f32[16,1], index: 15, kind: input, shape index: {}]
  %s16 = inlined_call_operand.vmem [shape: f32[16,1], index: 16, kind: input, shape index: {}]
  %s17 = inlined_call_operand.vmem [shape: bf16[8,144], index: 17, kind: input, shape index: {}]
  %s18 = inlined_call_operand.vmem [shape: f32[32,1], index: 18, kind: input, shape index: {}]
  %s19 = inlined_call_operand.vmem [shape: f32[32,1], index: 19, kind: input, shape index: {}]
  %s20 = inlined_call_operand.vmem [shape: bf16[16,32], index: 20, kind: input, shape index: {}]
  %s21 = inlined_call_operand.vmem [shape: f32[512,128], index: 21, kind: input, shape index: {}]
  %s22 = inlined_call_operand.vmem [shape: f32[16,128], index: 22, kind: output, shape index: {}]
  %s23 = sld [smem:[#allocation0]]
  $region98: #{densenet_forward.3} parent=0
    _
  %s25 = ssub.s32 1, %s23
  %s26 = scalar_select 0, %s25, %s23
  // Predicated region
  $region2: #{densenet_forward.3} parent=0 // pred_check
    _
  $region3: #{densenet_forward.3} parent=0 // pred_check_branch
    %28 = sbr.rel (0) target = $region5
  $region4: #{densenet_forward.3} parent=0 // pred_region
    _
  $region5: #{densenet_forward.3} parent=0 // pred_fallthru
    _
  // Predicated region
  $region6: #{densenet_forward.3} parent=0 // pred_check
    _
  $region7: #{densenet_forward.3} parent=0 // pred_check_branch
    %30 = sbr.rel (0) target = $region9
  $region8: #{densenet_forward.3} parent=0 // pred_region
    _
  $region9: #{densenet_forward.3} parent=0 // pred_fallthru
    _
  // Predicated region
  $region10: #{densenet_forward.3} parent=0 // pred_check
    _
  $region11: #{densenet_forward.3} parent=0 // pred_check_branch
    %32 = sbr.rel (0) target = $region13
  $region12: #{densenet_forward.3} parent=0 // pred_region
    _
  $region13: #{densenet_forward.3} parent=0 // pred_fallthru
    _
  // Predicated region
  $region14: #{densenet_forward.3} parent=0 // pred_check
    _
  $region15: #{densenet_forward.3} parent=0 // pred_check_branch
    %34 = sbr.rel (0) target = $region17
  $region16: #{densenet_forward.3} parent=0 // pred_region
    _
  $region17: #{densenet_forward.3} parent=0 // pred_fallthru
    _
  // Predicated region
  $region18: #{densenet_forward.3} parent=0 // pred_check
    _
  $region19: #{densenet_forward.3} parent=0 // pred_check_branch
    %36 = sbr.rel (0) target = $region21
  $region20: #{densenet_forward.3} parent=0 // pred_region
    _
  $region21: #{densenet_forward.3} parent=0 // pred_fallthru
    _
  // Predicated region
  $region22: #{densenet_forward.3} parent=0 // pred_check
    _
  $region23: #{densenet_forward.3} parent=0 // pred_check_branch
    %38 = sbr.rel (0) target = $region25
  $region24: #{densenet_forward.3} parent=0 // pred_region
    _
  $region25: #{densenet_forward.3} parent=0 // pred_fallthru
    _
  // Predicated region
  $region26: #{densenet_forward.3} parent=0 // pred_check
    _
  $region27: #{densenet_forward.3} parent=0 // pred_check_branch
    %40 = sbr.rel (0) target = $region29
  $region28: #{densenet_forward.3} parent=0 // pred_region
    _
  $region29: #{densenet_forward.3} parent=0 // pred_fallthru
    _
  // Predicated region
  $region30: #{densenet_forward.3} parent=0 // pred_check
    _
  $region31: #{densenet_forward.3} parent=0 // pred_check_branch
    %42 = sbr.rel (0) target = $region33
  $region32: #{densenet_forward.3} parent=0 // pred_region
    _
  $region33: #{densenet_forward.3} parent=0 // pred_fallthru
    _
  // Predicated region
  $region34: #{densenet_forward.3} parent=0 // pred_check
    _
  $region35: #{densenet_forward.3} parent=0 // pred_check_branch
    %44 = sbr.rel (0) target = $region37
  $region36: #{densenet_forward.3} parent=0 // pred_region
    _
  $region37: #{densenet_forward.3} parent=0 // pred_fallthru
    _
  // Predicated region
  $region38: #{densenet_forward.3} parent=0 // pred_check
    _
  $region39: #{densenet_forward.3} parent=0 // pred_check_branch
    %46 = sbr.rel (0) target = $region41
  $region40: #{densenet_forward.3} parent=0 // pred_region
    _
  $region41: #{densenet_forward.3} parent=0 // pred_fallthru
    _
  // Predicated region
  $region42: #{densenet_forward.3} parent=0 // pred_check
    _
  $region43: #{densenet_forward.3} parent=0 // pred_check_branch
    %48 = sbr.rel (0) target = $region45
  $region44: #{densenet_forward.3} parent=0 // pred_region
    _
  $region45: #{densenet_forward.3} parent=0 // pred_fallthru
    _
  // Predicated region
  $region46: #{densenet_forward.3} parent=0 // pred_check
    _
  $region47: #{densenet_forward.3} parent=0 // pred_check_branch
    %50 = sbr.rel (0) target = $region49
  $region48: #{densenet_forward.3} parent=0 // pred_region
    _
  $region49: #{densenet_forward.3} parent=0 // pred_fallthru
    _
  // Predicated region
  $region50: #{densenet_forward.3} parent=0 // pred_check
    _
  $region51: #{densenet_forward.3} parent=0 // pred_check_branch
    %52 = sbr.rel (0) target = $region53
  $region52: #{densenet_forward.3} parent=0 // pred_region
    _
  $region53: #{densenet_forward.3} parent=0 // pred_fallthru
    _
  // Predicated region
  $region54: #{densenet_forward.3} parent=0 // pred_check
    _
  $region55: #{densenet_forward.3} parent=0 // pred_check_branch
    %54 = sbr.rel (0) target = $region57
  $region56: #{densenet_forward.3} parent=0 // pred_region
    _
  $region57: #{densenet_forward.3} parent=0 // pred_fallthru
    _
  // Predicated region
  $region58: #{densenet_forward.3} parent=0 // pred_check
    _
  $region59: #{densenet_forward.3} parent=0 // pred_check_branch
    %56 = sbr.rel (0) target = $region61
  $region60: #{densenet_forward.3} parent=0 // pred_region
    _
  $region61: #{densenet_forward.3} parent=0 // pred_fallthru
    _
  // Predicated region
  $region62: #{densenet_forward.3} parent=0 // pred_check
    _
  $region63: #{densenet_forward.3} parent=0 // pred_check_branch
    %58 = sbr.rel (0) target = $region65
  $region64: #{densenet_forward.3} parent=0 // pred_region
    _
  $region65: #{densenet_forward.3} parent=0 // pred_fallthru
    _
  // Predicated region
  $region66: #{densenet_forward.3} parent=0 // pred_check
    _
  $region67: #{densenet_forward.3} parent=0 // pred_check_branch
    %60 = sbr.rel (0) target = $region69
  $region68: #{densenet_forward.3} parent=0 // pred_region
    _
  $region69: #{densenet_forward.3} parent=0 // pred_fallthru
    _
  // Predicated region
  $region70: #{densenet_forward.3} parent=0 // pred_check
    _
  $region71: #{densenet_forward.3} parent=0 // pred_check_branch
    %62 = sbr.rel (0) target = $region73
  $region72: #{densenet_forward.3} parent=0 // pred_region
    _
  $region73: #{densenet_forward.3} parent=0 // pred_fallthru
    _
  // Predicated region
  $region74: #{densenet_forward.3} parent=0 // pred_check
    _
  $region75: #{densenet_forward.3} parent=0 // pred_check_branch
    %64 = sbr.rel (0) target = $region77
  $region76: #{densenet_forward.3} parent=0 // pred_region
    _
  $region77: #{densenet_forward.3} parent=0 // pred_fallthru
    _
  // Predicated region
  $region78: #{densenet_forward.3} parent=0 // pred_check
    _
  $region79: #{densenet_forward.3} parent=0 // pred_check_branch
    %66 = sbr.rel (0) target = $region81
  $region80: #{densenet_forward.3} parent=0 // pred_region
    _
  $region81: #{densenet_forward.3} parent=0 // pred_fallthru
    _
  // Predicated region
  $region82: #{densenet_forward.3} parent=0 // pred_check
    _
  $region83: #{densenet_forward.3} parent=0 // pred_check_branch
    %68 = sbr.rel (0) target = $region85
  $region84: #{densenet_forward.3} parent=0 // pred_region
    _
  $region85: #{densenet_forward.3} parent=0 // pred_fallthru
    _
  // Predicated region
  $region86: #{densenet_forward.3} parent=0 // pred_check
    _
  $region87: #{densenet_forward.3} parent=0 // pred_check_branch
    %70 = sbr.rel (0) target = $region89
  $region88: #{densenet_forward.3} parent=0 // pred_region
    _
  $region89: #{densenet_forward.3} parent=0 // pred_fallthru
    _
  %v72 = vld [vmem:[%s2] sm:$0xff]
  %v73 = vld [vmem:[%s2 + $0x8] sm:$0xff]
  %v74 = vld [vmem:[%s3] sm:$0xff]
  %v75 = vld [vmem:[%s3 + $0x8] sm:$0xff]
  %v76 = vld [vmem:[%s1] sm:$0xff]
  %v77 = vld [vmem:[%s1 + $0x8] sm:$0xff]
  %v78 = vld [vmem:[%s0] sm:$0xff]
  %v79 = vld [vmem:[%s0 + $0x8] sm:$0xff]
  %v80 = vld [vmem:[%s0 + $0x10] sm:$0xff]
  %v81 = vld [vmem:[%s0 + $0x18] sm:$0xff]
  %v82 = vld [vmem:[%s0 + $0x20] sm:$0xff]
  %v83 = vld [vmem:[%s0 + $0x28] sm:$0xff]
  %v84 = vld [vmem:[%s0 + $0x30] sm:$0xff]
  %v85 = vld [vmem:[%s0 + $0x38] sm:$0xff]
  %v86 = vld [vmem:[%s0 + $0x40] sm:$0xff]
  %v87 = vld [vmem:[%s0 + $0x48] sm:$0xff]
  %v88 = vld [vmem:[%s0 + $0x50] sm:$0xff]
  %v89 = vld [vmem:[%s0 + $0x58] sm:$0xff]
  %v90 = vld [vmem:[%s0 + $0x60] sm:$0xff]
  %v91 = vld [vmem:[%s0 + $0x68] sm:$0xff]
  %v92 = vld [vmem:[%s0 + $0x70] sm:$0xff]
  %v93 = vld [vmem:[%s0 + $0x78] sm:$0xff]
  %v94 = vld [vmem:[%s0 + $0x80] sm:$0xff]
  %v95 = vld [vmem:[%s0 + $0x88] sm:$0xff]
  %v96 = vld [vmem:[%s0 + $0x90] sm:$0xff]
  %v97 = vld [vmem:[%s0 + $0x98] sm:$0xff]
  %v98 = vld [vmem:[%s0 + $0xa0] sm:$0xff]
  %v99 = vld [vmem:[%s0 + $0xa8] sm:$0xff]
  %v100 = vld [vmem:[%s0 + $0xb0] sm:$0xff]
  %v101 = vld [vmem:[%s0 + $0xb8] sm:$0xff]
  %v102 = vld [vmem:[%s0 + $0xc0] sm:$0xff]
  %v103 = vld [vmem:[%s0 + $0xc8] sm:$0xff]
  %v104 = vld [vmem:[%s0 + $0xd0] sm:$0xff]
  %v105 = vld [vmem:[%s0 + $0xd8] sm:$0xff]
  %v106 = vld [vmem:[%s0 + $0xe0] sm:$0xff]
  %v107 = vld [vmem:[%s0 + $0xe8] sm:$0xff]
  %v108 = vld [vmem:[%s0 + $0xf0] sm:$0xff]
  %v109 = vld [vmem:[%s0 + $0xf8] sm:$0xff]
  %v110 = vld [vmem:[%s0 + $0x100] sm:$0xff]
  %v111 = vld [vmem:[%s0 + $0x108] sm:$0xff]
  %v112 = vld [vmem:[%s0 + $0x110] sm:$0xff]
  %v113 = vld [vmem:[%s0 + $0x118] sm:$0xff]
  %v114 = vld [vmem:[%s0 + $0x120] sm:$0xff]
  %v115 = vld [vmem:[%s0 + $0x128] sm:$0xff]
  %v116 = vld [vmem:[%s0 + $0x130] sm:$0xff]
  %v117 = vld [vmem:[%s0 + $0x138] sm:$0xff]
  %v118 = vld [vmem:[%s0 + $0x140] sm:$0xff]
  %v119 = vld [vmem:[%s0 + $0x148] sm:$0xff]
  %v120 = vld [vmem:[%s0 + $0x150] sm:$0xff]
  %v121 = vld [vmem:[%s0 + $0x158] sm:$0xff]
  %v122 = vld [vmem:[%s0 + $0x160] sm:$0xff]
  %v123 = vld [vmem:[%s0 + $0x168] sm:$0xff]
  %v124 = vld [vmem:[%s0 + $0x170] sm:$0xff]
  %v125 = vld [vmem:[%s0 + $0x178] sm:$0xff]
  %v126 = vld [vmem:[%s0 + $0x180] sm:$0xff]
  %v127 = vld [vmem:[%s0 + $0x188] sm:$0xff]
  %v128 = vld [vmem:[%s0 + $0x190] sm:$0xff]
  %v129 = vld [vmem:[%s0 + $0x198] sm:$0xff]
  %v130 = vld [vmem:[%s0 + $0x1a0] sm:$0xff]
  %v131 = vld [vmem:[%s0 + $0x1a8] sm:$0xff]
  %v132 = vld [vmem:[%s0 + $0x1b0] sm:$0xff]
  %v133 = vld [vmem:[%s0 + $0x1b8] sm:$0xff]
  %v134 = vld [vmem:[%s0 + $0x1c0] sm:$0xff]
  %v135 = vld [vmem:[%s0 + $0x1c8] sm:$0xff]
  %v136 = vld [vmem:[%s0 + $0x1d0] sm:$0xff]
  %v137 = vld [vmem:[%s0 + $0x1d8] sm:$0xff]
  %v138 = vld [vmem:[%s0 + $0x1e0] sm:$0xff]
  %v139 = vld [vmem:[%s0 + $0x1e8] sm:$0xff]
  %v140 = vld [vmem:[%s0 + $0x1f0] sm:$0xff]
  %v141 = vld [vmem:[%s0 + $0x1f8] sm:$0xff]
  %v142 = vld [vmem:[%s0 + $0x200] sm:$0xff]
  %v143 = vld [vmem:[%s0 + $0x208] sm:$0xff]
  %v144 = vld [vmem:[%s0 + $0x210] sm:$0xff]
  %v145 = vld [vmem:[%s0 + $0x218] sm:$0xff]
  %v146 = vld [vmem:[%s0 + $0x220] sm:$0xff]
  %v147 = vld [vmem:[%s0 + $0x228] sm:$0xff]
  %v148 = vld [vmem:[%s0 + $0x230] sm:$0xff]
  %v149 = vld [vmem:[%s0 + $0x238] sm:$0xff]
  %v150 = vld [vmem:[%s0 + $0x240] sm:$0xff]
  %v151 = vld [vmem:[%s0 + $0x248] sm:$0xff]
  %v152 = vld [vmem:[%s0 + $0x250] sm:$0xff]
  %v153 = vld [vmem:[%s0 + $0x258] sm:$0xff]
  %v154 = vld [vmem:[%s0 + $0x260] sm:$0xff]
  %v155 = vld [vmem:[%s0 + $0x268] sm:$0xff]
  %v156 = vld [vmem:[%s0 + $0x270] sm:$0xff]
  %v157 = vld [vmem:[%s0 + $0x278] sm:$0xff]
  %v158 = vld [vmem:[%s0 + $0x280] sm:$0xff]
  %v159 = vld [vmem:[%s0 + $0x288] sm:$0xff]
  %v160 = vld [vmem:[%s0 + $0x290] sm:$0xff]
  %v161 = vld [vmem:[%s0 + $0x298] sm:$0xff]
  %v162 = vld [vmem:[%s0 + $0x2a0] sm:$0xff]
  %v163 = vld [vmem:[%s0 + $0x2a8] sm:$0xff]
  %v164 = vld [vmem:[%s0 + $0x2b0] sm:$0xff]
  %v165 = vld [vmem:[%s0 + $0x2b8] sm:$0xff]
  %v166 = vld [vmem:[%s0 + $0x2c0] sm:$0xff]
  %v167 = vld [vmem:[%s0 + $0x2c8] sm:$0xff]
  %v168 = vld [vmem:[%s0 + $0x2d0] sm:$0xff]
  %v169 = vld [vmem:[%s0 + $0x2d8] sm:$0xff]
  %v170 = vld [vmem:[%s0 + $0x2e0] sm:$0xff]
  %v171 = vld [vmem:[%s0 + $0x2e8] sm:$0xff]
  %v172 = vld [vmem:[%s0 + $0x2f0] sm:$0xff]
  %v173 = vld [vmem:[%s0 + $0x2f8] sm:$0xff]
  %v174 = vld [vmem:[%s0 + $0x300] sm:$0xff]
  %v175 = vld [vmem:[%s0 + $0x308] sm:$0xff]
  %v176 = vld [vmem:[%s0 + $0x310] sm:$0xff]
  %v177 = vld [vmem:[%s0 + $0x318] sm:$0xff]
  %v178 = vld [vmem:[%s0 + $0x320] sm:$0xff]
  %v179 = vld [vmem:[%s0 + $0x328] sm:$0xff]
  %v180 = vld [vmem:[%s0 + $0x330] sm:$0xff]
  %v181 = vld [vmem:[%s0 + $0x338] sm:$0xff]
  %v182 = vld [vmem:[%s0 + $0x340] sm:$0xff]
  %v183 = vld [vmem:[%s0 + $0x348] sm:$0xff]
  %v184 = vld [vmem:[%s0 + $0x350] sm:$0xff]
  %v185 = vld [vmem:[%s0 + $0x358] sm:$0xff]
  %v186 = vld [vmem:[%s0 + $0x360] sm:$0xff]
  %v187 = vld [vmem:[%s0 + $0x368] sm:$0xff]
  %v188 = vld [vmem:[%s0 + $0x370] sm:$0xff]
  %v189 = vld [vmem:[%s0 + $0x378] sm:$0xff]
  %v190 = vld [vmem:[%s0 + $0x380] sm:$0xff]
  %v191 = vld [vmem:[%s0 + $0x388] sm:$0xff]
  %v192 = vld [vmem:[%s0 + $0x390] sm:$0xff]
  %v193 = vld [vmem:[%s0 + $0x398] sm:$0xff]
  %v194 = vld [vmem:[%s0 + $0x3a0] sm:$0xff]
  %v195 = vld [vmem:[%s0 + $0x3a8] sm:$0xff]
  %v196 = vld [vmem:[%s0 + $0x3b0] sm:$0xff]
  %v197 = vld [vmem:[%s0 + $0x3b8] sm:$0xff]
  %v198 = vld [vmem:[%s0 + $0x3c0] sm:$0xff]
  %v199 = vld [vmem:[%s0 + $0x3c8] sm:$0xff]
  %v200 = vld [vmem:[%s0 + $0x3d0] sm:$0xff]
  %v201 = vld [vmem:[%s0 + $0x3d8] sm:$0xff]
  %v202 = vld [vmem:[%s0 + $0x3e0] sm:$0xff]
  %v203 = vld [vmem:[%s0 + $0x3e8] sm:$0xff]
  %v204 = vld [vmem:[%s0 + $0x3f0] sm:$0xff]
  %v205 = vld [vmem:[%s0 + $0x3f8] sm:$0xff]
  %v206 = vld [vmem:[%s0 + $0x400] sm:$0xff]
  %v207 = vld [vmem:[%s0 + $0x408] sm:$0xff]
  %v208 = vld [vmem:[%s0 + $0x410] sm:$0xff]
  %v209 = vld [vmem:[%s0 + $0x418] sm:$0xff]
  %v210 = vld [vmem:[%s0 + $0x420] sm:$0xff]
  %v211 = vld [vmem:[%s0 + $0x428] sm:$0xff]
  %v212 = vld [vmem:[%s0 + $0x430] sm:$0xff]
  %v213 = vld [vmem:[%s0 + $0x438] sm:$0xff]
  %v214 = vld [vmem:[%s0 + $0x440] sm:$0xff]
  %v215 = vld [vmem:[%s0 + $0x448] sm:$0xff]
  %v216 = vld [vmem:[%s0 + $0x450] sm:$0xff]
  %v217 = vld [vmem:[%s0 + $0x458] sm:$0xff]
  %v218 = vld [vmem:[%s0 + $0x460] sm:$0xff]
  %v219 = vld [vmem:[%s0 + $0x468] sm:$0xff]
  %v220 = vld [vmem:[%s0 + $0x470] sm:$0xff]
  %v221 = vld [vmem:[%s0 + $0x478] sm:$0xff]
  %v222 = vld [vmem:[%s0 + $0x480] sm:$0x33]
  %v223 = vld [vmem:[%s0 + $0x488] sm:$0x33]
  %v224 = vld [vmem:[%s0 + $0x490] sm:$0x33]
  %v225 = vld [vmem:[%s0 + $0x498] sm:$0x33]
  %v226 = vld [vmem:[%s0 + $0x4a0] sm:$0x33]
  %v227 = vld [vmem:[%s0 + $0x4a8] sm:$0x33]
  %v228 = vld [vmem:[%s0 + $0x4b0] sm:$0x33]
  %v229 = vld [vmem:[%s0 + $0x4b8] sm:$0x33]
  %v232 = vunpack.c.l.b16 %v76
  %v233 = vunpack.c.h.b16 %v76
  %v234 = vunpack.c.l.b16 %v77
  %v235 = vunpack.c.h.b16 %v77
  %v236 = vpack.c.b16 %v234, %v232
  %v237 = vpack.c.b16 %v235, %v233
  %v391 = vunpack.c.l.b16 %v78
  %v392 = vunpack.c.h.b16 %v78
  %v393 = vunpack.c.l.b16 %v79
  %v394 = vunpack.c.h.b16 %v79
  %v395 = vunpack.c.l.b16 %v80
  %v396 = vunpack.c.h.b16 %v80
  %v397 = vunpack.c.l.b16 %v81
  %v398 = vunpack.c.h.b16 %v81
  %v399 = vunpack.c.l.b16 %v82
  %v400 = vunpack.c.h.b16 %v82
  %v401 = vunpack.c.l.b16 %v83
  %v402 = vunpack.c.h.b16 %v83
  %v403 = vunpack.c.l.b16 %v84
  %v404 = vunpack.c.h.b16 %v84
  %v405 = vunpack.c.l.b16 %v85
  %v406 = vunpack.c.h.b16 %v85
  %v407 = vunpack.c.l.b16 %v86
  %v408 = vunpack.c.h.b16 %v86
  %v409 = vunpack.c.l.b16 %v87
  %v410 = vunpack.c.h.b16 %v87
  %v411 = vunpack.c.l.b16 %v88
  %v412 = vunpack.c.h.b16 %v88
  %v413 = vunpack.c.l.b16 %v89
  %v414 = vunpack.c.h.b16 %v89
  %v415 = vunpack.c.l.b16 %v90
  %v416 = vunpack.c.h.b16 %v90
  %v417 = vunpack.c.l.b16 %v91
  %v418 = vunpack.c.h.b16 %v91
  %v419 = vunpack.c.l.b16 %v92
  %v420 = vunpack.c.h.b16 %v92
  %v421 = vunpack.c.l.b16 %v93
  %v422 = vunpack.c.h.b16 %v93
  %v423 = vunpack.c.l.b16 %v94
  %v424 = vunpack.c.h.b16 %v94
  %v425 = vunpack.c.l.b16 %v95
  %v426 = vunpack.c.h.b16 %v95
  %v427 = vunpack.c.l.b16 %v96
  %v428 = vunpack.c.h.b16 %v96
  %v429 = vunpack.c.l.b16 %v97
  %v430 = vunpack.c.h.b16 %v97
  %v431 = vunpack.c.l.b16 %v98
  %v432 = vunpack.c.h.b16 %v98
  %v433 = vunpack.c.l.b16 %v99
  %v434 = vunpack.c.h.b16 %v99
  %v435 = vunpack.c.l.b16 %v100
  %v436 = vunpack.c.h.b16 %v100
  %v437 = vunpack.c.l.b16 %v101
  %v438 = vunpack.c.h.b16 %v101
  %v439 = vunpack.c.l.b16 %v102
  %v440 = vunpack.c.h.b16 %v102
  %v441 = vunpack.c.l.b16 %v103
  %v442 = vunpack.c.h.b16 %v103
  %v443 = vunpack.c.l.b16 %v104
  %v444 = vunpack.c.h.b16 %v104
  %v445 = vunpack.c.l.b16 %v105
  %v446 = vunpack.c.h.b16 %v105
  %v447 = vunpack.c.l.b16 %v106
  %v448 = vunpack.c.h.b16 %v106
  %v449 = vunpack.c.l.b16 %v107
  %v450 = vunpack.c.h.b16 %v107
  %v451 = vunpack.c.l.b16 %v108
  %v452 = vunpack.c.h.b16 %v108
  %v453 = vunpack.c.l.b16 %v109
  %v454 = vunpack.c.h.b16 %v109
  %v455 = vunpack.c.l.b16 %v110
  %v456 = vunpack.c.h.b16 %v110
  %v457 = vunpack.c.l.b16 %v111
  %v458 = vunpack.c.h.b16 %v111
  %v459 = vunpack.c.l.b16 %v112
  %v460 = vunpack.c.h.b16 %v112
  %v461 = vunpack.c.l.b16 %v113
  %v462 = vunpack.c.h.b16 %v113
  %v463 = vunpack.c.l.b16 %v114
  %v464 = vunpack.c.h.b16 %v114
  %v465 = vunpack.c.l.b16 %v115
  %v466 = vunpack.c.h.b16 %v115
  %v467 = vunpack.c.l.b16 %v116
  %v468 = vunpack.c.h.b16 %v116
  %v469 = vunpack.c.l.b16 %v117
  %v470 = vunpack.c.h.b16 %v117
  %v471 = vunpack.c.l.b16 %v118
  %v472 = vunpack.c.h.b16 %v118
  %v473 = vunpack.c.l.b16 %v119
  %v474 = vunpack.c.h.b16 %v119
  %v475 = vunpack.c.l.b16 %v120
  %v476 = vunpack.c.h.b16 %v120
  %v477 = vunpack.c.l.b16 %v121
  %v478 = vunpack.c.h.b16 %v121
  %v479 = vunpack.c.l.b16 %v122
  %v480 = vunpack.c.h.b16 %v122
  %v481 = vunpack.c.l.b16 %v123
  %v482 = vunpack.c.h.b16 %v123
  %v483 = vunpack.c.l.b16 %v124
  %v484 = vunpack.c.h.b16 %v124
  %v485 = vunpack.c.l.b16 %v125
  %v486 = vunpack.c.h.b16 %v125
  %v487 = vunpack.c.l.b16 %v126
  %v488 = vunpack.c.h.b16 %v126
  %v489 = vunpack.c.l.b16 %v127
  %v490 = vunpack.c.h.b16 %v127
  %v491 = vunpack.c.l.b16 %v128
  %v492 = vunpack.c.h.b16 %v128
  %v493 = vunpack.c.l.b16 %v129
  %v494 = vunpack.c.h.b16 %v129
  %v495 = vunpack.c.l.b16 %v130
  %v496 = vunpack.c.h.b16 %v130
  %v497 = vunpack.c.l.b16 %v131
  %v498 = vunpack.c.h.b16 %v131
  %v499 = vunpack.c.l.b16 %v132
  %v500 = vunpack.c.h.b16 %v132
  %v501 = vunpack.c.l.b16 %v133
  %v502 = vunpack.c.h.b16 %v133
  %v503 = vunpack.c.l.b16 %v134
  %v504 = vunpack.c.h.b16 %v134
  %v505 = vunpack.c.l.b16 %v135
  %v506 = vunpack.c.h.b16 %v135
  %v507 = vunpack.c.l.b16 %v136
  %v508 = vunpack.c.h.b16 %v136
  %v509 = vunpack.c.l.b16 %v137
  %v510 = vunpack.c.h.b16 %v137
  %v511 = vunpack.c.l.b16 %v138
  %v512 = vunpack.c.h.b16 %v138
  %v513 = vunpack.c.l.b16 %v139
  %v514 = vunpack.c.h.b16 %v139
  %v515 = vunpack.c.l.b16 %v140
  %v516 = vunpack.c.h.b16 %v140
  %v517 = vunpack.c.l.b16 %v141
  %v518 = vunpack.c.h.b16 %v141
  %v519 = vunpack.c.l.b16 %v142
  %v520 = vunpack.c.h.b16 %v142
  %v521 = vunpack.c.l.b16 %v143
  %v522 = vunpack.c.h.b16 %v143
  %v523 = vunpack.c.l.b16 %v144
  %v524 = vunpack.c.h.b16 %v144
  %v525 = vunpack.c.l.b16 %v145
  %v526 = vunpack.c.h.b16 %v145
  %v527 = vunpack.c.l.b16 %v146
  %v528 = vunpack.c.h.b16 %v146
  %v529 = vunpack.c.l.b16 %v147
  %v530 = vunpack.c.h.b16 %v147
  %v531 = vunpack.c.l.b16 %v148
  %v532 = vunpack.c.h.b16 %v148
  %v533 = vunpack.c.l.b16 %v149
  %v534 = vunpack.c.h.b16 %v149
  %v535 = vunpack.c.l.b16 %v150
  %v536 = vunpack.c.h.b16 %v150
  %v537 = vunpack.c.l.b16 %v151
  %v538 = vunpack.c.h.b16 %v151
  %v539 = vunpack.c.l.b16 %v152
  %v540 = vunpack.c.h.b16 %v152
  %v541 = vunpack.c.l.b16 %v153
  %v542 = vunpack.c.h.b16 %v153
  %v543 = vunpack.c.l.b16 %v154
  %v544 = vunpack.c.h.b16 %v154
  %v545 = vunpack.c.l.b16 %v155
  %v546 = vunpack.c.h.b16 %v155
  %v547 = vunpack.c.l.b16 %v156
  %v548 = vunpack.c.h.b16 %v156
  %v549 = vunpack.c.l.b16 %v157
  %v550 = vunpack.c.h.b16 %v157
  %v551 = vunpack.c.l.b16 %v158
  %v552 = vunpack.c.h.b16 %v158
  %v553 = vunpack.c.l.b16 %v159
  %v554 = vunpack.c.h.b16 %v159
  %v555 = vunpack.c.l.b16 %v160
  %v556 = vunpack.c.h.b16 %v160
  %v557 = vunpack.c.l.b16 %v161
  %v558 = vunpack.c.h.b16 %v161
  %v559 = vunpack.c.l.b16 %v162
  %v560 = vunpack.c.h.b16 %v162
  %v561 = vunpack.c.l.b16 %v163
  %v562 = vunpack.c.h.b16 %v163
  %v563 = vunpack.c.l.b16 %v164
  %v564 = vunpack.c.h.b16 %v164
  %v565 = vunpack.c.l.b16 %v165
  %v566 = vunpack.c.h.b16 %v165
  %v567 = vunpack.c.l.b16 %v166
  %v568 = vunpack.c.h.b16 %v166
  %v569 = vunpack.c.l.b16 %v167
  %v570 = vunpack.c.h.b16 %v167
  %v571 = vunpack.c.l.b16 %v168
  %v572 = vunpack.c.h.b16 %v168
  %v573 = vunpack.c.l.b16 %v169
  %v574 = vunpack.c.h.b16 %v169
  %v575 = vunpack.c.l.b16 %v170
  %v576 = vunpack.c.h.b16 %v170
  %v577 = vunpack.c.l.b16 %v171
  %v578 = vunpack.c.h.b16 %v171
  %v579 = vunpack.c.l.b16 %v172
  %v580 = vunpack.c.h.b16 %v172
  %v581 = vunpack.c.l.b16 %v173
  %v582 = vunpack.c.h.b16 %v173
  %v583 = vunpack.c.l.b16 %v174
  %v584 = vunpack.c.h.b16 %v174
  %v585 = vunpack.c.l.b16 %v175
  %v586 = vunpack.c.h.b16 %v175
  %v587 = vunpack.c.l.b16 %v176
  %v588 = vunpack.c.h.b16 %v176
  %v589 = vunpack.c.l.b16 %v177
  %v590 = vunpack.c.h.b16 %v177
  %v591 = vunpack.c.l.b16 %v178
  %v592 = vunpack.c.h.b16 %v178
  %v593 = vunpack.c.l.b16 %v179
  %v594 = vunpack.c.h.b16 %v179
  %v595 = vunpack.c.l.b16 %v180
  %v596 = vunpack.c.h.b16 %v180
  %v597 = vunpack.c.l.b16 %v181
  %v598 = vunpack.c.h.b16 %v181
  %v599 = vunpack.c.l.b16 %v182
  %v600 = vunpack.c.h.b16 %v182
  %v601 = vunpack.c.l.b16 %v183
  %v602 = vunpack.c.h.b16 %v183
  %v603 = vunpack.c.l.b16 %v184
  %v604 = vunpack.c.h.b16 %v184
  %v605 = vunpack.c.l.b16 %v185
  %v606 = vunpack.c.h.b16 %v185
  %v607 = vunpack.c.l.b16 %v186
  %v608 = vunpack.c.h.b16 %v186
  %v609 = vunpack.c.l.b16 %v187
  %v610 = vunpack.c.h.b16 %v187
  %v611 = vunpack.c.l.b16 %v188
  %v612 = vunpack.c.h.b16 %v188
  %v613 = vunpack.c.l.b16 %v189
  %v614 = vunpack.c.h.b16 %v189
  %v615 = vunpack.c.l.b16 %v190
  %v616 = vunpack.c.h.b16 %v190
  %v617 = vunpack.c.l.b16 %v191
  %v618 = vunpack.c.h.b16 %v191
  %v619 = vunpack.c.l.b16 %v192
  %v620 = vunpack.c.h.b16 %v192
  %v621 = vunpack.c.l.b16 %v193
  %v622 = vunpack.c.h.b16 %v193
  %v623 = vunpack.c.l.b16 %v194
  %v624 = vunpack.c.h.b16 %v194
  %v625 = vunpack.c.l.b16 %v195
  %v626 = vunpack.c.h.b16 %v195
  %v627 = vunpack.c.l.b16 %v196
  %v628 = vunpack.c.h.b16 %v196
  %v629 = vunpack.c.l.b16 %v197
  %v630 = vunpack.c.h.b16 %v197
  %v631 = vunpack.c.l.b16 %v198
  %v632 = vunpack.c.h.b16 %v198
  %v633 = vunpack.c.l.b16 %v199
  %v634 = vunpack.c.h.b16 %v199
  %v635 = vunpack.c.l.b16 %v200
  %v636 = vunpack.c.h.b16 %v200
  %v637 = vunpack.c.l.b16 %v201
  %v638 = vunpack.c.h.b16 %v201
  %v639 = vunpack.c.l.b16 %v202
  %v640 = vunpack.c.h.b16 %v202
  %v641 = vunpack.c.l.b16 %v203
  %v642 = vunpack.c.h.b16 %v203
  %v643 = vunpack.c.l.b16 %v204
  %v644 = vunpack.c.h.b16 %v204
  %v645 = vunpack.c.l.b16 %v205
  %v646 = vunpack.c.h.b16 %v205
  %v647 = vunpack.c.l.b16 %v206
  %v648 = vunpack.c.h.b16 %v206
  %v649 = vunpack.c.l.b16 %v207
  %v650 = vunpack.c.h.b16 %v207
  %v651 = vunpack.c.l.b16 %v208
  %v652 = vunpack.c.h.b16 %v208
  %v653 = vunpack.c.l.b16 %v209
  %v654 = vunpack.c.h.b16 %v209
  %v655 = vunpack.c.l.b16 %v210
  %v656 = vunpack.c.h.b16 %v210
  %v657 = vunpack.c.l.b16 %v211
  %v658 = vunpack.c.h.b16 %v211
  %v659 = vunpack.c.l.b16 %v212
  %v660 = vunpack.c.h.b16 %v212
  %v661 = vunpack.c.l.b16 %v213
  %v662 = vunpack.c.h.b16 %v213
  %v663 = vunpack.c.l.b16 %v214
  %v664 = vunpack.c.h.b16 %v214
  %v665 = vunpack.c.l.b16 %v215
  %v666 = vunpack.c.h.b16 %v215
  %v667 = vunpack.c.l.b16 %v216
  %v668 = vunpack.c.h.b16 %v216
  %v669 = vunpack.c.l.b16 %v217
  %v670 = vunpack.c.h.b16 %v217
  %v671 = vunpack.c.l.b16 %v218
  %v672 = vunpack.c.h.b16 %v218
  %v673 = vunpack.c.l.b16 %v219
  %v674 = vunpack.c.h.b16 %v219
  %v675 = vunpack.c.l.b16 %v220
  %v676 = vunpack.c.h.b16 %v220
  %v677 = vunpack.c.l.b16 %v221
  %v678 = vunpack.c.h.b16 %v221
  %v679 = vunpack.c.l.b16 %v222
  %v680 = vunpack.c.h.b16 %v222
  %v681 = vunpack.c.l.b16 %v223
  %v682 = vunpack.c.h.b16 %v223
  %v683 = vunpack.c.l.b16 %v224
  %v684 = vunpack.c.h.b16 %v224
  %v685 = vunpack.c.l.b16 %v225
  %v686 = vunpack.c.h.b16 %v225
  %v687 = vunpack.c.l.b16 %v226
  %v688 = vunpack.c.h.b16 %v226
  %v689 = vunpack.c.l.b16 %v227
  %v690 = vunpack.c.h.b16 %v227
  %v691 = vunpack.c.l.b16 %v228
  %v692 = vunpack.c.h.b16 %v228
  %v693 = vunpack.c.l.b16 %v229
  %v694 = vunpack.c.h.b16 %v229
  %v695 = vpack.c.b16 %v407, %v391
  %v696 = vpack.c.b16 %v408, %v392
  %v697 = vpack.c.b16 %v409, %v393
  %v698 = vpack.c.b16 %v410, %v394
  %v699 = vpack.c.b16 %v411, %v395
  %v700 = vpack.c.b16 %v412, %v396
  %v701 = vpack.c.b16 %v413, %v397
  %v702 = vpack.c.b16 %v414, %v398
  %v703 = vpack.c.b16 %v415, %v399
  %v704 = vpack.c.b16 %v416, %v400
  %v705 = vpack.c.b16 %v417, %v401
  %v706 = vpack.c.b16 %v418, %v402
  %v707 = vpack.c.b16 %v419, %v403
  %v708 = vpack.c.b16 %v420, %v404
  %v709 = vpack.c.b16 %v421, %v405
  %v710 = vpack.c.b16 %v422, %v406
  %v711 = vpack.c.b16 %v439, %v423
  %v712 = vpack.c.b16 %v440, %v424
  %v713 = vpack.c.b16 %v441, %v425
  %v714 = vpack.c.b16 %v442, %v426
  %v715 = vpack.c.b16 %v443, %v427
  %v716 = vpack.c.b16 %v444, %v428
  %v717 = vpack.c.b16 %v445, %v429
  %v718 = vpack.c.b16 %v446, %v430
  %v719 = vpack.c.b16 %v447, %v431
  %v720 = vpack.c.b16 %v448, %v432
  %v721 = vpack.c.b16 %v449, %v433
  %v722 = vpack.c.b16 %v450, %v434
  %v723 = vpack.c.b16 %v451, %v435
  %v724 = vpack.c.b16 %v452, %v436
  %v725 = vpack.c.b16 %v453, %v437
  %v726 = vpack.c.b16 %v454, %v438
  %v727 = vpack.c.b16 %v471, %v455
  %v728 = vpack.c.b16 %v472, %v456
  %v729 = vpack.c.b16 %v473, %v457
  %v730 = vpack.c.b16 %v474, %v458
  %v731 = vpack.c.b16 %v475, %v459
  %v732 = vpack.c.b16 %v476, %v460
  %v733 = vpack.c.b16 %v477, %v461
  %v734 = vpack.c.b16 %v478, %v462
  %v735 = vpack.c.b16 %v479, %v463
  %v736 = vpack.c.b16 %v480, %v464
  %v737 = vpack.c.b16 %v481, %v465
  %v738 = vpack.c.b16 %v482, %v466
  %v739 = vpack.c.b16 %v483, %v467
  %v740 = vpack.c.b16 %v484, %v468
  %v741 = vpack.c.b16 %v485, %v469
  %v742 = vpack.c.b16 %v486, %v470
  %v743 = vpack.c.b16 %v503, %v487
  %v744 = vpack.c.b16 %v504, %v488
  %v745 = vpack.c.b16 %v505, %v489
  %v746 = vpack.c.b16 %v506, %v490
  %v747 = vpack.c.b16 %v507, %v491
  %v748 = vpack.c.b16 %v508, %v492
  %v749 = vpack.c.b16 %v509, %v493
  %v750 = vpack.c.b16 %v510, %v494
  %v751 = vpack.c.b16 %v511, %v495
  %v752 = vpack.c.b16 %v512, %v496
  %v753 = vpack.c.b16 %v513, %v497
  %v754 = vpack.c.b16 %v514, %v498
  %v755 = vpack.c.b16 %v515, %v499
  %v756 = vpack.c.b16 %v516, %v500
  %v757 = vpack.c.b16 %v517, %v501
  %v758 = vpack.c.b16 %v518, %v502
  %v759 = vpack.c.b16 %v535, %v519
  %v760 = vpack.c.b16 %v536, %v520
  %v761 = vpack.c.b16 %v537, %v521
  %v762 = vpack.c.b16 %v538, %v522
  %v763 = vpack.c.b16 %v539, %v523
  %v764 = vpack.c.b16 %v540, %v524
  %v765 = vpack.c.b16 %v541, %v525
  %v766 = vpack.c.b16 %v542, %v526
  %v767 = vpack.c.b16 %v543, %v527
  %v768 = vpack.c.b16 %v544, %v528
  %v769 = vpack.c.b16 %v545, %v529
  %v770 = vpack.c.b16 %v546, %v530
  %v771 = vpack.c.b16 %v547, %v531
  %v772 = vpack.c.b16 %v548, %v532
  %v773 = vpack.c.b16 %v549, %v533
  %v774 = vpack.c.b16 %v550, %v534
  %v775 = vpack.c.b16 %v567, %v551
  %v776 = vpack.c.b16 %v568, %v552
  %v777 = vpack.c.b16 %v569, %v553
  %v778 = vpack.c.b16 %v570, %v554
  %v779 = vpack.c.b16 %v571, %v555
  %v780 = vpack.c.b16 %v572, %v556
  %v781 = vpack.c.b16 %v573, %v557
  %v782 = vpack.c.b16 %v574, %v558
  %v783 = vpack.c.b16 %v575, %v559
  %v784 = vpack.c.b16 %v576, %v560
  %v785 = vpack.c.b16 %v577, %v561
  %v786 = vpack.c.b16 %v578, %v562
  %v787 = vpack.c.b16 %v579, %v563
  %v788 = vpack.c.b16 %v580, %v564
  %v789 = vpack.c.b16 %v581, %v565
  %v790 = vpack.c.b16 %v582, %v566
  %v791 = vpack.c.b16 %v599, %v583
  %v792 = vpack.c.b16 %v600, %v584
  %v793 = vpack.c.b16 %v601, %v585
  %v794 = vpack.c.b16 %v602, %v586
  %v795 = vpack.c.b16 %v603, %v587
  %v796 = vpack.c.b16 %v604, %v588
  %v797 = vpack.c.b16 %v605, %v589
  %v798 = vpack.c.b16 %v606, %v590
  %v799 = vpack.c.b16 %v607, %v591
  %v800 = vpack.c.b16 %v608, %v592
  %v801 = vpack.c.b16 %v609, %v593
  %v802 = vpack.c.b16 %v610, %v594
  %v803 = vpack.c.b16 %v611, %v595
  %v804 = vpack.c.b16 %v612, %v596
  %v805 = vpack.c.b16 %v613, %v597
  %v806 = vpack.c.b16 %v614, %v598
  %v807 = vpack.c.b16 %v631, %v615
  %v808 = vpack.c.b16 %v632, %v616
  %v809 = vpack.c.b16 %v633, %v617
  %v810 = vpack.c.b16 %v634, %v618
  %v811 = vpack.c.b16 %v635, %v619
  %v812 = vpack.c.b16 %v636, %v620
  %v813 = vpack.c.b16 %v637, %v621
  %v814 = vpack.c.b16 %v638, %v622
  %v815 = vpack.c.b16 %v639, %v623
  %v816 = vpack.c.b16 %v640, %v624
  %v817 = vpack.c.b16 %v641, %v625
  %v818 = vpack.c.b16 %v642, %v626
  %v819 = vpack.c.b16 %v643, %v627
  %v820 = vpack.c.b16 %v644, %v628
  %v821 = vpack.c.b16 %v645, %v629
  %v822 = vpack.c.b16 %v646, %v630
  %v823 = vpack.c.b16 %v663, %v647
  %v824 = vpack.c.b16 %v664, %v648
  %v825 = vpack.c.b16 %v665, %v649
  %v826 = vpack.c.b16 %v666, %v650
  %v827 = vpack.c.b16 %v667, %v651
  %v828 = vpack.c.b16 %v668, %v652
  %v829 = vpack.c.b16 %v669, %v653
  %v830 = vpack.c.b16 %v670, %v654
  %v831 = vpack.c.b16 %v671, %v655
  %v832 = vpack.c.b16 %v672, %v656
  %v833 = vpack.c.b16 %v673, %v657
  %v834 = vpack.c.b16 %v674, %v658
  %v835 = vpack.c.b16 %v675, %v659
  %v836 = vpack.c.b16 %v676, %v660
  %v837 = vpack.c.b16 %v677, %v661
  %v838 = vpack.c.b16 %v678, %v662
  %v839 = vpack.c.b16 %v679, %v679
  %v840 = vpack.c.b16 %v680, %v680
  %v841 = vpack.c.b16 %v681, %v681
  %v842 = vpack.c.b16 %v682, %v682
  %v843 = vpack.c.b16 %v683, %v683
  %v844 = vpack.c.b16 %v684, %v684
  %v845 = vpack.c.b16 %v685, %v685
  %v846 = vpack.c.b16 %v686, %v686
  %v847 = vpack.c.b16 %v687, %v687
  %v848 = vpack.c.b16 %v688, %v688
  %v849 = vpack.c.b16 %v689, %v689
  %v850 = vpack.c.b16 %v690, %v690
  %v851 = vpack.c.b16 %v691, %v691
  %v852 = vpack.c.b16 %v692, %v692
  %v853 = vpack.c.b16 %v693, %v693
  %v854 = vpack.c.b16 %v694, %v694
  %vm999 = vcmask 154624
  %v1001 = vsel %vm999, %v237, 0
  %vm1003 = vcmask 1040384
  %vm1004 = vcmask 1041408
  %v1005 = vsel %vm1003, 4294967295, 65535
  %v1006 = vsel %vm1004, %v1005, 0
  %v1008 = vand.u32 %v839, %v1006
  %v1011 = vand.u32 %v840, %v1006
  %v1014 = vand.u32 %v841, %v1006
  %v1017 = vand.u32 %v842, %v1006
  %v1020 = vand.u32 %v843, %v1006
  %v1023 = vand.u32 %v844, %v1006
  %v1026 = vand.u32 %v845, %v1006
  %v1029 = vand.u32 %v846, %v1006
  %v1032 = vand.u32 %v847, %v1006
  %v1035 = vand.u32 %v848, %v1006
  %v1038 = vand.u32 %v849, %v1006
  %v1041 = vand.u32 %v850, %v1006
  %v1044 = vand.u32 %v851, %v1006
  %v1047 = vand.u32 %v852, %v1006
  %v1050 = vand.u32 %v853, %v1006
  %v1053 = vand.u32 %v854, %v1006
  %1055 = vmatprep.subr.bf16.mxu0 %v696
  %1056 = vmatpush1.bf16.msra.mxu0 %v695
  %1057 = vmatprep.subr.bf16.mxu0 %v712
  %1058 = vmatpush1.bf16.msra.mxu0 %v711
  %1059 = vmatprep.subr.bf16.mxu0 %v728
  %1060 = vmatpush1.bf16.msra.mxu0 %v727
  %1061 = vmatprep.subr.bf16.mxu0 %v744
  %1062 = vmatpush1.bf16.msra.mxu0 %v743
  %1063 = vmatprep.subr.bf16.mxu0 %v760
  %1064 = vmatpush1.bf16.msra.mxu0 %v759
  %1065 = vmatprep.subr.bf16.mxu0 %v776
  %1066 = vmatpush1.bf16.msra.mxu0 %v775
  %1067 = vmatprep.subr.bf16.mxu0 %v792
  %1068 = vmatpush1.bf16.msra.mxu0 %v791
  %1069 = vmatprep.subr.bf16.mxu0 %v808
  %1070 = vmatpush1.bf16.msra.mxu0 %v807
  %1071 = vmatprep.subr.bf16.mxu0 %v824
  %1072 = vmatpush1.bf16.msra.mxu0 %v823
  %1073 = vmatprep.subr.bf16.mxu0 %v1011
  %1074 = vmatpush1.bf16.msra.mxu0 %v1008
  %1075 = vmatprep.subr.bf16.mxu0 0
  %1076 = vmatpush1.bf16.msra.mxu0 0
  %1077 = vmatprep.subr.bf16.mxu0 0
  %1078 = vmatpush1.bf16.msra.mxu0 0
  %1079 = vmatprep.subr.bf16.mxu0 0
  %1080 = vmatpush1.bf16.msra.mxu0 0
  %1081 = vmatprep.subr.bf16.mxu0 0
  %1082 = vmatpush1.bf16.msra.mxu0 0
  %1083 = vmatprep.subr.bf16.mxu0 0
  %1084 = vmatpush1.bf16.msra.mxu0 0
  %1085 = vmatprep.subr.bf16.mxu0 0
  %1086 = vmatpush1.bf16.msra.mxu0 0
  %1087 = vmatprep.mubr.bf16.mxu0 %v1001
  %1088 = vmatmul.mubr.bf16.gmra.mrb[0].mxu0 %v236
  %v1089 = vpop.f32.mrb[0].mxu0
  %v1090 = vadd.f32 0.0, %v1089
  %v1091 = vpop.f32.mrb[0].mxu0
  %v1092 = vadd.f32 0.0, %v1091
  %v1093 = vpop.f32.mrb[0].mxu0
  %v1094 = vadd.f32 0.0, %v1093
  %v1095 = vpop.f32.mrb[0].mxu0
  %v1096 = vadd.f32 0.0, %v1095
  %1097 = vdwg.mxu0
  %1098 = vmatprep.subr.bf16.mxu0 %v698
  %1099 = vmatpush1.bf16.msra.mxu0 %v697
  %1100 = vmatprep.subr.bf16.mxu0 %v714
  %1101 = vmatpush1.bf16.msra.mxu0 %v713
  %1102 = vmatprep.subr.bf16.mxu0 %v730
  %1103 = vmatpush1.bf16.msra.mxu0 %v729
  %1104 = vmatprep.subr.bf16.mxu0 %v746
  %1105 = vmatpush1.bf16.msra.mxu0 %v745
  %1106 = vmatprep.subr.bf16.mxu0 %v762
  %1107 = vmatpush1.bf16.msra.mxu0 %v761
  %1108 = vmatprep.subr.bf16.mxu0 %v778
  %1109 = vmatpush1.bf16.msra.mxu0 %v777
  %1110 = vmatprep.subr.bf16.mxu0 %v794
  %1111 = vmatpush1.bf16.msra.mxu0 %v793
  %1112 = vmatprep.subr.bf16.mxu0 %v810
  %1113 = vmatpush1.bf16.msra.mxu0 %v809
  %1114 = vmatprep.subr.bf16.mxu0 %v826
  %1115 = vmatpush1.bf16.msra.mxu0 %v825
  %1116 = vmatprep.subr.bf16.mxu0 %v1017
  %1117 = vmatpush1.bf16.msra.mxu0 %v1014
  %1118 = vmatprep.subr.bf16.mxu0 0
  %1119 = vmatpush1.bf16.msra.mxu0 0
  %1120 = vmatprep.subr.bf16.mxu0 0
  %1121 = vmatpush1.bf16.msra.mxu0 0
  %1122 = vmatprep.subr.bf16.mxu0 0
  %1123 = vmatpush1.bf16.msra.mxu0 0
  %1124 = vmatprep.subr.bf16.mxu0 0
  %1125 = vmatpush1.bf16.msra.mxu0 0
  %1126 = vmatprep.subr.bf16.mxu0 0
  %1127 = vmatpush1.bf16.msra.mxu0 0
  %1128 = vmatprep.subr.bf16.mxu0 0
  %1129 = vmatpush1.bf16.msra.mxu0 0
  %1130 = vmatprep.mubr.bf16.mxu0 %v1001
  %1131 = vmatmul.mubr.bf16.gmra.mrb[0].mxu0 %v236
  %v1132 = vpop.f32.mrb[0].mxu0
  %v1133 = vadd.f32 0.0, %v1132
  %v1134 = vpop.f32.mrb[0].mxu0
  %v1135 = vadd.f32 0.0, %v1134
  %v1136 = vpop.f32.mrb[0].mxu0
  %v1137 = vadd.f32 0.0, %v1136
  %v1138 = vpop.f32.mrb[0].mxu0
  %v1139 = vadd.f32 0.0, %v1138
  %1140 = vdwg.mxu0
  %1141 = vmatprep.subr.bf16.mxu0 %v700
  %1142 = vmatpush1.bf16.msra.mxu0 %v699
  %1143 = vmatprep.subr.bf16.mxu0 %v716
  %1144 = vmatpush1.bf16.msra.mxu0 %v715
  %1145 = vmatprep.subr.bf16.mxu0 %v732
  %1146 = vmatpush1.bf16.msra.mxu0 %v731
  %1147 = vmatprep.subr.bf16.mxu0 %v748
  %1148 = vmatpush1.bf16.msra.mxu0 %v747
  %1149 = vmatprep.subr.bf16.mxu0 %v764
  %1150 = vmatpush1.bf16.msra.mxu0 %v763
  %1151 = vmatprep.subr.bf16.mxu0 %v780
  %1152 = vmatpush1.bf16.msra.mxu0 %v779
  %1153 = vmatprep.subr.bf16.mxu0 %v796
  %1154 = vmatpush1.bf16.msra.mxu0 %v795
  %1155 = vmatprep.subr.bf16.mxu0 %v812
  %1156 = vmatpush1.bf16.msra.mxu0 %v811
  %1157 = vmatprep.subr.bf16.mxu0 %v828
  %1158 = vmatpush1.bf16.msra.mxu0 %v827
  %1159 = vmatprep.subr.bf16.mxu0 %v1023
  %1160 = vmatpush1.bf16.msra.mxu0 %v1020
  %1161 = vmatprep.subr.bf16.mxu0 0
  %1162 = vmatpush1.bf16.msra.mxu0 0
  %1163 = vmatprep.subr.bf16.mxu0 0
  %1164 = vmatpush1.bf16.msra.mxu0 0
  %1165 = vmatprep.subr.bf16.mxu0 0
  %1166 = vmatpush1.bf16.msra.mxu0 0
  %1167 = vmatprep.subr.bf16.mxu0 0
  %1168 = vmatpush1.bf16.msra.mxu0 0
  %1169 = vmatprep.subr.bf16.mxu0 0
  %1170 = vmatpush1.bf16.msra.mxu0 0
  %1171 = vmatprep.subr.bf16.mxu0 0
  %1172 = vmatpush1.bf16.msra.mxu0 0
  %1173 = vmatprep.mubr.bf16.mxu0 %v1001
  %1174 = vmatmul.mubr.bf16.gmra.mrb[0].mxu0 %v236
  %v1175 = vpop.f32.mrb[0].mxu0
  %v1176 = vadd.f32 0.0, %v1175
  %v1177 = vpop.f32.mrb[0].mxu0
  %v1178 = vadd.f32 0.0, %v1177
  %v1179 = vpop.f32.mrb[0].mxu0
  %v1180 = vadd.f32 0.0, %v1179
  %v1181 = vpop.f32.mrb[0].mxu0
  %v1182 = vadd.f32 0.0, %v1181
  %1183 = vdwg.mxu0
  %1184 = vmatprep.subr.bf16.mxu0 %v702
  %1185 = vmatpush1.bf16.msra.mxu0 %v701
  %1186 = vmatprep.subr.bf16.mxu0 %v718
  %1187 = vmatpush1.bf16.msra.mxu0 %v717
  %1188 = vmatprep.subr.bf16.mxu0 %v734
  %1189 = vmatpush1.bf16.msra.mxu0 %v733
  %1190 = vmatprep.subr.bf16.mxu0 %v750
  %1191 = vmatpush1.bf16.msra.mxu0 %v749
  %1192 = vmatprep.subr.bf16.mxu0 %v766
  %1193 = vmatpush1.bf16.msra.mxu0 %v765
  %1194 = vmatprep.subr.bf16.mxu0 %v782
  %1195 = vmatpush1.bf16.msra.mxu0 %v781
  %1196 = vmatprep.subr.bf16.mxu0 %v798
  %1197 = vmatpush1.bf16.msra.mxu0 %v797
  %1198 = vmatprep.subr.bf16.mxu0 %v814
  %1199 = vmatpush1.bf16.msra.mxu0 %v813
  %1200 = vmatprep.subr.bf16.mxu0 %v830
  %1201 = vmatpush1.bf16.msra.mxu0 %v829
  %1202 = vmatprep.subr.bf16.mxu0 %v1029
  %1203 = vmatpush1.bf16.msra.mxu0 %v1026
  %1204 = vmatprep.subr.bf16.mxu0 0
  %1205 = vmatpush1.bf16.msra.mxu0 0
  %1206 = vmatprep.subr.bf16.mxu0 0
  %1207 = vmatpush1.bf16.msra.mxu0 0
  %1208 = vmatprep.subr.bf16.mxu0 0
  %1209 = vmatpush1.bf16.msra.mxu0 0
  %1210 = vmatprep.subr.bf16.mxu0 0
  %1211 = vmatpush1.bf16.msra.mxu0 0
  %1212 = vmatprep.subr.bf16.mxu0 0
  %1213 = vmatpush1.bf16.msra.mxu0 0
  %1214 = vmatprep.subr.bf16.mxu0 0
  %1215 = vmatpush1.bf16.msra.mxu0 0
  %1216 = vmatprep.mubr.bf16.mxu0 %v1001
  %1217 = vmatmul.mubr.bf16.gmra.mrb[0].mxu0 %v236
  %v1218 = vpop.f32.mrb[0].mxu0
  %v1219 = vadd.f32 0.0, %v1218
  %v1220 = vpop.f32.mrb[0].mxu0
  %v1221 = vadd.f32 0.0, %v1220
  %v1222 = vpop.f32.mrb[0].mxu0
  %v1223 = vadd.f32 0.0, %v1222
  %v1224 = vpop.f32.mrb[0].mxu0
  %v1225 = vadd.f32 0.0, %v1224
  %1226 = vdwg.mxu0
  %1227 = vmatprep.subr.bf16.mxu0 %v704
  %1228 = vmatpush1.bf16.msra.mxu0 %v703
  %1229 = vmatprep.subr.bf16.mxu0 %v720
  %1230 = vmatpush1.bf16.msra.mxu0 %v719
  %1231 = vmatprep.subr.bf16.mxu0 %v736
  %1232 = vmatpush1.bf16.msra.mxu0 %v735
  %1233 = vmatprep.subr.bf16.mxu0 %v752
  %1234 = vmatpush1.bf16.msra.mxu0 %v751
  %1235 = vmatprep.subr.bf16.mxu0 %v768
  %1236 = vmatpush1.bf16.msra.mxu0 %v767
  %1237 = vmatprep.subr.bf16.mxu0 %v784
  %1238 = vmatpush1.bf16.msra.mxu0 %v783
  %1239 = vmatprep.subr.bf16.mxu0 %v800
  %1240 = vmatpush1.bf16.msra.mxu0 %v799
  %1241 = vmatprep.subr.bf16.mxu0 %v816
  %1242 = vmatpush1.bf16.msra.mxu0 %v815
  %1243 = vmatprep.subr.bf16.mxu0 %v832
  %1244 = vmatpush1.bf16.msra.mxu0 %v831
  %1245 = vmatprep.subr.bf16.mxu0 %v1035
  %1246 = vmatpush1.bf16.msra.mxu0 %v1032
  %1247 = vmatprep.subr.bf16.mxu0 0
  %1248 = vmatpush1.bf16.msra.mxu0 0
  %1249 = vmatprep.subr.bf16.mxu0 0
  %1250 = vmatpush1.bf16.msra.mxu0 0
  %1251 = vmatprep.subr.bf16.mxu0 0
  %1252 = vmatpush1.bf16.msra.mxu0 0
  %1253 = vmatprep.subr.bf16.mxu0 0
  %1254 = vmatpush1.bf16.msra.mxu0 0
  %1255 = vmatprep.subr.bf16.mxu0 0
  %1256 = vmatpush1.bf16.msra.mxu0 0
  %1257 = vmatprep.subr.bf16.mxu0 0
  %1258 = vmatpush1.bf16.msra.mxu0 0
  %1259 = vmatprep.mubr.bf16.mxu0 %v1001
  %1260 = vmatmul.mubr.bf16.gmra.mrb[0].mxu0 %v236
  %v1261 = vpop.f32.mrb[0].mxu0
  %v1262 = vadd.f32 0.0, %v1261
  %v1263 = vpop.f32.mrb[0].mxu0
  %v1264 = vadd.f32 0.0, %v1263
  %v1265 = vpop.f32.mrb[0].mxu0
  %v1266 = vadd.f32 0.0, %v1265
  %v1267 = vpop.f32.mrb[0].mxu0
  %v1268 = vadd.f32 0.0, %v1267
  %1269 = vdwg.mxu0
  %1270 = vmatprep.subr.bf16.mxu0 %v706
  %1271 = vmatpush1.bf16.msra.mxu0 %v705
  %1272 = vmatprep.subr.bf16.mxu0 %v722
  %1273 = vmatpush1.bf16.msra.mxu0 %v721
  %1274 = vmatprep.subr.bf16.mxu0 %v738
  %1275 = vmatpush1.bf16.msra.mxu0 %v737
  %1276 = vmatprep.subr.bf16.mxu0 %v754
  %1277 = vmatpush1.bf16.msra.mxu0 %v753
  %1278 = vmatprep.subr.bf16.mxu0 %v770
  %1279 = vmatpush1.bf16.msra.mxu0 %v769
  %1280 = vmatprep.subr.bf16.mxu0 %v786
  %1281 = vmatpush1.bf16.msra.mxu0 %v785
  %1282 = vmatprep.subr.bf16.mxu0 %v802
  %1283 = vmatpush1.bf16.msra.mxu0 %v801
  %1284 = vmatprep.subr.bf16.mxu0 %v818
  %1285 = vmatpush1.bf16.msra.mxu0 %v817
  %1286 = vmatprep.subr.bf16.mxu0 %v834
  %1287 = vmatpush1.bf16.msra.mxu0 %v833
  %1288 = vmatprep.subr.bf16.mxu0 %v1041
  %1289 = vmatpush1.bf16.msra.mxu0 %v1038
  %1290 = vmatprep.subr.bf16.mxu0 0
  %1291 = vmatpush1.bf16.msra.mxu0 0
  %1292 = vmatprep.subr.bf16.mxu0 0
  %1293 = vmatpush1.bf16.msra.mxu0 0
  %1294 = vmatprep.subr.bf16.mxu0 0
  %1295 = vmatpush1.bf16.msra.mxu0 0
  %1296 = vmatprep.subr.bf16.mxu0 0
  %1297 = vmatpush1.bf16.msra.mxu0 0
  %1298 = vmatprep.subr.bf16.mxu0 0
  %1299 = vmatpush1.bf16.msra.mxu0 0
  %1300 = vmatprep.subr.bf16.mxu0 0
  %1301 = vmatpush1.bf16.msra.mxu0 0
  %1302 = vmatprep.mubr.bf16.mxu0 %v1001
  %1303 = vmatmul.mubr.bf16.gmra.mrb[0].mxu0 %v236
  %v1304 = vpop.f32.mrb[0].mxu0
  %v1305 = vadd.f32 0.0, %v1304
  %v1306 = vpop.f32.mrb[0].mxu0
  %v1307 = vadd.f32 0.0, %v1306
  %v1308 = vpop.f32.mrb[0].mxu0
  %v1309 = vadd.f32 0.0, %v1308
  %v1310 = vpop.f32.mrb[0].mxu0
  %v1311 = vadd.f32 0.0, %v1310
  %1312 = vdwg.mxu0
  %1313 = vmatprep.subr.bf16.mxu0 %v708
  %1314 = vmatpush1.bf16.msra.mxu0 %v707
  %1315 = vmatprep.subr.bf16.mxu0 %v724
  %1316 = vmatpush1.bf16.msra.mxu0 %v723
  %1317 = vmatprep.subr.bf16.mxu0 %v740
  %1318 = vmatpush1.bf16.msra.mxu0 %v739
  %1319 = vmatprep.subr.bf16.mxu0 %v756
  %1320 = vmatpush1.bf16.msra.mxu0 %v755
  %1321 = vmatprep.subr.bf16.mxu0 %v772
  %1322 = vmatpush1.bf16.msra.mxu0 %v771
  %1323 = vmatprep.subr.bf16.mxu0 %v788
  %1324 = vmatpush1.bf16.msra.mxu0 %v787
  %1325 = vmatprep.subr.bf16.mxu0 %v804
  %1326 = vmatpush1.bf16.msra.mxu0 %v803
  %1327 = vmatprep.subr.bf16.mxu0 %v820
  %1328 = vmatpush1.bf16.msra.mxu0 %v819
  %1329 = vmatprep.subr.bf16.mxu0 %v836
  %1330 = vmatpush1.bf16.msra.mxu0 %v835
  %1331 = vmatprep.subr.bf16.mxu0 %v1047
  %1332 = vmatpush1.bf16.msra.mxu0 %v1044
  %1333 = vmatprep.subr.bf16.mxu0 0
  %1334 = vmatpush1.bf16.msra.mxu0 0
  %1335 = vmatprep.subr.bf16.mxu0 0
  %1336 = vmatpush1.bf16.msra.mxu0 0
  %1337 = vmatprep.subr.bf16.mxu0 0
  %1338 = vmatpush1.bf16.msra.mxu0 0
  %1339 = vmatprep.subr.bf16.mxu0 0
  %1340 = vmatpush1.bf16.msra.mxu0 0
  %1341 = vmatprep.subr.bf16.mxu0 0
  %1342 = vmatpush1.bf16.msra.mxu0 0
  %1343 = vmatprep.subr.bf16.mxu0 0
  %1344 = vmatpush1.bf16.msra.mxu0 0
  %1345 = vmatprep.mubr.bf16.mxu0 %v1001
  %1346 = vmatmul.mubr.bf16.gmra.mrb[0].mxu0 %v236
  %v1347 = vpop.f32.mrb[0].mxu0
  %v1348 = vadd.f32 0.0, %v1347
  %v1349 = vpop.f32.mrb[0].mxu0
  %v1350 = vadd.f32 0.0, %v1349
  %v1351 = vpop.f32.mrb[0].mxu0
  %v1352 = vadd.f32 0.0, %v1351
  %v1353 = vpop.f32.mrb[0].mxu0
  %v1354 = vadd.f32 0.0, %v1353
  %1355 = vdwg.mxu0
  %1356 = vmatprep.subr.bf16.mxu0 %v710
  %1357 = vmatpush1.bf16.msra.mxu0 %v709
  %1358 = vmatprep.subr.bf16.mxu0 %v726
  %1359 = vmatpush1.bf16.msra.mxu0 %v725
  %1360 = vmatprep.subr.bf16.mxu0 %v742
  %1361 = vmatpush1.bf16.msra.mxu0 %v741
  %1362 = vmatprep.subr.bf16.mxu0 %v758
  %1363 = vmatpush1.bf16.msra.mxu0 %v757
  %1364 = vmatprep.subr.bf16.mxu0 %v774
  %1365 = vmatpush1.bf16.msra.mxu0 %v773
  %1366 = vmatprep.subr.bf16.mxu0 %v790
  %1367 = vmatpush1.bf16.msra.mxu0 %v789
  %1368 = vmatprep.subr.bf16.mxu0 %v806
  %1369 = vmatpush1.bf16.msra.mxu0 %v805
  %1370 = vmatprep.subr.bf16.mxu0 %v822
  %1371 = vmatpush1.bf16.msra.mxu0 %v821
  %1372 = vmatprep.subr.bf16.mxu0 %v838
  %1373 = vmatpush1.bf16.msra.mxu0 %v837
  %1374 = vmatprep.subr.bf16.mxu0 %v1053
  %1375 = vmatpush1.bf16.msra.mxu0 %v1050
  %1376 = vmatprep.subr.bf16.mxu0 0
  %1377 = vmatpush1.bf16.msra.mxu0 0
  %1378 = vmatprep.subr.bf16.mxu0 0
  %1379 = vmatpush1.bf16.msra.mxu0 0
  %1380 = vmatprep.subr.bf16.mxu0 0
  %1381 = vmatpush1.bf16.msra.mxu0 0
  %1382 = vmatprep.subr.bf16.mxu0 0
  %1383 = vmatpush1.bf16.msra.mxu0 0
  %1384 = vmatprep.subr.bf16.mxu0 0
  %1385 = vmatpush1.bf16.msra.mxu0 0
  %1386 = vmatprep.subr.bf16.mxu0 0
  %1387 = vmatpush1.bf16.msra.mxu0 0
  %1388 = vmatprep.mubr.bf16.mxu0 %v1001
  %1389 = vmatmul.mubr.bf16.gmra.mrb[0].mxu0 %v236
  %v1390 = vpop.f32.mrb[0].mxu0
  %v1391 = vadd.f32 0.0, %v1390
  %v1392 = vpop.f32.mrb[0].mxu0
  %v1393 = vadd.f32 0.0, %v1392
  %v1394 = vpop.f32.mrb[0].mxu0
  %v1395 = vadd.f32 0.0, %v1394
  %v1396 = vpop.f32.mrb[0].mxu0
  %v1397 = vadd.f32 0.0, %v1396
  %1398 = vdwg.mxu0
  %v1399 = vadd.f32 %v1090, %v1092
  %v1400 = vadd.f32 %v1399, %v1133
  %v1401 = vadd.f32 %v1400, %v1135
  %v1402 = vadd.f32 %v1401, %v1176
  %v1403 = vadd.f32 %v1402, %v1178
  %v1404 = vadd.f32 %v1403, %v1219
  %v1405 = vadd.f32 %v1404, %v1221
  %v1406 = vadd.f32 %v1405, %v1262
  %v1407 = vadd.f32 %v1406, %v1264
  %v1408 = vadd.f32 %v1407, %v1305
  %v1409 = vadd.f32 %v1408, %v1307
  %v1410 = vadd.f32 %v1409, %v1348
  %v1411 = vadd.f32 %v1410, %v1350
  %v1412 = vadd.f32 %v1411, %v1391
  %v1413 = vadd.f32 %v1412, %v1393
  %1414 = vadd.xlane.f32.xlu0 %v1413
  %v1415 = vpop.xlane.xlu0 %1414
  %v1416 = vadd.f32 %v1094, %v1096
  %v1417 = vadd.f32 %v1416, %v1137
  %v1418 = vadd.f32 %v1417, %v1139
  %v1419 = vadd.f32 %v1418, %v1180
  %v1420 = vadd.f32 %v1419, %v1182
  %v1421 = vadd.f32 %v1420, %v1223
  %v1422 = vadd.f32 %v1421, %v1225
  %v1423 = vadd.f32 %v1422, %v1266
  %v1424 = vadd.f32 %v1423, %v1268
  %v1425 = vadd.f32 %v1424, %v1309
  %v1426 = vadd.f32 %v1425, %v1311
  %v1427 = vadd.f32 %v1426, %v1352
  %v1428 = vadd.f32 %v1427, %v1354
  %v1429 = vadd.f32 %v1428, %v1395
  %v1430 = vadd.f32 %v1429, %v1397
  %1431 = vadd.xlane.f32.xlu0 %v1430
  %v1432 = vpop.xlane.xlu0 %1431
  %v1433 = vrcp.pop 2048.0
  %v1434 = vmul.f32 %v1415, %v1433
  %v1435 = vmul.f32 %v1432, %v1433
  %v1436 = vmul.f32 %v1090, %v1090
  %v1437 = vmul.f32 %v1092, %v1092
  %v1438 = vmul.f32 %v1133, %v1133
  %v1439 = vmul.f32 %v1135, %v1135
  %v1440 = vmul.f32 %v1176, %v1176
  %v1441 = vmul.f32 %v1178, %v1178
  %v1442 = vmul.f32 %v1219, %v1219
  %v1443 = vmul.f32 %v1221, %v1221
  %v1444 = vmul.f32 %v1262, %v1262
  %v1445 = vmul.f32 %v1264, %v1264
  %v1446 = vmul.f32 %v1305, %v1305
  %v1447 = vmul.f32 %v1307, %v1307
  %v1448 = vmul.f32 %v1348, %v1348
  %v1449 = vmul.f32 %v1350, %v1350
  %v1450 = vmul.f32 %v1391, %v1391
  %v1451 = vmul.f32 %v1393, %v1393
  %v1452 = vmul.f32 %v1094, %v1094
  %v1453 = vmul.f32 %v1096, %v1096
  %v1454 = vmul.f32 %v1137, %v1137
  %v1455 = vmul.f32 %v1139, %v1139
  %v1456 = vmul.f32 %v1180, %v1180
  %v1457 = vmul.f32 %v1182, %v1182
  %v1458 = vmul.f32 %v1223, %v1223
  %v1459 = vmul.f32 %v1225, %v1225
  %v1460 = vmul.f32 %v1266, %v1266
  %v1461 = vmul.f32 %v1268, %v1268
  %v1462 = vmul.f32 %v1309, %v1309
  %v1463 = vmul.f32 %v1311, %v1311
  %v1464 = vmul.f32 %v1352, %v1352
  %v1465 = vmul.f32 %v1354, %v1354
  %v1466 = vmul.f32 %v1395, %v1395
  %v1467 = vmul.f32 %v1397, %v1397
  %v1468 = vadd.f32 %v1436, %v1437
  %v1469 = vadd.f32 %v1468, %v1438
  %v1470 = vadd.f32 %v1469, %v1439
  %v1471 = vadd.f32 %v1470, %v1440
  %v1472 = vadd.f32 %v1471, %v1441
  %v1473 = vadd.f32 %v1472, %v1442
  %v1474 = vadd.f32 %v1473, %v1443
  %v1475 = vadd.f32 %v1474, %v1444
  %v1476 = vadd.f32 %v1475, %v1445
  %v1477 = vadd.f32 %v1476, %v1446
  %v1478 = vadd.f32 %v1477, %v1447
  %v1479 = vadd.f32 %v1478, %v1448
  %v1480 = vadd.f32 %v1479, %v1449
  %v1481 = vadd.f32 %v1480, %v1450
  %v1482 = vadd.f32 %v1481, %v1451
  %1483 = vadd.xlane.f32.xlu0 %v1482
  %v1484 = vpop.xlane.xlu0 %1483
  %v1485 = vadd.f32 %v1452, %v1453
  %v1486 = vadd.f32 %v1485, %v1454
  %v1487 = vadd.f32 %v1486, %v1455
  %v1488 = vadd.f32 %v1487, %v1456
  %v1489 = vadd.f32 %v1488, %v1457
  %v1490 = vadd.f32 %v1489, %v1458
  %v1491 = vadd.f32 %v1490, %v1459
  %v1492 = vadd.f32 %v1491, %v1460
  %v1493 = vadd.f32 %v1492, %v1461
  %v1494 = vadd.f32 %v1493, %v1462
  %v1495 = vadd.f32 %v1494, %v1463
  %v1496 = vadd.f32 %v1495, %v1464
  %v1497 = vadd.f32 %v1496, %v1465
  %v1498 = vadd.f32 %v1497, %v1466
  %v1499 = vadd.f32 %v1498, %v1467
  %1500 = vadd.xlane.f32.xlu0 %v1499
  %v1501 = vpop.xlane.xlu0 %1500
  %v1502 = vmul.f32 %v1484, %v1433
  %v1503 = vmul.f32 %v1501, %v1433
  %v1504 = vmul.f32 %v1434, %v1434
  %v1505 = vmul.f32 %v1435, %v1435
  %v1506 = vsub.f32 %v1502, %v1504
  %v1507 = vsub.f32 %v1503, %v1505
  %v1508 = vadd.f32 %v1506, 1e-05
  %v1509 = vadd.f32 %v1507, 1e-05
  %v1510 = vrsqrt.pop %v1508
  %v1511 = vrsqrt.pop %v1509
  %v1512 = vmul.f32 %v72, %v1510
  %v1513 = vmul.f32 %v73, %v1511
  %1515 = vset.pattern.permute.xlu0 0
  %1516 = vperm.xlu0 %1515, %v1512
  %v1517 = vpop.permute.xlu0 %1516
  %1520 = vset.pattern.permute.xlu0 0
  %1521 = vperm.xlu0 %1520, %v1513
  %v1522 = vpop.permute.xlu0 %1521
  %v1524 = vmul.f32 %v1090, %v1517
  %v1525 = vmul.f32 %v1092, %v1517
  %v1526 = vmul.f32 %v1133, %v1517
  %v1527 = vmul.f32 %v1135, %v1517
  %v1528 = vmul.f32 %v1176, %v1517
  %v1529 = vmul.f32 %v1178, %v1517
  %v1530 = vmul.f32 %v1219, %v1517
  %v1531 = vmul.f32 %v1221, %v1517
  %v1532 = vmul.f32 %v1262, %v1517
  %v1533 = vmul.f32 %v1264, %v1517
  %v1534 = vmul.f32 %v1305, %v1517
  %v1535 = vmul.f32 %v1307, %v1517
  %v1536 = vmul.f32 %v1348, %v1517
  %v1537 = vmul.f32 %v1350, %v1517
  %v1538 = vmul.f32 %v1391, %v1517
  %v1539 = vmul.f32 %v1393, %v1517
  %v1540 = vmul.f32 %v1094, %v1522
  %v1541 = vmul.f32 %v1096, %v1522
  %v1542 = vmul.f32 %v1137, %v1522
  %v1543 = vmul.f32 %v1139, %v1522
  %v1544 = vmul.f32 %v1180, %v1522
  %v1545 = vmul.f32 %v1182, %v1522
  %v1546 = vmul.f32 %v1223, %v1522
  %v1547 = vmul.f32 %v1225, %v1522
  %v1548 = vmul.f32 %v1266, %v1522
  %v1549 = vmul.f32 %v1268, %v1522
  %v1550 = vmul.f32 %v1309, %v1522
  %v1551 = vmul.f32 %v1311, %v1522
  %v1552 = vmul.f32 %v1352, %v1522
  %v1553 = vmul.f32 %v1354, %v1522
  %v1554 = vmul.f32 %v1395, %v1522
  %v1555 = vmul.f32 %v1397, %v1522
  %v1556 = vmul.f32 %v1434, %v1512
  %v1557 = vmul.f32 %v1435, %v1513
  %v1558 = vsub.f32 %v74, %v1556
  %v1559 = vsub.f32 %v75, %v1557
  %1561 = vset.pattern.permute.xlu0 0
  %1562 = vperm.xlu0 %1561, %v1558
  %v1563 = vpop.permute.xlu0 %1562
  %1566 = vset.pattern.permute.xlu0 0
  %1567 = vperm.xlu0 %1566, %v1559
  %v1568 = vpop.permute.xlu0 %1567
  %v1570 = vadd.f32 %v1524, %v1563
  %v1571 = vadd.f32 %v1525, %v1563
  %v1572 = vadd.f32 %v1526, %v1563
  %v1573 = vadd.f32 %v1527, %v1563
  %v1574 = vadd.f32 %v1528, %v1563
  %v1575 = vadd.f32 %v1529, %v1563
  %v1576 = vadd.f32 %v1530, %v1563
  %v1577 = vadd.f32 %v1531, %v1563
  %v1578 = vadd.f32 %v1532, %v1563
  %v1579 = vadd.f32 %v1533, %v1563
  %v1580 = vadd.f32 %v1534, %v1563
  %v1581 = vadd.f32 %v1535, %v1563
  %v1582 = vadd.f32 %v1536, %v1563
  %v1583 = vadd.f32 %v1537, %v1563
  %v1584 = vadd.f32 %v1538, %v1563
  %v1585 = vadd.f32 %v1539, %v1563
  %v1586 = vadd.f32 %v1540, %v1568
  %v1587 = vadd.f32 %v1541, %v1568
  %v1588 = vadd.f32 %v1542, %v1568
  %v1589 = vadd.f32 %v1543, %v1568
  %v1590 = vadd.f32 %v1544, %v1568
  %v1591 = vadd.f32 %v1545, %v1568
  %v1592 = vadd.f32 %v1546, %v1568
  %v1593 = vadd.f32 %v1547, %v1568
  %v1594 = vadd.f32 %v1548, %v1568
  %v1595 = vadd.f32 %v1549, %v1568
  %v1596 = vadd.f32 %v1550, %v1568
  %v1597 = vadd.f32 %v1551, %v1568
  %v1598 = vadd.f32 %v1552, %v1568
  %v1599 = vadd.f32 %v1553, %v1568
  %v1600 = vadd.f32 %v1554, %v1568
  %v1601 = vadd.f32 %v1555, %v1568
  %v1602 = vmax.f32 %v1570, 0.0
  %v1603 = vmax.f32 %v1571, 0.0
  %v1604 = vmax.f32 %v1572, 0.0
  %v1605 = vmax.f32 %v1573, 0.0
  %v1606 = vmax.f32 %v1574, 0.0
  %v1607 = vmax.f32 %v1575, 0.0
  %v1608 = vmax.f32 %v1576, 0.0
  %v1609 = vmax.f32 %v1577, 0.0
  %v1610 = vmax.f32 %v1578, 0.0
  %v1611 = vmax.f32 %v1579, 0.0
  %v1612 = vmax.f32 %v1580, 0.0
  %v1613 = vmax.f32 %v1581, 0.0
  %v1614 = vmax.f32 %v1582, 0.0
  %v1615 = vmax.f32 %v1583, 0.0
  %v1616 = vmax.f32 %v1584, 0.0
  %v1617 = vmax.f32 %v1585, 0.0
  %v1618 = vmax.f32 %v1586, 0.0
  %v1619 = vmax.f32 %v1587, 0.0
  %v1620 = vmax.f32 %v1588, 0.0
  %v1621 = vmax.f32 %v1589, 0.0
  %v1622 = vmax.f32 %v1590, 0.0
  %v1623 = vmax.f32 %v1591, 0.0
  %v1624 = vmax.f32 %v1592, 0.0
  %v1625 = vmax.f32 %v1593, 0.0
  %v1626 = vmax.f32 %v1594, 0.0
  %v1627 = vmax.f32 %v1595, 0.0
  %v1628 = vmax.f32 %v1596, 0.0
  %v1629 = vmax.f32 %v1597, 0.0
  %v1630 = vmax.f32 %v1598, 0.0
  %v1631 = vmax.f32 %v1599, 0.0
  %v1632 = vmax.f32 %v1600, 0.0
  %v1633 = vmax.f32 %v1601, 0.0
  %1634 = vrot.lane.b32.xlu0 %v1614, 17
  %v1635 = vpop.permute.xlu0 %1634
  %1636 = vrot.lane.b32.xlu0 %v1630, 17
  %v1637 = vpop.permute.xlu0 %1636
  %1638 = vrot.lane.b32.xlu0 %v1615, 17
  %v1639 = vpop.permute.xlu0 %1638
  %1640 = vrot.lane.b32.xlu0 %v1631, 17
  %v1641 = vpop.permute.xlu0 %1640
  %1642 = vrot.lane.b32.xlu0 %v1616, 17
  %v1643 = vpop.permute.xlu0 %1642
  %1644 = vrot.lane.b32.xlu0 %v1632, 17
  %v1645 = vpop.permute.xlu0 %1644
  %1646 = vrot.lane.b32.xlu0 %v1617, 17
  %v1647 = vpop.permute.xlu0 %1646
  %1648 = vrot.lane.b32.xlu0 %v1633, 17
  %v1649 = vpop.permute.xlu0 %1648
  %v1650 = vlaneseq
  %v1651 = vand.u32 %v1650, 127
  %vm1652 = vcmp.lt.s32.totalorder %v1651, 17
  %v1653 = vsel %vm1652, %v1643, %v1647
  %v1654 = vsel %vm1652, %v1645, %v1649
  %v1655 = vsel %vm1652, %v1639, %v1643
  %v1656 = vsel %vm1652, %v1641, %v1645
  %v1657 = vsel %vm1652, %v1635, %v1639
  %v1658 = vsel %vm1652, %v1637, %v1641
  %v1659 = vsel %vm1652, %v1647, %v1635
  %v1660 = vsel %vm1652, %v1649, %v1637
  %v1661 = vld [vmem:[%s4] ss:$8 sm:$0xf]
  %v1663 = vlaneseq
  %v1664 = vshrl.u32 %v1663, 7
  %v1665 = vsub.s32 0, %v1664
  %v1666 = vrot.slane %v1661, %v1665
  %v1667 = vlaneseq
  %v1668 = vshrl.u32 %v1667, 7
  %v1669 = vsub.s32 1, %v1668
  %v1670 = vrot.slane %v1661, %v1669
  %v1671 = vlaneseq
  %v1672 = vshrl.u32 %v1671, 7
  %v1673 = vsub.s32 2, %v1672
  %v1674 = vrot.slane %v1661, %v1673
  %v1675 = vlaneseq
  %v1676 = vshrl.u32 %v1675, 7
  %v1677 = vsub.s32 3, %v1676
  %v1678 = vrot.slane %v1661, %v1677
  %v1683 = vmul.f32 %v1659, %v1666
  %v1684 = vmul.f32 %v1657, %v1670
  %v1685 = vmul.f32 %v1655, %v1674
  %v1686 = vmul.f32 %v1653, %v1678
  %v1687 = vmul.f32 %v1660, %v1666
  %v1688 = vmul.f32 %v1658, %v1670
  %v1689 = vmul.f32 %v1656, %v1674
  %v1690 = vmul.f32 %v1654, %v1678
  %1691 = vrot.lane.b32.xlu0 %v1610, 16
  %v1692 = vpop.permute.xlu0 %1691
  %1693 = vrot.lane.b32.xlu0 %v1626, 16
  %v1694 = vpop.permute.xlu0 %1693
  %1695 = vrot.lane.b32.xlu0 %v1611, 16
  %v1696 = vpop.permute.xlu0 %1695
  %1697 = vrot.lane.b32.xlu0 %v1627, 16
  %v1698 = vpop.permute.xlu0 %1697
  %1699 = vrot.lane.b32.xlu0 %v1612, 16
  %v1700 = vpop.permute.xlu0 %1699
  %1701 = vrot.lane.b32.xlu0 %v1628, 16
  %v1702 = vpop.permute.xlu0 %1701
  %1703 = vrot.lane.b32.xlu0 %v1613, 16
  %v1704 = vpop.permute.xlu0 %1703
  %1705 = vrot.lane.b32.xlu0 %v1629, 16
  %v1706 = vpop.permute.xlu0 %1705
  %vm1707 = vcmp.lt.s32.totalorder %v1651, 16
  %v1708 = vsel %vm1707, %v1700, %v1704
  %v1709 = vsel %vm1707, %v1702, %v1706
  %v1710 = vsel %vm1707, %v1696, %v1700
  %v1711 = vsel %vm1707, %v1698, %v1702
  %v1712 = vsel %vm1707, %v1692, %v1696
  %v1713 = vsel %vm1707, %v1694, %v1698
  %v1714 = vsel %vm1707, %v1704, %v1692
  %v1715 = vsel %vm1707, %v1706, %v1694
  %s1716 = scalar_lea.vmem %s4, 1
  %v1717 = vld [vmem:[%s1716] ss:$8 sm:$0xf]
  %v1719 = vlaneseq
  %v1720 = vshrl.u32 %v1719, 7
  %v1721 = vsub.s32 0, %v1720
  %v1722 = vrot.slane %v1717, %v1721
  %v1723 = vlaneseq
  %v1724 = vshrl.u32 %v1723, 7
  %v1725 = vsub.s32 1, %v1724
  %v1726 = vrot.slane %v1717, %v1725
  %v1727 = vlaneseq
  %v1728 = vshrl.u32 %v1727, 7
  %v1729 = vsub.s32 2, %v1728
  %v1730 = vrot.slane %v1717, %v1729
  %v1731 = vlaneseq
  %v1732 = vshrl.u32 %v1731, 7
  %v1733 = vsub.s32 3, %v1732
  %v1734 = vrot.slane %v1717, %v1733
  %v1739 = vmul.f32 %v1714, %v1722
  %v1740 = vmul.f32 %v1712, %v1726
  %v1741 = vmul.f32 %v1710, %v1730
  %v1742 = vmul.f32 %v1708, %v1734
  %v1743 = vmul.f32 %v1715, %v1722
  %v1744 = vmul.f32 %v1713, %v1726
  %v1745 = vmul.f32 %v1711, %v1730
  %v1746 = vmul.f32 %v1709, %v1734
  %v1747 = vmax.f32 %v1683, %v1739
  %v1748 = vmax.f32 %v1684, %v1740
  %v1749 = vmax.f32 %v1685, %v1741
  %v1750 = vmax.f32 %v1686, %v1742
  %v1751 = vmax.f32 %v1687, %v1743
  %v1752 = vmax.f32 %v1688, %v1744
  %v1753 = vmax.f32 %v1689, %v1745
  %v1754 = vmax.f32 %v1690, %v1746
  %1755 = vrot.lane.b32.xlu0 %v1614, 16
  %v1756 = vpop.permute.xlu0 %1755
  %1757 = vrot.lane.b32.xlu0 %v1630, 16
  %v1758 = vpop.permute.xlu0 %1757
  %1759 = vrot.lane.b32.xlu0 %v1615, 16
  %v1760 = vpop.permute.xlu0 %1759
  %1761 = vrot.lane.b32.xlu0 %v1631, 16
  %v1762 = vpop.permute.xlu0 %1761
  %1763 = vrot.lane.b32.xlu0 %v1616, 16
  %v1764 = vpop.permute.xlu0 %1763
  %1765 = vrot.lane.b32.xlu0 %v1632, 16
  %v1766 = vpop.permute.xlu0 %1765
  %1767 = vrot.lane.b32.xlu0 %v1617, 16
  %v1768 = vpop.permute.xlu0 %1767
  %1769 = vrot.lane.b32.xlu0 %v1633, 16
  %v1770 = vpop.permute.xlu0 %1769
  %v1771 = vsel %vm1707, %v1764, %v1768
  %v1772 = vsel %vm1707, %v1766, %v1770
  %v1773 = vsel %vm1707, %v1760, %v1764
  %v1774 = vsel %vm1707, %v1762, %v1766
  %v1775 = vsel %vm1707, %v1756, %v1760
  %v1776 = vsel %vm1707, %v1758, %v1762
  %v1777 = vsel %vm1707, %v1768, %v1756
  %v1778 = vsel %vm1707, %v1770, %v1758
  %s1779 = scalar_lea.vmem %s4, 2
  %v1780 = vld [vmem:[%s1779] ss:$8 sm:$0xf]
  %v1782 = vlaneseq
  %v1783 = vshrl.u32 %v1782, 7
  %v1784 = vsub.s32 0, %v1783
  %v1785 = vrot.slane %v1780, %v1784
  %v1786 = vlaneseq
  %v1787 = vshrl.u32 %v1786, 7
  %v1788 = vsub.s32 1, %v1787
  %v1789 = vrot.slane %v1780, %v1788
  %v1790 = vlaneseq
  %v1791 = vshrl.u32 %v1790, 7
  %v1792 = vsub.s32 2, %v1791
  %v1793 = vrot.slane %v1780, %v1792
  %v1794 = vlaneseq
  %v1795 = vshrl.u32 %v1794, 7
  %v1796 = vsub.s32 3, %v1795
  %v1797 = vrot.slane %v1780, %v1796
  %v1802 = vmul.f32 %v1777, %v1785
  %v1803 = vmul.f32 %v1775, %v1789
  %v1804 = vmul.f32 %v1773, %v1793
  %v1805 = vmul.f32 %v1771, %v1797
  %v1806 = vmul.f32 %v1778, %v1785
  %v1807 = vmul.f32 %v1776, %v1789
  %v1808 = vmul.f32 %v1774, %v1793
  %v1809 = vmul.f32 %v1772, %v1797
  %v1810 = vmax.f32 %v1747, %v1802
  %v1811 = vmax.f32 %v1748, %v1803
  %v1812 = vmax.f32 %v1749, %v1804
  %v1813 = vmax.f32 %v1750, %v1805
  %v1814 = vmax.f32 %v1751, %v1806
  %v1815 = vmax.f32 %v1752, %v1807
  %v1816 = vmax.f32 %v1753, %v1808
  %v1817 = vmax.f32 %v1754, %v1809
  %1818 = vrot.lane.b32.xlu0 %v1606, 1
  %v1819 = vpop.permute.xlu0 %1818
  %1820 = vrot.lane.b32.xlu0 %v1622, 1
  %v1821 = vpop.permute.xlu0 %1820
  %1822 = vrot.lane.b32.xlu0 %v1607, 1
  %v1823 = vpop.permute.xlu0 %1822
  %1824 = vrot.lane.b32.xlu0 %v1623, 1
  %v1825 = vpop.permute.xlu0 %1824
  %1826 = vrot.lane.b32.xlu0 %v1608, 1
  %v1827 = vpop.permute.xlu0 %1826
  %1828 = vrot.lane.b32.xlu0 %v1624, 1
  %v1829 = vpop.permute.xlu0 %1828
  %1830 = vrot.lane.b32.xlu0 %v1609, 1
  %v1831 = vpop.permute.xlu0 %1830
  %1832 = vrot.lane.b32.xlu0 %v1625, 1
  %v1833 = vpop.permute.xlu0 %1832
  %vm1834 = vcmp.lt.s32.totalorder %v1651, 1
  %v1835 = vsel %vm1834, %v1827, %v1831
  %v1836 = vsel %vm1834, %v1829, %v1833
  %v1837 = vsel %vm1834, %v1823, %v1827
  %v1838 = vsel %vm1834, %v1825, %v1829
  %v1839 = vsel %vm1834, %v1819, %v1823
  %v1840 = vsel %vm1834, %v1821, %v1825
  %v1841 = vsel %vm1834, %v1831, %v1819
  %v1842 = vsel %vm1834, %v1833, %v1821
  %s1843 = scalar_lea.vmem %s4, 3
  %v1844 = vld [vmem:[%s1843] ss:$8 sm:$0xf]
  %v1846 = vlaneseq
  %v1847 = vshrl.u32 %v1846, 7
  %v1848 = vsub.s32 0, %v1847
  %v1849 = vrot.slane %v1844, %v1848
  %v1850 = vlaneseq
  %v1851 = vshrl.u32 %v1850, 7
  %v1852 = vsub.s32 1, %v1851
  %v1853 = vrot.slane %v1844, %v1852
  %v1854 = vlaneseq
  %v1855 = vshrl.u32 %v1854, 7
  %v1856 = vsub.s32 2, %v1855
  %v1857 = vrot.slane %v1844, %v1856
  %v1858 = vlaneseq
  %v1859 = vshrl.u32 %v1858, 7
  %v1860 = vsub.s32 3, %v1859
  %v1861 = vrot.slane %v1844, %v1860
  %v1866 = vmul.f32 %v1841, %v1849
  %v1867 = vmul.f32 %v1839, %v1853
  %v1868 = vmul.f32 %v1837, %v1857
  %v1869 = vmul.f32 %v1835, %v1861
  %v1870 = vmul.f32 %v1842, %v1849
  %v1871 = vmul.f32 %v1840, %v1853
  %v1872 = vmul.f32 %v1838, %v1857
  %v1873 = vmul.f32 %v1836, %v1861
  %v1874 = vmax.f32 %v1810, %v1866
  %v1875 = vmax.f32 %v1811, %v1867
  %v1876 = vmax.f32 %v1812, %v1868
  %v1877 = vmax.f32 %v1813, %v1869
  %v1878 = vmax.f32 %v1814, %v1870
  %v1879 = vmax.f32 %v1815, %v1871
  %v1880 = vmax.f32 %v1816, %v1872
  %v1881 = vmax.f32 %v1817, %v1873
  %v1882 = vmax.f32 %v1874, %v1602
  %v1883 = vmax.f32 %v1875, %v1603
  %v1884 = vmax.f32 %v1876, %v1604
  %v1885 = vmax.f32 %v1877, %v1605
  %v1886 = vmax.f32 %v1878, %v1618
  %v1887 = vmax.f32 %v1879, %v1619
  %v1888 = vmax.f32 %v1880, %v1620
  %v1889 = vmax.f32 %v1881, %v1621
  %v1890 = vmax.f32 %v1882, %v1606
  %v1891 = vmax.f32 %v1883, %v1607
  %v1892 = vmax.f32 %v1884, %v1608
  %v1893 = vmax.f32 %v1885, %v1609
  %v1894 = vmax.f32 %v1886, %v1622
  %v1895 = vmax.f32 %v1887, %v1623
  %v1896 = vmax.f32 %v1888, %v1624
  %v1897 = vmax.f32 %v1889, %v1625
  %1898 = vrot.lane.b32.xlu0 %v1614, 1
  %v1899 = vpop.permute.xlu0 %1898
  %1900 = vrot.lane.b32.xlu0 %v1630, 1
  %v1901 = vpop.permute.xlu0 %1900
  %1902 = vrot.lane.b32.xlu0 %v1615, 1
  %v1903 = vpop.permute.xlu0 %1902
  %1904 = vrot.lane.b32.xlu0 %v1631, 1
  %v1905 = vpop.permute.xlu0 %1904
  %1906 = vrot.lane.b32.xlu0 %v1616, 1
  %v1907 = vpop.permute.xlu0 %1906
  %1908 = vrot.lane.b32.xlu0 %v1632, 1
  %v1909 = vpop.permute.xlu0 %1908
  %1910 = vrot.lane.b32.xlu0 %v1617, 1
  %v1911 = vpop.permute.xlu0 %1910
  %1912 = vrot.lane.b32.xlu0 %v1633, 1
  %v1913 = vpop.permute.xlu0 %1912
  %v1914 = vsel %vm1834, %v1907, %v1911
  %v1915 = vsel %vm1834, %v1909, %v1913
  %v1916 = vsel %vm1834, %v1903, %v1907
  %v1917 = vsel %vm1834, %v1905, %v1909
  %v1918 = vsel %vm1834, %v1899, %v1903
  %v1919 = vsel %vm1834, %v1901, %v1905
  %v1920 = vsel %vm1834, %v1911, %v1899
  %v1921 = vsel %vm1834, %v1913, %v1901
  %s1922 = scalar_lea.vmem %s4, 6
  %v1923 = vld [vmem:[%s1922] ss:$8 sm:$0xf]
  %v1925 = vlaneseq
  %v1926 = vshrl.u32 %v1925, 7
  %v1927 = vsub.s32 0, %v1926
  %v1928 = vrot.slane %v1923, %v1927
  %v1929 = vlaneseq
  %v1930 = vshrl.u32 %v1929, 7
  %v1931 = vsub.s32 1, %v1930
  %v1932 = vrot.slane %v1923, %v1931
  %v1933 = vlaneseq
  %v1934 = vshrl.u32 %v1933, 7
  %v1935 = vsub.s32 2, %v1934
  %v1936 = vrot.slane %v1923, %v1935
  %v1937 = vlaneseq
  %v1938 = vshrl.u32 %v1937, 7
  %v1939 = vsub.s32 3, %v1938
  %v1940 = vrot.slane %v1923, %v1939
  %v1945 = vmul.f32 %v1920, %v1928
  %v1946 = vmul.f32 %v1918, %v1932
  %v1947 = vmul.f32 %v1916, %v1936
  %v1948 = vmul.f32 %v1914, %v1940
  %v1949 = vmul.f32 %v1921, %v1928
  %v1950 = vmul.f32 %v1919, %v1932
  %v1951 = vmul.f32 %v1917, %v1936
  %v1952 = vmul.f32 %v1915, %v1940
  %v1953 = vmax.f32 %v1890, %v1945
  %v1954 = vmax.f32 %v1891, %v1946
  %v1955 = vmax.f32 %v1892, %v1947
  %v1956 = vmax.f32 %v1893, %v1948
  %v1957 = vmax.f32 %v1894, %v1949
  %v1958 = vmax.f32 %v1895, %v1950
  %v1959 = vmax.f32 %v1896, %v1951
  %v1960 = vmax.f32 %v1897, %v1952
  %v1961 = vmax.f32 %v1953, %v1610
  %v1962 = vmax.f32 %v1954, %v1611
  %v1963 = vmax.f32 %v1955, %v1612
  %v1964 = vmax.f32 %v1956, %v1613
  %v1965 = vmax.f32 %v1957, %v1626
  %v1966 = vmax.f32 %v1958, %v1627
  %v1967 = vmax.f32 %v1959, %v1628
  %v1968 = vmax.f32 %v1960, %v1629
  %v1969 = vmax.f32 %v1961, %v1614
  %v1970 = vmax.f32 %v1962, %v1615
  %v1971 = vmax.f32 %v1963, %v1616
  %v1972 = vmax.f32 %v1964, %v1617
  %v1973 = vmax.f32 %v1965, %v1630
  %v1974 = vmax.f32 %v1966, %v1631
  %v1975 = vmax.f32 %v1967, %v1632
  %v1976 = vmax.f32 %v1968, %v1633
  %v1977 = vld [vmem:[%s6] sm:$0xff]
  %v1978 = vld [vmem:[%s6 + $0x8] sm:$0xff]
  %v1979 = vld [vmem:[%s7] sm:$0xff]
  %v1980 = vld [vmem:[%s7 + $0x8] sm:$0xff]
  %v1981 = vld [vmem:[%s8] sm:$0xf]
  %v1982 = vld [vmem:[%s8 + $0x4] sm:$0xf]
  %v1983 = vld [vmem:[%s9] sm:$0xff]
  %v1984 = vld [vmem:[%s9 + $0x8] sm:$0xff]
  %v1985 = vld [vmem:[%s10] sm:$0xff]
  %v1986 = vld [vmem:[%s10 + $0x8] sm:$0xff]
  %v1987 = vld [vmem:[%s11] sm:$0xff]
  %v1988 = vadd.f32 %v1969, %v1970
  %v1989 = vadd.f32 %v1988, %v1971
  %v1990 = vadd.f32 %v1989, %v1972
  %1991 = vadd.xlane.f32.xlu0 %v1990
  %v1992 = vpop.xlane.xlu0 %1991
  %v1993 = vadd.f32 %v1973, %v1974
  %v1994 = vadd.f32 %v1993, %v1975
  %v1995 = vadd.f32 %v1994, %v1976
  %1996 = vadd.xlane.f32.xlu0 %v1995
  %v1997 = vpop.xlane.xlu0 %1996
  %v1998 = vrcp.pop 512.0
  %v1999 = vmul.f32 %v1992, %v1998
  %v2000 = vmul.f32 %v1997, %v1998
  %v2001 = vmul.f32 %v1969, %v1969
  %v2002 = vmul.f32 %v1970, %v1970
  %v2003 = vmul.f32 %v1971, %v1971
  %v2004 = vmul.f32 %v1972, %v1972
  %v2005 = vmul.f32 %v1973, %v1973
  %v2006 = vmul.f32 %v1974, %v1974
  %v2007 = vmul.f32 %v1975, %v1975
  %v2008 = vmul.f32 %v1976, %v1976
  %v2009 = vadd.f32 %v2001, %v2002
  %v2010 = vadd.f32 %v2009, %v2003
  %v2011 = vadd.f32 %v2010, %v2004
  %2012 = vadd.xlane.f32.xlu0 %v2011
  %v2013 = vpop.xlane.xlu0 %2012
  %v2014 = vadd.f32 %v2005, %v2006
  %v2015 = vadd.f32 %v2014, %v2007
  %v2016 = vadd.f32 %v2015, %v2008
  %2017 = vadd.xlane.f32.xlu0 %v2016
  %v2018 = vpop.xlane.xlu0 %2017
  %v2019 = vmul.f32 %v2013, %v1998
  %v2020 = vmul.f32 %v2018, %v1998
  %v2021 = vmul.f32 %v1999, %v1999
  %v2022 = vmul.f32 %v2000, %v2000
  %v2023 = vsub.f32 %v2019, %v2021
  %v2024 = vsub.f32 %v2020, %v2022
  %v2025 = vadd.f32 %v2023, 1e-05
  %v2026 = vadd.f32 %v2024, 1e-05
  %v2027 = vrsqrt.pop %v2025
  %v2028 = vrsqrt.pop %v2026
  %v2029 = vmul.f32 %v1977, %v2027
  %v2030 = vmul.f32 %v1978, %v2028
  %2032 = vset.pattern.permute.xlu0 0
  %2033 = vperm.xlu0 %2032, %v2029
  %v2034 = vpop.permute.xlu0 %2033
  %2037 = vset.pattern.permute.xlu0 0
  %2038 = vperm.xlu0 %2037, %v2030
  %v2039 = vpop.permute.xlu0 %2038
  %v2041 = vmul.f32 %v1969, %v2034
  %v2042 = vmul.f32 %v1970, %v2034
  %v2043 = vmul.f32 %v1971, %v2034
  %v2044 = vmul.f32 %v1972, %v2034
  %v2045 = vmul.f32 %v1973, %v2039
  %v2046 = vmul.f32 %v1974, %v2039
  %v2047 = vmul.f32 %v1975, %v2039
  %v2048 = vmul.f32 %v1976, %v2039
  %v2049 = vmul.f32 %v1999, %v2029
  %v2050 = vmul.f32 %v2000, %v2030
  %v2051 = vsub.f32 %v1979, %v2049
  %v2052 = vsub.f32 %v1980, %v2050
  %2054 = vset.pattern.permute.xlu0 0
  %2055 = vperm.xlu0 %2054, %v2051
  %v2056 = vpop.permute.xlu0 %2055
  %2059 = vset.pattern.permute.xlu0 0
  %2060 = vperm.xlu0 %2059, %v2052
  %v2061 = vpop.permute.xlu0 %2060
  %v2063 = vadd.f32 %v2041, %v2056
  %v2064 = vadd.f32 %v2042, %v2056
  %v2065 = vadd.f32 %v2043, %v2056
  %v2066 = vadd.f32 %v2044, %v2056
  %v2067 = vadd.f32 %v2045, %v2061
  %v2068 = vadd.f32 %v2046, %v2061
  %v2069 = vadd.f32 %v2047, %v2061
  %v2070 = vadd.f32 %v2048, %v2061
  %v2071 = vmax.f32 %v2063, 0.0
  %v2072 = vmax.f32 %v2064, 0.0
  %v2073 = vmax.f32 %v2065, 0.0
  %v2074 = vmax.f32 %v2066, 0.0
  %v2075 = vmax.f32 %v2067, 0.0
  %v2076 = vmax.f32 %v2068, 0.0
  %v2077 = vmax.f32 %v2069, 0.0
  %v2078 = vmax.f32 %v2070, 0.0
  %v2079 = vpack.c.bf16 %v2075, %v2071
  %v2080 = vpack.c.bf16 %v2076, %v2072
  %v2081 = vpack.c.bf16 %v2077, %v2073
  %v2082 = vpack.c.bf16 %v2078, %v2074
  %v2085 = vunpack.c.l.b16 %v1981
  %v2086 = vunpack.c.l.b16 %v1982
  %v2087 = vpack.c.b16 %v2086, %v2085
  %vm2088 = vcmask 130048
  %v2090 = vsel %vm2088, %v2087, 0
  %2092 = vmatprep.subr.bf16.mxu0 %v2080
  %2093 = vmatpush1.bf16.msra.mxu0 %v2079
  %2094 = vmatprep.subr.bf16.mxu0 0
  %2095 = vmatpush1.bf16.msra.mxu0 0
  %2096 = vmatprep.subr.bf16.mxu0 0
  %2097 = vmatpush1.bf16.msra.mxu0 0
  %2098 = vmatprep.subr.bf16.mxu0 0
  %2099 = vmatpush1.bf16.msra.mxu0 0
  %2100 = vmatprep.subr.bf16.mxu0 0
  %2101 = vmatpush1.bf16.msra.mxu0 0
  %2102 = vmatprep.subr.bf16.mxu0 0
  %2103 = vmatpush1.bf16.msra.mxu0 0
  %2104 = vmatprep.subr.bf16.mxu0 0
  %2105 = vmatpush1.bf16.msra.mxu0 0
  %2106 = vmatprep.subr.bf16.mxu0 0
  %2107 = vmatpush1.bf16.msra.mxu0 0
  %2108 = vmatprep.subr.bf16.mxu0 0
  %2109 = vmatpush1.bf16.msra.mxu0 0
  %2110 = vmatprep.subr.bf16.mxu0 0
  %2111 = vmatpush1.bf16.msra.mxu0 0
  %2112 = vmatprep.subr.bf16.mxu0 0
  %2113 = vmatpush1.bf16.msra.mxu0 0
  %2114 = vmatprep.subr.bf16.mxu0 0
  %2115 = vmatpush1.bf16.msra.mxu0 0
  %2116 = vmatprep.subr.bf16.mxu0 0
  %2117 = vmatpush1.bf16.msra.mxu0 0
  %2118 = vmatprep.subr.bf16.mxu0 0
  %2119 = vmatpush1.bf16.msra.mxu0 0
  %2120 = vmatprep.subr.bf16.mxu0 0
  %2121 = vmatpush1.bf16.msra.mxu0 0
  %2122 = vmatprep.subr.bf16.mxu0 0
  %2123 = vmatpush1.bf16.msra.mxu0 0
  %2124 = vmatprep.mubr.bf16.mxu0 0
  %2125 = vmatmul.mubr.bf16.gmra.mrb[0].mxu0 %v2090
  %v2126 = vpop.f32.mrb[0].mxu0
  %v2127 = vadd.f32 0.0, %v2126
  %v2128 = vpop.f32.mrb[0].mxu0
  %v2129 = vadd.f32 0.0, %v2128
  %v2130 = vpop.f32.mrb[0].mxu0
  %v2131 = vadd.f32 0.0, %v2130
  %v2132 = vpop.f32.mrb[0].mxu0
  %v2133 = vadd.f32 0.0, %v2132
  %2134 = vdwg.mxu0
  %2135 = vmatprep.subr.bf16.mxu0 %v2082
  %2136 = vmatpush1.bf16.msra.mxu0 %v2081
  %2137 = vmatprep.subr.bf16.mxu0 0
  %2138 = vmatpush1.bf16.msra.mxu0 0
  %2139 = vmatprep.subr.bf16.mxu0 0
  %2140 = vmatpush1.bf16.msra.mxu0 0
  %2141 = vmatprep.subr.bf16.mxu0 0
  %2142 = vmatpush1.bf16.msra.mxu0 0
  %2143 = vmatprep.subr.bf16.mxu0 0
  %2144 = vmatpush1.bf16.msra.mxu0 0
  %2145 = vmatprep.subr.bf16.mxu0 0
  %2146 = vmatpush1.bf16.msra.mxu0 0
  %2147 = vmatprep.subr.bf16.mxu0 0
  %2148 = vmatpush1.bf16.msra.mxu0 0
  %2149 = vmatprep.subr.bf16.mxu0 0
  %2150 = vmatpush1.bf16.msra.mxu0 0
  %2151 = vmatprep.subr.bf16.mxu0 0
  %2152 = vmatpush1.bf16.msra.mxu0 0
  %2153 = vmatprep.subr.bf16.mxu0 0
  %2154 = vmatpush1.bf16.msra.mxu0 0
  %2155 = vmatprep.subr.bf16.mxu0 0
  %2156 = vmatpush1.bf16.msra.mxu0 0
  %2157 = vmatprep.subr.bf16.mxu0 0
  %2158 = vmatpush1.bf16.msra.mxu0 0
  %2159 = vmatprep.subr.bf16.mxu0 0
  %2160 = vmatpush1.bf16.msra.mxu0 0
  %2161 = vmatprep.subr.bf16.mxu0 0
  %2162 = vmatpush1.bf16.msra.mxu0 0
  %2163 = vmatprep.subr.bf16.mxu0 0
  %2164 = vmatpush1.bf16.msra.mxu0 0
  %2165 = vmatprep.subr.bf16.mxu0 0
  %2166 = vmatpush1.bf16.msra.mxu0 0
  %2167 = vmatprep.mubr.bf16.mxu0 0
  %2168 = vmatmul.mubr.bf16.gmra.mrb[0].mxu0 %v2090
  %v2169 = vpop.f32.mrb[0].mxu0
  %v2170 = vadd.f32 0.0, %v2169
  %v2171 = vpop.f32.mrb[0].mxu0
  %v2172 = vadd.f32 0.0, %v2171
  %v2173 = vpop.f32.mrb[0].mxu0
  %v2174 = vadd.f32 0.0, %v2173
  %v2175 = vpop.f32.mrb[0].mxu0
  %v2176 = vadd.f32 0.0, %v2175
  %2177 = vdwg.mxu0
  %v2178 = vadd.f32 %v2127, %v2129
  %v2179 = vadd.f32 %v2178, %v2170
  %v2180 = vadd.f32 %v2179, %v2172
  %2181 = vadd.xlane.f32.xlu0 %v2180
  %v2182 = vpop.xlane.xlu0 %2181
  %v2183 = vadd.f32 %v2131, %v2133
  %v2184 = vadd.f32 %v2183, %v2174
  %v2185 = vadd.f32 %v2184, %v2176
  %2186 = vadd.xlane.f32.xlu0 %v2185
  %v2187 = vpop.xlane.xlu0 %2186
  %v2188 = vmul.f32 %v2182, %v1998
  %v2189 = vmul.f32 %v2187, %v1998
  %v2190 = vmul.f32 %v2127, %v2127
  %v2191 = vmul.f32 %v2129, %v2129
  %v2192 = vmul.f32 %v2170, %v2170
  %v2193 = vmul.f32 %v2172, %v2172
  %v2194 = vmul.f32 %v2131, %v2131
  %v2195 = vmul.f32 %v2133, %v2133
  %v2196 = vmul.f32 %v2174, %v2174
  %v2197 = vmul.f32 %v2176, %v2176
  %v2198 = vadd.f32 %v2190, %v2191
  %v2199 = vadd.f32 %v2198, %v2192
  %v2200 = vadd.f32 %v2199, %v2193
  %2201 = vadd.xlane.f32.xlu0 %v2200
  %v2202 = vpop.xlane.xlu0 %2201
  %v2203 = vadd.f32 %v2194, %v2195
  %v2204 = vadd.f32 %v2203, %v2196
  %v2205 = vadd.f32 %v2204, %v2197
  %2206 = vadd.xlane.f32.xlu0 %v2205
  %v2207 = vpop.xlane.xlu0 %2206
  %v2208 = vmul.f32 %v2202, %v1998
  %v2209 = vmul.f32 %v2207, %v1998
  %v2210 = vmul.f32 %v2188, %v2188
  %v2211 = vmul.f32 %v2189, %v2189
  %v2212 = vsub.f32 %v2208, %v2210
  %v2213 = vsub.f32 %v2209, %v2211
  %v2214 = vadd.f32 %v2212, 1e-05
  %v2215 = vadd.f32 %v2213, 1e-05
  %v2216 = vrsqrt.pop %v2214
  %v2217 = vrsqrt.pop %v2215
  %v2218 = vmul.f32 %v1983, %v2216
  %v2219 = vmul.f32 %v1984, %v2217
  %2221 = vset.pattern.permute.xlu0 0
  %2222 = vperm.xlu0 %2221, %v2218
  %v2223 = vpop.permute.xlu0 %2222
  %2226 = vset.pattern.permute.xlu0 0
  %2227 = vperm.xlu0 %2226, %v2219
  %v2228 = vpop.permute.xlu0 %2227
  %v2230 = vmul.f32 %v2127, %v2223
  %v2231 = vmul.f32 %v2129, %v2223
  %v2232 = vmul.f32 %v2170, %v2223
  %v2233 = vmul.f32 %v2172, %v2223
  %v2234 = vmul.f32 %v2131, %v2228
  %v2235 = vmul.f32 %v2133, %v2228
  %v2236 = vmul.f32 %v2174, %v2228
  %v2237 = vmul.f32 %v2176, %v2228
  %v2238 = vmul.f32 %v2188, %v2218
  %v2239 = vmul.f32 %v2189, %v2219
  %v2240 = vsub.f32 %v1985, %v2238
  %v2241 = vsub.f32 %v1986, %v2239
  %2243 = vset.pattern.permute.xlu0 0
  %2244 = vperm.xlu0 %2243, %v2240
  %v2245 = vpop.permute.xlu0 %2244
  %2248 = vset.pattern.permute.xlu0 0
  %2249 = vperm.xlu0 %2248, %v2241
  %v2250 = vpop.permute.xlu0 %2249
  %v2252 = vadd.f32 %v2230, %v2245
  %v2253 = vadd.f32 %v2231, %v2245
  %v2254 = vadd.f32 %v2232, %v2245
  %v2255 = vadd.f32 %v2233, %v2245
  %v2256 = vadd.f32 %v2234, %v2250
  %v2257 = vadd.f32 %v2235, %v2250
  %v2258 = vadd.f32 %v2236, %v2250
  %v2259 = vadd.f32 %v2237, %v2250
  %v2260 = vmax.f32 %v2252, 0.0
  %v2261 = vmax.f32 %v2253, 0.0
  %v2262 = vmax.f32 %v2254, 0.0
  %v2263 = vmax.f32 %v2255, 0.0
  %v2264 = vmax.f32 %v2256, 0.0
  %v2265 = vmax.f32 %v2257, 0.0
  %v2266 = vmax.f32 %v2258, 0.0
  %v2267 = vmax.f32 %v2259, 0.0
  %2268 = vrot.lane.b32.xlu0 %v2260, 17
  %v2269 = vpop.permute.xlu0 %2268
  %2270 = vrot.lane.b32.xlu0 %v2264, 17
  %v2271 = vpop.permute.xlu0 %2270
  %2272 = vrot.lane.b32.xlu0 %v2261, 17
  %v2273 = vpop.permute.xlu0 %2272
  %2274 = vrot.lane.b32.xlu0 %v2265, 17
  %v2275 = vpop.permute.xlu0 %2274
  %2276 = vrot.lane.b32.xlu0 %v2262, 17
  %v2277 = vpop.permute.xlu0 %2276
  %2278 = vrot.lane.b32.xlu0 %v2266, 17
  %v2279 = vpop.permute.xlu0 %2278
  %2280 = vrot.lane.b32.xlu0 %v2263, 17
  %v2281 = vpop.permute.xlu0 %2280
  %2282 = vrot.lane.b32.xlu0 %v2267, 17
  %v2283 = vpop.permute.xlu0 %2282
  %v2284 = vsel %vm1652, %v2277, %v2281
  %v2285 = vsel %vm1652, %v2279, %v2283
  %v2286 = vsel %vm1652, %v2273, %v2277
  %v2287 = vsel %vm1652, %v2275, %v2279
  %v2288 = vsel %vm1652, %v2269, %v2273
  %v2289 = vsel %vm1652, %v2271, %v2275
  %v2290 = vsel %vm1652, %v2281, %v2269
  %v2291 = vsel %vm1652, %v2283, %v2271
  %v2292 = vld [vmem:[%s5] ss:$8 sm:$0xf]
  %v2294 = vlaneseq
  %v2295 = vshrl.u32 %v2294, 7
  %v2296 = vsub.s32 0, %v2295
  %v2297 = vrot.slane %v2292, %v2296
  %v2298 = vlaneseq
  %v2299 = vshrl.u32 %v2298, 7
  %v2300 = vsub.s32 1, %v2299
  %v2301 = vrot.slane %v2292, %v2300
  %v2302 = vlaneseq
  %v2303 = vshrl.u32 %v2302, 7
  %v2304 = vsub.s32 2, %v2303
  %v2305 = vrot.slane %v2292, %v2304
  %v2306 = vlaneseq
  %v2307 = vshrl.u32 %v2306, 7
  %v2308 = vsub.s32 3, %v2307
  %v2309 = vrot.slane %v2292, %v2308
  %v2314 = vmul.f32 %v2290, %v2297
  %v2315 = vmul.f32 %v2288, %v2301
  %v2316 = vmul.f32 %v2286, %v2305
  %v2317 = vmul.f32 %v2284, %v2309
  %v2318 = vmul.f32 %v2291, %v2297
  %v2319 = vmul.f32 %v2289, %v2301
  %v2320 = vmul.f32 %v2287, %v2305
  %v2321 = vmul.f32 %v2285, %v2309
  %v2322 = vpack.c.bf16 %v2318, %v2314
  %v2323 = vpack.c.bf16 %v2319, %v2315
  %v2324 = vpack.c.bf16 %v2320, %v2316
  %v2325 = vpack.c.bf16 %v2321, %v2317
  %2326 = vrot.lane.b32.xlu0 %v2260, 16
  %v2327 = vpop.permute.xlu0 %2326
  %2328 = vrot.lane.b32.xlu0 %v2264, 16
  %v2329 = vpop.permute.xlu0 %2328
  %2330 = vrot.lane.b32.xlu0 %v2261, 16
  %v2331 = vpop.permute.xlu0 %2330
  %2332 = vrot.lane.b32.xlu0 %v2265, 16
  %v2333 = vpop.permute.xlu0 %2332
  %2334 = vrot.lane.b32.xlu0 %v2262, 16
  %v2335 = vpop.permute.xlu0 %2334
  %2336 = vrot.lane.b32.xlu0 %v2266, 16
  %v2337 = vpop.permute.xlu0 %2336
  %2338 = vrot.lane.b32.xlu0 %v2263, 16
  %v2339 = vpop.permute.xlu0 %2338
  %2340 = vrot.lane.b32.xlu0 %v2267, 16
  %v2341 = vpop.permute.xlu0 %2340
  %v2342 = vsel %vm1707, %v2335, %v2339
  %v2343 = vsel %vm1707, %v2337, %v2341
  %v2344 = vsel %vm1707, %v2331, %v2335
  %v2345 = vsel %vm1707, %v2333, %v2337
  %v2346 = vsel %vm1707, %v2327, %v2331
  %v2347 = vsel %vm1707, %v2329, %v2333
  %v2348 = vsel %vm1707, %v2339, %v2327
  %v2349 = vsel %vm1707, %v2341, %v2329
  %s2350 = scalar_lea.vmem %s5, 1
  %v2351 = vld [vmem:[%s2350] ss:$8 sm:$0xf]
  %v2353 = vlaneseq
  %v2354 = vshrl.u32 %v2353, 7
  %v2355 = vsub.s32 0, %v2354
  %v2356 = vrot.slane %v2351, %v2355
  %v2357 = vlaneseq
  %v2358 = vshrl.u32 %v2357, 7
  %v2359 = vsub.s32 1, %v2358
  %v2360 = vrot.slane %v2351, %v2359
  %v2361 = vlaneseq
  %v2362 = vshrl.u32 %v2361, 7
  %v2363 = vsub.s32 2, %v2362
  %v2364 = vrot.slane %v2351, %v2363
  %v2365 = vlaneseq
  %v2366 = vshrl.u32 %v2365, 7
  %v2367 = vsub.s32 3, %v2366
  %v2368 = vrot.slane %v2351, %v2367
  %v2373 = vmul.f32 %v2348, %v2356
  %v2374 = vmul.f32 %v2346, %v2360
  %v2375 = vmul.f32 %v2344, %v2364
  %v2376 = vmul.f32 %v2342, %v2368
  %v2377 = vmul.f32 %v2349, %v2356
  %v2378 = vmul.f32 %v2347, %v2360
  %v2379 = vmul.f32 %v2345, %v2364
  %v2380 = vmul.f32 %v2343, %v2368
  %v2381 = vpack.c.bf16 %v2377, %v2373
  %v2382 = vpack.c.bf16 %v2378, %v2374
  %v2383 = vpack.c.bf16 %v2379, %v2375
  %v2384 = vpack.c.bf16 %v2380, %v2376
  %2385 = vrot.lane.b32.xlu0 %v2260, 15
  %v2386 = vpop.permute.xlu0 %2385
  %2387 = vrot.lane.b32.xlu0 %v2264, 15
  %v2388 = vpop.permute.xlu0 %2387
  %2389 = vrot.lane.b32.xlu0 %v2261, 15
  %v2390 = vpop.permute.xlu0 %2389
  %2391 = vrot.lane.b32.xlu0 %v2265, 15
  %v2392 = vpop.permute.xlu0 %2391
  %2393 = vrot.lane.b32.xlu0 %v2262, 15
  %v2394 = vpop.permute.xlu0 %2393
  %2395 = vrot.lane.b32.xlu0 %v2266, 15
  %v2396 = vpop.permute.xlu0 %2395
  %2397 = vrot.lane.b32.xlu0 %v2263, 15
  %v2398 = vpop.permute.xlu0 %2397
  %2399 = vrot.lane.b32.xlu0 %v2267, 15
  %v2400 = vpop.permute.xlu0 %2399
  %vm2401 = vcmp.lt.s32.totalorder %v1651, 15
  %v2402 = vsel %vm2401, %v2394, %v2398
  %v2403 = vsel %vm2401, %v2396, %v2400
  %v2404 = vsel %vm2401, %v2390, %v2394
  %v2405 = vsel %vm2401, %v2392, %v2396
  %v2406 = vsel %vm2401, %v2386, %v2390
  %v2407 = vsel %vm2401, %v2388, %v2392
  %v2408 = vsel %vm2401, %v2398, %v2386
  %v2409 = vsel %vm2401, %v2400, %v2388
  %s2410 = scalar_lea.vmem %s5, 2
  %v2411 = vld [vmem:[%s2410] ss:$8 sm:$0xf]
  %v2413 = vlaneseq
  %v2414 = vshrl.u32 %v2413, 7
  %v2415 = vsub.s32 0, %v2414
  %v2416 = vrot.slane %v2411, %v2415
  %v2417 = vlaneseq
  %v2418 = vshrl.u32 %v2417, 7
  %v2419 = vsub.s32 1, %v2418
  %v2420 = vrot.slane %v2411, %v2419
  %v2421 = vlaneseq
  %v2422 = vshrl.u32 %v2421, 7
  %v2423 = vsub.s32 2, %v2422
  %v2424 = vrot.slane %v2411, %v2423
  %v2425 = vlaneseq
  %v2426 = vshrl.u32 %v2425, 7
  %v2427 = vsub.s32 3, %v2426
  %v2428 = vrot.slane %v2411, %v2427
  %v2433 = vmul.f32 %v2408, %v2416
  %v2434 = vmul.f32 %v2406, %v2420
  %v2435 = vmul.f32 %v2404, %v2424
  %v2436 = vmul.f32 %v2402, %v2428
  %v2437 = vmul.f32 %v2409, %v2416
  %v2438 = vmul.f32 %v2407, %v2420
  %v2439 = vmul.f32 %v2405, %v2424
  %v2440 = vmul.f32 %v2403, %v2428
  %v2441 = vpack.c.bf16 %v2437, %v2433
  %v2442 = vpack.c.bf16 %v2438, %v2434
  %v2443 = vpack.c.bf16 %v2439, %v2435
  %v2444 = vpack.c.bf16 %v2440, %v2436
  %2445 = vrot.lane.b32.xlu0 %v2260, 1
  %v2446 = vpop.permute.xlu0 %2445
  %2447 = vrot.lane.b32.xlu0 %v2264, 1
  %v2448 = vpop.permute.xlu0 %2447
  %2449 = vrot.lane.b32.xlu0 %v2261, 1
  %v2450 = vpop.permute.xlu0 %2449
  %2451 = vrot.lane.b32.xlu0 %v2265, 1
  %v2452 = vpop.permute.xlu0 %2451
  %2453 = vrot.lane.b32.xlu0 %v2262, 1
  %v2454 = vpop.permute.xlu0 %2453
  %2455 = vrot.lane.b32.xlu0 %v2266, 1
  %v2456 = vpop.permute.xlu0 %2455
  %2457 = vrot.lane.b32.xlu0 %v2263, 1
  %v2458 = vpop.permute.xlu0 %2457
  %2459 = vrot.lane.b32.xlu0 %v2267, 1
  %v2460 = vpop.permute.xlu0 %2459
  %v2461 = vsel %vm1834, %v2454, %v2458
  %v2462 = vsel %vm1834, %v2456, %v2460
  %v2463 = vsel %vm1834, %v2450, %v2454
  %v2464 = vsel %vm1834, %v2452, %v2456
  %v2465 = vsel %vm1834, %v2446, %v2450
  %v2466 = vsel %vm1834, %v2448, %v2452
  %v2467 = vsel %vm1834, %v2458, %v2446
  %v2468 = vsel %vm1834, %v2460, %v2448
  %s2469 = scalar_lea.vmem %s5, 3
  %v2470 = vld [vmem:[%s2469] ss:$8 sm:$0xf]
  %v2472 = vlaneseq
  %v2473 = vshrl.u32 %v2472, 7
  %v2474 = vsub.s32 0, %v2473
  %v2475 = vrot.slane %v2470, %v2474
  %v2476 = vlaneseq
  %v2477 = vshrl.u32 %v2476, 7
  %v2478 = vsub.s32 1, %v2477
  %v2479 = vrot.slane %v2470, %v2478
  %v2480 = vlaneseq
  %v2481 = vshrl.u32 %v2480, 7
  %v2482 = vsub.s32 2, %v2481
  %v2483 = vrot.slane %v2470, %v2482
  %v2484 = vlaneseq
  %v2485 = vshrl.u32 %v2484, 7
  %v2486 = vsub.s32 3, %v2485
  %v2487 = vrot.slane %v2470, %v2486
  %v2492 = vmul.f32 %v2467, %v2475
  %v2493 = vmul.f32 %v2465, %v2479
  %v2494 = vmul.f32 %v2463, %v2483
  %v2495 = vmul.f32 %v2461, %v2487
  %v2496 = vmul.f32 %v2468, %v2475
  %v2497 = vmul.f32 %v2466, %v2479
  %v2498 = vmul.f32 %v2464, %v2483
  %v2499 = vmul.f32 %v2462, %v2487
  %v2500 = vpack.c.bf16 %v2496, %v2492
  %v2501 = vpack.c.bf16 %v2497, %v2493
  %v2502 = vpack.c.bf16 %v2498, %v2494
  %v2503 = vpack.c.bf16 %v2499, %v2495
  %v2504 = vpack.c.bf16 %v2264, %v2260
  %v2505 = vpack.c.bf16 %v2265, %v2261
  %v2506 = vpack.c.bf16 %v2266, %v2262
  %v2507 = vpack.c.bf16 %v2267, %v2263
  %2508 = vrot.lane.b32.xlu0 %v2260, 127
  %v2509 = vpop.permute.xlu0 %2508
  %2510 = vrot.lane.b32.xlu0 %v2264, 127
  %v2511 = vpop.permute.xlu0 %2510
  %2512 = vrot.lane.b32.xlu0 %v2261, 127
  %v2513 = vpop.permute.xlu0 %2512
  %2514 = vrot.lane.b32.xlu0 %v2265, 127
  %v2515 = vpop.permute.xlu0 %2514
  %2516 = vrot.lane.b32.xlu0 %v2262, 127
  %v2517 = vpop.permute.xlu0 %2516
  %2518 = vrot.lane.b32.xlu0 %v2266, 127
  %v2519 = vpop.permute.xlu0 %2518
  %2520 = vrot.lane.b32.xlu0 %v2263, 127
  %v2521 = vpop.permute.xlu0 %2520
  %2522 = vrot.lane.b32.xlu0 %v2267, 127
  %v2523 = vpop.permute.xlu0 %2522
  %vm2524 = vcmp.lt.s32.totalorder %v1651, 127
  %v2525 = vsel %vm2524, %v2517, %v2521
  %v2526 = vsel %vm2524, %v2519, %v2523
  %v2527 = vsel %vm2524, %v2513, %v2517
  %v2528 = vsel %vm2524, %v2515, %v2519
  %v2529 = vsel %vm2524, %v2509, %v2513
  %v2530 = vsel %vm2524, %v2511, %v2515
  %v2531 = vsel %vm2524, %v2521, %v2509
  %v2532 = vsel %vm2524, %v2523, %v2511
  %s2533 = scalar_lea.vmem %s5, 5
  %v2534 = vld [vmem:[%s2533] ss:$8 sm:$0xf]
  %v2536 = vlaneseq
  %v2537 = vshrl.u32 %v2536, 7
  %v2538 = vsub.s32 0, %v2537
  %v2539 = vrot.slane %v2534, %v2538
  %v2540 = vlaneseq
  %v2541 = vshrl.u32 %v2540, 7
  %v2542 = vsub.s32 1, %v2541
  %v2543 = vrot.slane %v2534, %v2542
  %v2544 = vlaneseq
  %v2545 = vshrl.u32 %v2544, 7
  %v2546 = vsub.s32 2, %v2545
  %v2547 = vrot.slane %v2534, %v2546
  %v2548 = vlaneseq
  %v2549 = vshrl.u32 %v2548, 7
  %v2550 = vsub.s32 3, %v2549
  %v2551 = vrot.slane %v2534, %v2550
  %v2556 = vmul.f32 %v2529, %v2539
  %v2557 = vmul.f32 %v2527, %v2543
  %v2558 = vmul.f32 %v2525, %v2547
  %v2559 = vmul.f32 %v2531, %v2551
  %v2560 = vmul.f32 %v2530, %v2539
  %v2561 = vmul.f32 %v2528, %v2543
  %v2562 = vmul.f32 %v2526, %v2547
  %v2563 = vmul.f32 %v2532, %v2551
  %v2564 = vpack.c.bf16 %v2560, %v2556
  %v2565 = vpack.c.bf16 %v2561, %v2557
  %v2566 = vpack.c.bf16 %v2562, %v2558
  %v2567 = vpack.c.bf16 %v2563, %v2559
  %2568 = vrot.lane.b32.xlu0 %v2260, 113
  %v2569 = vpop.permute.xlu0 %2568
  %2570 = vrot.lane.b32.xlu0 %v2264, 113
  %v2571 = vpop.permute.xlu0 %2570
  %2572 = vrot.lane.b32.xlu0 %v2261, 113
  %v2573 = vpop.permute.xlu0 %2572
  %2574 = vrot.lane.b32.xlu0 %v2265, 113
  %v2575 = vpop.permute.xlu0 %2574
  %2576 = vrot.lane.b32.xlu0 %v2262, 113
  %v2577 = vpop.permute.xlu0 %2576
  %2578 = vrot.lane.b32.xlu0 %v2266, 113
  %v2579 = vpop.permute.xlu0 %2578
  %2580 = vrot.lane.b32.xlu0 %v2263, 113
  %v2581 = vpop.permute.xlu0 %2580
  %2582 = vrot.lane.b32.xlu0 %v2267, 113
  %v2583 = vpop.permute.xlu0 %2582
  %vm2584 = vcmp.lt.s32.totalorder %v1651, 113
  %v2585 = vsel %vm2584, %v2577, %v2581
  %v2586 = vsel %vm2584, %v2579, %v2583
  %v2587 = vsel %vm2584, %v2573, %v2577
  %v2588 = vsel %vm2584, %v2575, %v2579
  %v2589 = vsel %vm2584, %v2569, %v2573
  %v2590 = vsel %vm2584, %v2571, %v2575
  %v2591 = vsel %vm2584, %v2581, %v2569
  %v2592 = vsel %vm2584, %v2583, %v2571
  %s2593 = scalar_lea.vmem %s5, 6
  %v2594 = vld [vmem:[%s2593] ss:$8 sm:$0xf]
  %v2596 = vlaneseq
  %v2597 = vshrl.u32 %v2596, 7
  %v2598 = vsub.s32 0, %v2597
  %v2599 = vrot.slane %v2594, %v2598
  %v2600 = vlaneseq
  %v2601 = vshrl.u32 %v2600, 7
  %v2602 = vsub.s32 1, %v2601
  %v2603 = vrot.slane %v2594, %v2602
  %v2604 = vlaneseq
  %v2605 = vshrl.u32 %v2604, 7
  %v2606 = vsub.s32 2, %v2605
  %v2607 = vrot.slane %v2594, %v2606
  %v2608 = vlaneseq
  %v2609 = vshrl.u32 %v2608, 7
  %v2610 = vsub.s32 3, %v2609
  %v2611 = vrot.slane %v2594, %v2610
  %v2616 = vmul.f32 %v2589, %v2599
  %v2617 = vmul.f32 %v2587, %v2603
  %v2618 = vmul.f32 %v2585, %v2607
  %v2619 = vmul.f32 %v2591, %v2611
  %v2620 = vmul.f32 %v2590, %v2599
  %v2621 = vmul.f32 %v2588, %v2603
  %v2622 = vmul.f32 %v2586, %v2607
  %v2623 = vmul.f32 %v2592, %v2611
  %v2624 = vpack.c.bf16 %v2620, %v2616
  %v2625 = vpack.c.bf16 %v2621, %v2617
  %v2626 = vpack.c.bf16 %v2622, %v2618
  %v2627 = vpack.c.bf16 %v2623, %v2619
  %2628 = vrot.lane.b32.xlu0 %v2260, 112
  %v2629 = vpop.permute.xlu0 %2628
  %2630 = vrot.lane.b32.xlu0 %v2264, 112
  %v2631 = vpop.permute.xlu0 %2630
  %2632 = vrot.lane.b32.xlu0 %v2261, 112
  %v2633 = vpop.permute.xlu0 %2632
  %2634 = vrot.lane.b32.xlu0 %v2265, 112
  %v2635 = vpop.permute.xlu0 %2634
  %2636 = vrot.lane.b32.xlu0 %v2262, 112
  %v2637 = vpop.permute.xlu0 %2636
  %2638 = vrot.lane.b32.xlu0 %v2266, 112
  %v2639 = vpop.permute.xlu0 %2638
  %2640 = vrot.lane.b32.xlu0 %v2263, 112
  %v2641 = vpop.permute.xlu0 %2640
  %2642 = vrot.lane.b32.xlu0 %v2267, 112
  %v2643 = vpop.permute.xlu0 %2642
  %vm2644 = vcmp.lt.s32.totalorder %v1651, 112
  %v2645 = vsel %vm2644, %v2637, %v2641
  %v2646 = vsel %vm2644, %v2639, %v2643
  %v2647 = vsel %vm2644, %v2633, %v2637
  %v2648 = vsel %vm2644, %v2635, %v2639
  %v2649 = vsel %vm2644, %v2629, %v2633
  %v2650 = vsel %vm2644, %v2631, %v2635
  %v2651 = vsel %vm2644, %v2641, %v2629
  %v2652 = vsel %vm2644, %v2643, %v2631
  %s2653 = scalar_lea.vmem %s5, 7
  %v2654 = vld [vmem:[%s2653] ss:$8 sm:$0xf]
  %v2656 = vlaneseq
  %v2657 = vshrl.u32 %v2656, 7
  %v2658 = vsub.s32 0, %v2657
  %v2659 = vrot.slane %v2654, %v2658
  %v2660 = vlaneseq
  %v2661 = vshrl.u32 %v2660, 7
  %v2662 = vsub.s32 1, %v2661
  %v2663 = vrot.slane %v2654, %v2662
  %v2664 = vlaneseq
  %v2665 = vshrl.u32 %v2664, 7
  %v2666 = vsub.s32 2, %v2665
  %v2667 = vrot.slane %v2654, %v2666
  %v2668 = vlaneseq
  %v2669 = vshrl.u32 %v2668, 7
  %v2670 = vsub.s32 3, %v2669
  %v2671 = vrot.slane %v2654, %v2670
  %v2676 = vmul.f32 %v2649, %v2659
  %v2677 = vmul.f32 %v2647, %v2663
  %v2678 = vmul.f32 %v2645, %v2667
  %v2679 = vmul.f32 %v2651, %v2671
  %v2680 = vmul.f32 %v2650, %v2659
  %v2681 = vmul.f32 %v2648, %v2663
  %v2682 = vmul.f32 %v2646, %v2667
  %v2683 = vmul.f32 %v2652, %v2671
  %v2684 = vpack.c.bf16 %v2680, %v2676
  %v2685 = vpack.c.bf16 %v2681, %v2677
  %v2686 = vpack.c.bf16 %v2682, %v2678
  %v2687 = vpack.c.bf16 %v2683, %v2679
  %2688 = vrot.lane.b32.xlu0 %v2260, 111
  %v2689 = vpop.permute.xlu0 %2688
  %2690 = vrot.lane.b32.xlu0 %v2264, 111
  %v2691 = vpop.permute.xlu0 %2690
  %2692 = vrot.lane.b32.xlu0 %v2261, 111
  %v2693 = vpop.permute.xlu0 %2692
  %2694 = vrot.lane.b32.xlu0 %v2265, 111
  %v2695 = vpop.permute.xlu0 %2694
  %2696 = vrot.lane.b32.xlu0 %v2262, 111
  %v2697 = vpop.permute.xlu0 %2696
  %2698 = vrot.lane.b32.xlu0 %v2266, 111
  %v2699 = vpop.permute.xlu0 %2698
  %2700 = vrot.lane.b32.xlu0 %v2263, 111
  %v2701 = vpop.permute.xlu0 %2700
  %2702 = vrot.lane.b32.xlu0 %v2267, 111
  %v2703 = vpop.permute.xlu0 %2702
  %vm2704 = vcmp.lt.s32.totalorder %v1651, 111
  %v2705 = vsel %vm2704, %v2697, %v2701
  %v2706 = vsel %vm2704, %v2699, %v2703
  %v2707 = vsel %vm2704, %v2693, %v2697
  %v2708 = vsel %vm2704, %v2695, %v2699
  %v2709 = vsel %vm2704, %v2689, %v2693
  %v2710 = vsel %vm2704, %v2691, %v2695
  %v2711 = vsel %vm2704, %v2701, %v2689
  %v2712 = vsel %vm2704, %v2703, %v2691
  %s2713 = scalar_lea.vmem %s5, 32
  %v2714 = vld [vmem:[%s2713] ss:$8 sm:$0xf]
  %v2716 = vlaneseq
  %v2717 = vshrl.u32 %v2716, 7
  %v2718 = vsub.s32 0, %v2717
  %v2719 = vrot.slane %v2714, %v2718
  %v2720 = vlaneseq
  %v2721 = vshrl.u32 %v2720, 7
  %v2722 = vsub.s32 1, %v2721
  %v2723 = vrot.slane %v2714, %v2722
  %v2724 = vlaneseq
  %v2725 = vshrl.u32 %v2724, 7
  %v2726 = vsub.s32 2, %v2725
  %v2727 = vrot.slane %v2714, %v2726
  %v2728 = vlaneseq
  %v2729 = vshrl.u32 %v2728, 7
  %v2730 = vsub.s32 3, %v2729
  %v2731 = vrot.slane %v2714, %v2730
  %v2736 = vmul.f32 %v2709, %v2719
  %v2737 = vmul.f32 %v2707, %v2723
  %v2738 = vmul.f32 %v2705, %v2727
  %v2739 = vmul.f32 %v2711, %v2731
  %v2740 = vmul.f32 %v2710, %v2719
  %v2741 = vmul.f32 %v2708, %v2723
  %v2742 = vmul.f32 %v2706, %v2727
  %v2743 = vmul.f32 %v2712, %v2731
  %v2744 = vpack.c.bf16 %v2740, %v2736
  %v2745 = vpack.c.bf16 %v2741, %v2737
  %v2746 = vpack.c.bf16 %v2742, %v2738
  %v2747 = vpack.c.bf16 %v2743, %v2739
  %v2749 = vunpack.c.l.b16 %v1987
  %v2750 = vunpack.c.h.b16 %v1987
  %v2751 = vpack.c.b16 %v2749, %v2749
  %v2752 = vpack.c.b16 %v2750, %v2750
  %v2755 = vsel %vm2088, %v2752, 0
  %2757 = vmatprep.subr.bf16.mxu0 %v2323
  %2758 = vmatpush1.bf16.msra.mxu0 %v2322
  %2759 = vmatprep.subr.bf16.mxu0 %v2382
  %2760 = vmatpush1.bf16.msra.mxu0 %v2381
  %2761 = vmatprep.subr.bf16.mxu0 %v2442
  %2762 = vmatpush1.bf16.msra.mxu0 %v2441
  %2763 = vmatprep.subr.bf16.mxu0 %v2501
  %2764 = vmatpush1.bf16.msra.mxu0 %v2500
  %2765 = vmatprep.subr.bf16.mxu0 %v2505
  %2766 = vmatpush1.bf16.msra.mxu0 %v2504
  %2767 = vmatprep.subr.bf16.mxu0 %v2565
  %2768 = vmatpush1.bf16.msra.mxu0 %v2564
  %2769 = vmatprep.subr.bf16.mxu0 %v2625
  %2770 = vmatpush1.bf16.msra.mxu0 %v2624
  %2771 = vmatprep.subr.bf16.mxu0 %v2685
  %2772 = vmatpush1.bf16.msra.mxu0 %v2684
  %2773 = vmatprep.subr.bf16.mxu0 %v2745
  %2774 = vmatpush1.bf16.msra.mxu0 %v2744
  %2775 = vmatprep.subr.bf16.mxu0 0
  %2776 = vmatpush1.bf16.msra.mxu0 0
  %2777 = vmatprep.subr.bf16.mxu0 0
  %2778 = vmatpush1.bf16.msra.mxu0 0
  %2779 = vmatprep.subr.bf16.mxu0 0
  %2780 = vmatpush1.bf16.msra.mxu0 0
  %2781 = vmatprep.subr.bf16.mxu0 0
  %2782 = vmatpush1.bf16.msra.mxu0 0
  %2783 = vmatprep.subr.bf16.mxu0 0
  %2784 = vmatpush1.bf16.msra.mxu0 0
  %2785 = vmatprep.subr.bf16.mxu0 0
  %2786 = vmatpush1.bf16.msra.mxu0 0
  %2787 = vmatprep.subr.bf16.mxu0 0
  %2788 = vmatpush1.bf16.msra.mxu0 0
  %2789 = vmatprep.mubr.bf16.mxu0 %v2755
  %2790 = vmatmul.mubr.bf16.gmra.mrb[0].mxu0 %v2751
  %v2791 = vpop.f32.mrb[0].mxu0
  %v2792 = vadd.f32 0.0, %v2791
  %v2793 = vpop.f32.mrb[0].mxu0
  %v2794 = vadd.f32 0.0, %v2793
  %v2795 = vpop.f32.mrb[0].mxu0
  %v2796 = vpop.f32.mrb[0].mxu0
  %2797 = vdwg.mxu0
  %2798 = vmatprep.subr.bf16.mxu0 %v2325
  %2799 = vmatpush1.bf16.msra.mxu0 %v2324
  %2800 = vmatprep.subr.bf16.mxu0 %v2384
  %2801 = vmatpush1.bf16.msra.mxu0 %v2383
  %2802 = vmatprep.subr.bf16.mxu0 %v2444
  %2803 = vmatpush1.bf16.msra.mxu0 %v2443
  %2804 = vmatprep.subr.bf16.mxu0 %v2503
  %2805 = vmatpush1.bf16.msra.mxu0 %v2502
  %2806 = vmatprep.subr.bf16.mxu0 %v2507
  %2807 = vmatpush1.bf16.msra.mxu0 %v2506
  %2808 = vmatprep.subr.bf16.mxu0 %v2567
  %2809 = vmatpush1.bf16.msra.mxu0 %v2566
  %2810 = vmatprep.subr.bf16.mxu0 %v2627
  %2811 = vmatpush1.bf16.msra.mxu0 %v2626
  %2812 = vmatprep.subr.bf16.mxu0 %v2687
  %2813 = vmatpush1.bf16.msra.mxu0 %v2686
  %2814 = vmatprep.subr.bf16.mxu0 %v2747
  %2815 = vmatpush1.bf16.msra.mxu0 %v2746
  %2816 = vmatprep.subr.bf16.mxu0 0
  %2817 = vmatpush1.bf16.msra.mxu0 0
  %2818 = vmatprep.subr.bf16.mxu0 0
  %2819 = vmatpush1.bf16.msra.mxu0 0
  %2820 = vmatprep.subr.bf16.mxu0 0
  %2821 = vmatpush1.bf16.msra.mxu0 0
  %2822 = vmatprep.subr.bf16.mxu0 0
  %2823 = vmatpush1.bf16.msra.mxu0 0
  %2824 = vmatprep.subr.bf16.mxu0 0
  %2825 = vmatpush1.bf16.msra.mxu0 0
  %2826 = vmatprep.subr.bf16.mxu0 0
  %2827 = vmatpush1.bf16.msra.mxu0 0
  %2828 = vmatprep.subr.bf16.mxu0 0
  %2829 = vmatpush1.bf16.msra.mxu0 0
  %2830 = vmatprep.mubr.bf16.mxu0 %v2755
  %2831 = vmatmul.mubr.bf16.gmra.mrb[0].mxu0 %v2751
  %v2832 = vpop.f32.mrb[0].mxu0
  %v2833 = vadd.f32 0.0, %v2832
  %v2834 = vpop.f32.mrb[0].mxu0
  %v2835 = vadd.f32 0.0, %v2834
  %v2836 = vpop.f32.mrb[0].mxu0
  %v2837 = vpop.f32.mrb[0].mxu0
  %2838 = vdwg.mxu0
  %v2839 = vld [vmem:[%s12] sm:$0xff]
  %v2840 = vld [vmem:[%s12 + $0x8] sm:$0xff]
  %v2841 = vld [vmem:[%s12 + $0x10] sm:$0xff]
  %v2842 = vld [vmem:[%s13] sm:$0xff]
  %v2843 = vld [vmem:[%s13 + $0x8] sm:$0xff]
  %v2844 = vld [vmem:[%s13 + $0x10] sm:$0xff]
  %v2845 = vld [vmem:[%s14] sm:$0xf]
  %v2846 = vld [vmem:[%s14 + $0x4] sm:$0xf]
  %v2847 = vld [vmem:[%s15] sm:$0xff]
  %v2848 = vld [vmem:[%s15 + $0x8] sm:$0xff]
  %v2849 = vld [vmem:[%s16] sm:$0xff]
  %v2850 = vld [vmem:[%s16 + $0x8] sm:$0xff]
  %v2851 = vld [vmem:[%s17] sm:$0xff]
  %v2852 = vadd.f32 %v2792, %v2794
  %v2853 = vadd.f32 %v2852, %v2833
  %v2854 = vadd.f32 %v2853, %v2835
  %2855 = vadd.xlane.f32.xlu0 %v2854
  %v2856 = vpop.xlane.xlu0 %2855
  %v2857 = vmul.f32 %v2856, %v1998
  %v2858 = vmul.f32 %v2792, %v2792
  %v2859 = vmul.f32 %v2794, %v2794
  %v2860 = vmul.f32 %v2833, %v2833
  %v2861 = vmul.f32 %v2835, %v2835
  %v2862 = vadd.f32 %v2858, %v2859
  %v2863 = vadd.f32 %v2862, %v2860
  %v2864 = vadd.f32 %v2863, %v2861
  %2865 = vadd.xlane.f32.xlu0 %v2864
  %v2866 = vpop.xlane.xlu0 %2865
  %v2867 = vmul.f32 %v2866, %v1998
  %v2868 = vmul.f32 %v2857, %v2857
  %v2869 = vsub.f32 %v2867, %v2868
  %v2870 = vadd.f32 %v2869, 1e-05
  %v2871 = vrsqrt.pop %v2870
  %v2872 = vmul.f32 %v2839, %v2027
  %v2873 = vmul.f32 %v2840, %v2028
  %v2874 = vmul.f32 %v2841, %v2871
  %2876 = vset.pattern.permute.xlu0 0
  %2877 = vperm.xlu0 %2876, %v2872
  %v2878 = vpop.permute.xlu0 %2877
  %2881 = vset.pattern.permute.xlu0 0
  %2882 = vperm.xlu0 %2881, %v2873
  %v2883 = vpop.permute.xlu0 %2882
  %2886 = vset.pattern.permute.xlu0 0
  %2887 = vperm.xlu0 %2886, %v2874
  %v2888 = vpop.permute.xlu0 %2887
  %v2890 = vmul.f32 %v1969, %v2878
  %v2891 = vmul.f32 %v1970, %v2878
  %v2892 = vmul.f32 %v1971, %v2878
  %v2893 = vmul.f32 %v1972, %v2878
  %v2894 = vmul.f32 %v1973, %v2883
  %v2895 = vmul.f32 %v1974, %v2883
  %v2896 = vmul.f32 %v1975, %v2883
  %v2897 = vmul.f32 %v1976, %v2883
  %v2898 = vmul.f32 %v2792, %v2888
  %v2899 = vmul.f32 %v2794, %v2888
  %v2900 = vmul.f32 %v2833, %v2888
  %v2901 = vmul.f32 %v2835, %v2888
  %v2902 = vmul.f32 %v1999, %v2872
  %v2903 = vmul.f32 %v2000, %v2873
  %v2904 = vmul.f32 %v2857, %v2874
  %v2905 = vsub.f32 %v2842, %v2902
  %v2906 = vsub.f32 %v2843, %v2903
  %v2907 = vsub.f32 %v2844, %v2904
  %2909 = vset.pattern.permute.xlu0 0
  %2910 = vperm.xlu0 %2909, %v2905
  %v2911 = vpop.permute.xlu0 %2910
  %2914 = vset.pattern.permute.xlu0 0
  %2915 = vperm.xlu0 %2914, %v2906
  %v2916 = vpop.permute.xlu0 %2915
  %2919 = vset.pattern.permute.xlu0 0
  %2920 = vperm.xlu0 %2919, %v2907
  %v2921 = vpop.permute.xlu0 %2920
  %v2923 = vadd.f32 %v2890, %v2911
  %v2924 = vadd.f32 %v2891, %v2911
  %v2925 = vadd.f32 %v2892, %v2911
  %v2926 = vadd.f32 %v2893, %v2911
  %v2927 = vadd.f32 %v2894, %v2916
  %v2928 = vadd.f32 %v2895, %v2916
  %v2929 = vadd.f32 %v2896, %v2916
  %v2930 = vadd.f32 %v2897, %v2916
  %v2931 = vadd.f32 %v2898, %v2921
  %v2932 = vadd.f32 %v2899, %v2921
  %v2933 = vadd.f32 %v2900, %v2921
  %v2934 = vadd.f32 %v2901, %v2921
  %v2935 = vmax.f32 %v2923, 0.0
  %v2936 = vmax.f32 %v2924, 0.0
  %v2937 = vmax.f32 %v2925, 0.0
  %v2938 = vmax.f32 %v2926, 0.0
  %v2939 = vmax.f32 %v2927, 0.0
  %v2940 = vmax.f32 %v2928, 0.0
  %v2941 = vmax.f32 %v2929, 0.0
  %v2942 = vmax.f32 %v2930, 0.0
  %v2943 = vmax.f32 %v2931, 0.0
  %v2944 = vmax.f32 %v2932, 0.0
  %v2945 = vmax.f32 %v2933, 0.0
  %v2946 = vmax.f32 %v2934, 0.0
  %v2947 = vpack.c.bf16 %v2939, %v2935
  %v2948 = vpack.c.bf16 %v2940, %v2936
  %v2949 = vpack.c.bf16 %v2941, %v2937
  %v2950 = vpack.c.bf16 %v2942, %v2938
  %v2951 = vpack.c.bf16 %v2943, %v2943
  %v2952 = vpack.c.bf16 %v2944, %v2944
  %v2953 = vpack.c.bf16 %v2945, %v2945
  %v2954 = vpack.c.bf16 %v2946, %v2946
  %v2957 = vunpack.c.l.b16 %v2845
  %v2958 = vunpack.c.l.b16 %v2846
  %v2959 = vpack.c.b16 %v2958, %v2957
  %vm2960 = vcmask 195584
  %v2962 = vsel %vm2960, %v2959, 0
  %vm2964 = vcmask 1043456
  %v2966 = vsel %vm2964, %v2951, 0
  %v2969 = vsel %vm2964, %v2952, 0
  %v2972 = vsel %vm2964, %v2953, 0
  %v2975 = vsel %vm2964, %v2954, 0
  %2977 = vmatprep.subr.bf16.mxu0 %v2948
  %2978 = vmatpush1.bf16.msra.mxu0 %v2947
  %2979 = vmatprep.subr.bf16.mxu0 %v2969
  %2980 = vmatpush1.bf16.msra.mxu0 %v2966
  %2981 = vmatprep.subr.bf16.mxu0 0
  %2982 = vmatpush1.bf16.msra.mxu0 0
  %2983 = vmatprep.subr.bf16.mxu0 0
  %2984 = vmatpush1.bf16.msra.mxu0 0
  %2985 = vmatprep.subr.bf16.mxu0 0
  %2986 = vmatpush1.bf16.msra.mxu0 0
  %2987 = vmatprep.subr.bf16.mxu0 0
  %2988 = vmatpush1.bf16.msra.mxu0 0
  %2989 = vmatprep.subr.bf16.mxu0 0
  %2990 = vmatpush1.bf16.msra.mxu0 0
  %2991 = vmatprep.subr.bf16.mxu0 0
  %2992 = vmatpush1.bf16.msra.mxu0 0
  %2993 = vmatprep.subr.bf16.mxu0 0
  %2994 = vmatpush1.bf16.msra.mxu0 0
  %2995 = vmatprep.subr.bf16.mxu0 0
  %2996 = vmatpush1.bf16.msra.mxu0 0
  %2997 = vmatprep.subr.bf16.mxu0 0
  %2998 = vmatpush1.bf16.msra.mxu0 0
  %2999 = vmatprep.subr.bf16.mxu0 0
  %3000 = vmatpush1.bf16.msra.mxu0 0
  %3001 = vmatprep.subr.bf16.mxu0 0
  %3002 = vmatpush1.bf16.msra.mxu0 0
  %3003 = vmatprep.subr.bf16.mxu0 0
  %3004 = vmatpush1.bf16.msra.mxu0 0
  %3005 = vmatprep.subr.bf16.mxu0 0
  %3006 = vmatpush1.bf16.msra.mxu0 0
  %3007 = vmatprep.subr.bf16.mxu0 0
  %3008 = vmatpush1.bf16.msra.mxu0 0
  %3009 = vmatprep.mubr.bf16.mxu0 0
  %3010 = vmatmul.mubr.bf16.gmra.mrb[0].mxu0 %v2962
  %v3011 = vpop.f32.mrb[0].mxu0
  %v3012 = vadd.f32 0.0, %v3011
  %v3013 = vpop.f32.mrb[0].mxu0
  %v3014 = vadd.f32 0.0, %v3013
  %v3015 = vpop.f32.mrb[0].mxu0
  %v3016 = vadd.f32 0.0, %v3015
  %v3017 = vpop.f32.mrb[0].mxu0
  %v3018 = vadd.f32 0.0, %v3017
  %3019 = vdwg.mxu0
  %3020 = vmatprep.subr.bf16.mxu0 %v2950
  %3021 = vmatpush1.bf16.msra.mxu0 %v2949
  %3022 = vmatprep.subr.bf16.mxu0 %v2975
  %3023 = vmatpush1.bf16.msra.mxu0 %v2972
  %3024 = vmatprep.subr.bf16.mxu0 0
  %3025 = vmatpush1.bf16.msra.mxu0 0
  %3026 = vmatprep.subr.bf16.mxu0 0
  %3027 = vmatpush1.bf16.msra.mxu0 0
  %3028 = vmatprep.subr.bf16.mxu0 0
  %3029 = vmatpush1.bf16.msra.mxu0 0
  %3030 = vmatprep.subr.bf16.mxu0 0
  %3031 = vmatpush1.bf16.msra.mxu0 0
  %3032 = vmatprep.subr.bf16.mxu0 0
  %3033 = vmatpush1.bf16.msra.mxu0 0
  %3034 = vmatprep.subr.bf16.mxu0 0
  %3035 = vmatpush1.bf16.msra.mxu0 0
  %3036 = vmatprep.subr.bf16.mxu0 0
  %3037 = vmatpush1.bf16.msra.mxu0 0
  %3038 = vmatprep.subr.bf16.mxu0 0
  %3039 = vmatpush1.bf16.msra.mxu0 0
  %3040 = vmatprep.subr.bf16.mxu0 0
  %3041 = vmatpush1.bf16.msra.mxu0 0
  %3042 = vmatprep.subr.bf16.mxu0 0
  %3043 = vmatpush1.bf16.msra.mxu0 0
  %3044 = vmatprep.subr.bf16.mxu0 0
  %3045 = vmatpush1.bf16.msra.mxu0 0
  %3046 = vmatprep.subr.bf16.mxu0 0
  %3047 = vmatpush1.bf16.msra.mxu0 0
  %3048 = vmatprep.subr.bf16.mxu0 0
  %3049 = vmatpush1.bf16.msra.mxu0 0
  %3050 = vmatprep.subr.bf16.mxu0 0
  %3051 = vmatpush1.bf16.msra.mxu0 0
  %3052 = vmatprep.mubr.bf16.mxu0 0
  %3053 = vmatmul.mubr.bf16.gmra.mrb[0].mxu0 %v2962
  %v3054 = vpop.f32.mrb[0].mxu0
  %v3055 = vadd.f32 0.0, %v3054
  %v3056 = vpop.f32.mrb[0].mxu0
  %v3057 = vadd.f32 0.0, %v3056
  %v3058 = vpop.f32.mrb[0].mxu0
  %v3059 = vadd.f32 0.0, %v3058
  %v3060 = vpop.f32.mrb[0].mxu0
  %v3061 = vadd.f32 0.0, %v3060
  %3062 = vdwg.mxu0
  %v3063 = vadd.f32 %v3012, %v3014
  %v3064 = vadd.f32 %v3063, %v3055
  %v3065 = vadd.f32 %v3064, %v3057
  %3066 = vadd.xlane.f32.xlu0 %v3065
  %v3067 = vpop.xlane.xlu0 %3066
  %v3068 = vadd.f32 %v3016, %v3018
  %v3069 = vadd.f32 %v3068, %v3059
  %v3070 = vadd.f32 %v3069, %v3061
  %3071 = vadd.xlane.f32.xlu0 %v3070
  %v3072 = vpop.xlane.xlu0 %3071
  %v3073 = vmul.f32 %v3067, %v1998
  %v3074 = vmul.f32 %v3072, %v1998
  %v3075 = vmul.f32 %v3012, %v3012
  %v3076 = vmul.f32 %v3014, %v3014
  %v3077 = vmul.f32 %v3055, %v3055
  %v3078 = vmul.f32 %v3057, %v3057
  %v3079 = vmul.f32 %v3016, %v3016
  %v3080 = vmul.f32 %v3018, %v3018
  %v3081 = vmul.f32 %v3059, %v3059
  %v3082 = vmul.f32 %v3061, %v3061
  %v3083 = vadd.f32 %v3075, %v3076
  %v3084 = vadd.f32 %v3083, %v3077
  %v3085 = vadd.f32 %v3084, %v3078
  %3086 = vadd.xlane.f32.xlu0 %v3085
  %v3087 = vpop.xlane.xlu0 %3086
  %v3088 = vadd.f32 %v3079, %v3080
  %v3089 = vadd.f32 %v3088, %v3081
  %v3090 = vadd.f32 %v3089, %v3082
  %3091 = vadd.xlane.f32.xlu0 %v3090
  %v3092 = vpop.xlane.xlu0 %3091
  %v3093 = vmul.f32 %v3087, %v1998
  %v3094 = vmul.f32 %v3092, %v1998
  %v3095 = vmul.f32 %v3073, %v3073
  %v3096 = vmul.f32 %v3074, %v3074
  %v3097 = vsub.f32 %v3093, %v3095
  %v3098 = vsub.f32 %v3094, %v3096
  %v3099 = vadd.f32 %v3097, 1e-05
  %v3100 = vadd.f32 %v3098, 1e-05
  %v3101 = vrsqrt.pop %v3099
  %v3102 = vrsqrt.pop %v3100
  %v3103 = vmul.f32 %v2847, %v3101
  %v3104 = vmul.f32 %v2848, %v3102
  %3106 = vset.pattern.permute.xlu0 0
  %3107 = vperm.xlu0 %3106, %v3103
  %v3108 = vpop.permute.xlu0 %3107
  %3111 = vset.pattern.permute.xlu0 0
  %3112 = vperm.xlu0 %3111, %v3104
  %v3113 = vpop.permute.xlu0 %3112
  %v3115 = vmul.f32 %v3012, %v3108
  %v3116 = vmul.f32 %v3014, %v3108
  %v3117 = vmul.f32 %v3055, %v3108
  %v3118 = vmul.f32 %v3057, %v3108
  %v3119 = vmul.f32 %v3016, %v3113
  %v3120 = vmul.f32 %v3018, %v3113
  %v3121 = vmul.f32 %v3059, %v3113
  %v3122 = vmul.f32 %v3061, %v3113
  %v3123 = vmul.f32 %v3073, %v3103
  %v3124 = vmul.f32 %v3074, %v3104
  %v3125 = vsub.f32 %v2849, %v3123
  %v3126 = vsub.f32 %v2850, %v3124
  %3128 = vset.pattern.permute.xlu0 0
  %3129 = vperm.xlu0 %3128, %v3125
  %v3130 = vpop.permute.xlu0 %3129
  %3133 = vset.pattern.permute.xlu0 0
  %3134 = vperm.xlu0 %3133, %v3126
  %v3135 = vpop.permute.xlu0 %3134
  %v3137 = vadd.f32 %v3115, %v3130
  %v3138 = vadd.f32 %v3116, %v3130
  %v3139 = vadd.f32 %v3117, %v3130
  %v3140 = vadd.f32 %v3118, %v3130
  %v3141 = vadd.f32 %v3119, %v3135
  %v3142 = vadd.f32 %v3120, %v3135
  %v3143 = vadd.f32 %v3121, %v3135
  %v3144 = vadd.f32 %v3122, %v3135
  %v3145 = vmax.f32 %v3137, 0.0
  %v3146 = vmax.f32 %v3138, 0.0
  %v3147 = vmax.f32 %v3139, 0.0
  %v3148 = vmax.f32 %v3140, 0.0
  %v3149 = vmax.f32 %v3141, 0.0
  %v3150 = vmax.f32 %v3142, 0.0
  %v3151 = vmax.f32 %v3143, 0.0
  %v3152 = vmax.f32 %v3144, 0.0
  %3153 = vrot.lane.b32.xlu0 %v3145, 17
  %v3154 = vpop.permute.xlu0 %3153
  %3155 = vrot.lane.b32.xlu0 %v3149, 17
  %v3156 = vpop.permute.xlu0 %3155
  %3157 = vrot.lane.b32.xlu0 %v3146, 17
  %v3158 = vpop.permute.xlu0 %3157
  %3159 = vrot.lane.b32.xlu0 %v3150, 17
  %v3160 = vpop.permute.xlu0 %3159
  %3161 = vrot.lane.b32.xlu0 %v3147, 17
  %v3162 = vpop.permute.xlu0 %3161
  %3163 = vrot.lane.b32.xlu0 %v3151, 17
  %v3164 = vpop.permute.xlu0 %3163
  %3165 = vrot.lane.b32.xlu0 %v3148, 17
  %v3166 = vpop.permute.xlu0 %3165
  %3167 = vrot.lane.b32.xlu0 %v3152, 17
  %v3168 = vpop.permute.xlu0 %3167
  %v3169 = vsel %vm1652, %v3162, %v3166
  %v3170 = vsel %vm1652, %v3164, %v3168
  %v3171 = vsel %vm1652, %v3158, %v3162
  %v3172 = vsel %vm1652, %v3160, %v3164
  %v3173 = vsel %vm1652, %v3154, %v3158
  %v3174 = vsel %vm1652, %v3156, %v3160
  %v3175 = vsel %vm1652, %v3166, %v3154
  %v3176 = vsel %vm1652, %v3168, %v3156
  %v3177 = vmul.f32 %v3175, %v2297
  %v3178 = vmul.f32 %v3173, %v2301
  %v3179 = vmul.f32 %v3171, %v2305
  %v3180 = vmul.f32 %v3169, %v2309
  %v3181 = vmul.f32 %v3176, %v2297
  %v3182 = vmul.f32 %v3174, %v2301
  %v3183 = vmul.f32 %v3172, %v2305
  %v3184 = vmul.f32 %v3170, %v2309
  %v3185 = vpack.c.bf16 %v3181, %v3177
  %v3186 = vpack.c.bf16 %v3182, %v3178
  %v3187 = vpack.c.bf16 %v3183, %v3179
  %v3188 = vpack.c.bf16 %v3184, %v3180
  %3189 = vrot.lane.b32.xlu0 %v3145, 16
  %v3190 = vpop.permute.xlu0 %3189
  %3191 = vrot.lane.b32.xlu0 %v3149, 16
  %v3192 = vpop.permute.xlu0 %3191
  %3193 = vrot.lane.b32.xlu0 %v3146, 16
  %v3194 = vpop.permute.xlu0 %3193
  %3195 = vrot.lane.b32.xlu0 %v3150, 16
  %v3196 = vpop.permute.xlu0 %3195
  %3197 = vrot.lane.b32.xlu0 %v3147, 16
  %v3198 = vpop.permute.xlu0 %3197
  %3199 = vrot.lane.b32.xlu0 %v3151, 16
  %v3200 = vpop.permute.xlu0 %3199
  %3201 = vrot.lane.b32.xlu0 %v3148, 16
  %v3202 = vpop.permute.xlu0 %3201
  %3203 = vrot.lane.b32.xlu0 %v3152, 16
  %v3204 = vpop.permute.xlu0 %3203
  %v3205 = vsel %vm1707, %v3198, %v3202
  %v3206 = vsel %vm1707, %v3200, %v3204
  %v3207 = vsel %vm1707, %v3194, %v3198
  %v3208 = vsel %vm1707, %v3196, %v3200
  %v3209 = vsel %vm1707, %v3190, %v3194
  %v3210 = vsel %vm1707, %v3192, %v3196
  %v3211 = vsel %vm1707, %v3202, %v3190
  %v3212 = vsel %vm1707, %v3204, %v3192
  %v3213 = vmul.f32 %v3211, %v2356
  %v3214 = vmul.f32 %v3209, %v2360
  %v3215 = vmul.f32 %v3207, %v2364
  %v3216 = vmul.f32 %v3205, %v2368
  %v3217 = vmul.f32 %v3212, %v2356
  %v3218 = vmul.f32 %v3210, %v2360
  %v3219 = vmul.f32 %v3208, %v2364
  %v3220 = vmul.f32 %v3206, %v2368
  %v3221 = vpack.c.bf16 %v3217, %v3213
  %v3222 = vpack.c.bf16 %v3218, %v3214
  %v3223 = vpack.c.bf16 %v3219, %v3215
  %v3224 = vpack.c.bf16 %v3220, %v3216
  %3225 = vrot.lane.b32.xlu0 %v3145, 15
  %v3226 = vpop.permute.xlu0 %3225
  %3227 = vrot.lane.b32.xlu0 %v3149, 15
  %v3228 = vpop.permute.xlu0 %3227
  %3229 = vrot.lane.b32.xlu0 %v3146, 15
  %v3230 = vpop.permute.xlu0 %3229
  %3231 = vrot.lane.b32.xlu0 %v3150, 15
  %v3232 = vpop.permute.xlu0 %3231
  %3233 = vrot.lane.b32.xlu0 %v3147, 15
  %v3234 = vpop.permute.xlu0 %3233
  %3235 = vrot.lane.b32.xlu0 %v3151, 15
  %v3236 = vpop.permute.xlu0 %3235
  %3237 = vrot.lane.b32.xlu0 %v3148, 15
  %v3238 = vpop.permute.xlu0 %3237
  %3239 = vrot.lane.b32.xlu0 %v3152, 15
  %v3240 = vpop.permute.xlu0 %3239
  %v3241 = vsel %vm2401, %v3234, %v3238
  %v3242 = vsel %vm2401, %v3236, %v3240
  %v3243 = vsel %vm2401, %v3230, %v3234
  %v3244 = vsel %vm2401, %v3232, %v3236
  %v3245 = vsel %vm2401, %v3226, %v3230
  %v3246 = vsel %vm2401, %v3228, %v3232
  %v3247 = vsel %vm2401, %v3238, %v3226
  %v3248 = vsel %vm2401, %v3240, %v3228
  %v3249 = vmul.f32 %v3247, %v2416
  %v3250 = vmul.f32 %v3245, %v2420
  %v3251 = vmul.f32 %v3243, %v2424
  %v3252 = vmul.f32 %v3241, %v2428
  %v3253 = vmul.f32 %v3248, %v2416
  %v3254 = vmul.f32 %v3246, %v2420
  %v3255 = vmul.f32 %v3244, %v2424
  %v3256 = vmul.f32 %v3242, %v2428
  %v3257 = vpack.c.bf16 %v3253, %v3249
  %v3258 = vpack.c.bf16 %v3254, %v3250
  %v3259 = vpack.c.bf16 %v3255, %v3251
  %v3260 = vpack.c.bf16 %v3256, %v3252
  %3261 = vrot.lane.b32.xlu0 %v3145, 1
  %v3262 = vpop.permute.xlu0 %3261
  %3263 = vrot.lane.b32.xlu0 %v3149, 1
  %v3264 = vpop.permute.xlu0 %3263
  %3265 = vrot.lane.b32.xlu0 %v3146, 1
  %v3266 = vpop.permute.xlu0 %3265
  %3267 = vrot.lane.b32.xlu0 %v3150, 1
  %v3268 = vpop.permute.xlu0 %3267
  %3269 = vrot.lane.b32.xlu0 %v3147, 1
  %v3270 = vpop.permute.xlu0 %3269
  %3271 = vrot.lane.b32.xlu0 %v3151, 1
  %v3272 = vpop.permute.xlu0 %3271
  %3273 = vrot.lane.b32.xlu0 %v3148, 1
  %v3274 = vpop.permute.xlu0 %3273
  %3275 = vrot.lane.b32.xlu0 %v3152, 1
  %v3276 = vpop.permute.xlu0 %3275
  %v3277 = vsel %vm1834, %v3270, %v3274
  %v3278 = vsel %vm1834, %v3272, %v3276
  %v3279 = vsel %vm1834, %v3266, %v3270
  %v3280 = vsel %vm1834, %v3268, %v3272
  %v3281 = vsel %vm1834, %v3262, %v3266
  %v3282 = vsel %vm1834, %v3264, %v3268
  %v3283 = vsel %vm1834, %v3274, %v3262
  %v3284 = vsel %vm1834, %v3276, %v3264
  %v3285 = vmul.f32 %v3283, %v2475
  %v3286 = vmul.f32 %v3281, %v2479
  %v3287 = vmul.f32 %v3279, %v2483
  %v3288 = vmul.f32 %v3277, %v2487
  %v3289 = vmul.f32 %v3284, %v2475
  %v3290 = vmul.f32 %v3282, %v2479
  %v3291 = vmul.f32 %v3280, %v2483
  %v3292 = vmul.f32 %v3278, %v2487
  %v3293 = vpack.c.bf16 %v3289, %v3285
  %v3294 = vpack.c.bf16 %v3290, %v3286
  %v3295 = vpack.c.bf16 %v3291, %v3287
  %v3296 = vpack.c.bf16 %v3292, %v3288
  %v3297 = vpack.c.bf16 %v3149, %v3145
  %v3298 = vpack.c.bf16 %v3150, %v3146
  %v3299 = vpack.c.bf16 %v3151, %v3147
  %v3300 = vpack.c.bf16 %v3152, %v3148
  %3301 = vrot.lane.b32.xlu0 %v3145, 127
  %v3302 = vpop.permute.xlu0 %3301
  %3303 = vrot.lane.b32.xlu0 %v3149, 127
  %v3304 = vpop.permute.xlu0 %3303
  %3305 = vrot.lane.b32.xlu0 %v3146, 127
  %v3306 = vpop.permute.xlu0 %3305
  %3307 = vrot.lane.b32.xlu0 %v3150, 127
  %v3308 = vpop.permute.xlu0 %3307
  %3309 = vrot.lane.b32.xlu0 %v3147, 127
  %v3310 = vpop.permute.xlu0 %3309
  %3311 = vrot.lane.b32.xlu0 %v3151, 127
  %v3312 = vpop.permute.xlu0 %3311
  %3313 = vrot.lane.b32.xlu0 %v3148, 127
  %v3314 = vpop.permute.xlu0 %3313
  %3315 = vrot.lane.b32.xlu0 %v3152, 127
  %v3316 = vpop.permute.xlu0 %3315
  %v3317 = vsel %vm2524, %v3310, %v3314
  %v3318 = vsel %vm2524, %v3312, %v3316
  %v3319 = vsel %vm2524, %v3306, %v3310
  %v3320 = vsel %vm2524, %v3308, %v3312
  %v3321 = vsel %vm2524, %v3302, %v3306
  %v3322 = vsel %vm2524, %v3304, %v3308
  %v3323 = vsel %vm2524, %v3314, %v3302
  %v3324 = vsel %vm2524, %v3316, %v3304
  %v3325 = vmul.f32 %v3321, %v2539
  %v3326 = vmul.f32 %v3319, %v2543
  %v3327 = vmul.f32 %v3317, %v2547
  %v3328 = vmul.f32 %v3323, %v2551
  %v3329 = vmul.f32 %v3322, %v2539
  %v3330 = vmul.f32 %v3320, %v2543
  %v3331 = vmul.f32 %v3318, %v2547
  %v3332 = vmul.f32 %v3324, %v2551
  %v3333 = vpack.c.bf16 %v3329, %v3325
  %v3334 = vpack.c.bf16 %v3330, %v3326
  %v3335 = vpack.c.bf16 %v3331, %v3327
  %v3336 = vpack.c.bf16 %v3332, %v3328
  %3337 = vrot.lane.b32.xlu0 %v3145, 113
  %v3338 = vpop.permute.xlu0 %3337
  %3339 = vrot.lane.b32.xlu0 %v3149, 113
  %v3340 = vpop.permute.xlu0 %3339
  %3341 = vrot.lane.b32.xlu0 %v3146, 113
  %v3342 = vpop.permute.xlu0 %3341
  %3343 = vrot.lane.b32.xlu0 %v3150, 113
  %v3344 = vpop.permute.xlu0 %3343
  %3345 = vrot.lane.b32.xlu0 %v3147, 113
  %v3346 = vpop.permute.xlu0 %3345
  %3347 = vrot.lane.b32.xlu0 %v3151, 113
  %v3348 = vpop.permute.xlu0 %3347
  %3349 = vrot.lane.b32.xlu0 %v3148, 113
  %v3350 = vpop.permute.xlu0 %3349
  %3351 = vrot.lane.b32.xlu0 %v3152, 113
  %v3352 = vpop.permute.xlu0 %3351
  %v3353 = vsel %vm2584, %v3346, %v3350
  %v3354 = vsel %vm2584, %v3348, %v3352
  %v3355 = vsel %vm2584, %v3342, %v3346
  %v3356 = vsel %vm2584, %v3344, %v3348
  %v3357 = vsel %vm2584, %v3338, %v3342
  %v3358 = vsel %vm2584, %v3340, %v3344
  %v3359 = vsel %vm2584, %v3350, %v3338
  %v3360 = vsel %vm2584, %v3352, %v3340
  %v3361 = vmul.f32 %v3357, %v2599
  %v3362 = vmul.f32 %v3355, %v2603
  %v3363 = vmul.f32 %v3353, %v2607
  %v3364 = vmul.f32 %v3359, %v2611
  %v3365 = vmul.f32 %v3358, %v2599
  %v3366 = vmul.f32 %v3356, %v2603
  %v3367 = vmul.f32 %v3354, %v2607
  %v3368 = vmul.f32 %v3360, %v2611
  %v3369 = vpack.c.bf16 %v3365, %v3361
  %v3370 = vpack.c.bf16 %v3366, %v3362
  %v3371 = vpack.c.bf16 %v3367, %v3363
  %v3372 = vpack.c.bf16 %v3368, %v3364
  %3373 = vrot.lane.b32.xlu0 %v3145, 112
  %v3374 = vpop.permute.xlu0 %3373
  %3375 = vrot.lane.b32.xlu0 %v3149, 112
  %v3376 = vpop.permute.xlu0 %3375
  %3377 = vrot.lane.b32.xlu0 %v3146, 112
  %v3378 = vpop.permute.xlu0 %3377
  %3379 = vrot.lane.b32.xlu0 %v3150, 112
  %v3380 = vpop.permute.xlu0 %3379
  %3381 = vrot.lane.b32.xlu0 %v3147, 112
  %v3382 = vpop.permute.xlu0 %3381
  %3383 = vrot.lane.b32.xlu0 %v3151, 112
  %v3384 = vpop.permute.xlu0 %3383
  %3385 = vrot.lane.b32.xlu0 %v3148, 112
  %v3386 = vpop.permute.xlu0 %3385
  %3387 = vrot.lane.b32.xlu0 %v3152, 112
  %v3388 = vpop.permute.xlu0 %3387
  %v3389 = vsel %vm2644, %v3382, %v3386
  %v3390 = vsel %vm2644, %v3384, %v3388
  %v3391 = vsel %vm2644, %v3378, %v3382
  %v3392 = vsel %vm2644, %v3380, %v3384
  %v3393 = vsel %vm2644, %v3374, %v3378
  %v3394 = vsel %vm2644, %v3376, %v3380
  %v3395 = vsel %vm2644, %v3386, %v3374
  %v3396 = vsel %vm2644, %v3388, %v3376
  %v3397 = vmul.f32 %v3393, %v2659
  %v3398 = vmul.f32 %v3391, %v2663
  %v3399 = vmul.f32 %v3389, %v2667
  %v3400 = vmul.f32 %v3395, %v2671
  %v3401 = vmul.f32 %v3394, %v2659
  %v3402 = vmul.f32 %v3392, %v2663
  %v3403 = vmul.f32 %v3390, %v2667
  %v3404 = vmul.f32 %v3396, %v2671
  %v3405 = vpack.c.bf16 %v3401, %v3397
  %v3406 = vpack.c.bf16 %v3402, %v3398
  %v3407 = vpack.c.bf16 %v3403, %v3399
  %v3408 = vpack.c.bf16 %v3404, %v3400
  %3409 = vrot.lane.b32.xlu0 %v3145, 111
  %v3410 = vpop.permute.xlu0 %3409
  %3411 = vrot.lane.b32.xlu0 %v3149, 111
  %v3412 = vpop.permute.xlu0 %3411
  %3413 = vrot.lane.b32.xlu0 %v3146, 111
  %v3414 = vpop.permute.xlu0 %3413
  %3415 = vrot.lane.b32.xlu0 %v3150, 111
  %v3416 = vpop.permute.xlu0 %3415
  %3417 = vrot.lane.b32.xlu0 %v3147, 111
  %v3418 = vpop.permute.xlu0 %3417
  %3419 = vrot.lane.b32.xlu0 %v3151, 111
  %v3420 = vpop.permute.xlu0 %3419
  %3421 = vrot.lane.b32.xlu0 %v3148, 111
  %v3422 = vpop.permute.xlu0 %3421
  %3423 = vrot.lane.b32.xlu0 %v3152, 111
  %v3424 = vpop.permute.xlu0 %3423
  %v3425 = vsel %vm2704, %v3418, %v3422
  %v3426 = vsel %vm2704, %v3420, %v3424
  %v3427 = vsel %vm2704, %v3414, %v3418
  %v3428 = vsel %vm2704, %v3416, %v3420
  %v3429 = vsel %vm2704, %v3410, %v3414
  %v3430 = vsel %vm2704, %v3412, %v3416
  %v3431 = vsel %vm2704, %v3422, %v3410
  %v3432 = vsel %vm2704, %v3424, %v3412
  %v3433 = vmul.f32 %v3429, %v2719
  %v3434 = vmul.f32 %v3427, %v2723
  %v3435 = vmul.f32 %v3425, %v2727
  %v3436 = vmul.f32 %v3431, %v2731
  %v3437 = vmul.f32 %v3430, %v2719
  %v3438 = vmul.f32 %v3428, %v2723
  %v3439 = vmul.f32 %v3426, %v2727
  %v3440 = vmul.f32 %v3432, %v2731
  %v3441 = vpack.c.bf16 %v3437, %v3433
  %v3442 = vpack.c.bf16 %v3438, %v3434
  %v3443 = vpack.c.bf16 %v3439, %v3435
  %v3444 = vpack.c.bf16 %v3440, %v3436
  %v3446 = vunpack.c.l.b16 %v2851
  %v3447 = vunpack.c.h.b16 %v2851
  %v3448 = vpack.c.b16 %v3446, %v3446
  %v3449 = vpack.c.b16 %v3447, %v3447
  %v3452 = vsel %vm2088, %v3449, 0
  %3454 = vmatprep.subr.bf16.mxu0 %v3186
  %3455 = vmatpush1.bf16.msra.mxu0 %v3185
  %3456 = vmatprep.subr.bf16.mxu0 %v3222
  %3457 = vmatpush1.bf16.msra.mxu0 %v3221
  %3458 = vmatprep.subr.bf16.mxu0 %v3258
  %3459 = vmatpush1.bf16.msra.mxu0 %v3257
  %3460 = vmatprep.subr.bf16.mxu0 %v3294
  %3461 = vmatpush1.bf16.msra.mxu0 %v3293
  %3462 = vmatprep.subr.bf16.mxu0 %v3298
  %3463 = vmatpush1.bf16.msra.mxu0 %v3297
  %3464 = vmatprep.subr.bf16.mxu0 %v3334
  %3465 = vmatpush1.bf16.msra.mxu0 %v3333
  %3466 = vmatprep.subr.bf16.mxu0 %v3370
  %3467 = vmatpush1.bf16.msra.mxu0 %v3369
  %3468 = vmatprep.subr.bf16.mxu0 %v3406
  %3469 = vmatpush1.bf16.msra.mxu0 %v3405
  %3470 = vmatprep.subr.bf16.mxu0 %v3442
  %3471 = vmatpush1.bf16.msra.mxu0 %v3441
  %3472 = vmatprep.subr.bf16.mxu0 0
  %3473 = vmatpush1.bf16.msra.mxu0 0
  %3474 = vmatprep.subr.bf16.mxu0 0
  %3475 = vmatpush1.bf16.msra.mxu0 0
  %3476 = vmatprep.subr.bf16.mxu0 0
  %3477 = vmatpush1.bf16.msra.mxu0 0
  %3478 = vmatprep.subr.bf16.mxu0 0
  %3479 = vmatpush1.bf16.msra.mxu0 0
  %3480 = vmatprep.subr.bf16.mxu0 0
  %3481 = vmatpush1.bf16.msra.mxu0 0
  %3482 = vmatprep.subr.bf16.mxu0 0
  %3483 = vmatpush1.bf16.msra.mxu0 0
  %3484 = vmatprep.subr.bf16.mxu0 0
  %3485 = vmatpush1.bf16.msra.mxu0 0
  %3486 = vmatprep.mubr.bf16.mxu0 %v3452
  %3487 = vmatmul.mubr.bf16.gmra.mrb[0].mxu0 %v3448
  %v3488 = vpop.f32.mrb[0].mxu0
  %v3489 = vadd.f32 0.0, %v3488
  %v3490 = vpop.f32.mrb[0].mxu0
  %v3491 = vadd.f32 0.0, %v3490
  %v3492 = vpop.f32.mrb[0].mxu0
  %v3493 = vpop.f32.mrb[0].mxu0
  %3494 = vdwg.mxu0
  %3495 = vmatprep.subr.bf16.mxu0 %v3188
  %3496 = vmatpush1.bf16.msra.mxu0 %v3187
  %3497 = vmatprep.subr.bf16.mxu0 %v3224
  %3498 = vmatpush1.bf16.msra.mxu0 %v3223
  %3499 = vmatprep.subr.bf16.mxu0 %v3260
  %3500 = vmatpush1.bf16.msra.mxu0 %v3259
  %3501 = vmatprep.subr.bf16.mxu0 %v3296
  %3502 = vmatpush1.bf16.msra.mxu0 %v3295
  %3503 = vmatprep.subr.bf16.mxu0 %v3300
  %3504 = vmatpush1.bf16.msra.mxu0 %v3299
  %3505 = vmatprep.subr.bf16.mxu0 %v3336
  %3506 = vmatpush1.bf16.msra.mxu0 %v3335
  %3507 = vmatprep.subr.bf16.mxu0 %v3372
  %3508 = vmatpush1.bf16.msra.mxu0 %v3371
  %3509 = vmatprep.subr.bf16.mxu0 %v3408
  %3510 = vmatpush1.bf16.msra.mxu0 %v3407
  %3511 = vmatprep.subr.bf16.mxu0 %v3444
  %3512 = vmatpush1.bf16.msra.mxu0 %v3443
  %3513 = vmatprep.subr.bf16.mxu0 0
  %3514 = vmatpush1.bf16.msra.mxu0 0
  %3515 = vmatprep.subr.bf16.mxu0 0
  %3516 = vmatpush1.bf16.msra.mxu0 0
  %3517 = vmatprep.subr.bf16.mxu0 0
  %3518 = vmatpush1.bf16.msra.mxu0 0
  %3519 = vmatprep.subr.bf16.mxu0 0
  %3520 = vmatpush1.bf16.msra.mxu0 0
  %3521 = vmatprep.subr.bf16.mxu0 0
  %3522 = vmatpush1.bf16.msra.mxu0 0
  %3523 = vmatprep.subr.bf16.mxu0 0
  %3524 = vmatpush1.bf16.msra.mxu0 0
  %3525 = vmatprep.subr.bf16.mxu0 0
  %3526 = vmatpush1.bf16.msra.mxu0 0
  %3527 = vmatprep.mubr.bf16.mxu0 %v3452
  %3528 = vmatmul.mubr.bf16.gmra.mrb[0].mxu0 %v3448
  %v3529 = vpop.f32.mrb[0].mxu0
  %v3530 = vadd.f32 0.0, %v3529
  %v3531 = vpop.f32.mrb[0].mxu0
  %v3532 = vadd.f32 0.0, %v3531
  %v3533 = vpop.f32.mrb[0].mxu0
  %v3534 = vpop.f32.mrb[0].mxu0
  %3535 = vdwg.mxu0
  %v3536 = vld [vmem:[%s18] sm:$0xff]
  %v3537 = vld [vmem:[%s18 + $0x8] sm:$0xff]
  %v3538 = vld [vmem:[%s18 + $0x10] sm:$0xff]
  %v3539 = vld [vmem:[%s18 + $0x18] sm:$0xff]
  %v3540 = vld [vmem:[%s19] sm:$0xff]
  %v3541 = vld [vmem:[%s19 + $0x8] sm:$0xff]
  %v3542 = vld [vmem:[%s19 + $0x10] sm:$0xff]
  %v3543 = vld [vmem:[%s19 + $0x18] sm:$0xff]
  %v3544 = vld [vmem:[%s20] sm:$0xf]
  %v3545 = vld [vmem:[%s20 + $0x4] sm:$0xf]
  %v3546 = vld [vmem:[%s21] sm:$0xff]
  %v3547 = vld [vmem:[%s21 + $0x8] sm:$0xff]
  %v3548 = vld [vmem:[%s21 + $0x10] sm:$0xff]
  %v3549 = vld [vmem:[%s21 + $0x18] sm:$0xff]
  %v3550 = vld [vmem:[%s21 + $0x20] sm:$0xff]
  %v3551 = vld [vmem:[%s21 + $0x28] sm:$0xff]
  %v3552 = vld [vmem:[%s21 + $0x30] sm:$0xff]
  %v3553 = vld [vmem:[%s21 + $0x38] sm:$0xff]
  %v3554 = vld [vmem:[%s21 + $0x40] sm:$0xff]
  %v3555 = vld [vmem:[%s21 + $0x48] sm:$0xff]
  %v3556 = vld [vmem:[%s21 + $0x50] sm:$0xff]
  %v3557 = vld [vmem:[%s21 + $0x58] sm:$0xff]
  %v3558 = vld [vmem:[%s21 + $0x60] sm:$0xff]
  %v3559 = vld [vmem:[%s21 + $0x68] sm:$0xff]
  %v3560 = vld [vmem:[%s21 + $0x70] sm:$0xff]
  %v3561 = vld [vmem:[%s21 + $0x78] sm:$0xff]
  %v3562 = vld [vmem:[%s21 + $0x80] sm:$0xff]
  %v3563 = vld [vmem:[%s21 + $0x88] sm:$0xff]
  %v3564 = vld [vmem:[%s21 + $0x90] sm:$0xff]
  %v3565 = vld [vmem:[%s21 + $0x98] sm:$0xff]
  %v3566 = vld [vmem:[%s21 + $0xa0] sm:$0xff]
  %v3567 = vld [vmem:[%s21 + $0xa8] sm:$0xff]
  %v3568 = vld [vmem:[%s21 + $0xb0] sm:$0xff]
  %v3569 = vld [vmem:[%s21 + $0xb8] sm:$0xff]
  %v3570 = vld [vmem:[%s21 + $0xc0] sm:$0xff]
  %v3571 = vld [vmem:[%s21 + $0xc8] sm:$0xff]
  %v3572 = vld [vmem:[%s21 + $0xd0] sm:$0xff]
  %v3573 = vld [vmem:[%s21 + $0xd8] sm:$0xff]
  %v3574 = vld [vmem:[%s21 + $0xe0] sm:$0xff]
  %v3575 = vld [vmem:[%s21 + $0xe8] sm:$0xff]
  %v3576 = vld [vmem:[%s21 + $0xf0] sm:$0xff]
  %v3577 = vld [vmem:[%s21 + $0xf8] sm:$0xff]
  %v3578 = vld [vmem:[%s21 + $0x100] sm:$0xff]
  %v3579 = vld [vmem:[%s21 + $0x108] sm:$0xff]
  %v3580 = vld [vmem:[%s21 + $0x110] sm:$0xff]
  %v3581 = vld [vmem:[%s21 + $0x118] sm:$0xff]
  %v3582 = vld [vmem:[%s21 + $0x120] sm:$0xff]
  %v3583 = vld [vmem:[%s21 + $0x128] sm:$0xff]
  %v3584 = vld [vmem:[%s21 + $0x130] sm:$0xff]
  %v3585 = vld [vmem:[%s21 + $0x138] sm:$0xff]
  %v3586 = vld [vmem:[%s21 + $0x140] sm:$0xff]
  %v3587 = vld [vmem:[%s21 + $0x148] sm:$0xff]
  %v3588 = vld [vmem:[%s21 + $0x150] sm:$0xff]
  %v3589 = vld [vmem:[%s21 + $0x158] sm:$0xff]
  %v3590 = vld [vmem:[%s21 + $0x160] sm:$0xff]
  %v3591 = vld [vmem:[%s21 + $0x168] sm:$0xff]
  %v3592 = vld [vmem:[%s21 + $0x170] sm:$0xff]
  %v3593 = vld [vmem:[%s21 + $0x178] sm:$0xff]
  %v3594 = vld [vmem:[%s21 + $0x180] sm:$0xff]
  %v3595 = vld [vmem:[%s21 + $0x188] sm:$0xff]
  %v3596 = vld [vmem:[%s21 + $0x190] sm:$0xff]
  %v3597 = vld [vmem:[%s21 + $0x198] sm:$0xff]
  %v3598 = vld [vmem:[%s21 + $0x1a0] sm:$0xff]
  %v3599 = vld [vmem:[%s21 + $0x1a8] sm:$0xff]
  %v3600 = vld [vmem:[%s21 + $0x1b0] sm:$0xff]
  %v3601 = vld [vmem:[%s21 + $0x1b8] sm:$0xff]
  %v3602 = vld [vmem:[%s21 + $0x1c0] sm:$0xff]
  %v3603 = vld [vmem:[%s21 + $0x1c8] sm:$0xff]
  %v3604 = vld [vmem:[%s21 + $0x1d0] sm:$0xff]
  %v3605 = vld [vmem:[%s21 + $0x1d8] sm:$0xff]
  %v3606 = vld [vmem:[%s21 + $0x1e0] sm:$0xff]
  %v3607 = vld [vmem:[%s21 + $0x1e8] sm:$0xff]
  %v3608 = vld [vmem:[%s21 + $0x1f0] sm:$0xff]
  %v3609 = vld [vmem:[%s21 + $0x1f8] sm:$0xff]
  %v3610 = vadd.f32 %v3489, %v3491
  %v3611 = vadd.f32 %v3610, %v3530
  %v3612 = vadd.f32 %v3611, %v3532
  %3613 = vadd.xlane.f32.xlu0 %v3612
  %v3614 = vpop.xlane.xlu0 %3613
  %v3615 = vmul.f32 %v3614, %v1998
  %v3616 = vmul.f32 %v3489, %v3489
  %v3617 = vmul.f32 %v3491, %v3491
  %v3618 = vmul.f32 %v3530, %v3530
  %v3619 = vmul.f32 %v3532, %v3532
  %v3620 = vadd.f32 %v3616, %v3617
  %v3621 = vadd.f32 %v3620, %v3618
  %v3622 = vadd.f32 %v3621, %v3619
  %3623 = vadd.xlane.f32.xlu0 %v3622
  %v3624 = vpop.xlane.xlu0 %3623
  %v3625 = vmul.f32 %v3624, %v1998
  %v3626 = vmul.f32 %v3615, %v3615
  %v3627 = vsub.f32 %v3625, %v3626
  %v3628 = vadd.f32 %v3627, 1e-05
  %v3629 = vrsqrt.pop %v3628
  %v3630 = vmul.f32 %v3536, %v2027
  %v3631 = vmul.f32 %v3537, %v2028
  %v3632 = vmul.f32 %v3538, %v2871
  %v3633 = vmul.f32 %v3539, %v3629
  %3635 = vset.pattern.permute.xlu0 0
  %3636 = vperm.xlu0 %3635, %v3630
  %v3637 = vpop.permute.xlu0 %3636
  %3640 = vset.pattern.permute.xlu0 0
  %3641 = vperm.xlu0 %3640, %v3631
  %v3642 = vpop.permute.xlu0 %3641
  %3645 = vset.pattern.permute.xlu0 0
  %3646 = vperm.xlu0 %3645, %v3632
  %v3647 = vpop.permute.xlu0 %3646
  %3650 = vset.pattern.permute.xlu0 0
  %3651 = vperm.xlu0 %3650, %v3633
  %v3652 = vpop.permute.xlu0 %3651
  %v3654 = vmul.f32 %v1969, %v3637
  %v3655 = vmul.f32 %v1970, %v3637
  %v3656 = vmul.f32 %v1971, %v3637
  %v3657 = vmul.f32 %v1972, %v3637
  %v3658 = vmul.f32 %v1973, %v3642
  %v3659 = vmul.f32 %v1974, %v3642
  %v3660 = vmul.f32 %v1975, %v3642
  %v3661 = vmul.f32 %v1976, %v3642
  %v3662 = vmul.f32 %v2792, %v3647
  %v3663 = vmul.f32 %v2794, %v3647
  %v3664 = vmul.f32 %v2833, %v3647
  %v3665 = vmul.f32 %v2835, %v3647
  %v3666 = vmul.f32 %v3489, %v3652
  %v3667 = vmul.f32 %v3491, %v3652
  %v3668 = vmul.f32 %v3530, %v3652
  %v3669 = vmul.f32 %v3532, %v3652
  %v3670 = vmul.f32 %v1999, %v3630
  %v3671 = vmul.f32 %v2000, %v3631
  %v3672 = vmul.f32 %v2857, %v3632
  %v3673 = vmul.f32 %v3615, %v3633
  %v3674 = vsub.f32 %v3540, %v3670
  %v3675 = vsub.f32 %v3541, %v3671
  %v3676 = vsub.f32 %v3542, %v3672
  %v3677 = vsub.f32 %v3543, %v3673
  %3679 = vset.pattern.permute.xlu0 0
  %3680 = vperm.xlu0 %3679, %v3674
  %v3681 = vpop.permute.xlu0 %3680
  %3684 = vset.pattern.permute.xlu0 0
  %3685 = vperm.xlu0 %3684, %v3675
  %v3686 = vpop.permute.xlu0 %3685
  %3689 = vset.pattern.permute.xlu0 0
  %3690 = vperm.xlu0 %3689, %v3676
  %v3691 = vpop.permute.xlu0 %3690
  %3694 = vset.pattern.permute.xlu0 0
  %3695 = vperm.xlu0 %3694, %v3677
  %v3696 = vpop.permute.xlu0 %3695
  %v3698 = vadd.f32 %v3654, %v3681
  %v3699 = vadd.f32 %v3655, %v3681
  %v3700 = vadd.f32 %v3656, %v3681
  %v3701 = vadd.f32 %v3657, %v3681
  %v3702 = vadd.f32 %v3658, %v3686
  %v3703 = vadd.f32 %v3659, %v3686
  %v3704 = vadd.f32 %v3660, %v3686
  %v3705 = vadd.f32 %v3661, %v3686
  %v3706 = vadd.f32 %v3662, %v3691
  %v3707 = vadd.f32 %v3663, %v3691
  %v3708 = vadd.f32 %v3664, %v3691
  %v3709 = vadd.f32 %v3665, %v3691
  %v3710 = vadd.f32 %v3666, %v3696
  %v3711 = vadd.f32 %v3667, %v3696
  %v3712 = vadd.f32 %v3668, %v3696
  %v3713 = vadd.f32 %v3669, %v3696
  %v3714 = vmax.f32 %v3698, 0.0
  %v3715 = vmax.f32 %v3699, 0.0
  %v3716 = vmax.f32 %v3700, 0.0
  %v3717 = vmax.f32 %v3701, 0.0
  %v3718 = vmax.f32 %v3702, 0.0
  %v3719 = vmax.f32 %v3703, 0.0
  %v3720 = vmax.f32 %v3704, 0.0
  %v3721 = vmax.f32 %v3705, 0.0
  %v3722 = vmax.f32 %v3706, 0.0
  %v3723 = vmax.f32 %v3707, 0.0
  %v3724 = vmax.f32 %v3708, 0.0
  %v3725 = vmax.f32 %v3709, 0.0
  %v3726 = vmax.f32 %v3710, 0.0
  %v3727 = vmax.f32 %v3711, 0.0
  %v3728 = vmax.f32 %v3712, 0.0
  %v3729 = vmax.f32 %v3713, 0.0
  %v3730 = vpack.c.bf16 %v3718, %v3714
  %v3731 = vpack.c.bf16 %v3719, %v3715
  %v3732 = vpack.c.bf16 %v3720, %v3716
  %v3733 = vpack.c.bf16 %v3721, %v3717
  %v3734 = vpack.c.bf16 %v3726, %v3722
  %v3735 = vpack.c.bf16 %v3727, %v3723
  %v3736 = vpack.c.bf16 %v3728, %v3724
  %v3737 = vpack.c.bf16 %v3729, %v3725
  %v3740 = vunpack.c.l.b16 %v3544
  %v3741 = vunpack.c.l.b16 %v3545
  %v3742 = vpack.c.b16 %v3741, %v3740
  %vm3743 = vcmask 261120
  %v3745 = vsel %vm3743, %v3742, 0
  %3747 = vmatprep.subr.bf16.mxu0 %v3731
  %3748 = vmatpush1.bf16.msra.mxu0 %v3730
  %3749 = vmatprep.subr.bf16.mxu0 %v3735
  %3750 = vmatpush1.bf16.msra.mxu0 %v3734
  %3751 = vmatprep.subr.bf16.mxu0 0
  %3752 = vmatpush1.bf16.msra.mxu0 0
  %3753 = vmatprep.subr.bf16.mxu0 0
  %3754 = vmatpush1.bf16.msra.mxu0 0
  %3755 = vmatprep.subr.bf16.mxu0 0
  %3756 = vmatpush1.bf16.msra.mxu0 0
  %3757 = vmatprep.subr.bf16.mxu0 0
  %3758 = vmatpush1.bf16.msra.mxu0 0
  %3759 = vmatprep.subr.bf16.mxu0 0
  %3760 = vmatpush1.bf16.msra.mxu0 0
  %3761 = vmatprep.subr.bf16.mxu0 0
  %3762 = vmatpush1.bf16.msra.mxu0 0
  %3763 = vmatprep.subr.bf16.mxu0 0
  %3764 = vmatpush1.bf16.msra.mxu0 0
  %3765 = vmatprep.subr.bf16.mxu0 0
  %3766 = vmatpush1.bf16.msra.mxu0 0
  %3767 = vmatprep.subr.bf16.mxu0 0
  %3768 = vmatpush1.bf16.msra.mxu0 0
  %3769 = vmatprep.subr.bf16.mxu0 0
  %3770 = vmatpush1.bf16.msra.mxu0 0
  %3771 = vmatprep.subr.bf16.mxu0 0
  %3772 = vmatpush1.bf16.msra.mxu0 0
  %3773 = vmatprep.subr.bf16.mxu0 0
  %3774 = vmatpush1.bf16.msra.mxu0 0
  %3775 = vmatprep.subr.bf16.mxu0 0
  %3776 = vmatpush1.bf16.msra.mxu0 0
  %3777 = vmatprep.subr.bf16.mxu0 0
  %3778 = vmatpush1.bf16.msra.mxu0 0
  %3779 = vmatprep.mubr.bf16.mxu0 0
  %3780 = vmatmul.mubr.bf16.gmra.mrb[0].mxu0 %v3745
  %v3781 = vpop.f32.mrb[0].mxu0
  %v3782 = vadd.f32 0.0, %v3781
  %v3783 = vpop.f32.mrb[0].mxu0
  %v3784 = vadd.f32 0.0, %v3783
  %v3785 = vpop.f32.mrb[0].mxu0
  %v3786 = vadd.f32 0.0, %v3785
  %v3787 = vpop.f32.mrb[0].mxu0
  %v3788 = vadd.f32 0.0, %v3787
  %3789 = vdwg.mxu0
  %3790 = vmatprep.subr.bf16.mxu0 %v3733
  %3791 = vmatpush1.bf16.msra.mxu0 %v3732
  %3792 = vmatprep.subr.bf16.mxu0 %v3737
  %3793 = vmatpush1.bf16.msra.mxu0 %v3736
  %3794 = vmatprep.subr.bf16.mxu0 0
  %3795 = vmatpush1.bf16.msra.mxu0 0
  %3796 = vmatprep.subr.bf16.mxu0 0
  %3797 = vmatpush1.bf16.msra.mxu0 0
  %3798 = vmatprep.subr.bf16.mxu0 0
  %3799 = vmatpush1.bf16.msra.mxu0 0
  %3800 = vmatprep.subr.bf16.mxu0 0
  %3801 = vmatpush1.bf16.msra.mxu0 0
  %3802 = vmatprep.subr.bf16.mxu0 0
  %3803 = vmatpush1.bf16.msra.mxu0 0
  %3804 = vmatprep.subr.bf16.mxu0 0
  %3805 = vmatpush1.bf16.msra.mxu0 0
  %3806 = vmatprep.subr.bf16.mxu0 0
  %3807 = vmatpush1.bf16.msra.mxu0 0
  %3808 = vmatprep.subr.bf16.mxu0 0
  %3809 = vmatpush1.bf16.msra.mxu0 0
  %3810 = vmatprep.subr.bf16.mxu0 0
  %3811 = vmatpush1.bf16.msra.mxu0 0
  %3812 = vmatprep.subr.bf16.mxu0 0
  %3813 = vmatpush1.bf16.msra.mxu0 0
  %3814 = vmatprep.subr.bf16.mxu0 0
  %3815 = vmatpush1.bf16.msra.mxu0 0
  %3816 = vmatprep.subr.bf16.mxu0 0
  %3817 = vmatpush1.bf16.msra.mxu0 0
  %3818 = vmatprep.subr.bf16.mxu0 0
  %3819 = vmatpush1.bf16.msra.mxu0 0
  %3820 = vmatprep.subr.bf16.mxu0 0
  %3821 = vmatpush1.bf16.msra.mxu0 0
  %3822 = vmatprep.mubr.bf16.mxu0 0
  %3823 = vmatmul.mubr.bf16.gmra.mrb[0].mxu0 %v3745
  %v3824 = vpop.f32.mrb[0].mxu0
  %v3825 = vadd.f32 0.0, %v3824
  %v3826 = vpop.f32.mrb[0].mxu0
  %v3827 = vadd.f32 0.0, %v3826
  %v3828 = vpop.f32.mrb[0].mxu0
  %v3829 = vadd.f32 0.0, %v3828
  %v3830 = vpop.f32.mrb[0].mxu0
  %v3831 = vadd.f32 0.0, %v3830
  %3832 = vdwg.mxu0
  %3833 = vmatprep.subr.mxu0 0.0
  %3834 = vmatpush1.msra.mxu0 %v3546
  %3835 = vmatprep.subr.mxu0 0.0
  %3836 = vmatpush1.msra.mxu0 %v3547
  %3837 = vmatprep.subr.mxu0 0.0
  %3838 = vmatpush1.msra.mxu0 %v3548
  %3839 = vmatprep.subr.mxu0 0.0
  %3840 = vmatpush1.msra.mxu0 %v3549
  %3841 = vmatprep.subr.mxu0 0.0
  %3842 = vmatpush1.msra.mxu0 %v3550
  %3843 = vmatprep.subr.mxu0 0.0
  %3844 = vmatpush1.msra.mxu0 %v3551
  %3845 = vmatprep.subr.mxu0 0.0
  %3846 = vmatpush1.msra.mxu0 %v3552
  %3847 = vmatprep.subr.mxu0 0.0
  %3848 = vmatpush1.msra.mxu0 %v3553
  %3849 = vmatprep.subr.mxu0 0.0
  %3850 = vmatpush1.msra.mxu0 %v3554
  %3851 = vmatprep.subr.mxu0 0.0
  %3852 = vmatpush1.msra.mxu0 %v3555
  %3853 = vmatprep.subr.mxu0 0.0
  %3854 = vmatpush1.msra.mxu0 %v3556
  %3855 = vmatprep.subr.mxu0 0.0
  %3856 = vmatpush1.msra.mxu0 %v3557
  %3857 = vmatprep.subr.mxu0 0.0
  %3858 = vmatpush1.msra.mxu0 %v3558
  %3859 = vmatprep.subr.mxu0 0.0
  %3860 = vmatpush1.msra.mxu0 %v3559
  %3861 = vmatprep.subr.mxu0 0.0
  %3862 = vmatpush1.msra.mxu0 %v3560
  %3863 = vmatprep.subr.mxu0 0.0
  %3864 = vmatpush1.msra.mxu0 %v3561
  %3865 = vmatprep.subr.mxu0 0.0
  %3866 = vmatpush1.msra.mxu0 %v3562
  %3867 = vmatprep.subr.mxu0 0.0
  %3868 = vmatpush1.msra.mxu0 %v3563
  %3869 = vmatprep.subr.mxu0 0.0
  %3870 = vmatpush1.msra.mxu0 %v3564
  %3871 = vmatprep.subr.mxu0 0.0
  %3872 = vmatpush1.msra.mxu0 %v3565
  %3873 = vmatprep.subr.mxu0 0.0
  %3874 = vmatpush1.msra.mxu0 %v3566
  %3875 = vmatprep.subr.mxu0 0.0
  %3876 = vmatpush1.msra.mxu0 %v3567
  %3877 = vmatprep.subr.mxu0 0.0
  %3878 = vmatpush1.msra.mxu0 %v3568
  %3879 = vmatprep.subr.mxu0 0.0
  %3880 = vmatpush1.msra.mxu0 %v3569
  %3881 = vmatprep.subr.mxu0 0.0
  %3882 = vmatpush1.msra.mxu0 %v3570
  %3883 = vmatprep.subr.mxu0 0.0
  %3884 = vmatpush1.msra.mxu0 %v3571
  %3885 = vmatprep.subr.mxu0 0.0
  %3886 = vmatpush1.msra.mxu0 %v3572
  %3887 = vmatprep.subr.mxu0 0.0
  %3888 = vmatpush1.msra.mxu0 %v3573
  %3889 = vmatprep.subr.mxu0 0.0
  %3890 = vmatpush1.msra.mxu0 %v3574
  %3891 = vmatprep.subr.mxu0 0.0
  %3892 = vmatpush1.msra.mxu0 %v3575
  %3893 = vmatprep.subr.mxu0 0.0
  %3894 = vmatpush1.msra.mxu0 %v3576
  %3895 = vmatprep.subr.mxu0 0.0
  %3896 = vmatpush1.msra.mxu0 %v3577
  %3897 = vmatprep.mubr.f32.mxu0 %v3784
  %3898 = vmatmul.mubr.f32.gmra.mrb[0].mxu0 %v3782
  %v3899 = vpop.f32.mrb[0].mxu0
  %v3900 = vadd.f32 0.0, %v3899
  %v3901 = vpop.f32.mrb[0].mxu0
  %3902 = vmatprep.mubr.f32.mxu0 %v3788
  %3903 = vmatmul.mubr.f32.gmra.mrb[0].mxu0 %v3786
  %v3904 = vpop.f32.mrb[0].mxu0
  %v3905 = vadd.f32 0.0, %v3904
  %v3906 = vpop.f32.mrb[0].mxu0
  %3907 = vdwg.mxu0
  %3908 = vmatprep.subr.mxu0 0.0
  %3909 = vmatpush1.msra.mxu0 %v3578
  %3910 = vmatprep.subr.mxu0 0.0
  %3911 = vmatpush1.msra.mxu0 %v3579
  %3912 = vmatprep.subr.mxu0 0.0
  %3913 = vmatpush1.msra.mxu0 %v3580
  %3914 = vmatprep.subr.mxu0 0.0
  %3915 = vmatpush1.msra.mxu0 %v3581
  %3916 = vmatprep.subr.mxu0 0.0
  %3917 = vmatpush1.msra.mxu0 %v3582
  %3918 = vmatprep.subr.mxu0 0.0
  %3919 = vmatpush1.msra.mxu0 %v3583
  %3920 = vmatprep.subr.mxu0 0.0
  %3921 = vmatpush1.msra.mxu0 %v3584
  %3922 = vmatprep.subr.mxu0 0.0
  %3923 = vmatpush1.msra.mxu0 %v3585
  %3924 = vmatprep.subr.mxu0 0.0
  %3925 = vmatpush1.msra.mxu0 %v3586
  %3926 = vmatprep.subr.mxu0 0.0
  %3927 = vmatpush1.msra.mxu0 %v3587
  %3928 = vmatprep.subr.mxu0 0.0
  %3929 = vmatpush1.msra.mxu0 %v3588
  %3930 = vmatprep.subr.mxu0 0.0
  %3931 = vmatpush1.msra.mxu0 %v3589
  %3932 = vmatprep.subr.mxu0 0.0
  %3933 = vmatpush1.msra.mxu0 %v3590
  %3934 = vmatprep.subr.mxu0 0.0
  %3935 = vmatpush1.msra.mxu0 %v3591
  %3936 = vmatprep.subr.mxu0 0.0
  %3937 = vmatpush1.msra.mxu0 %v3592
  %3938 = vmatprep.subr.mxu0 0.0
  %3939 = vmatpush1.msra.mxu0 %v3593
  %3940 = vmatprep.subr.mxu0 0.0
  %3941 = vmatpush1.msra.mxu0 %v3594
  %3942 = vmatprep.subr.mxu0 0.0
  %3943 = vmatpush1.msra.mxu0 %v3595
  %3944 = vmatprep.subr.mxu0 0.0
  %3945 = vmatpush1.msra.mxu0 %v3596
  %3946 = vmatprep.subr.mxu0 0.0
  %3947 = vmatpush1.msra.mxu0 %v3597
  %3948 = vmatprep.subr.mxu0 0.0
  %3949 = vmatpush1.msra.mxu0 %v3598
  %3950 = vmatprep.subr.mxu0 0.0
  %3951 = vmatpush1.msra.mxu0 %v3599
  %3952 = vmatprep.subr.mxu0 0.0
  %3953 = vmatpush1.msra.mxu0 %v3600
  %3954 = vmatprep.subr.mxu0 0.0
  %3955 = vmatpush1.msra.mxu0 %v3601
  %3956 = vmatprep.subr.mxu0 0.0
  %3957 = vmatpush1.msra.mxu0 %v3602
  %3958 = vmatprep.subr.mxu0 0.0
  %3959 = vmatpush1.msra.mxu0 %v3603
  %3960 = vmatprep.subr.mxu0 0.0
  %3961 = vmatpush1.msra.mxu0 %v3604
  %3962 = vmatprep.subr.mxu0 0.0
  %3963 = vmatpush1.msra.mxu0 %v3605
  %3964 = vmatprep.subr.mxu0 0.0
  %3965 = vmatpush1.msra.mxu0 %v3606
  %3966 = vmatprep.subr.mxu0 0.0
  %3967 = vmatpush1.msra.mxu0 %v3607
  %3968 = vmatprep.subr.mxu0 0.0
  %3969 = vmatpush1.msra.mxu0 %v3608
  %3970 = vmatprep.subr.mxu0 0.0
  %3971 = vmatpush1.msra.mxu0 %v3609
  %3972 = vmatprep.mubr.f32.mxu0 %v3827
  %3973 = vmatmul.mubr.f32.gmra.mrb[0].mxu0 %v3825
  %v3974 = vpop.f32.mrb[0].mxu0
  %v3975 = vadd.f32 %v3900, %v3974
  %v3976 = vpop.f32.mrb[0].mxu0
  %3977 = vmatprep.mubr.f32.mxu0 %v3831
  %3978 = vmatmul.mubr.f32.gmra.mrb[0].mxu0 %v3829
  %v3979 = vpop.f32.mrb[0].mxu0
  %v3980 = vadd.f32 %v3905, %v3979
  %v3981 = vpop.f32.mrb[0].mxu0
  %3982 = vdwg.mxu0
  %3983 = vst [vmem:[%s22] sm:$0xff] %v3975
  %3984 = vst [vmem:[%s22 + $0x8] sm:$0xff] %v3980
  // Predicated region
  $region90: #{densenet_forward.3} parent=0 // pred_check
    _
  $region91: #{densenet_forward.3} parent=0 // pred_check_branch
    %3986 = sbr.rel (0) target = $region93
  $region92: #{densenet_forward.3} parent=0 // pred_region
    _
  $region93: #{densenet_forward.3} parent=0 // pred_fallthru
    _
  // Predicated region
  $region94: #{densenet_forward.3} parent=0 // pred_check
    _
  $region95: #{densenet_forward.3} parent=0 // pred_check_branch
    %3988 = sbr.rel (0) target = $region97
  $region96: #{densenet_forward.3} parent=0 // pred_region
    _
  $region97: #{densenet_forward.3} parent=0 // pred_fallthru
    _

// kernel: densenet_forward.5
$region0: #{densenet_forward.5}
  #allocation0 [shape = 'u32[]', space=smem, size = 0x4, offset = 0x4, fixed_abs, tag = 'smem constant byte address 0x4 - core index']
  #allocation1 [shape = 'u32[144,128]{1,0:T(1,128)}', space=vmem, size = 0x12000, scoped, tag = 'internal scratch']
  %s0 = inlined_call_operand.smem [shape: u32[37], index: -1, kind: input, shape index: {}]
  %s1 = sld [smem:[%s0]]
  %s2 = scalar_lea.smem %s0, 1
  %s3 = sld [smem:[%s2]]
  %s4 = scalar_lea.smem %s0, 2
  %s5 = sld [smem:[%s4]]
  %s6 = scalar_lea.smem %s0, 3
  %s7 = sld [smem:[%s6]]
  %s8 = scalar_lea.smem %s0, 4
  %s9 = sld [smem:[%s8]]
  %s10 = scalar_lea.smem %s0, 5
  %s11 = sld [smem:[%s10]]
  %s12 = scalar_lea.smem %s0, 6
  %s13 = sld [smem:[%s12]]
  %s14 = scalar_lea.smem %s0, 7
  %s15 = sld [smem:[%s14]]
  %s16 = scalar_lea.smem %s0, 8
  %s17 = sld [smem:[%s16]]
  %s18 = scalar_lea.smem %s0, 9
  %s19 = sld [smem:[%s18]]
  %s20 = scalar_lea.smem %s0, 10
  %s21 = sld [smem:[%s20]]
  %s22 = scalar_lea.smem %s0, 11
  %s23 = sld [smem:[%s22]]
  %s24 = scalar_lea.smem %s0, 12
  %s25 = sld [smem:[%s24]]
  %s26 = scalar_lea.smem %s0, 13
  %s27 = sld [smem:[%s26]]
  %s28 = scalar_lea.smem %s0, 14
  %s29 = sld [smem:[%s28]]
  %s30 = scalar_lea.smem %s0, 15
  %s31 = sld [smem:[%s30]]
  %s32 = scalar_lea.smem %s0, 16
  %s33 = sld [smem:[%s32]]
  %s34 = scalar_lea.smem %s0, 17
  %s35 = sld [smem:[%s34]]
  %s36 = scalar_lea.smem %s0, 18
  %s37 = sld [smem:[%s36]]
  %s38 = scalar_lea.smem %s0, 19
  %s39 = sld [smem:[%s38]]
  %s40 = scalar_lea.smem %s0, 20
  %s41 = sld [smem:[%s40]]
  %s42 = scalar_lea.smem %s0, 21
  %s43 = sld [smem:[%s42]]
  %s44 = scalar_lea.smem %s0, 22
  %s45 = sld [smem:[%s44]]
  %s46 = scalar_lea.smem %s0, 23
  %s47 = sld [smem:[%s46]]
  %s48 = scalar_lea.smem %s0, 24
  %s49 = sld [smem:[%s48]]
  %s50 = scalar_lea.smem %s0, 25
  %s51 = sld [smem:[%s50]]
  %s52 = scalar_lea.smem %s0, 26
  %s53 = sld [smem:[%s52]]
  %s54 = scalar_lea.smem %s0, 27
  %s55 = sld [smem:[%s54]]
  %s56 = scalar_lea.smem %s0, 28
  %s57 = sld [smem:[%s56]]
  %s58 = scalar_lea.smem %s0, 29
  %s59 = sld [smem:[%s58]]
  %s60 = scalar_lea.smem %s0, 30
  %s61 = sld [smem:[%s60]]
  %s62 = scalar_lea.smem %s0, 31
  %s63 = sld [smem:[%s62]]
  %s64 = scalar_lea.smem %s0, 32
  %s65 = sld [smem:[%s64]]
  %s66 = scalar_lea.smem %s0, 33
  %s67 = sld [smem:[%s66]]
  %s68 = scalar_lea.smem %s0, 34
  %s69 = sld [smem:[%s68]]
  %s70 = scalar_lea.smem %s0, 35
  %s71 = sld [smem:[%s70]]
  %s72 = scalar_lea.smem %s0, 36
  %s73 = sld [smem:[%s72]]
  %s74 = sld [smem:[#allocation0]]
  $region154: #{densenet_forward.5} parent=0
    _
  %s76 = ssub.s32 1, %s74
  %s77 = scalar_select 0, %s76, %s74
  // Predicated region
  $region2: #{densenet_forward.5} parent=0 // pred_check
    _
  $region3: #{densenet_forward.5} parent=0 // pred_check_branch
    %79 = sbr.rel (0) target = $region5
  $region4: #{densenet_forward.5} parent=0 // pred_region
    _
  $region5: #{densenet_forward.5} parent=0 // pred_fallthru
    _
  // Predicated region
  $region6: #{densenet_forward.5} parent=0 // pred_check
    _
  $region7: #{densenet_forward.5} parent=0 // pred_check_branch
    %81 = sbr.rel (0) target = $region9
  $region8: #{densenet_forward.5} parent=0 // pred_region
    _
  $region9: #{densenet_forward.5} parent=0 // pred_fallthru
    _
  // Predicated region
  $region10: #{densenet_forward.5} parent=0 // pred_check
    _
  $region11: #{densenet_forward.5} parent=0 // pred_check_branch
    %83 = sbr.rel (0) target = $region13
  $region12: #{densenet_forward.5} parent=0 // pred_region
    _
  $region13: #{densenet_forward.5} parent=0 // pred_fallthru
    _
  // Predicated region
  $region14: #{densenet_forward.5} parent=0 // pred_check
    _
  $region15: #{densenet_forward.5} parent=0 // pred_check_branch
    %85 = sbr.rel (0) target = $region17
  $region16: #{densenet_forward.5} parent=0 // pred_region
    _
  $region17: #{densenet_forward.5} parent=0 // pred_fallthru
    _
  // Predicated region
  $region18: #{densenet_forward.5} parent=0 // pred_check
    _
  $region19: #{densenet_forward.5} parent=0 // pred_check_branch
    %87 = sbr.rel (0) target = $region21
  $region20: #{densenet_forward.5} parent=0 // pred_region
    _
  $region21: #{densenet_forward.5} parent=0 // pred_fallthru
    _
  // Predicated region
  $region22: #{densenet_forward.5} parent=0 // pred_check
    _
  $region23: #{densenet_forward.5} parent=0 // pred_check_branch
    %89 = sbr.rel (0) target = $region25
  $region24: #{densenet_forward.5} parent=0 // pred_region
    _
  $region25: #{densenet_forward.5} parent=0 // pred_fallthru
    _
  // Predicated region
  $region26: #{densenet_forward.5} parent=0 // pred_check
    _
  $region27: #{densenet_forward.5} parent=0 // pred_check_branch
    %91 = sbr.rel (0) target = $region29
  $region28: #{densenet_forward.5} parent=0 // pred_region
    _
  $region29: #{densenet_forward.5} parent=0 // pred_fallthru
    _
  // Predicated region
  $region30: #{densenet_forward.5} parent=0 // pred_check
    _
  $region31: #{densenet_forward.5} parent=0 // pred_check_branch
    %93 = sbr.rel (0) target = $region33
  $region32: #{densenet_forward.5} parent=0 // pred_region
    _
  $region33: #{densenet_forward.5} parent=0 // pred_fallthru
    _
  // Predicated region
  $region34: #{densenet_forward.5} parent=0 // pred_check
    _
  $region35: #{densenet_forward.5} parent=0 // pred_check_branch
    %95 = sbr.rel (0) target = $region37
  $region36: #{densenet_forward.5} parent=0 // pred_region
    _
  $region37: #{densenet_forward.5} parent=0 // pred_fallthru
    _
  // Predicated region
  $region38: #{densenet_forward.5} parent=0 // pred_check
    _
  $region39: #{densenet_forward.5} parent=0 // pred_check_branch
    %97 = sbr.rel (0) target = $region41
  $region40: #{densenet_forward.5} parent=0 // pred_region
    _
  $region41: #{densenet_forward.5} parent=0 // pred_fallthru
    _
  // Predicated region
  $region42: #{densenet_forward.5} parent=0 // pred_check
    _
  $region43: #{densenet_forward.5} parent=0 // pred_check_branch
    %99 = sbr.rel (0) target = $region45
  $region44: #{densenet_forward.5} parent=0 // pred_region
    _
  $region45: #{densenet_forward.5} parent=0 // pred_fallthru
    _
  // Predicated region
  $region46: #{densenet_forward.5} parent=0 // pred_check
    _
  $region47: #{densenet_forward.5} parent=0 // pred_check_branch
    %101 = sbr.rel (0) target = $region49
  $region48: #{densenet_forward.5} parent=0 // pred_region
    _
  $region49: #{densenet_forward.5} parent=0 // pred_fallthru
    _
  // Predicated region
  $region50: #{densenet_forward.5} parent=0 // pred_check
    _
  $region51: #{densenet_forward.5} parent=0 // pred_check_branch
    %103 = sbr.rel (0) target = $region53
  $region52: #{densenet_forward.5} parent=0 // pred_region
    _
  $region53: #{densenet_forward.5} parent=0 // pred_fallthru
    _
  // Predicated region
  $region54: #{densenet_forward.5} parent=0 // pred_check
    _
  $region55: #{densenet_forward.5} parent=0 // pred_check_branch
    %105 = sbr.rel (0) target = $region57
  $region56: #{densenet_forward.5} parent=0 // pred_region
    _
  $region57: #{densenet_forward.5} parent=0 // pred_fallthru
    _
  // Predicated region
  $region58: #{densenet_forward.5} parent=0 // pred_check
    _
  $region59: #{densenet_forward.5} parent=0 // pred_check_branch
    %107 = sbr.rel (0) target = $region61
  $region60: #{densenet_forward.5} parent=0 // pred_region
    _
  $region61: #{densenet_forward.5} parent=0 // pred_fallthru
    _
  // Predicated region
  $region62: #{densenet_forward.5} parent=0 // pred_check
    _
  $region63: #{densenet_forward.5} parent=0 // pred_check_branch
    %109 = sbr.rel (0) target = $region65
  $region64: #{densenet_forward.5} parent=0 // pred_region
    _
  $region65: #{densenet_forward.5} parent=0 // pred_fallthru
    _
  // Predicated region
  $region66: #{densenet_forward.5} parent=0 // pred_check
    _
  $region67: #{densenet_forward.5} parent=0 // pred_check_branch
    %111 = sbr.rel (0) target = $region69
  $region68: #{densenet_forward.5} parent=0 // pred_region
    _
  $region69: #{densenet_forward.5} parent=0 // pred_fallthru
    _
  // Predicated region
  $region70: #{densenet_forward.5} parent=0 // pred_check
    _
  $region71: #{densenet_forward.5} parent=0 // pred_check_branch
    %113 = sbr.rel (0) target = $region73
  $region72: #{densenet_forward.5} parent=0 // pred_region
    _
  $region73: #{densenet_forward.5} parent=0 // pred_fallthru
    _
  // Predicated region
  $region74: #{densenet_forward.5} parent=0 // pred_check
    _
  $region75: #{densenet_forward.5} parent=0 // pred_check_branch
    %115 = sbr.rel (0) target = $region77
  $region76: #{densenet_forward.5} parent=0 // pred_region
    _
  $region77: #{densenet_forward.5} parent=0 // pred_fallthru
    _
  // Predicated region
  $region78: #{densenet_forward.5} parent=0 // pred_check
    _
  $region79: #{densenet_forward.5} parent=0 // pred_check_branch
    %117 = sbr.rel (0) target = $region81
  $region80: #{densenet_forward.5} parent=0 // pred_region
    _
  $region81: #{densenet_forward.5} parent=0 // pred_fallthru
    _
  // Predicated region
  $region82: #{densenet_forward.5} parent=0 // pred_check
    _
  $region83: #{densenet_forward.5} parent=0 // pred_check_branch
    %119 = sbr.rel (0) target = $region85
  $region84: #{densenet_forward.5} parent=0 // pred_region
    _
  $region85: #{densenet_forward.5} parent=0 // pred_fallthru
    _
  // Predicated region
  $region86: #{densenet_forward.5} parent=0 // pred_check
    _
  $region87: #{densenet_forward.5} parent=0 // pred_check_branch
    %121 = sbr.rel (0) target = $region89
  $region88: #{densenet_forward.5} parent=0 // pred_region
    _
  $region89: #{densenet_forward.5} parent=0 // pred_fallthru
    _
  // Predicated region
  $region90: #{densenet_forward.5} parent=0 // pred_check
    _
  $region91: #{densenet_forward.5} parent=0 // pred_check_branch
    %123 = sbr.rel (0) target = $region93
  $region92: #{densenet_forward.5} parent=0 // pred_region
    _
  $region93: #{densenet_forward.5} parent=0 // pred_fallthru
    _
  // Predicated region
  $region94: #{densenet_forward.5} parent=0 // pred_check
    _
  $region95: #{densenet_forward.5} parent=0 // pred_check_branch
    %125 = sbr.rel (0) target = $region97
  $region96: #{densenet_forward.5} parent=0 // pred_region
    _
  $region97: #{densenet_forward.5} parent=0 // pred_fallthru
    _
  // Predicated region
  $region98: #{densenet_forward.5} parent=0 // pred_check
    _
  $region99: #{densenet_forward.5} parent=0 // pred_check_branch
    %127 = sbr.rel (0) target = $region101
  $region100: #{densenet_forward.5} parent=0 // pred_region
    _
  $region101: #{densenet_forward.5} parent=0 // pred_fallthru
    _
  // Predicated region
  $region102: #{densenet_forward.5} parent=0 // pred_check
    _
  $region103: #{densenet_forward.5} parent=0 // pred_check_branch
    %129 = sbr.rel (0) target = $region105
  $region104: #{densenet_forward.5} parent=0 // pred_region
    _
  $region105: #{densenet_forward.5} parent=0 // pred_fallthru
    _
  // Predicated region
  $region106: #{densenet_forward.5} parent=0 // pred_check
    _
  $region107: #{densenet_forward.5} parent=0 // pred_check_branch
    %131 = sbr.rel (0) target = $region109
  $region108: #{densenet_forward.5} parent=0 // pred_region
    _
  $region109: #{densenet_forward.5} parent=0 // pred_fallthru
    _
  // Predicated region
  $region110: #{densenet_forward.5} parent=0 // pred_check
    _
  $region111: #{densenet_forward.5} parent=0 // pred_check_branch
    %133 = sbr.rel (0) target = $region113
  $region112: #{densenet_forward.5} parent=0 // pred_region
    _
  $region113: #{densenet_forward.5} parent=0 // pred_fallthru
    _
  // Predicated region
  $region114: #{densenet_forward.5} parent=0 // pred_check
    _
  $region115: #{densenet_forward.5} parent=0 // pred_check_branch
    %135 = sbr.rel (0) target = $region117
  $region116: #{densenet_forward.5} parent=0 // pred_region
    _
  $region117: #{densenet_forward.5} parent=0 // pred_fallthru
    _
  // Predicated region
  $region118: #{densenet_forward.5} parent=0 // pred_check
    _
  $region119: #{densenet_forward.5} parent=0 // pred_check_branch
    %137 = sbr.rel (0) target = $region121
  $region120: #{densenet_forward.5} parent=0 // pred_region
    _
  $region121: #{densenet_forward.5} parent=0 // pred_fallthru
    _
  // Predicated region
  $region122: #{densenet_forward.5} parent=0 // pred_check
    _
  $region123: #{densenet_forward.5} parent=0 // pred_check_branch
    %139 = sbr.rel (0) target = $region125
  $region124: #{densenet_forward.5} parent=0 // pred_region
    _
  $region125: #{densenet_forward.5} parent=0 // pred_fallthru
    _
  // Predicated region
  $region126: #{densenet_forward.5} parent=0 // pred_check
    _
  $region127: #{densenet_forward.5} parent=0 // pred_check_branch
    %141 = sbr.rel (0) target = $region129
  $region128: #{densenet_forward.5} parent=0 // pred_region
    _
  $region129: #{densenet_forward.5} parent=0 // pred_fallthru
    _
  // Predicated region
  $region130: #{densenet_forward.5} parent=0 // pred_check
    _
  $region131: #{densenet_forward.5} parent=0 // pred_check_branch
    %143 = sbr.rel (0) target = $region133
  $region132: #{densenet_forward.5} parent=0 // pred_region
    _
  $region133: #{densenet_forward.5} parent=0 // pred_fallthru
    _
  // Predicated region
  $region134: #{densenet_forward.5} parent=0 // pred_check
    _
  $region135: #{densenet_forward.5} parent=0 // pred_check_branch
    %145 = sbr.rel (0) target = $region137
  $region136: #{densenet_forward.5} parent=0 // pred_region
    _
  $region137: #{densenet_forward.5} parent=0 // pred_fallthru
    _
  // Predicated region
  $region138: #{densenet_forward.5} parent=0 // pred_check
    _
  $region139: #{densenet_forward.5} parent=0 // pred_check_branch
    %147 = sbr.rel (0) target = $region141
  $region140: #{densenet_forward.5} parent=0 // pred_region
    _
  $region141: #{densenet_forward.5} parent=0 // pred_fallthru
    _
  // Predicated region
  $region142: #{densenet_forward.5} parent=0 // pred_check
    _
  $region143: #{densenet_forward.5} parent=0 // pred_check_branch
    %149 = sbr.rel (0) target = $region145
  $region144: #{densenet_forward.5} parent=0 // pred_region
    _
  $region145: #{densenet_forward.5} parent=0 // pred_fallthru
    _
  %v151 = vld [vmem:[%s1] sm:$0xff]
  %v152 = vld [vmem:[%s1 + $0x8] sm:$0xff]
  %v153 = vld [vmem:[%s5] sm:$0xff]
  %v154 = vld [vmem:[%s5 + $0x8] sm:$0xff]
  %v155 = vld [vmem:[%s7] sm:$0xff]
  %v156 = vld [vmem:[%s7 + $0x8] sm:$0xff]
  %v157 = vld [vmem:[%s9] sm:$0xf]
  %v158 = vld [vmem:[%s9 + $0x4] sm:$0xf]
  %v159 = vld [vmem:[%s11] sm:$0xff]
  %v160 = vld [vmem:[%s11 + $0x8] sm:$0xff]
  %v161 = vld [vmem:[%s13] sm:$0xff]
  %v162 = vld [vmem:[%s13 + $0x8] sm:$0xff]
  %v163 = vld [vmem:[%s15] sm:$0xff]
  %vm164 = vcmask 261120
  %v165 = vsel %vm164, %v151, 0.0
  %166 = vadd.xlane.f32.xlu0 %v165
  %v167 = vpop.xlane.xlu0 %166
  %v168 = vsel %vm164, %v152, 0.0
  %169 = vadd.xlane.f32.xlu0 %v168
  %v170 = vpop.xlane.xlu0 %169
  %v171 = vrcp.pop 32.0
  %v172 = vmul.f32 %v167, %v171
  %v173 = vmul.f32 %v170, %v171
  %v174 = vmul.f32 %v151, %v151
  %v175 = vmul.f32 %v152, %v152
  %v176 = vsel %vm164, %v174, 0.0
  %177 = vadd.xlane.f32.xlu0 %v176
  %v178 = vpop.xlane.xlu0 %177
  %v179 = vsel %vm164, %v175, 0.0
  %180 = vadd.xlane.f32.xlu0 %v179
  %v181 = vpop.xlane.xlu0 %180
  %v182 = vmul.f32 %v178, %v171
  %v183 = vmul.f32 %v181, %v171
  %v184 = vmul.f32 %v172, %v172
  %v185 = vmul.f32 %v173, %v173
  %v186 = vsub.f32 %v182, %v184
  %v187 = vsub.f32 %v183, %v185
  %v188 = vadd.f32 %v186, 1e-05
  %v189 = vadd.f32 %v187, 1e-05
  %v190 = vrsqrt.pop %v188
  %v191 = vrsqrt.pop %v189
  %v192 = vmul.f32 %v153, %v190
  %v193 = vmul.f32 %v154, %v191
  %195 = vset.pattern.permute.xlu0 0
  %196 = vperm.xlu0 %195, %v192
  %v197 = vpop.permute.xlu0 %196
  %200 = vset.pattern.permute.xlu0 0
  %201 = vperm.xlu0 %200, %v193
  %v202 = vpop.permute.xlu0 %201
  %v204 = vmul.f32 %v151, %v197
  %v205 = vmul.f32 %v152, %v202
  %v206 = vmul.f32 %v172, %v192
  %v207 = vmul.f32 %v173, %v193
  %v208 = vsub.f32 %v155, %v206
  %v209 = vsub.f32 %v156, %v207
  %211 = vset.pattern.permute.xlu0 0
  %212 = vperm.xlu0 %211, %v208
  %v213 = vpop.permute.xlu0 %212
  %216 = vset.pattern.permute.xlu0 0
  %217 = vperm.xlu0 %216, %v209
  %v218 = vpop.permute.xlu0 %217
  %v220 = vadd.f32 %v204, %v213
  %v221 = vadd.f32 %v205, %v218
  %v222 = vmax.f32 %v220, 0.0
  %v223 = vmax.f32 %v221, 0.0
  %v224 = vpack.c.bf16 %v223, %v222
  %v227 = vunpack.c.l.b16 %v157
  %v228 = vunpack.c.l.b16 %v158
  %v229 = vpack.c.b16 %v228, %v227
  %vm230 = vcmask 130048
  %v232 = vsel %vm230, %v229, 0
  %234 = vmatprep.subr.bf16.mxu0 0
  %235 = vmatpush1.bf16.msra.mxu0 %v224
  %236 = vmatprep.subr.bf16.mxu0 0
  %237 = vmatpush1.bf16.msra.mxu0 0
  %238 = vmatprep.subr.bf16.mxu0 0
  %239 = vmatpush1.bf16.msra.mxu0 0
  %240 = vmatprep.subr.bf16.mxu0 0
  %241 = vmatpush1.bf16.msra.mxu0 0
  %242 = vmatprep.subr.bf16.mxu0 0
  %243 = vmatpush1.bf16.msra.mxu0 0
  %244 = vmatprep.subr.bf16.mxu0 0
  %245 = vmatpush1.bf16.msra.mxu0 0
  %246 = vmatprep.subr.bf16.mxu0 0
  %247 = vmatpush1.bf16.msra.mxu0 0
  %248 = vmatprep.subr.bf16.mxu0 0
  %249 = vmatpush1.bf16.msra.mxu0 0
  %250 = vmatprep.subr.bf16.mxu0 0
  %251 = vmatpush1.bf16.msra.mxu0 0
  %252 = vmatprep.subr.bf16.mxu0 0
  %253 = vmatpush1.bf16.msra.mxu0 0
  %254 = vmatprep.subr.bf16.mxu0 0
  %255 = vmatpush1.bf16.msra.mxu0 0
  %256 = vmatprep.subr.bf16.mxu0 0
  %257 = vmatpush1.bf16.msra.mxu0 0
  %258 = vmatprep.subr.bf16.mxu0 0
  %259 = vmatpush1.bf16.msra.mxu0 0
  %260 = vmatprep.subr.bf16.mxu0 0
  %261 = vmatpush1.bf16.msra.mxu0 0
  %262 = vmatprep.subr.bf16.mxu0 0
  %263 = vmatpush1.bf16.msra.mxu0 0
  %264 = vmatprep.subr.bf16.mxu0 0
  %265 = vmatpush1.bf16.msra.mxu0 0
  %266 = vmatprep.mubr.bf16.mxu0 0
  %267 = vmatmul.mubr.bf16.gmra.mrb[0].mxu0 %v232
  %v268 = vpop.f32.mrb[0].mxu0
  %v269 = vadd.f32 0.0, %v268
  %v270 = vpop.f32.mrb[0].mxu0
  %v271 = vpop.f32.mrb[0].mxu0
  %v272 = vadd.f32 0.0, %v271
  %v273 = vpop.f32.mrb[0].mxu0
  %274 = vdwg.mxu0
  %v275 = vsel %vm164, %v269, 0.0
  %276 = vadd.xlane.f32.xlu0 %v275
  %v277 = vpop.xlane.xlu0 %276
  %v278 = vsel %vm164, %v272, 0.0
  %279 = vadd.xlane.f32.xlu0 %v278
  %v280 = vpop.xlane.xlu0 %279
  %v281 = vmul.f32 %v277, %v171
  %v282 = vmul.f32 %v280, %v171
  %v283 = vmul.f32 %v269, %v269
  %v284 = vmul.f32 %v272, %v272
  %v285 = vsel %vm164, %v283, 0.0
  %286 = vadd.xlane.f32.xlu0 %v285
  %v287 = vpop.xlane.xlu0 %286
  %v288 = vsel %vm164, %v284, 0.0
  %289 = vadd.xlane.f32.xlu0 %v288
  %v290 = vpop.xlane.xlu0 %289
  %v291 = vmul.f32 %v287, %v171
  %v292 = vmul.f32 %v290, %v171
  %v293 = vmul.f32 %v281, %v281
  %v294 = vmul.f32 %v282, %v282
  %v295 = vsub.f32 %v291, %v293
  %v296 = vsub.f32 %v292, %v294
  %v297 = vadd.f32 %v295, 1e-05
  %v298 = vadd.f32 %v296, 1e-05
  %v299 = vrsqrt.pop %v297
  %v300 = vrsqrt.pop %v298
  %v301 = vmul.f32 %v159, %v299
  %v302 = vmul.f32 %v160, %v300
  %304 = vset.pattern.permute.xlu0 0
  %305 = vperm.xlu0 %304, %v301
  %v306 = vpop.permute.xlu0 %305
  %309 = vset.pattern.permute.xlu0 0
  %310 = vperm.xlu0 %309, %v302
  %v311 = vpop.permute.xlu0 %310
  %v313 = vmul.f32 %v269, %v306
  %v314 = vmul.f32 %v272, %v311
  %v315 = vmul.f32 %v281, %v301
  %v316 = vmul.f32 %v282, %v302
  %v317 = vsub.f32 %v161, %v315
  %v318 = vsub.f32 %v162, %v316
  %320 = vset.pattern.permute.xlu0 0
  %321 = vperm.xlu0 %320, %v317
  %v322 = vpop.permute.xlu0 %321
  %325 = vset.pattern.permute.xlu0 0
  %326 = vperm.xlu0 %325, %v318
  %v327 = vpop.permute.xlu0 %326
  %v329 = vadd.f32 %v313, %v322
  %v330 = vadd.f32 %v314, %v327
  %v331 = vmax.f32 %v329, 0.0
  %v332 = vmax.f32 %v330, 0.0
  %v333 = vld [vmem:[%s3] sm:$0xff]
  %v334 = vld [vmem:[%s3 + $0x8] sm:$0xff]
  %v335 = vld [vmem:[%s3 + $0x10] sm:$0xff]
  %v336 = vld [vmem:[%s3 + $0x18] sm:$0xff]
  %v338 = vsel %vm164, %v331, 0
  %v341 = vsel %vm164, %v332, 0
  %343 = vmatprep.subr.mxu0 0.0
  %344 = vmatpush1.msra.mxu0 %v333
  %345 = vmatprep.subr.mxu0 0.0
  %346 = vmatpush1.msra.mxu0 %v334
  %347 = vmatprep.subr.mxu0 0.0
  %348 = vmatpush1.msra.mxu0 %v335
  %349 = vmatprep.subr.mxu0 0.0
  %350 = vmatpush1.msra.mxu0 %v336
  %351 = vmatprep.subr.mxu0 0.0
  %352 = vmatpush1.msra.mxu0 0.0
  %353 = vmatprep.subr.mxu0 0.0
  %354 = vmatpush1.msra.mxu0 0.0
  %355 = vmatprep.subr.mxu0 0.0
  %356 = vmatpush1.msra.mxu0 0.0
  %357 = vmatprep.subr.mxu0 0.0
  %358 = vmatpush1.msra.mxu0 0.0
  %359 = vmatprep.subr.mxu0 0.0
  %360 = vmatpush1.msra.mxu0 0.0
  %361 = vmatprep.subr.mxu0 0.0
  %362 = vmatpush1.msra.mxu0 0.0
  %363 = vmatprep.subr.mxu0 0.0
  %364 = vmatpush1.msra.mxu0 0.0
  %365 = vmatprep.subr.mxu0 0.0
  %366 = vmatpush1.msra.mxu0 0.0
  %367 = vmatprep.subr.mxu0 0.0
  %368 = vmatpush1.msra.mxu0 0.0
  %369 = vmatprep.subr.mxu0 0.0
  %370 = vmatpush1.msra.mxu0 0.0
  %371 = vmatprep.subr.mxu0 0.0
  %372 = vmatpush1.msra.mxu0 0.0
  %373 = vmatprep.subr.mxu0 0.0
  %374 = vmatpush1.msra.mxu0 0.0
  %375 = vmatprep.subr.mxu0 0.0
  %376 = vmatpush1.msra.mxu0 0.0
  %377 = vmatprep.subr.mxu0 0.0
  %378 = vmatpush1.msra.mxu0 0.0
  %379 = vmatprep.subr.mxu0 0.0
  %380 = vmatpush1.msra.mxu0 0.0
  %381 = vmatprep.subr.mxu0 0.0
  %382 = vmatpush1.msra.mxu0 0.0
  %383 = vmatprep.subr.mxu0 0.0
  %384 = vmatpush1.msra.mxu0 0.0
  %385 = vmatprep.subr.mxu0 0.0
  %386 = vmatpush1.msra.mxu0 0.0
  %387 = vmatprep.subr.mxu0 0.0
  %388 = vmatpush1.msra.mxu0 0.0
  %389 = vmatprep.subr.mxu0 0.0
  %390 = vmatpush1.msra.mxu0 0.0
  %391 = vmatprep.subr.mxu0 0.0
  %392 = vmatpush1.msra.mxu0 0.0
  %393 = vmatprep.subr.mxu0 0.0
  %394 = vmatpush1.msra.mxu0 0.0
  %395 = vmatprep.subr.mxu0 0.0
  %396 = vmatpush1.msra.mxu0 0.0
  %397 = vmatprep.subr.mxu0 0.0
  %398 = vmatpush1.msra.mxu0 0.0
  %399 = vmatprep.subr.mxu0 0.0
  %400 = vmatpush1.msra.mxu0 0.0
  %401 = vmatprep.subr.mxu0 0.0
  %402 = vmatpush1.msra.mxu0 0.0
  %403 = vmatprep.subr.mxu0 0.0
  %404 = vmatpush1.msra.mxu0 0.0
  %405 = vmatprep.subr.mxu0 0.0
  %406 = vmatpush1.msra.mxu0 0.0
  %407 = vmatprep.mubr.f32.mxu0 0.0
  %408 = vmatmul.mubr.f32.gmra.mrb[0].mxu0 %v338
  %v409 = vpop.f32.mrb[0].mxu0
  %v410 = vadd.f32 0.0, %v409
  %v411 = vpop.f32.mrb[0].mxu0
  %412 = vmatprep.mubr.f32.mxu0 0.0
  %413 = vmatmul.mubr.f32.gmra.mrb[0].mxu0 %v341
  %v414 = vpop.f32.mrb[0].mxu0
  %v415 = vadd.f32 0.0, %v414
  %v416 = vpop.f32.mrb[0].mxu0
  %417 = vdwg.mxu0
  %v418 = vpack.c.bf16 %v415, %v410
  %s419 = scalar_lea.vmem %s3, 32
  %v420 = vld [vmem:[%s419] sm:$0xff]
  %v421 = vld [vmem:[%s419 + $0x8] sm:$0xff]
  %v422 = vld [vmem:[%s419 + $0x10] sm:$0xff]
  %v423 = vld [vmem:[%s419 + $0x18] sm:$0xff]
  %424 = vmatprep.subr.mxu0 0.0
  %425 = vmatpush1.msra.mxu0 %v420
  %426 = vmatprep.subr.mxu0 0.0
  %427 = vmatpush1.msra.mxu0 %v421
  %428 = vmatprep.subr.mxu0 0.0
  %429 = vmatpush1.msra.mxu0 %v422
  %430 = vmatprep.subr.mxu0 0.0
  %431 = vmatpush1.msra.mxu0 %v423
  %432 = vmatprep.subr.mxu0 0.0
  %433 = vmatpush1.msra.mxu0 0.0
  %434 = vmatprep.subr.mxu0 0.0
  %435 = vmatpush1.msra.mxu0 0.0
  %436 = vmatprep.subr.mxu0 0.0
  %437 = vmatpush1.msra.mxu0 0.0
  %438 = vmatprep.subr.mxu0 0.0
  %439 = vmatpush1.msra.mxu0 0.0
  %440 = vmatprep.subr.mxu0 0.0
  %441 = vmatpush1.msra.mxu0 0.0
  %442 = vmatprep.subr.mxu0 0.0
  %443 = vmatpush1.msra.mxu0 0.0
  %444 = vmatprep.subr.mxu0 0.0
  %445 = vmatpush1.msra.mxu0 0.0
  %446 = vmatprep.subr.mxu0 0.0
  %447 = vmatpush1.msra.mxu0 0.0
  %448 = vmatprep.subr.mxu0 0.0
  %449 = vmatpush1.msra.mxu0 0.0
  %450 = vmatprep.subr.mxu0 0.0
  %451 = vmatpush1.msra.mxu0 0.0
  %452 = vmatprep.subr.mxu0 0.0
  %453 = vmatpush1.msra.mxu0 0.0
  %454 = vmatprep.subr.mxu0 0.0
  %455 = vmatpush1.msra.mxu0 0.0
  %456 = vmatprep.subr.mxu0 0.0
  %457 = vmatpush1.msra.mxu0 0.0
  %458 = vmatprep.subr.mxu0 0.0
  %459 = vmatpush1.msra.mxu0 0.0
  %460 = vmatprep.subr.mxu0 0.0
  %461 = vmatpush1.msra.mxu0 0.0
  %462 = vmatprep.subr.mxu0 0.0
  %463 = vmatpush1.msra.mxu0 0.0
  %464 = vmatprep.subr.mxu0 0.0
  %465 = vmatpush1.msra.mxu0 0.0
  %466 = vmatprep.subr.mxu0 0.0
  %467 = vmatpush1.msra.mxu0 0.0
  %468 = vmatprep.subr.mxu0 0.0
  %469 = vmatpush1.msra.mxu0 0.0
  %470 = vmatprep.subr.mxu0 0.0
  %471 = vmatpush1.msra.mxu0 0.0
  %472 = vmatprep.subr.mxu0 0.0
  %473 = vmatpush1.msra.mxu0 0.0
  %474 = vmatprep.subr.mxu0 0.0
  %475 = vmatpush1.msra.mxu0 0.0
  %476 = vmatprep.subr.mxu0 0.0
  %477 = vmatpush1.msra.mxu0 0.0
  %478 = vmatprep.subr.mxu0 0.0
  %479 = vmatpush1.msra.mxu0 0.0
  %480 = vmatprep.subr.mxu0 0.0
  %481 = vmatpush1.msra.mxu0 0.0
  %482 = vmatprep.subr.mxu0 0.0
  %483 = vmatpush1.msra.mxu0 0.0
  %484 = vmatprep.subr.mxu0 0.0
  %485 = vmatpush1.msra.mxu0 0.0
  %486 = vmatprep.subr.mxu0 0.0
  %487 = vmatpush1.msra.mxu0 0.0
  %488 = vmatprep.mubr.f32.mxu0 0.0
  %489 = vmatmul.mubr.f32.gmra.mrb[0].mxu0 %v338
  %v490 = vpop.f32.mrb[0].mxu0
  %v491 = vadd.f32 0.0, %v490
  %v492 = vpop.f32.mrb[0].mxu0
  %493 = vmatprep.mubr.f32.mxu0 0.0
  %494 = vmatmul.mubr.f32.gmra.mrb[0].mxu0 %v341
  %v495 = vpop.f32.mrb[0].mxu0
  %v496 = vadd.f32 0.0, %v495
  %v497 = vpop.f32.mrb[0].mxu0
  %498 = vdwg.mxu0
  %v499 = vpack.c.bf16 %v496, %v491
  %s500 = scalar_lea.vmem %s3, 64
  %v501 = vld [vmem:[%s500] sm:$0xff]
  %v502 = vld [vmem:[%s500 + $0x8] sm:$0xff]
  %v503 = vld [vmem:[%s500 + $0x10] sm:$0xff]
  %v504 = vld [vmem:[%s500 + $0x18] sm:$0xff]
  %505 = vmatprep.subr.mxu0 0.0
  %506 = vmatpush1.msra.mxu0 %v501
  %507 = vmatprep.subr.mxu0 0.0
  %508 = vmatpush1.msra.mxu0 %v502
  %509 = vmatprep.subr.mxu0 0.0
  %510 = vmatpush1.msra.mxu0 %v503
  %511 = vmatprep.subr.mxu0 0.0
  %512 = vmatpush1.msra.mxu0 %v504
  %513 = vmatprep.subr.mxu0 0.0
  %514 = vmatpush1.msra.mxu0 0.0
  %515 = vmatprep.subr.mxu0 0.0
  %516 = vmatpush1.msra.mxu0 0.0
  %517 = vmatprep.subr.mxu0 0.0
  %518 = vmatpush1.msra.mxu0 0.0
  %519 = vmatprep.subr.mxu0 0.0
  %520 = vmatpush1.msra.mxu0 0.0
  %521 = vmatprep.subr.mxu0 0.0
  %522 = vmatpush1.msra.mxu0 0.0
  %523 = vmatprep.subr.mxu0 0.0
  %524 = vmatpush1.msra.mxu0 0.0
  %525 = vmatprep.subr.mxu0 0.0
  %526 = vmatpush1.msra.mxu0 0.0
  %527 = vmatprep.subr.mxu0 0.0
  %528 = vmatpush1.msra.mxu0 0.0
  %529 = vmatprep.subr.mxu0 0.0
  %530 = vmatpush1.msra.mxu0 0.0
  %531 = vmatprep.subr.mxu0 0.0
  %532 = vmatpush1.msra.mxu0 0.0
  %533 = vmatprep.subr.mxu0 0.0
  %534 = vmatpush1.msra.mxu0 0.0
  %535 = vmatprep.subr.mxu0 0.0
  %536 = vmatpush1.msra.mxu0 0.0
  %537 = vmatprep.subr.mxu0 0.0
  %538 = vmatpush1.msra.mxu0 0.0
  %539 = vmatprep.subr.mxu0 0.0
  %540 = vmatpush1.msra.mxu0 0.0
  %541 = vmatprep.subr.mxu0 0.0
  %542 = vmatpush1.msra.mxu0 0.0
  %543 = vmatprep.subr.mxu0 0.0
  %544 = vmatpush1.msra.mxu0 0.0
  %545 = vmatprep.subr.mxu0 0.0
  %546 = vmatpush1.msra.mxu0 0.0
  %547 = vmatprep.subr.mxu0 0.0
  %548 = vmatpush1.msra.mxu0 0.0
  %549 = vmatprep.subr.mxu0 0.0
  %550 = vmatpush1.msra.mxu0 0.0
  %551 = vmatprep.subr.mxu0 0.0
  %552 = vmatpush1.msra.mxu0 0.0
  %553 = vmatprep.subr.mxu0 0.0
  %554 = vmatpush1.msra.mxu0 0.0
  %555 = vmatprep.subr.mxu0 0.0
  %556 = vmatpush1.msra.mxu0 0.0
  %557 = vmatprep.subr.mxu0 0.0
  %558 = vmatpush1.msra.mxu0 0.0
  %559 = vmatprep.subr.mxu0 0.0
  %560 = vmatpush1.msra.mxu0 0.0
  %561 = vmatprep.subr.mxu0 0.0
  %562 = vmatpush1.msra.mxu0 0.0
  %563 = vmatprep.subr.mxu0 0.0
  %564 = vmatpush1.msra.mxu0 0.0
  %565 = vmatprep.subr.mxu0 0.0
  %566 = vmatpush1.msra.mxu0 0.0
  %567 = vmatprep.subr.mxu0 0.0
  %568 = vmatpush1.msra.mxu0 0.0
  %569 = vmatprep.mubr.f32.mxu0 0.0
  %570 = vmatmul.mubr.f32.gmra.mrb[0].mxu0 %v338
  %v571 = vpop.f32.mrb[0].mxu0
  %v572 = vadd.f32 0.0, %v571
  %v573 = vpop.f32.mrb[0].mxu0
  %574 = vmatprep.mubr.f32.mxu0 0.0
  %575 = vmatmul.mubr.f32.gmra.mrb[0].mxu0 %v341
  %v576 = vpop.f32.mrb[0].mxu0
  %v577 = vadd.f32 0.0, %v576
  %v578 = vpop.f32.mrb[0].mxu0
  %579 = vdwg.mxu0
  %v580 = vpack.c.bf16 %v577, %v572
  %s581 = scalar_lea.vmem %s3, 96
  %v582 = vld [vmem:[%s581] sm:$0xff]
  %v583 = vld [vmem:[%s581 + $0x8] sm:$0xff]
  %v584 = vld [vmem:[%s581 + $0x10] sm:$0xff]
  %v585 = vld [vmem:[%s581 + $0x18] sm:$0xff]
  %586 = vmatprep.subr.mxu0 0.0
  %587 = vmatpush1.msra.mxu0 %v582
  %588 = vmatprep.subr.mxu0 0.0
  %589 = vmatpush1.msra.mxu0 %v583
  %590 = vmatprep.subr.mxu0 0.0
  %591 = vmatpush1.msra.mxu0 %v584
  %592 = vmatprep.subr.mxu0 0.0
  %593 = vmatpush1.msra.mxu0 %v585
  %594 = vmatprep.subr.mxu0 0.0
  %595 = vmatpush1.msra.mxu0 0.0
  %596 = vmatprep.subr.mxu0 0.0
  %597 = vmatpush1.msra.mxu0 0.0
  %598 = vmatprep.subr.mxu0 0.0
  %599 = vmatpush1.msra.mxu0 0.0
  %600 = vmatprep.subr.mxu0 0.0
  %601 = vmatpush1.msra.mxu0 0.0
  %602 = vmatprep.subr.mxu0 0.0
  %603 = vmatpush1.msra.mxu0 0.0
  %604 = vmatprep.subr.mxu0 0.0
  %605 = vmatpush1.msra.mxu0 0.0
  %606 = vmatprep.subr.mxu0 0.0
  %607 = vmatpush1.msra.mxu0 0.0
  %608 = vmatprep.subr.mxu0 0.0
  %609 = vmatpush1.msra.mxu0 0.0
  %610 = vmatprep.subr.mxu0 0.0
  %611 = vmatpush1.msra.mxu0 0.0
  %612 = vmatprep.subr.mxu0 0.0
  %613 = vmatpush1.msra.mxu0 0.0
  %614 = vmatprep.subr.mxu0 0.0
  %615 = vmatpush1.msra.mxu0 0.0
  %616 = vmatprep.subr.mxu0 0.0
  %617 = vmatpush1.msra.mxu0 0.0
  %618 = vmatprep.subr.mxu0 0.0
  %619 = vmatpush1.msra.mxu0 0.0
  %620 = vmatprep.subr.mxu0 0.0
  %621 = vmatpush1.msra.mxu0 0.0
  %622 = vmatprep.subr.mxu0 0.0
  %623 = vmatpush1.msra.mxu0 0.0
  %624 = vmatprep.subr.mxu0 0.0
  %625 = vmatpush1.msra.mxu0 0.0
  %626 = vmatprep.subr.mxu0 0.0
  %627 = vmatpush1.msra.mxu0 0.0
  %628 = vmatprep.subr.mxu0 0.0
  %629 = vmatpush1.msra.mxu0 0.0
  %630 = vmatprep.subr.mxu0 0.0
  %631 = vmatpush1.msra.mxu0 0.0
  %632 = vmatprep.subr.mxu0 0.0
  %633 = vmatpush1.msra.mxu0 0.0
  %634 = vmatprep.subr.mxu0 0.0
  %635 = vmatpush1.msra.mxu0 0.0
  %636 = vmatprep.subr.mxu0 0.0
  %637 = vmatpush1.msra.mxu0 0.0
  %638 = vmatprep.subr.mxu0 0.0
  %639 = vmatpush1.msra.mxu0 0.0
  %640 = vmatprep.subr.mxu0 0.0
  %641 = vmatpush1.msra.mxu0 0.0
  %642 = vmatprep.subr.mxu0 0.0
  %643 = vmatpush1.msra.mxu0 0.0
  %644 = vmatprep.subr.mxu0 0.0
  %645 = vmatpush1.msra.mxu0 0.0
  %646 = vmatprep.subr.mxu0 0.0
  %647 = vmatpush1.msra.mxu0 0.0
  %648 = vmatprep.subr.mxu0 0.0
  %649 = vmatpush1.msra.mxu0 0.0
  %650 = vmatprep.mubr.f32.mxu0 0.0
  %651 = vmatmul.mubr.f32.gmra.mrb[0].mxu0 %v338
  %v652 = vpop.f32.mrb[0].mxu0
  %v653 = vadd.f32 0.0, %v652
  %v654 = vpop.f32.mrb[0].mxu0
  %655 = vmatprep.mubr.f32.mxu0 0.0
  %656 = vmatmul.mubr.f32.gmra.mrb[0].mxu0 %v341
  %v657 = vpop.f32.mrb[0].mxu0
  %v658 = vadd.f32 0.0, %v657
  %v659 = vpop.f32.mrb[0].mxu0
  %660 = vdwg.mxu0
  %v661 = vpack.c.bf16 %v658, %v653
  %s662 = scalar_lea.vmem %s3, 128
  %v663 = vld [vmem:[%s662] sm:$0xff]
  %v664 = vld [vmem:[%s662 + $0x8] sm:$0xff]
  %v665 = vld [vmem:[%s662 + $0x10] sm:$0xff]
  %v666 = vld [vmem:[%s662 + $0x18] sm:$0xff]
  %667 = vmatprep.subr.mxu0 0.0
  %668 = vmatpush1.msra.mxu0 %v663
  %669 = vmatprep.subr.mxu0 0.0
  %670 = vmatpush1.msra.mxu0 %v664
  %671 = vmatprep.subr.mxu0 0.0
  %672 = vmatpush1.msra.mxu0 %v665
  %673 = vmatprep.subr.mxu0 0.0
  %674 = vmatpush1.msra.mxu0 %v666
  %675 = vmatprep.subr.mxu0 0.0
  %676 = vmatpush1.msra.mxu0 0.0
  %677 = vmatprep.subr.mxu0 0.0
  %678 = vmatpush1.msra.mxu0 0.0
  %679 = vmatprep.subr.mxu0 0.0
  %680 = vmatpush1.msra.mxu0 0.0
  %681 = vmatprep.subr.mxu0 0.0
  %682 = vmatpush1.msra.mxu0 0.0
  %683 = vmatprep.subr.mxu0 0.0
  %684 = vmatpush1.msra.mxu0 0.0
  %685 = vmatprep.subr.mxu0 0.0
  %686 = vmatpush1.msra.mxu0 0.0
  %687 = vmatprep.subr.mxu0 0.0
  %688 = vmatpush1.msra.mxu0 0.0
  %689 = vmatprep.subr.mxu0 0.0
  %690 = vmatpush1.msra.mxu0 0.0
  %691 = vmatprep.subr.mxu0 0.0
  %692 = vmatpush1.msra.mxu0 0.0
  %693 = vmatprep.subr.mxu0 0.0
  %694 = vmatpush1.msra.mxu0 0.0
  %695 = vmatprep.subr.mxu0 0.0
  %696 = vmatpush1.msra.mxu0 0.0
  %697 = vmatprep.subr.mxu0 0.0
  %698 = vmatpush1.msra.mxu0 0.0
  %699 = vmatprep.subr.mxu0 0.0
  %700 = vmatpush1.msra.mxu0 0.0
  %701 = vmatprep.subr.mxu0 0.0
  %702 = vmatpush1.msra.mxu0 0.0
  %703 = vmatprep.subr.mxu0 0.0
  %704 = vmatpush1.msra.mxu0 0.0
  %705 = vmatprep.subr.mxu0 0.0
  %706 = vmatpush1.msra.mxu0 0.0
  %707 = vmatprep.subr.mxu0 0.0
  %708 = vmatpush1.msra.mxu0 0.0
  %709 = vmatprep.subr.mxu0 0.0
  %710 = vmatpush1.msra.mxu0 0.0
  %711 = vmatprep.subr.mxu0 0.0
  %712 = vmatpush1.msra.mxu0 0.0
  %713 = vmatprep.subr.mxu0 0.0
  %714 = vmatpush1.msra.mxu0 0.0
  %715 = vmatprep.subr.mxu0 0.0
  %716 = vmatpush1.msra.mxu0 0.0
  %717 = vmatprep.subr.mxu0 0.0
  %718 = vmatpush1.msra.mxu0 0.0
  %719 = vmatprep.subr.mxu0 0.0
  %720 = vmatpush1.msra.mxu0 0.0
  %721 = vmatprep.subr.mxu0 0.0
  %722 = vmatpush1.msra.mxu0 0.0
  %723 = vmatprep.subr.mxu0 0.0
  %724 = vmatpush1.msra.mxu0 0.0
  %725 = vmatprep.subr.mxu0 0.0
  %726 = vmatpush1.msra.mxu0 0.0
  %727 = vmatprep.subr.mxu0 0.0
  %728 = vmatpush1.msra.mxu0 0.0
  %729 = vmatprep.subr.mxu0 0.0
  %730 = vmatpush1.msra.mxu0 0.0
  %731 = vmatprep.mubr.f32.mxu0 0.0
  %732 = vmatmul.mubr.f32.gmra.mrb[0].mxu0 %v338
  %v733 = vpop.f32.mrb[0].mxu0
  %v734 = vadd.f32 0.0, %v733
  %v735 = vpop.f32.mrb[0].mxu0
  %736 = vmatprep.mubr.f32.mxu0 0.0
  %737 = vmatmul.mubr.f32.gmra.mrb[0].mxu0 %v341
  %v738 = vpop.f32.mrb[0].mxu0
  %v739 = vadd.f32 0.0, %v738
  %v740 = vpop.f32.mrb[0].mxu0
  %741 = vdwg.mxu0
  %v742 = vpack.c.bf16 %v739, %v734
  %s743 = scalar_lea.vmem %s3, 160
  %v744 = vld [vmem:[%s743] sm:$0xff]
  %v745 = vld [vmem:[%s743 + $0x8] sm:$0xff]
  %v746 = vld [vmem:[%s743 + $0x10] sm:$0xff]
  %v747 = vld [vmem:[%s743 + $0x18] sm:$0xff]
  %748 = vmatprep.subr.mxu0 0.0
  %749 = vmatpush1.msra.mxu0 %v744
  %750 = vmatprep.subr.mxu0 0.0
  %751 = vmatpush1.msra.mxu0 %v745
  %752 = vmatprep.subr.mxu0 0.0
  %753 = vmatpush1.msra.mxu0 %v746
  %754 = vmatprep.subr.mxu0 0.0
  %755 = vmatpush1.msra.mxu0 %v747
  %756 = vmatprep.subr.mxu0 0.0
  %757 = vmatpush1.msra.mxu0 0.0
  %758 = vmatprep.subr.mxu0 0.0
  %759 = vmatpush1.msra.mxu0 0.0
  %760 = vmatprep.subr.mxu0 0.0
  %761 = vmatpush1.msra.mxu0 0.0
  %762 = vmatprep.subr.mxu0 0.0
  %763 = vmatpush1.msra.mxu0 0.0
  %764 = vmatprep.subr.mxu0 0.0
  %765 = vmatpush1.msra.mxu0 0.0
  %766 = vmatprep.subr.mxu0 0.0
  %767 = vmatpush1.msra.mxu0 0.0
  %768 = vmatprep.subr.mxu0 0.0
  %769 = vmatpush1.msra.mxu0 0.0
  %770 = vmatprep.subr.mxu0 0.0
  %771 = vmatpush1.msra.mxu0 0.0
  %772 = vmatprep.subr.mxu0 0.0
  %773 = vmatpush1.msra.mxu0 0.0
  %774 = vmatprep.subr.mxu0 0.0
  %775 = vmatpush1.msra.mxu0 0.0
  %776 = vmatprep.subr.mxu0 0.0
  %777 = vmatpush1.msra.mxu0 0.0
  %778 = vmatprep.subr.mxu0 0.0
  %779 = vmatpush1.msra.mxu0 0.0
  %780 = vmatprep.subr.mxu0 0.0
  %781 = vmatpush1.msra.mxu0 0.0
  %782 = vmatprep.subr.mxu0 0.0
  %783 = vmatpush1.msra.mxu0 0.0
  %784 = vmatprep.subr.mxu0 0.0
  %785 = vmatpush1.msra.mxu0 0.0
  %786 = vmatprep.subr.mxu0 0.0
  %787 = vmatpush1.msra.mxu0 0.0
  %788 = vmatprep.subr.mxu0 0.0
  %789 = vmatpush1.msra.mxu0 0.0
  %790 = vmatprep.subr.mxu0 0.0
  %791 = vmatpush1.msra.mxu0 0.0
  %792 = vmatprep.subr.mxu0 0.0
  %793 = vmatpush1.msra.mxu0 0.0
  %794 = vmatprep.subr.mxu0 0.0
  %795 = vmatpush1.msra.mxu0 0.0
  %796 = vmatprep.subr.mxu0 0.0
  %797 = vmatpush1.msra.mxu0 0.0
  %798 = vmatprep.subr.mxu0 0.0
  %799 = vmatpush1.msra.mxu0 0.0
  %800 = vmatprep.subr.mxu0 0.0
  %801 = vmatpush1.msra.mxu0 0.0
  %802 = vmatprep.subr.mxu0 0.0
  %803 = vmatpush1.msra.mxu0 0.0
  %804 = vmatprep.subr.mxu0 0.0
  %805 = vmatpush1.msra.mxu0 0.0
  %806 = vmatprep.subr.mxu0 0.0
  %807 = vmatpush1.msra.mxu0 0.0
  %808 = vmatprep.subr.mxu0 0.0
  %809 = vmatpush1.msra.mxu0 0.0
  %810 = vmatprep.subr.mxu0 0.0
  %811 = vmatpush1.msra.mxu0 0.0
  %812 = vmatprep.mubr.f32.mxu0 0.0
  %813 = vmatmul.mubr.f32.gmra.mrb[0].mxu0 %v338
  %v814 = vpop.f32.mrb[0].mxu0
  %v815 = vadd.f32 0.0, %v814
  %v816 = vpop.f32.mrb[0].mxu0
  %817 = vmatprep.mubr.f32.mxu0 0.0
  %818 = vmatmul.mubr.f32.gmra.mrb[0].mxu0 %v341
  %v819 = vpop.f32.mrb[0].mxu0
  %v820 = vadd.f32 0.0, %v819
  %v821 = vpop.f32.mrb[0].mxu0
  %822 = vdwg.mxu0
  %v823 = vpack.c.bf16 %v820, %v815
  %s824 = scalar_lea.vmem %s3, 192
  %v825 = vld [vmem:[%s824] sm:$0xff]
  %v826 = vld [vmem:[%s824 + $0x8] sm:$0xff]
  %v827 = vld [vmem:[%s824 + $0x10] sm:$0xff]
  %v828 = vld [vmem:[%s824 + $0x18] sm:$0xff]
  %829 = vmatprep.subr.mxu0 0.0
  %830 = vmatpush1.msra.mxu0 %v825
  %831 = vmatprep.subr.mxu0 0.0
  %832 = vmatpush1.msra.mxu0 %v826
  %833 = vmatprep.subr.mxu0 0.0
  %834 = vmatpush1.msra.mxu0 %v827
  %835 = vmatprep.subr.mxu0 0.0
  %836 = vmatpush1.msra.mxu0 %v828
  %837 = vmatprep.subr.mxu0 0.0
  %838 = vmatpush1.msra.mxu0 0.0
  %839 = vmatprep.subr.mxu0 0.0
  %840 = vmatpush1.msra.mxu0 0.0
  %841 = vmatprep.subr.mxu0 0.0
  %842 = vmatpush1.msra.mxu0 0.0
  %843 = vmatprep.subr.mxu0 0.0
  %844 = vmatpush1.msra.mxu0 0.0
  %845 = vmatprep.subr.mxu0 0.0
  %846 = vmatpush1.msra.mxu0 0.0
  %847 = vmatprep.subr.mxu0 0.0
  %848 = vmatpush1.msra.mxu0 0.0
  %849 = vmatprep.subr.mxu0 0.0
  %850 = vmatpush1.msra.mxu0 0.0
  %851 = vmatprep.subr.mxu0 0.0
  %852 = vmatpush1.msra.mxu0 0.0
  %853 = vmatprep.subr.mxu0 0.0
  %854 = vmatpush1.msra.mxu0 0.0
  %855 = vmatprep.subr.mxu0 0.0
  %856 = vmatpush1.msra.mxu0 0.0
  %857 = vmatprep.subr.mxu0 0.0
  %858 = vmatpush1.msra.mxu0 0.0
  %859 = vmatprep.subr.mxu0 0.0
  %860 = vmatpush1.msra.mxu0 0.0
  %861 = vmatprep.subr.mxu0 0.0
  %862 = vmatpush1.msra.mxu0 0.0
  %863 = vmatprep.subr.mxu0 0.0
  %864 = vmatpush1.msra.mxu0 0.0
  %865 = vmatprep.subr.mxu0 0.0
  %866 = vmatpush1.msra.mxu0 0.0
  %867 = vmatprep.subr.mxu0 0.0
  %868 = vmatpush1.msra.mxu0 0.0
  %869 = vmatprep.subr.mxu0 0.0
  %870 = vmatpush1.msra.mxu0 0.0
  %871 = vmatprep.subr.mxu0 0.0
  %872 = vmatpush1.msra.mxu0 0.0
  %873 = vmatprep.subr.mxu0 0.0
  %874 = vmatpush1.msra.mxu0 0.0
  %875 = vmatprep.subr.mxu0 0.0
  %876 = vmatpush1.msra.mxu0 0.0
  %877 = vmatprep.subr.mxu0 0.0
  %878 = vmatpush1.msra.mxu0 0.0
  %879 = vmatprep.subr.mxu0 0.0
  %880 = vmatpush1.msra.mxu0 0.0
  %881 = vmatprep.subr.mxu0 0.0
  %882 = vmatpush1.msra.mxu0 0.0
  %883 = vmatprep.subr.mxu0 0.0
  %884 = vmatpush1.msra.mxu0 0.0
  %885 = vmatprep.subr.mxu0 0.0
  %886 = vmatpush1.msra.mxu0 0.0
  %887 = vmatprep.subr.mxu0 0.0
  %888 = vmatpush1.msra.mxu0 0.0
  %889 = vmatprep.subr.mxu0 0.0
  %890 = vmatpush1.msra.mxu0 0.0
  %891 = vmatprep.subr.mxu0 0.0
  %892 = vmatpush1.msra.mxu0 0.0
  %893 = vmatprep.mubr.f32.mxu0 0.0
  %894 = vmatmul.mubr.f32.gmra.mrb[0].mxu0 %v338
  %v895 = vpop.f32.mrb[0].mxu0
  %v896 = vadd.f32 0.0, %v895
  %v897 = vpop.f32.mrb[0].mxu0
  %898 = vmatprep.mubr.f32.mxu0 0.0
  %899 = vmatmul.mubr.f32.gmra.mrb[0].mxu0 %v341
  %v900 = vpop.f32.mrb[0].mxu0
  %v901 = vadd.f32 0.0, %v900
  %v902 = vpop.f32.mrb[0].mxu0
  %903 = vdwg.mxu0
  %v904 = vpack.c.bf16 %v901, %v896
  %s905 = scalar_lea.vmem %s3, 224
  %v906 = vld [vmem:[%s905] sm:$0xff]
  %v907 = vld [vmem:[%s905 + $0x8] sm:$0xff]
  %v908 = vld [vmem:[%s905 + $0x10] sm:$0xff]
  %v909 = vld [vmem:[%s905 + $0x18] sm:$0xff]
  %910 = vmatprep.subr.mxu0 0.0
  %911 = vmatpush1.msra.mxu0 %v906
  %912 = vmatprep.subr.mxu0 0.0
  %913 = vmatpush1.msra.mxu0 %v907
  %914 = vmatprep.subr.mxu0 0.0
  %915 = vmatpush1.msra.mxu0 %v908
  %916 = vmatprep.subr.mxu0 0.0
  %917 = vmatpush1.msra.mxu0 %v909
  %918 = vmatprep.subr.mxu0 0.0
  %919 = vmatpush1.msra.mxu0 0.0
  %920 = vmatprep.subr.mxu0 0.0
  %921 = vmatpush1.msra.mxu0 0.0
  %922 = vmatprep.subr.mxu0 0.0
  %923 = vmatpush1.msra.mxu0 0.0
  %924 = vmatprep.subr.mxu0 0.0
  %925 = vmatpush1.msra.mxu0 0.0
  %926 = vmatprep.subr.mxu0 0.0
  %927 = vmatpush1.msra.mxu0 0.0
  %928 = vmatprep.subr.mxu0 0.0
  %929 = vmatpush1.msra.mxu0 0.0
  %930 = vmatprep.subr.mxu0 0.0
  %931 = vmatpush1.msra.mxu0 0.0
  %932 = vmatprep.subr.mxu0 0.0
  %933 = vmatpush1.msra.mxu0 0.0
  %934 = vmatprep.subr.mxu0 0.0
  %935 = vmatpush1.msra.mxu0 0.0
  %936 = vmatprep.subr.mxu0 0.0
  %937 = vmatpush1.msra.mxu0 0.0
  %938 = vmatprep.subr.mxu0 0.0
  %939 = vmatpush1.msra.mxu0 0.0
  %940 = vmatprep.subr.mxu0 0.0
  %941 = vmatpush1.msra.mxu0 0.0
  %942 = vmatprep.subr.mxu0 0.0
  %943 = vmatpush1.msra.mxu0 0.0
  %944 = vmatprep.subr.mxu0 0.0
  %945 = vmatpush1.msra.mxu0 0.0
  %946 = vmatprep.subr.mxu0 0.0
  %947 = vmatpush1.msra.mxu0 0.0
  %948 = vmatprep.subr.mxu0 0.0
  %949 = vmatpush1.msra.mxu0 0.0
  %950 = vmatprep.subr.mxu0 0.0
  %951 = vmatpush1.msra.mxu0 0.0
  %952 = vmatprep.subr.mxu0 0.0
  %953 = vmatpush1.msra.mxu0 0.0
  %954 = vmatprep.subr.mxu0 0.0
  %955 = vmatpush1.msra.mxu0 0.0
  %956 = vmatprep.subr.mxu0 0.0
  %957 = vmatpush1.msra.mxu0 0.0
  %958 = vmatprep.subr.mxu0 0.0
  %959 = vmatpush1.msra.mxu0 0.0
  %960 = vmatprep.subr.mxu0 0.0
  %961 = vmatpush1.msra.mxu0 0.0
  %962 = vmatprep.subr.mxu0 0.0
  %963 = vmatpush1.msra.mxu0 0.0
  %964 = vmatprep.subr.mxu0 0.0
  %965 = vmatpush1.msra.mxu0 0.0
  %966 = vmatprep.subr.mxu0 0.0
  %967 = vmatpush1.msra.mxu0 0.0
  %968 = vmatprep.subr.mxu0 0.0
  %969 = vmatpush1.msra.mxu0 0.0
  %970 = vmatprep.subr.mxu0 0.0
  %971 = vmatpush1.msra.mxu0 0.0
  %972 = vmatprep.subr.mxu0 0.0
  %973 = vmatpush1.msra.mxu0 0.0
  %974 = vmatprep.mubr.f32.mxu0 0.0
  %975 = vmatmul.mubr.f32.gmra.mrb[0].mxu0 %v338
  %v976 = vpop.f32.mrb[0].mxu0
  %v977 = vadd.f32 0.0, %v976
  %v978 = vpop.f32.mrb[0].mxu0
  %979 = vmatprep.mubr.f32.mxu0 0.0
  %980 = vmatmul.mubr.f32.gmra.mrb[0].mxu0 %v341
  %v981 = vpop.f32.mrb[0].mxu0
  %v982 = vadd.f32 0.0, %v981
  %v983 = vpop.f32.mrb[0].mxu0
  %984 = vdwg.mxu0
  %v985 = vpack.c.bf16 %v982, %v977
  %s986 = scalar_lea.vmem %s3, 256
  %v987 = vld [vmem:[%s986] sm:$0xff]
  %v988 = vld [vmem:[%s986 + $0x8] sm:$0xff]
  %v989 = vld [vmem:[%s986 + $0x10] sm:$0xff]
  %v990 = vld [vmem:[%s986 + $0x18] sm:$0xff]
  %991 = vmatprep.subr.mxu0 0.0
  %992 = vmatpush1.msra.mxu0 %v987
  %993 = vmatprep.subr.mxu0 0.0
  %994 = vmatpush1.msra.mxu0 %v988
  %995 = vmatprep.subr.mxu0 0.0
  %996 = vmatpush1.msra.mxu0 %v989
  %997 = vmatprep.subr.mxu0 0.0
  %998 = vmatpush1.msra.mxu0 %v990
  %999 = vmatprep.subr.mxu0 0.0
  %1000 = vmatpush1.msra.mxu0 0.0
  %1001 = vmatprep.subr.mxu0 0.0
  %1002 = vmatpush1.msra.mxu0 0.0
  %1003 = vmatprep.subr.mxu0 0.0
  %1004 = vmatpush1.msra.mxu0 0.0
  %1005 = vmatprep.subr.mxu0 0.0
  %1006 = vmatpush1.msra.mxu0 0.0
  %1007 = vmatprep.subr.mxu0 0.0
  %1008 = vmatpush1.msra.mxu0 0.0
  %1009 = vmatprep.subr.mxu0 0.0
  %1010 = vmatpush1.msra.mxu0 0.0
  %1011 = vmatprep.subr.mxu0 0.0
  %1012 = vmatpush1.msra.mxu0 0.0
  %1013 = vmatprep.subr.mxu0 0.0
  %1014 = vmatpush1.msra.mxu0 0.0
  %1015 = vmatprep.subr.mxu0 0.0
  %1016 = vmatpush1.msra.mxu0 0.0
  %1017 = vmatprep.subr.mxu0 0.0
  %1018 = vmatpush1.msra.mxu0 0.0
  %1019 = vmatprep.subr.mxu0 0.0
  %1020 = vmatpush1.msra.mxu0 0.0
  %1021 = vmatprep.subr.mxu0 0.0
  %1022 = vmatpush1.msra.mxu0 0.0
  %1023 = vmatprep.subr.mxu0 0.0
  %1024 = vmatpush1.msra.mxu0 0.0
  %1025 = vmatprep.subr.mxu0 0.0
  %1026 = vmatpush1.msra.mxu0 0.0
  %1027 = vmatprep.subr.mxu0 0.0
  %1028 = vmatpush1.msra.mxu0 0.0
  %1029 = vmatprep.subr.mxu0 0.0
  %1030 = vmatpush1.msra.mxu0 0.0
  %1031 = vmatprep.subr.mxu0 0.0
  %1032 = vmatpush1.msra.mxu0 0.0
  %1033 = vmatprep.subr.mxu0 0.0
  %1034 = vmatpush1.msra.mxu0 0.0
  %1035 = vmatprep.subr.mxu0 0.0
  %1036 = vmatpush1.msra.mxu0 0.0
  %1037 = vmatprep.subr.mxu0 0.0
  %1038 = vmatpush1.msra.mxu0 0.0
  %1039 = vmatprep.subr.mxu0 0.0
  %1040 = vmatpush1.msra.mxu0 0.0
  %1041 = vmatprep.subr.mxu0 0.0
  %1042 = vmatpush1.msra.mxu0 0.0
  %1043 = vmatprep.subr.mxu0 0.0
  %1044 = vmatpush1.msra.mxu0 0.0
  %1045 = vmatprep.subr.mxu0 0.0
  %1046 = vmatpush1.msra.mxu0 0.0
  %1047 = vmatprep.subr.mxu0 0.0
  %1048 = vmatpush1.msra.mxu0 0.0
  %1049 = vmatprep.subr.mxu0 0.0
  %1050 = vmatpush1.msra.mxu0 0.0
  %1051 = vmatprep.subr.mxu0 0.0
  %1052 = vmatpush1.msra.mxu0 0.0
  %1053 = vmatprep.subr.mxu0 0.0
  %1054 = vmatpush1.msra.mxu0 0.0
  %1055 = vmatprep.mubr.f32.mxu0 0.0
  %1056 = vmatmul.mubr.f32.gmra.mrb[0].mxu0 %v338
  %v1057 = vpop.f32.mrb[0].mxu0
  %v1058 = vadd.f32 0.0, %v1057
  %v1059 = vpop.f32.mrb[0].mxu0
  %1060 = vmatprep.mubr.f32.mxu0 0.0
  %1061 = vmatmul.mubr.f32.gmra.mrb[0].mxu0 %v341
  %v1062 = vpop.f32.mrb[0].mxu0
  %v1063 = vadd.f32 0.0, %v1062
  %v1064 = vpop.f32.mrb[0].mxu0
  %1065 = vdwg.mxu0
  %v1066 = vpack.c.bf16 %v1063, %v1058
  %v1068 = vunpack.c.l.b16 %v163
  %v1069 = vunpack.c.h.b16 %v163
  %v1070 = vpack.c.b16 %v1068, %v1068
  %v1071 = vpack.c.b16 %v1069, %v1069
  %v1074 = vsel %vm230, %v1071, 0
  %1076 = vmatprep.subr.bf16.mxu0 0
  %1077 = vmatpush1.bf16.msra.mxu0 %v418
  %1078 = vmatprep.subr.bf16.mxu0 0
  %1079 = vmatpush1.bf16.msra.mxu0 %v499
  %1080 = vmatprep.subr.bf16.mxu0 0
  %1081 = vmatpush1.bf16.msra.mxu0 %v580
  %1082 = vmatprep.subr.bf16.mxu0 0
  %1083 = vmatpush1.bf16.msra.mxu0 %v661
  %1084 = vmatprep.subr.bf16.mxu0 0
  %1085 = vmatpush1.bf16.msra.mxu0 %v742
  %1086 = vmatprep.subr.bf16.mxu0 0
  %1087 = vmatpush1.bf16.msra.mxu0 %v823
  %1088 = vmatprep.subr.bf16.mxu0 0
  %1089 = vmatpush1.bf16.msra.mxu0 %v904
  %1090 = vmatprep.subr.bf16.mxu0 0
  %1091 = vmatpush1.bf16.msra.mxu0 %v985
  %1092 = vmatprep.subr.bf16.mxu0 0
  %1093 = vmatpush1.bf16.msra.mxu0 %v1066
  %1094 = vmatprep.subr.bf16.mxu0 0
  %1095 = vmatpush1.bf16.msra.mxu0 0
  %1096 = vmatprep.subr.bf16.mxu0 0
  %1097 = vmatpush1.bf16.msra.mxu0 0
  %1098 = vmatprep.subr.bf16.mxu0 0
  %1099 = vmatpush1.bf16.msra.mxu0 0
  %1100 = vmatprep.subr.bf16.mxu0 0
  %1101 = vmatpush1.bf16.msra.mxu0 0
  %1102 = vmatprep.subr.bf16.mxu0 0
  %1103 = vmatpush1.bf16.msra.mxu0 0
  %1104 = vmatprep.subr.bf16.mxu0 0
  %1105 = vmatpush1.bf16.msra.mxu0 0
  %1106 = vmatprep.subr.bf16.mxu0 0
  %1107 = vmatpush1.bf16.msra.mxu0 0
  %1108 = vmatprep.mubr.bf16.mxu0 %v1074
  %1109 = vmatmul.mubr.bf16.gmra.mrb[0].mxu0 %v1070
  %v1110 = vpop.f32.mrb[0].mxu0
  %v1111 = vadd.f32 0.0, %v1110
  %v1112 = vpop.f32.mrb[0].mxu0
  %v1113 = vpop.f32.mrb[0].mxu0
  %v1114 = vpop.f32.mrb[0].mxu0
  %1115 = vdwg.mxu0
  %v1116 = vld [vmem:[%s17] sm:$0xff]
  %v1117 = vld [vmem:[%s17 + $0x8] sm:$0xff]
  %v1118 = vld [vmem:[%s17 + $0x10] sm:$0xff]
  %v1119 = vld [vmem:[%s19] sm:$0xff]
  %v1120 = vld [vmem:[%s19 + $0x8] sm:$0xff]
  %v1121 = vld [vmem:[%s19 + $0x10] sm:$0xff]
  %v1122 = vld [vmem:[%s21] sm:$0xf]
  %v1123 = vld [vmem:[%s21 + $0x4] sm:$0xf]
  %v1124 = vld [vmem:[%s23] sm:$0xff]
  %v1125 = vld [vmem:[%s23 + $0x8] sm:$0xff]
  %v1126 = vld [vmem:[%s25] sm:$0xff]
  %v1127 = vld [vmem:[%s25 + $0x8] sm:$0xff]
  %v1128 = vld [vmem:[%s27] sm:$0xff]
  %v1129 = vsel %vm164, %v1111, 0.0
  %1130 = vadd.xlane.f32.xlu0 %v1129
  %v1131 = vpop.xlane.xlu0 %1130
  %v1132 = vmul.f32 %v1131, %v171
  %v1133 = vmul.f32 %v1111, %v1111
  %v1134 = vsel %vm164, %v1133, 0.0
  %1135 = vadd.xlane.f32.xlu0 %v1134
  %v1136 = vpop.xlane.xlu0 %1135
  %v1137 = vmul.f32 %v1136, %v171
  %v1138 = vmul.f32 %v1132, %v1132
  %v1139 = vsub.f32 %v1137, %v1138
  %v1140 = vadd.f32 %v1139, 1e-05
  %v1141 = vrsqrt.pop %v1140
  %v1142 = vmul.f32 %v1116, %v190
  %v1143 = vmul.f32 %v1117, %v191
  %v1144 = vmul.f32 %v1118, %v1141
  %1146 = vset.pattern.permute.xlu0 0
  %1147 = vperm.xlu0 %1146, %v1142
  %v1148 = vpop.permute.xlu0 %1147
  %1151 = vset.pattern.permute.xlu0 0
  %1152 = vperm.xlu0 %1151, %v1143
  %v1153 = vpop.permute.xlu0 %1152
  %1156 = vset.pattern.permute.xlu0 0
  %1157 = vperm.xlu0 %1156, %v1144
  %v1158 = vpop.permute.xlu0 %1157
  %v1160 = vmul.f32 %v151, %v1148
  %v1161 = vmul.f32 %v152, %v1153
  %v1162 = vmul.f32 %v1111, %v1158
  %v1163 = vmul.f32 %v172, %v1142
  %v1164 = vmul.f32 %v173, %v1143
  %v1165 = vmul.f32 %v1132, %v1144
  %v1166 = vsub.f32 %v1119, %v1163
  %v1167 = vsub.f32 %v1120, %v1164
  %v1168 = vsub.f32 %v1121, %v1165
  %1170 = vset.pattern.permute.xlu0 0
  %1171 = vperm.xlu0 %1170, %v1166
  %v1172 = vpop.permute.xlu0 %1171
  %1175 = vset.pattern.permute.xlu0 0
  %1176 = vperm.xlu0 %1175, %v1167
  %v1177 = vpop.permute.xlu0 %1176
  %1180 = vset.pattern.permute.xlu0 0
  %1181 = vperm.xlu0 %1180, %v1168
  %v1182 = vpop.permute.xlu0 %1181
  %v1184 = vadd.f32 %v1160, %v1172
  %v1185 = vadd.f32 %v1161, %v1177
  %v1186 = vadd.f32 %v1162, %v1182
  %v1187 = vmax.f32 %v1184, 0.0
  %v1188 = vmax.f32 %v1185, 0.0
  %v1189 = vmax.f32 %v1186, 0.0
  %v1190 = vpack.c.bf16 %v1188, %v1187
  %v1191 = vpack.c.bf16 %v1189, %v1189
  %v1194 = vunpack.c.l.b16 %v1122
  %v1195 = vunpack.c.l.b16 %v1123
  %v1196 = vpack.c.b16 %v1195, %v1194
  %vm1197 = vcmask 195584
  %v1199 = vsel %vm1197, %v1196, 0
  %vm1201 = vcmask 1043456
  %v1203 = vsel %vm1201, %v1191, 0
  %1205 = vmatprep.subr.bf16.mxu0 0
  %1206 = vmatpush1.bf16.msra.mxu0 %v1190
  %1207 = vmatprep.subr.bf16.mxu0 0
  %1208 = vmatpush1.bf16.msra.mxu0 %v1203
  %1209 = vmatprep.subr.bf16.mxu0 0
  %1210 = vmatpush1.bf16.msra.mxu0 0
  %1211 = vmatprep.subr.bf16.mxu0 0
  %1212 = vmatpush1.bf16.msra.mxu0 0
  %1213 = vmatprep.subr.bf16.mxu0 0
  %1214 = vmatpush1.bf16.msra.mxu0 0
  %1215 = vmatprep.subr.bf16.mxu0 0
  %1216 = vmatpush1.bf16.msra.mxu0 0
  %1217 = vmatprep.subr.bf16.mxu0 0
  %1218 = vmatpush1.bf16.msra.mxu0 0
  %1219 = vmatprep.subr.bf16.mxu0 0
  %1220 = vmatpush1.bf16.msra.mxu0 0
  %1221 = vmatprep.subr.bf16.mxu0 0
  %1222 = vmatpush1.bf16.msra.mxu0 0
  %1223 = vmatprep.subr.bf16.mxu0 0
  %1224 = vmatpush1.bf16.msra.mxu0 0
  %1225 = vmatprep.subr.bf16.mxu0 0
  %1226 = vmatpush1.bf16.msra.mxu0 0
  %1227 = vmatprep.subr.bf16.mxu0 0
  %1228 = vmatpush1.bf16.msra.mxu0 0
  %1229 = vmatprep.subr.bf16.mxu0 0
  %1230 = vmatpush1.bf16.msra.mxu0 0
  %1231 = vmatprep.subr.bf16.mxu0 0
  %1232 = vmatpush1.bf16.msra.mxu0 0
  %1233 = vmatprep.subr.bf16.mxu0 0
  %1234 = vmatpush1.bf16.msra.mxu0 0
  %1235 = vmatprep.subr.bf16.mxu0 0
  %1236 = vmatpush1.bf16.msra.mxu0 0
  %1237 = vmatprep.mubr.bf16.mxu0 0
  %1238 = vmatmul.mubr.bf16.gmra.mrb[0].mxu0 %v1199
  %v1239 = vpop.f32.mrb[0].mxu0
  %v1240 = vadd.f32 0.0, %v1239
  %v1241 = vpop.f32.mrb[0].mxu0
  %v1242 = vpop.f32.mrb[0].mxu0
  %v1243 = vadd.f32 0.0, %v1242
  %v1244 = vpop.f32.mrb[0].mxu0
  %1245 = vdwg.mxu0
  %v1246 = vsel %vm164, %v1240, 0.0
  %1247 = vadd.xlane.f32.xlu0 %v1246
  %v1248 = vpop.xlane.xlu0 %1247
  %v1249 = vsel %vm164, %v1243, 0.0
  %1250 = vadd.xlane.f32.xlu0 %v1249
  %v1251 = vpop.xlane.xlu0 %1250
  %v1252 = vmul.f32 %v1248, %v171
  %v1253 = vmul.f32 %v1251, %v171
  %v1254 = vmul.f32 %v1240, %v1240
  %v1255 = vmul.f32 %v1243, %v1243
  %v1256 = vsel %vm164, %v1254, 0.0
  %1257 = vadd.xlane.f32.xlu0 %v1256
  %v1258 = vpop.xlane.xlu0 %1257
  %v1259 = vsel %vm164, %v1255, 0.0
  %1260 = vadd.xlane.f32.xlu0 %v1259
  %v1261 = vpop.xlane.xlu0 %1260
  %v1262 = vmul.f32 %v1258, %v171
  %v1263 = vmul.f32 %v1261, %v171
  %v1264 = vmul.f32 %v1252, %v1252
  %v1265 = vmul.f32 %v1253, %v1253
  %v1266 = vsub.f32 %v1262, %v1264
  %v1267 = vsub.f32 %v1263, %v1265
  %v1268 = vadd.f32 %v1266, 1e-05
  %v1269 = vadd.f32 %v1267, 1e-05
  %v1270 = vrsqrt.pop %v1268
  %v1271 = vrsqrt.pop %v1269
  %v1272 = vmul.f32 %v1124, %v1270
  %v1273 = vmul.f32 %v1125, %v1271
  %1275 = vset.pattern.permute.xlu0 0
  %1276 = vperm.xlu0 %1275, %v1272
  %v1277 = vpop.permute.xlu0 %1276
  %1280 = vset.pattern.permute.xlu0 0
  %1281 = vperm.xlu0 %1280, %v1273
  %v1282 = vpop.permute.xlu0 %1281
  %v1284 = vmul.f32 %v1240, %v1277
  %v1285 = vmul.f32 %v1243, %v1282
  %v1286 = vmul.f32 %v1252, %v1272
  %v1287 = vmul.f32 %v1253, %v1273
  %v1288 = vsub.f32 %v1126, %v1286
  %v1289 = vsub.f32 %v1127, %v1287
  %1291 = vset.pattern.permute.xlu0 0
  %1292 = vperm.xlu0 %1291, %v1288
  %v1293 = vpop.permute.xlu0 %1292
  %1296 = vset.pattern.permute.xlu0 0
  %1297 = vperm.xlu0 %1296, %v1289
  %v1298 = vpop.permute.xlu0 %1297
  %v1300 = vadd.f32 %v1284, %v1293
  %v1301 = vadd.f32 %v1285, %v1298
  %v1302 = vmax.f32 %v1300, 0.0
  %v1303 = vmax.f32 %v1301, 0.0
  %v1305 = vsel %vm164, %v1302, 0
  %v1308 = vsel %vm164, %v1303, 0
  %1310 = vmatprep.subr.mxu0 0.0
  %1311 = vmatpush1.msra.mxu0 %v333
  %1312 = vmatprep.subr.mxu0 0.0
  %1313 = vmatpush1.msra.mxu0 %v334
  %1314 = vmatprep.subr.mxu0 0.0
  %1315 = vmatpush1.msra.mxu0 %v335
  %1316 = vmatprep.subr.mxu0 0.0
  %1317 = vmatpush1.msra.mxu0 %v336
  %1318 = vmatprep.subr.mxu0 0.0
  %1319 = vmatpush1.msra.mxu0 0.0
  %1320 = vmatprep.subr.mxu0 0.0
  %1321 = vmatpush1.msra.mxu0 0.0
  %1322 = vmatprep.subr.mxu0 0.0
  %1323 = vmatpush1.msra.mxu0 0.0
  %1324 = vmatprep.subr.mxu0 0.0
  %1325 = vmatpush1.msra.mxu0 0.0
  %1326 = vmatprep.subr.mxu0 0.0
  %1327 = vmatpush1.msra.mxu0 0.0
  %1328 = vmatprep.subr.mxu0 0.0
  %1329 = vmatpush1.msra.mxu0 0.0
  %1330 = vmatprep.subr.mxu0 0.0
  %1331 = vmatpush1.msra.mxu0 0.0
  %1332 = vmatprep.subr.mxu0 0.0
  %1333 = vmatpush1.msra.mxu0 0.0
  %1334 = vmatprep.subr.mxu0 0.0
  %1335 = vmatpush1.msra.mxu0 0.0
  %1336 = vmatprep.subr.mxu0 0.0
  %1337 = vmatpush1.msra.mxu0 0.0
  %1338 = vmatprep.subr.mxu0 0.0
  %1339 = vmatpush1.msra.mxu0 0.0
  %1340 = vmatprep.subr.mxu0 0.0
  %1341 = vmatpush1.msra.mxu0 0.0
  %1342 = vmatprep.subr.mxu0 0.0
  %1343 = vmatpush1.msra.mxu0 0.0
  %1344 = vmatprep.subr.mxu0 0.0
  %1345 = vmatpush1.msra.mxu0 0.0
  %1346 = vmatprep.subr.mxu0 0.0
  %1347 = vmatpush1.msra.mxu0 0.0
  %1348 = vmatprep.subr.mxu0 0.0
  %1349 = vmatpush1.msra.mxu0 0.0
  %1350 = vmatprep.subr.mxu0 0.0
  %1351 = vmatpush1.msra.mxu0 0.0
  %1352 = vmatprep.subr.mxu0 0.0
  %1353 = vmatpush1.msra.mxu0 0.0
  %1354 = vmatprep.subr.mxu0 0.0
  %1355 = vmatpush1.msra.mxu0 0.0
  %1356 = vmatprep.subr.mxu0 0.0
  %1357 = vmatpush1.msra.mxu0 0.0
  %1358 = vmatprep.subr.mxu0 0.0
  %1359 = vmatpush1.msra.mxu0 0.0
  %1360 = vmatprep.subr.mxu0 0.0
  %1361 = vmatpush1.msra.mxu0 0.0
  %1362 = vmatprep.subr.mxu0 0.0
  %1363 = vmatpush1.msra.mxu0 0.0
  %1364 = vmatprep.subr.mxu0 0.0
  %1365 = vmatpush1.msra.mxu0 0.0
  %1366 = vmatprep.subr.mxu0 0.0
  %1367 = vmatpush1.msra.mxu0 0.0
  %1368 = vmatprep.subr.mxu0 0.0
  %1369 = vmatpush1.msra.mxu0 0.0
  %1370 = vmatprep.subr.mxu0 0.0
  %1371 = vmatpush1.msra.mxu0 0.0
  %1372 = vmatprep.subr.mxu0 0.0
  %1373 = vmatpush1.msra.mxu0 0.0
  %1374 = vmatprep.mubr.f32.mxu0 0.0
  %1375 = vmatmul.mubr.f32.gmra.mrb[0].mxu0 %v1305
  %v1376 = vpop.f32.mrb[0].mxu0
  %v1377 = vadd.f32 0.0, %v1376
  %v1378 = vpop.f32.mrb[0].mxu0
  %1379 = vmatprep.mubr.f32.mxu0 0.0
  %1380 = vmatmul.mubr.f32.gmra.mrb[0].mxu0 %v1308
  %v1381 = vpop.f32.mrb[0].mxu0
  %v1382 = vadd.f32 0.0, %v1381
  %v1383 = vpop.f32.mrb[0].mxu0
  %1384 = vdwg.mxu0
  %v1385 = vpack.c.bf16 %v1382, %v1377
  %1386 = vmatprep.subr.mxu0 0.0
  %1387 = vmatpush1.msra.mxu0 %v420
  %1388 = vmatprep.subr.mxu0 0.0
  %1389 = vmatpush1.msra.mxu0 %v421
  %1390 = vmatprep.subr.mxu0 0.0
  %1391 = vmatpush1.msra.mxu0 %v422
  %1392 = vmatprep.subr.mxu0 0.0
  %1393 = vmatpush1.msra.mxu0 %v423
  %1394 = vmatprep.subr.mxu0 0.0
  %1395 = vmatpush1.msra.mxu0 0.0
  %1396 = vmatprep.subr.mxu0 0.0
  %1397 = vmatpush1.msra.mxu0 0.0
  %1398 = vmatprep.subr.mxu0 0.0
  %1399 = vmatpush1.msra.mxu0 0.0
  %1400 = vmatprep.subr.mxu0 0.0
  %1401 = vmatpush1.msra.mxu0 0.0
  %1402 = vmatprep.subr.mxu0 0.0
  %1403 = vmatpush1.msra.mxu0 0.0
  %1404 = vmatprep.subr.mxu0 0.0
  %1405 = vmatpush1.msra.mxu0 0.0
  %1406 = vmatprep.subr.mxu0 0.0
  %1407 = vmatpush1.msra.mxu0 0.0
  %1408 = vmatprep.subr.mxu0 0.0
  %1409 = vmatpush1.msra.mxu0 0.0
  %1410 = vmatprep.subr.mxu0 0.0
  %1411 = vmatpush1.msra.mxu0 0.0
  %1412 = vmatprep.subr.mxu0 0.0
  %1413 = vmatpush1.msra.mxu0 0.0
  %1414 = vmatprep.subr.mxu0 0.0
  %1415 = vmatpush1.msra.mxu0 0.0
  %1416 = vmatprep.subr.mxu0 0.0
  %1417 = vmatpush1.msra.mxu0 0.0
  %1418 = vmatprep.subr.mxu0 0.0
  %1419 = vmatpush1.msra.mxu0 0.0
  %1420 = vmatprep.subr.mxu0 0.0
  %1421 = vmatpush1.msra.mxu0 0.0
  %1422 = vmatprep.subr.mxu0 0.0
  %1423 = vmatpush1.msra.mxu0 0.0
  %1424 = vmatprep.subr.mxu0 0.0
  %1425 = vmatpush1.msra.mxu0 0.0
  %1426 = vmatprep.subr.mxu0 0.0
  %1427 = vmatpush1.msra.mxu0 0.0
  %1428 = vmatprep.subr.mxu0 0.0
  %1429 = vmatpush1.msra.mxu0 0.0
  %1430 = vmatprep.subr.mxu0 0.0
  %1431 = vmatpush1.msra.mxu0 0.0
  %1432 = vmatprep.subr.mxu0 0.0
  %1433 = vmatpush1.msra.mxu0 0.0
  %1434 = vmatprep.subr.mxu0 0.0
  %1435 = vmatpush1.msra.mxu0 0.0
  %1436 = vmatprep.subr.mxu0 0.0
  %1437 = vmatpush1.msra.mxu0 0.0
  %1438 = vmatprep.subr.mxu0 0.0
  %1439 = vmatpush1.msra.mxu0 0.0
  %1440 = vmatprep.subr.mxu0 0.0
  %1441 = vmatpush1.msra.mxu0 0.0
  %1442 = vmatprep.subr.mxu0 0.0
  %1443 = vmatpush1.msra.mxu0 0.0
  %1444 = vmatprep.subr.mxu0 0.0
  %1445 = vmatpush1.msra.mxu0 0.0
  %1446 = vmatprep.subr.mxu0 0.0
  %1447 = vmatpush1.msra.mxu0 0.0
  %1448 = vmatprep.subr.mxu0 0.0
  %1449 = vmatpush1.msra.mxu0 0.0
  %1450 = vmatprep.mubr.f32.mxu0 0.0
  %1451 = vmatmul.mubr.f32.gmra.mrb[0].mxu0 %v1305
  %v1452 = vpop.f32.mrb[0].mxu0
  %v1453 = vadd.f32 0.0, %v1452
  %v1454 = vpop.f32.mrb[0].mxu0
  %1455 = vmatprep.mubr.f32.mxu0 0.0
  %1456 = vmatmul.mubr.f32.gmra.mrb[0].mxu0 %v1308
  %v1457 = vpop.f32.mrb[0].mxu0
  %v1458 = vadd.f32 0.0, %v1457
  %v1459 = vpop.f32.mrb[0].mxu0
  %1460 = vdwg.mxu0
  %v1461 = vpack.c.bf16 %v1458, %v1453
  %1462 = vmatprep.subr.mxu0 0.0
  %1463 = vmatpush1.msra.mxu0 %v501
  %1464 = vmatprep.subr.mxu0 0.0
  %1465 = vmatpush1.msra.mxu0 %v502
  %1466 = vmatprep.subr.mxu0 0.0
  %1467 = vmatpush1.msra.mxu0 %v503
  %1468 = vmatprep.subr.mxu0 0.0
  %1469 = vmatpush1.msra.mxu0 %v504
  %1470 = vmatprep.subr.mxu0 0.0
  %1471 = vmatpush1.msra.mxu0 0.0
  %1472 = vmatprep.subr.mxu0 0.0
  %1473 = vmatpush1.msra.mxu0 0.0
  %1474 = vmatprep.subr.mxu0 0.0
  %1475 = vmatpush1.msra.mxu0 0.0
  %1476 = vmatprep.subr.mxu0 0.0
  %1477 = vmatpush1.msra.mxu0 0.0
  %1478 = vmatprep.subr.mxu0 0.0
  %1479 = vmatpush1.msra.mxu0 0.0
  %1480 = vmatprep.subr.mxu0 0.0
  %1481 = vmatpush1.msra.mxu0 0.0
  %1482 = vmatprep.subr.mxu0 0.0
  %1483 = vmatpush1.msra.mxu0 0.0
  %1484 = vmatprep.subr.mxu0 0.0
  %1485 = vmatpush1.msra.mxu0 0.0
  %1486 = vmatprep.subr.mxu0 0.0
  %1487 = vmatpush1.msra.mxu0 0.0
  %1488 = vmatprep.subr.mxu0 0.0
  %1489 = vmatpush1.msra.mxu0 0.0
  %1490 = vmatprep.subr.mxu0 0.0
  %1491 = vmatpush1.msra.mxu0 0.0
  %1492 = vmatprep.subr.mxu0 0.0
  %1493 = vmatpush1.msra.mxu0 0.0
  %1494 = vmatprep.subr.mxu0 0.0
  %1495 = vmatpush1.msra.mxu0 0.0
  %1496 = vmatprep.subr.mxu0 0.0
  %1497 = vmatpush1.msra.mxu0 0.0
  %1498 = vmatprep.subr.mxu0 0.0
  %1499 = vmatpush1.msra.mxu0 0.0
  %1500 = vmatprep.subr.mxu0 0.0
  %1501 = vmatpush1.msra.mxu0 0.0
  %1502 = vmatprep.subr.mxu0 0.0
  %1503 = vmatpush1.msra.mxu0 0.0
  %1504 = vmatprep.subr.mxu0 0.0
  %1505 = vmatpush1.msra.mxu0 0.0
  %1506 = vmatprep.subr.mxu0 0.0
  %1507 = vmatpush1.msra.mxu0 0.0
  %1508 = vmatprep.subr.mxu0 0.0
  %1509 = vmatpush1.msra.mxu0 0.0
  %1510 = vmatprep.subr.mxu0 0.0
  %1511 = vmatpush1.msra.mxu0 0.0
  %1512 = vmatprep.subr.mxu0 0.0
  %1513 = vmatpush1.msra.mxu0 0.0
  %1514 = vmatprep.subr.mxu0 0.0
  %1515 = vmatpush1.msra.mxu0 0.0
  %1516 = vmatprep.subr.mxu0 0.0
  %1517 = vmatpush1.msra.mxu0 0.0
  %1518 = vmatprep.subr.mxu0 0.0
  %1519 = vmatpush1.msra.mxu0 0.0
  %1520 = vmatprep.subr.mxu0 0.0
  %1521 = vmatpush1.msra.mxu0 0.0
  %1522 = vmatprep.subr.mxu0 0.0
  %1523 = vmatpush1.msra.mxu0 0.0
  %1524 = vmatprep.subr.mxu0 0.0
  %1525 = vmatpush1.msra.mxu0 0.0
  %1526 = vmatprep.mubr.f32.mxu0 0.0
  %1527 = vmatmul.mubr.f32.gmra.mrb[0].mxu0 %v1305
  %v1528 = vpop.f32.mrb[0].mxu0
  %v1529 = vadd.f32 0.0, %v1528
  %v1530 = vpop.f32.mrb[0].mxu0
  %1531 = vmatprep.mubr.f32.mxu0 0.0
  %1532 = vmatmul.mubr.f32.gmra.mrb[0].mxu0 %v1308
  %v1533 = vpop.f32.mrb[0].mxu0
  %v1534 = vadd.f32 0.0, %v1533
  %v1535 = vpop.f32.mrb[0].mxu0
  %1536 = vdwg.mxu0
  %v1537 = vpack.c.bf16 %v1534, %v1529
  %1538 = vmatprep.subr.mxu0 0.0
  %1539 = vmatpush1.msra.mxu0 %v582
  %1540 = vmatprep.subr.mxu0 0.0
  %1541 = vmatpush1.msra.mxu0 %v583
  %1542 = vmatprep.subr.mxu0 0.0
  %1543 = vmatpush1.msra.mxu0 %v584
  %1544 = vmatprep.subr.mxu0 0.0
  %1545 = vmatpush1.msra.mxu0 %v585
  %1546 = vmatprep.subr.mxu0 0.0
  %1547 = vmatpush1.msra.mxu0 0.0
  %1548 = vmatprep.subr.mxu0 0.0
  %1549 = vmatpush1.msra.mxu0 0.0
  %1550 = vmatprep.subr.mxu0 0.0
  %1551 = vmatpush1.msra.mxu0 0.0
  %1552 = vmatprep.subr.mxu0 0.0
  %1553 = vmatpush1.msra.mxu0 0.0
  %1554 = vmatprep.subr.mxu0 0.0
  %1555 = vmatpush1.msra.mxu0 0.0
  %1556 = vmatprep.subr.mxu0 0.0
  %1557 = vmatpush1.msra.mxu0 0.0
  %1558 = vmatprep.subr.mxu0 0.0
  %1559 = vmatpush1.msra.mxu0 0.0
  %1560 = vmatprep.subr.mxu0 0.0
  %1561 = vmatpush1.msra.mxu0 0.0
  %1562 = vmatprep.subr.mxu0 0.0
  %1563 = vmatpush1.msra.mxu0 0.0
  %1564 = vmatprep.subr.mxu0 0.0
  %1565 = vmatpush1.msra.mxu0 0.0
  %1566 = vmatprep.subr.mxu0 0.0
  %1567 = vmatpush1.msra.mxu0 0.0
  %1568 = vmatprep.subr.mxu0 0.0
  %1569 = vmatpush1.msra.mxu0 0.0
  %1570 = vmatprep.subr.mxu0 0.0
  %1571 = vmatpush1.msra.mxu0 0.0
  %1572 = vmatprep.subr.mxu0 0.0
  %1573 = vmatpush1.msra.mxu0 0.0
  %1574 = vmatprep.subr.mxu0 0.0
  %1575 = vmatpush1.msra.mxu0 0.0
  %1576 = vmatprep.subr.mxu0 0.0
  %1577 = vmatpush1.msra.mxu0 0.0
  %1578 = vmatprep.subr.mxu0 0.0
  %1579 = vmatpush1.msra.mxu0 0.0
  %1580 = vmatprep.subr.mxu0 0.0
  %1581 = vmatpush1.msra.mxu0 0.0
  %1582 = vmatprep.subr.mxu0 0.0
  %1583 = vmatpush1.msra.mxu0 0.0
  %1584 = vmatprep.subr.mxu0 0.0
  %1585 = vmatpush1.msra.mxu0 0.0
  %1586 = vmatprep.subr.mxu0 0.0
  %1587 = vmatpush1.msra.mxu0 0.0
  %1588 = vmatprep.subr.mxu0 0.0
  %1589 = vmatpush1.msra.mxu0 0.0
  %1590 = vmatprep.subr.mxu0 0.0
  %1591 = vmatpush1.msra.mxu0 0.0
  %1592 = vmatprep.subr.mxu0 0.0
  %1593 = vmatpush1.msra.mxu0 0.0
  %1594 = vmatprep.subr.mxu0 0.0
  %1595 = vmatpush1.msra.mxu0 0.0
  %1596 = vmatprep.subr.mxu0 0.0
  %1597 = vmatpush1.msra.mxu0 0.0
  %1598 = vmatprep.subr.mxu0 0.0
  %1599 = vmatpush1.msra.mxu0 0.0
  %1600 = vmatprep.subr.mxu0 0.0
  %1601 = vmatpush1.msra.mxu0 0.0
  %1602 = vmatprep.mubr.f32.mxu0 0.0
  %1603 = vmatmul.mubr.f32.gmra.mrb[0].mxu0 %v1305
  %v1604 = vpop.f32.mrb[0].mxu0
  %v1605 = vadd.f32 0.0, %v1604
  %v1606 = vpop.f32.mrb[0].mxu0
  %1607 = vmatprep.mubr.f32.mxu0 0.0
  %1608 = vmatmul.mubr.f32.gmra.mrb[0].mxu0 %v1308
  %v1609 = vpop.f32.mrb[0].mxu0
  %v1610 = vadd.f32 0.0, %v1609
  %v1611 = vpop.f32.mrb[0].mxu0
  %1612 = vdwg.mxu0
  %v1613 = vpack.c.bf16 %v1610, %v1605
  %1614 = vmatprep.subr.mxu0 0.0
  %1615 = vmatpush1.msra.mxu0 %v663
  %1616 = vmatprep.subr.mxu0 0.0
  %1617 = vmatpush1.msra.mxu0 %v664
  %1618 = vmatprep.subr.mxu0 0.0
  %1619 = vmatpush1.msra.mxu0 %v665
  %1620 = vmatprep.subr.mxu0 0.0
  %1621 = vmatpush1.msra.mxu0 %v666
  %1622 = vmatprep.subr.mxu0 0.0
  %1623 = vmatpush1.msra.mxu0 0.0
  %1624 = vmatprep.subr.mxu0 0.0
  %1625 = vmatpush1.msra.mxu0 0.0
  %1626 = vmatprep.subr.mxu0 0.0
  %1627 = vmatpush1.msra.mxu0 0.0
  %1628 = vmatprep.subr.mxu0 0.0
  %1629 = vmatpush1.msra.mxu0 0.0
  %1630 = vmatprep.subr.mxu0 0.0
  %1631 = vmatpush1.msra.mxu0 0.0
  %1632 = vmatprep.subr.mxu0 0.0
  %1633 = vmatpush1.msra.mxu0 0.0
  %1634 = vmatprep.subr.mxu0 0.0
  %1635 = vmatpush1.msra.mxu0 0.0
  %1636 = vmatprep.subr.mxu0 0.0
  %1637 = vmatpush1.msra.mxu0 0.0
  %1638 = vmatprep.subr.mxu0 0.0
  %1639 = vmatpush1.msra.mxu0 0.0
  %1640 = vmatprep.subr.mxu0 0.0
  %1641 = vmatpush1.msra.mxu0 0.0
  %1642 = vmatprep.subr.mxu0 0.0
  %1643 = vmatpush1.msra.mxu0 0.0
  %1644 = vmatprep.subr.mxu0 0.0
  %1645 = vmatpush1.msra.mxu0 0.0
  %1646 = vmatprep.subr.mxu0 0.0
  %1647 = vmatpush1.msra.mxu0 0.0
  %1648 = vmatprep.subr.mxu0 0.0
  %1649 = vmatpush1.msra.mxu0 0.0
  %1650 = vmatprep.subr.mxu0 0.0
  %1651 = vmatpush1.msra.mxu0 0.0
  %1652 = vmatprep.subr.mxu0 0.0
  %1653 = vmatpush1.msra.mxu0 0.0
  %1654 = vmatprep.subr.mxu0 0.0
  %1655 = vmatpush1.msra.mxu0 0.0
  %1656 = vmatprep.subr.mxu0 0.0
  %1657 = vmatpush1.msra.mxu0 0.0
  %1658 = vmatprep.subr.mxu0 0.0
  %1659 = vmatpush1.msra.mxu0 0.0
  %1660 = vmatprep.subr.mxu0 0.0
  %1661 = vmatpush1.msra.mxu0 0.0
  %1662 = vmatprep.subr.mxu0 0.0
  %1663 = vmatpush1.msra.mxu0 0.0
  %1664 = vmatprep.subr.mxu0 0.0
  %1665 = vmatpush1.msra.mxu0 0.0
  %1666 = vmatprep.subr.mxu0 0.0
  %1667 = vmatpush1.msra.mxu0 0.0
  %1668 = vmatprep.subr.mxu0 0.0
  %1669 = vmatpush1.msra.mxu0 0.0
  %1670 = vmatprep.subr.mxu0 0.0
  %1671 = vmatpush1.msra.mxu0 0.0
  %1672 = vmatprep.subr.mxu0 0.0
  %1673 = vmatpush1.msra.mxu0 0.0
  %1674 = vmatprep.subr.mxu0 0.0
  %1675 = vmatpush1.msra.mxu0 0.0
  %1676 = vmatprep.subr.mxu0 0.0
  %1677 = vmatpush1.msra.mxu0 0.0
  %1678 = vmatprep.mubr.f32.mxu0 0.0
  %1679 = vmatmul.mubr.f32.gmra.mrb[0].mxu0 %v1305
  %v1680 = vpop.f32.mrb[0].mxu0
  %v1681 = vadd.f32 0.0, %v1680
  %v1682 = vpop.f32.mrb[0].mxu0
  %1683 = vmatprep.mubr.f32.mxu0 0.0
  %1684 = vmatmul.mubr.f32.gmra.mrb[0].mxu0 %v1308
  %v1685 = vpop.f32.mrb[0].mxu0
  %v1686 = vadd.f32 0.0, %v1685
  %v1687 = vpop.f32.mrb[0].mxu0
  %1688 = vdwg.mxu0
  %v1689 = vpack.c.bf16 %v1686, %v1681
  %1690 = vmatprep.subr.mxu0 0.0
  %1691 = vmatpush1.msra.mxu0 %v744
  %1692 = vmatprep.subr.mxu0 0.0
  %1693 = vmatpush1.msra.mxu0 %v745
  %1694 = vmatprep.subr.mxu0 0.0
  %1695 = vmatpush1.msra.mxu0 %v746
  %1696 = vmatprep.subr.mxu0 0.0
  %1697 = vmatpush1.msra.mxu0 %v747
  %1698 = vmatprep.subr.mxu0 0.0
  %1699 = vmatpush1.msra.mxu0 0.0
  %1700 = vmatprep.subr.mxu0 0.0
  %1701 = vmatpush1.msra.mxu0 0.0
  %1702 = vmatprep.subr.mxu0 0.0
  %1703 = vmatpush1.msra.mxu0 0.0
  %1704 = vmatprep.subr.mxu0 0.0
  %1705 = vmatpush1.msra.mxu0 0.0
  %1706 = vmatprep.subr.mxu0 0.0
  %1707 = vmatpush1.msra.mxu0 0.0
  %1708 = vmatprep.subr.mxu0 0.0
  %1709 = vmatpush1.msra.mxu0 0.0
  %1710 = vmatprep.subr.mxu0 0.0
  %1711 = vmatpush1.msra.mxu0 0.0
  %1712 = vmatprep.subr.mxu0 0.0
  %1713 = vmatpush1.msra.mxu0 0.0
  %1714 = vmatprep.subr.mxu0 0.0
  %1715 = vmatpush1.msra.mxu0 0.0
  %1716 = vmatprep.subr.mxu0 0.0
  %1717 = vmatpush1.msra.mxu0 0.0
  %1718 = vmatprep.subr.mxu0 0.0
  %1719 = vmatpush1.msra.mxu0 0.0
  %1720 = vmatprep.subr.mxu0 0.0
  %1721 = vmatpush1.msra.mxu0 0.0
  %1722 = vmatprep.subr.mxu0 0.0
  %1723 = vmatpush1.msra.mxu0 0.0
  %1724 = vmatprep.subr.mxu0 0.0
  %1725 = vmatpush1.msra.mxu0 0.0
  %1726 = vmatprep.subr.mxu0 0.0
  %1727 = vmatpush1.msra.mxu0 0.0
  %1728 = vmatprep.subr.mxu0 0.0
  %1729 = vmatpush1.msra.mxu0 0.0
  %1730 = vmatprep.subr.mxu0 0.0
  %1731 = vmatpush1.msra.mxu0 0.0
  %1732 = vmatprep.subr.mxu0 0.0
  %1733 = vmatpush1.msra.mxu0 0.0
  %1734 = vmatprep.subr.mxu0 0.0
  %1735 = vmatpush1.msra.mxu0 0.0
  %1736 = vmatprep.subr.mxu0 0.0
  %1737 = vmatpush1.msra.mxu0 0.0
  %1738 = vmatprep.subr.mxu0 0.0
  %1739 = vmatpush1.msra.mxu0 0.0
  %1740 = vmatprep.subr.mxu0 0.0
  %1741 = vmatpush1.msra.mxu0 0.0
  %1742 = vmatprep.subr.mxu0 0.0
  %1743 = vmatpush1.msra.mxu0 0.0
  %1744 = vmatprep.subr.mxu0 0.0
  %1745 = vmatpush1.msra.mxu0 0.0
  %1746 = vmatprep.subr.mxu0 0.0
  %1747 = vmatpush1.msra.mxu0 0.0
  %1748 = vmatprep.subr.mxu0 0.0
  %1749 = vmatpush1.msra.mxu0 0.0
  %1750 = vmatprep.subr.mxu0 0.0
  %1751 = vmatpush1.msra.mxu0 0.0
  %1752 = vmatprep.subr.mxu0 0.0
  %1753 = vmatpush1.msra.mxu0 0.0
  %1754 = vmatprep.mubr.f32.mxu0 0.0
  %1755 = vmatmul.mubr.f32.gmra.mrb[0].mxu0 %v1305
  %v1756 = vpop.f32.mrb[0].mxu0
  %v1757 = vadd.f32 0.0, %v1756
  %v1758 = vpop.f32.mrb[0].mxu0
  %1759 = vmatprep.mubr.f32.mxu0 0.0
  %1760 = vmatmul.mubr.f32.gmra.mrb[0].mxu0 %v1308
  %v1761 = vpop.f32.mrb[0].mxu0
  %v1762 = vadd.f32 0.0, %v1761
  %v1763 = vpop.f32.mrb[0].mxu0
  %1764 = vdwg.mxu0
  %v1765 = vpack.c.bf16 %v1762, %v1757
  %1766 = vmatprep.subr.mxu0 0.0
  %1767 = vmatpush1.msra.mxu0 %v825
  %1768 = vmatprep.subr.mxu0 0.0
  %1769 = vmatpush1.msra.mxu0 %v826
  %1770 = vmatprep.subr.mxu0 0.0
  %1771 = vmatpush1.msra.mxu0 %v827
  %1772 = vmatprep.subr.mxu0 0.0
  %1773 = vmatpush1.msra.mxu0 %v828
  %1774 = vmatprep.subr.mxu0 0.0
  %1775 = vmatpush1.msra.mxu0 0.0
  %1776 = vmatprep.subr.mxu0 0.0
  %1777 = vmatpush1.msra.mxu0 0.0
  %1778 = vmatprep.subr.mxu0 0.0
  %1779 = vmatpush1.msra.mxu0 0.0
  %1780 = vmatprep.subr.mxu0 0.0
  %1781 = vmatpush1.msra.mxu0 0.0
  %1782 = vmatprep.subr.mxu0 0.0
  %1783 = vmatpush1.msra.mxu0 0.0
  %1784 = vmatprep.subr.mxu0 0.0
  %1785 = vmatpush1.msra.mxu0 0.0
  %1786 = vmatprep.subr.mxu0 0.0
  %1787 = vmatpush1.msra.mxu0 0.0
  %1788 = vmatprep.subr.mxu0 0.0
  %1789 = vmatpush1.msra.mxu0 0.0
  %1790 = vmatprep.subr.mxu0 0.0
  %1791 = vmatpush1.msra.mxu0 0.0
  %1792 = vmatprep.subr.mxu0 0.0
  %1793 = vmatpush1.msra.mxu0 0.0
  %1794 = vmatprep.subr.mxu0 0.0
  %1795 = vmatpush1.msra.mxu0 0.0
  %1796 = vmatprep.subr.mxu0 0.0
  %1797 = vmatpush1.msra.mxu0 0.0
  %1798 = vmatprep.subr.mxu0 0.0
  %1799 = vmatpush1.msra.mxu0 0.0
  %1800 = vmatprep.subr.mxu0 0.0
  %1801 = vmatpush1.msra.mxu0 0.0
  %1802 = vmatprep.subr.mxu0 0.0
  %1803 = vmatpush1.msra.mxu0 0.0
  %1804 = vmatprep.subr.mxu0 0.0
  %1805 = vmatpush1.msra.mxu0 0.0
  %1806 = vmatprep.subr.mxu0 0.0
  %1807 = vmatpush1.msra.mxu0 0.0
  %1808 = vmatprep.subr.mxu0 0.0
  %1809 = vmatpush1.msra.mxu0 0.0
  %1810 = vmatprep.subr.mxu0 0.0
  %1811 = vmatpush1.msra.mxu0 0.0
  %1812 = vmatprep.subr.mxu0 0.0
  %1813 = vmatpush1.msra.mxu0 0.0
  %1814 = vmatprep.subr.mxu0 0.0
  %1815 = vmatpush1.msra.mxu0 0.0
  %1816 = vmatprep.subr.mxu0 0.0
  %1817 = vmatpush1.msra.mxu0 0.0
  %1818 = vmatprep.subr.mxu0 0.0
  %1819 = vmatpush1.msra.mxu0 0.0
  %1820 = vmatprep.subr.mxu0 0.0
  %1821 = vmatpush1.msra.mxu0 0.0
  %1822 = vmatprep.subr.mxu0 0.0
  %1823 = vmatpush1.msra.mxu0 0.0
  %1824 = vmatprep.subr.mxu0 0.0
  %1825 = vmatpush1.msra.mxu0 0.0
  %1826 = vmatprep.subr.mxu0 0.0
  %1827 = vmatpush1.msra.mxu0 0.0
  %1828 = vmatprep.subr.mxu0 0.0
  %1829 = vmatpush1.msra.mxu0 0.0
  %1830 = vmatprep.mubr.f32.mxu0 0.0
  %1831 = vmatmul.mubr.f32.gmra.mrb[0].mxu0 %v1305
  %v1832 = vpop.f32.mrb[0].mxu0
  %v1833 = vadd.f32 0.0, %v1832
  %v1834 = vpop.f32.mrb[0].mxu0
  %1835 = vmatprep.mubr.f32.mxu0 0.0
  %1836 = vmatmul.mubr.f32.gmra.mrb[0].mxu0 %v1308
  %v1837 = vpop.f32.mrb[0].mxu0
  %v1838 = vadd.f32 0.0, %v1837
  %v1839 = vpop.f32.mrb[0].mxu0
  %1840 = vdwg.mxu0
  %v1841 = vpack.c.bf16 %v1838, %v1833
  %1842 = vmatprep.subr.mxu0 0.0
  %1843 = vmatpush1.msra.mxu0 %v906
  %1844 = vmatprep.subr.mxu0 0.0
  %1845 = vmatpush1.msra.mxu0 %v907
  %1846 = vmatprep.subr.mxu0 0.0
  %1847 = vmatpush1.msra.mxu0 %v908
  %1848 = vmatprep.subr.mxu0 0.0
  %1849 = vmatpush1.msra.mxu0 %v909
  %1850 = vmatprep.subr.mxu0 0.0
  %1851 = vmatpush1.msra.mxu0 0.0
  %1852 = vmatprep.subr.mxu0 0.0
  %1853 = vmatpush1.msra.mxu0 0.0
  %1854 = vmatprep.subr.mxu0 0.0
  %1855 = vmatpush1.msra.mxu0 0.0
  %1856 = vmatprep.subr.mxu0 0.0
  %1857 = vmatpush1.msra.mxu0 0.0
  %1858 = vmatprep.subr.mxu0 0.0
  %1859 = vmatpush1.msra.mxu0 0.0
  %1860 = vmatprep.subr.mxu0 0.0
  %1861 = vmatpush1.msra.mxu0 0.0
  %1862 = vmatprep.subr.mxu0 0.0
  %1863 = vmatpush1.msra.mxu0 0.0
  %1864 = vmatprep.subr.mxu0 0.0
  %1865 = vmatpush1.msra.mxu0 0.0
  %1866 = vmatprep.subr.mxu0 0.0
  %1867 = vmatpush1.msra.mxu0 0.0
  %1868 = vmatprep.subr.mxu0 0.0
  %1869 = vmatpush1.msra.mxu0 0.0
  %1870 = vmatprep.subr.mxu0 0.0
  %1871 = vmatpush1.msra.mxu0 0.0
  %1872 = vmatprep.subr.mxu0 0.0
  %1873 = vmatpush1.msra.mxu0 0.0
  %1874 = vmatprep.subr.mxu0 0.0
  %1875 = vmatpush1.msra.mxu0 0.0
  %1876 = vmatprep.subr.mxu0 0.0
  %1877 = vmatpush1.msra.mxu0 0.0
  %1878 = vmatprep.subr.mxu0 0.0
  %1879 = vmatpush1.msra.mxu0 0.0
  %1880 = vmatprep.subr.mxu0 0.0
  %1881 = vmatpush1.msra.mxu0 0.0
  %1882 = vmatprep.subr.mxu0 0.0
  %1883 = vmatpush1.msra.mxu0 0.0
  %1884 = vmatprep.subr.mxu0 0.0
  %1885 = vmatpush1.msra.mxu0 0.0
  %1886 = vmatprep.subr.mxu0 0.0
  %1887 = vmatpush1.msra.mxu0 0.0
  %1888 = vmatprep.subr.mxu0 0.0
  %1889 = vmatpush1.msra.mxu0 0.0
  %1890 = vmatprep.subr.mxu0 0.0
  %1891 = vmatpush1.msra.mxu0 0.0
  %1892 = vmatprep.subr.mxu0 0.0
  %1893 = vmatpush1.msra.mxu0 0.0
  %1894 = vmatprep.subr.mxu0 0.0
  %1895 = vmatpush1.msra.mxu0 0.0
  %1896 = vmatprep.subr.mxu0 0.0
  %1897 = vmatpush1.msra.mxu0 0.0
  %1898 = vmatprep.subr.mxu0 0.0
  %1899 = vmatpush1.msra.mxu0 0.0
  %1900 = vmatprep.subr.mxu0 0.0
  %1901 = vmatpush1.msra.mxu0 0.0
  %1902 = vmatprep.subr.mxu0 0.0
  %1903 = vmatpush1.msra.mxu0 0.0
  %1904 = vmatprep.subr.mxu0 0.0
  %1905 = vmatpush1.msra.mxu0 0.0
  %1906 = vmatprep.mubr.f32.mxu0 0.0
  %1907 = vmatmul.mubr.f32.gmra.mrb[0].mxu0 %v1305
  %v1908 = vpop.f32.mrb[0].mxu0
  %v1909 = vadd.f32 0.0, %v1908
  %v1910 = vpop.f32.mrb[0].mxu0
  %1911 = vmatprep.mubr.f32.mxu0 0.0
  %1912 = vmatmul.mubr.f32.gmra.mrb[0].mxu0 %v1308
  %v1913 = vpop.f32.mrb[0].mxu0
  %v1914 = vadd.f32 0.0, %v1913
  %v1915 = vpop.f32.mrb[0].mxu0
  %1916 = vdwg.mxu0
  %v1917 = vpack.c.bf16 %v1914, %v1909
  %1918 = vmatprep.subr.mxu0 0.0
  %1919 = vmatpush1.msra.mxu0 %v987
  %1920 = vmatprep.subr.mxu0 0.0
  %1921 = vmatpush1.msra.mxu0 %v988
  %1922 = vmatprep.subr.mxu0 0.0
  %1923 = vmatpush1.msra.mxu0 %v989
  %1924 = vmatprep.subr.mxu0 0.0
  %1925 = vmatpush1.msra.mxu0 %v990
  %1926 = vmatprep.subr.mxu0 0.0
  %1927 = vmatpush1.msra.mxu0 0.0
  %1928 = vmatprep.subr.mxu0 0.0
  %1929 = vmatpush1.msra.mxu0 0.0
  %1930 = vmatprep.subr.mxu0 0.0
  %1931 = vmatpush1.msra.mxu0 0.0
  %1932 = vmatprep.subr.mxu0 0.0
  %1933 = vmatpush1.msra.mxu0 0.0
  %1934 = vmatprep.subr.mxu0 0.0
  %1935 = vmatpush1.msra.mxu0 0.0
  %1936 = vmatprep.subr.mxu0 0.0
  %1937 = vmatpush1.msra.mxu0 0.0
  %1938 = vmatprep.subr.mxu0 0.0
  %1939 = vmatpush1.msra.mxu0 0.0
  %1940 = vmatprep.subr.mxu0 0.0
  %1941 = vmatpush1.msra.mxu0 0.0
  %1942 = vmatprep.subr.mxu0 0.0
  %1943 = vmatpush1.msra.mxu0 0.0
  %1944 = vmatprep.subr.mxu0 0.0
  %1945 = vmatpush1.msra.mxu0 0.0
  %1946 = vmatprep.subr.mxu0 0.0
  %1947 = vmatpush1.msra.mxu0 0.0
  %1948 = vmatprep.subr.mxu0 0.0
  %1949 = vmatpush1.msra.mxu0 0.0
  %1950 = vmatprep.subr.mxu0 0.0
  %1951 = vmatpush1.msra.mxu0 0.0
  %1952 = vmatprep.subr.mxu0 0.0
  %1953 = vmatpush1.msra.mxu0 0.0
  %1954 = vmatprep.subr.mxu0 0.0
  %1955 = vmatpush1.msra.mxu0 0.0
  %1956 = vmatprep.subr.mxu0 0.0
  %1957 = vmatpush1.msra.mxu0 0.0
  %1958 = vmatprep.subr.mxu0 0.0
  %1959 = vmatpush1.msra.mxu0 0.0
  %1960 = vmatprep.subr.mxu0 0.0
  %1961 = vmatpush1.msra.mxu0 0.0
  %1962 = vmatprep.subr.mxu0 0.0
  %1963 = vmatpush1.msra.mxu0 0.0
  %1964 = vmatprep.subr.mxu0 0.0
  %1965 = vmatpush1.msra.mxu0 0.0
  %1966 = vmatprep.subr.mxu0 0.0
  %1967 = vmatpush1.msra.mxu0 0.0
  %1968 = vmatprep.subr.mxu0 0.0
  %1969 = vmatpush1.msra.mxu0 0.0
  %1970 = vmatprep.subr.mxu0 0.0
  %1971 = vmatpush1.msra.mxu0 0.0
  %1972 = vmatprep.subr.mxu0 0.0
  %1973 = vmatpush1.msra.mxu0 0.0
  %1974 = vmatprep.subr.mxu0 0.0
  %1975 = vmatpush1.msra.mxu0 0.0
  %1976 = vmatprep.subr.mxu0 0.0
  %1977 = vmatpush1.msra.mxu0 0.0
  %1978 = vmatprep.subr.mxu0 0.0
  %1979 = vmatpush1.msra.mxu0 0.0
  %1980 = vmatprep.subr.mxu0 0.0
  %1981 = vmatpush1.msra.mxu0 0.0
  %1982 = vmatprep.mubr.f32.mxu0 0.0
  %1983 = vmatmul.mubr.f32.gmra.mrb[0].mxu0 %v1305
  %v1984 = vpop.f32.mrb[0].mxu0
  %v1985 = vadd.f32 0.0, %v1984
  %v1986 = vpop.f32.mrb[0].mxu0
  %1987 = vmatprep.mubr.f32.mxu0 0.0
  %1988 = vmatmul.mubr.f32.gmra.mrb[0].mxu0 %v1308
  %v1989 = vpop.f32.mrb[0].mxu0
  %v1990 = vadd.f32 0.0, %v1989
  %v1991 = vpop.f32.mrb[0].mxu0
  %1992 = vdwg.mxu0
  %v1993 = vpack.c.bf16 %v1990, %v1985
  %v1995 = vunpack.c.l.b16 %v1128
  %v1996 = vunpack.c.h.b16 %v1128
  %v1997 = vpack.c.b16 %v1995, %v1995
  %v1998 = vpack.c.b16 %v1996, %v1996
  %v2001 = vsel %vm230, %v1998, 0
  %2003 = vmatprep.subr.bf16.mxu0 0
  %2004 = vmatpush1.bf16.msra.mxu0 %v1385
  %2005 = vmatprep.subr.bf16.mxu0 0
  %2006 = vmatpush1.bf16.msra.mxu0 %v1461
  %2007 = vmatprep.subr.bf16.mxu0 0
  %2008 = vmatpush1.bf16.msra.mxu0 %v1537
  %2009 = vmatprep.subr.bf16.mxu0 0
  %2010 = vmatpush1.bf16.msra.mxu0 %v1613
  %2011 = vmatprep.subr.bf16.mxu0 0
  %2012 = vmatpush1.bf16.msra.mxu0 %v1689
  %2013 = vmatprep.subr.bf16.mxu0 0
  %2014 = vmatpush1.bf16.msra.mxu0 %v1765
  %2015 = vmatprep.subr.bf16.mxu0 0
  %2016 = vmatpush1.bf16.msra.mxu0 %v1841
  %2017 = vmatprep.subr.bf16.mxu0 0
  %2018 = vmatpush1.bf16.msra.mxu0 %v1917
  %2019 = vmatprep.subr.bf16.mxu0 0
  %2020 = vmatpush1.bf16.msra.mxu0 %v1993
  %2021 = vmatprep.subr.bf16.mxu0 0
  %2022 = vmatpush1.bf16.msra.mxu0 0
  %2023 = vmatprep.subr.bf16.mxu0 0
  %2024 = vmatpush1.bf16.msra.mxu0 0
  %2025 = vmatprep.subr.bf16.mxu0 0
  %2026 = vmatpush1.bf16.msra.mxu0 0
  %2027 = vmatprep.subr.bf16.mxu0 0
  %2028 = vmatpush1.bf16.msra.mxu0 0
  %2029 = vmatprep.subr.bf16.mxu0 0
  %2030 = vmatpush1.bf16.msra.mxu0 0
  %2031 = vmatprep.subr.bf16.mxu0 0
  %2032 = vmatpush1.bf16.msra.mxu0 0
  %2033 = vmatprep.subr.bf16.mxu0 0
  %2034 = vmatpush1.bf16.msra.mxu0 0
  %2035 = vmatprep.mubr.bf16.mxu0 %v2001
  %2036 = vmatmul.mubr.bf16.gmra.mrb[0].mxu0 %v1997
  %v2037 = vpop.f32.mrb[0].mxu0
  %v2038 = vadd.f32 0.0, %v2037
  %v2039 = vpop.f32.mrb[0].mxu0
  %v2040 = vpop.f32.mrb[0].mxu0
  %v2041 = vpop.f32.mrb[0].mxu0
  %2042 = vdwg.mxu0
  %v2043 = vld [vmem:[%s29] sm:$0xff]
  %v2044 = vld [vmem:[%s29 + $0x8] sm:$0xff]
  %v2045 = vld [vmem:[%s29 + $0x10] sm:$0xff]
  %v2046 = vld [vmem:[%s29 + $0x18] sm:$0xff]
  %v2047 = vld [vmem:[%s31] sm:$0xff]
  %v2048 = vld [vmem:[%s31 + $0x8] sm:$0xff]
  %v2049 = vld [vmem:[%s31 + $0x10] sm:$0xff]
  %v2050 = vld [vmem:[%s31 + $0x18] sm:$0xff]
  %v2051 = vld [vmem:[%s33] sm:$0xf]
  %v2052 = vld [vmem:[%s33 + $0x4] sm:$0xf]
  %v2053 = vld [vmem:[%s35] sm:$0xff]
  %v2054 = vld [vmem:[%s35 + $0x8] sm:$0xff]
  %v2055 = vld [vmem:[%s35 + $0x10] sm:$0xff]
  %v2056 = vld [vmem:[%s35 + $0x18] sm:$0xff]
  %v2057 = vsel %vm164, %v2038, 0.0
  %2058 = vadd.xlane.f32.xlu0 %v2057
  %v2059 = vpop.xlane.xlu0 %2058
  %v2060 = vmul.f32 %v2059, %v171
  %v2061 = vmul.f32 %v2038, %v2038
  %v2062 = vsel %vm164, %v2061, 0.0
  %2063 = vadd.xlane.f32.xlu0 %v2062
  %v2064 = vpop.xlane.xlu0 %2063
  %v2065 = vmul.f32 %v2064, %v171
  %v2066 = vmul.f32 %v2060, %v2060
  %v2067 = vsub.f32 %v2065, %v2066
  %v2068 = vadd.f32 %v2067, 1e-05
  %v2069 = vrsqrt.pop %v2068
  %v2070 = vmul.f32 %v2043, %v190
  %v2071 = vmul.f32 %v2044, %v191
  %v2072 = vmul.f32 %v2045, %v1141
  %v2073 = vmul.f32 %v2046, %v2069
  %2075 = vset.pattern.permute.xlu0 0
  %2076 = vperm.xlu0 %2075, %v2070
  %v2077 = vpop.permute.xlu0 %2076
  %2080 = vset.pattern.permute.xlu0 0
  %2081 = vperm.xlu0 %2080, %v2071
  %v2082 = vpop.permute.xlu0 %2081
  %2085 = vset.pattern.permute.xlu0 0
  %2086 = vperm.xlu0 %2085, %v2072
  %v2087 = vpop.permute.xlu0 %2086
  %2090 = vset.pattern.permute.xlu0 0
  %2091 = vperm.xlu0 %2090, %v2073
  %v2092 = vpop.permute.xlu0 %2091
  %v2094 = vmul.f32 %v151, %v2077
  %v2095 = vmul.f32 %v152, %v2082
  %v2096 = vmul.f32 %v1111, %v2087
  %v2097 = vmul.f32 %v2038, %v2092
  %v2098 = vmul.f32 %v172, %v2070
  %v2099 = vmul.f32 %v173, %v2071
  %v2100 = vmul.f32 %v1132, %v2072
  %v2101 = vmul.f32 %v2060, %v2073
  %v2102 = vsub.f32 %v2047, %v2098
  %v2103 = vsub.f32 %v2048, %v2099
  %v2104 = vsub.f32 %v2049, %v2100
  %v2105 = vsub.f32 %v2050, %v2101
  %2107 = vset.pattern.permute.xlu0 0
  %2108 = vperm.xlu0 %2107, %v2102
  %v2109 = vpop.permute.xlu0 %2108
  %2112 = vset.pattern.permute.xlu0 0
  %2113 = vperm.xlu0 %2112, %v2103
  %v2114 = vpop.permute.xlu0 %2113
  %2117 = vset.pattern.permute.xlu0 0
  %2118 = vperm.xlu0 %2117, %v2104
  %v2119 = vpop.permute.xlu0 %2118
  %2122 = vset.pattern.permute.xlu0 0
  %2123 = vperm.xlu0 %2122, %v2105
  %v2124 = vpop.permute.xlu0 %2123
  %v2126 = vadd.f32 %v2094, %v2109
  %v2127 = vadd.f32 %v2095, %v2114
  %v2128 = vadd.f32 %v2096, %v2119
  %v2129 = vadd.f32 %v2097, %v2124
  %v2130 = vmax.f32 %v2126, 0.0
  %v2131 = vmax.f32 %v2127, 0.0
  %v2132 = vmax.f32 %v2128, 0.0
  %v2133 = vmax.f32 %v2129, 0.0
  %v2134 = vpack.c.bf16 %v2131, %v2130
  %v2135 = vpack.c.bf16 %v2133, %v2132
  %v2138 = vunpack.c.l.b16 %v2051
  %v2139 = vunpack.c.l.b16 %v2052
  %v2140 = vpack.c.b16 %v2139, %v2138
  %v2142 = vsel %vm164, %v2140, 0
  %2144 = vmatprep.subr.bf16.mxu0 0
  %2145 = vmatpush1.bf16.msra.mxu0 %v2134
  %2146 = vmatprep.subr.bf16.mxu0 0
  %2147 = vmatpush1.bf16.msra.mxu0 %v2135
  %2148 = vmatprep.subr.bf16.mxu0 0
  %2149 = vmatpush1.bf16.msra.mxu0 0
  %2150 = vmatprep.subr.bf16.mxu0 0
  %2151 = vmatpush1.bf16.msra.mxu0 0
  %2152 = vmatprep.subr.bf16.mxu0 0
  %2153 = vmatpush1.bf16.msra.mxu0 0
  %2154 = vmatprep.subr.bf16.mxu0 0
  %2155 = vmatpush1.bf16.msra.mxu0 0
  %2156 = vmatprep.subr.bf16.mxu0 0
  %2157 = vmatpush1.bf16.msra.mxu0 0
  %2158 = vmatprep.subr.bf16.mxu0 0
  %2159 = vmatpush1.bf16.msra.mxu0 0
  %2160 = vmatprep.subr.bf16.mxu0 0
  %2161 = vmatpush1.bf16.msra.mxu0 0
  %2162 = vmatprep.subr.bf16.mxu0 0
  %2163 = vmatpush1.bf16.msra.mxu0 0
  %2164 = vmatprep.subr.bf16.mxu0 0
  %2165 = vmatpush1.bf16.msra.mxu0 0
  %2166 = vmatprep.subr.bf16.mxu0 0
  %2167 = vmatpush1.bf16.msra.mxu0 0
  %2168 = vmatprep.subr.bf16.mxu0 0
  %2169 = vmatpush1.bf16.msra.mxu0 0
  %2170 = vmatprep.subr.bf16.mxu0 0
  %2171 = vmatpush1.bf16.msra.mxu0 0
  %2172 = vmatprep.subr.bf16.mxu0 0
  %2173 = vmatpush1.bf16.msra.mxu0 0
  %2174 = vmatprep.subr.bf16.mxu0 0
  %2175 = vmatpush1.bf16.msra.mxu0 0
  %2176 = vmatprep.mubr.bf16.mxu0 0
  %2177 = vmatmul.mubr.bf16.gmra.mrb[0].mxu0 %v2142
  %v2178 = vpop.f32.mrb[0].mxu0
  %v2179 = vadd.f32 0.0, %v2178
  %v2180 = vpop.f32.mrb[0].mxu0
  %v2181 = vpop.f32.mrb[0].mxu0
  %v2182 = vadd.f32 0.0, %v2181
  %v2183 = vpop.f32.mrb[0].mxu0
  %2184 = vdwg.mxu0
  %v2186 = vsel %vm164, %v2179, 0
  %v2189 = vsel %vm164, %v2182, 0
  %2191 = vmatprep.subr.mxu0 0.0
  %2192 = vmatpush1.msra.mxu0 %v2053
  %2193 = vmatprep.subr.mxu0 0.0
  %2194 = vmatpush1.msra.mxu0 %v2054
  %2195 = vmatprep.subr.mxu0 0.0
  %2196 = vmatpush1.msra.mxu0 %v2055
  %2197 = vmatprep.subr.mxu0 0.0
  %2198 = vmatpush1.msra.mxu0 %v2056
  %2199 = vmatprep.subr.mxu0 0.0
  %2200 = vmatpush1.msra.mxu0 0.0
  %2201 = vmatprep.subr.mxu0 0.0
  %2202 = vmatpush1.msra.mxu0 0.0
  %2203 = vmatprep.subr.mxu0 0.0
  %2204 = vmatpush1.msra.mxu0 0.0
  %2205 = vmatprep.subr.mxu0 0.0
  %2206 = vmatpush1.msra.mxu0 0.0
  %2207 = vmatprep.subr.mxu0 0.0
  %2208 = vmatpush1.msra.mxu0 0.0
  %2209 = vmatprep.subr.mxu0 0.0
  %2210 = vmatpush1.msra.mxu0 0.0
  %2211 = vmatprep.subr.mxu0 0.0
  %2212 = vmatpush1.msra.mxu0 0.0
  %2213 = vmatprep.subr.mxu0 0.0
  %2214 = vmatpush1.msra.mxu0 0.0
  %2215 = vmatprep.subr.mxu0 0.0
  %2216 = vmatpush1.msra.mxu0 0.0
  %2217 = vmatprep.subr.mxu0 0.0
  %2218 = vmatpush1.msra.mxu0 0.0
  %2219 = vmatprep.subr.mxu0 0.0
  %2220 = vmatpush1.msra.mxu0 0.0
  %2221 = vmatprep.subr.mxu0 0.0
  %2222 = vmatpush1.msra.mxu0 0.0
  %2223 = vmatprep.subr.mxu0 0.0
  %2224 = vmatpush1.msra.mxu0 0.0
  %2225 = vmatprep.subr.mxu0 0.0
  %2226 = vmatpush1.msra.mxu0 0.0
  %2227 = vmatprep.subr.mxu0 0.0
  %2228 = vmatpush1.msra.mxu0 0.0
  %2229 = vmatprep.subr.mxu0 0.0
  %2230 = vmatpush1.msra.mxu0 0.0
  %2231 = vmatprep.subr.mxu0 0.0
  %2232 = vmatpush1.msra.mxu0 0.0
  %2233 = vmatprep.subr.mxu0 0.0
  %2234 = vmatpush1.msra.mxu0 0.0
  %2235 = vmatprep.subr.mxu0 0.0
  %2236 = vmatpush1.msra.mxu0 0.0
  %2237 = vmatprep.subr.mxu0 0.0
  %2238 = vmatpush1.msra.mxu0 0.0
  %2239 = vmatprep.subr.mxu0 0.0
  %2240 = vmatpush1.msra.mxu0 0.0
  %2241 = vmatprep.subr.mxu0 0.0
  %2242 = vmatpush1.msra.mxu0 0.0
  %2243 = vmatprep.subr.mxu0 0.0
  %2244 = vmatpush1.msra.mxu0 0.0
  %2245 = vmatprep.subr.mxu0 0.0
  %2246 = vmatpush1.msra.mxu0 0.0
  %2247 = vmatprep.subr.mxu0 0.0
  %2248 = vmatpush1.msra.mxu0 0.0
  %2249 = vmatprep.subr.mxu0 0.0
  %2250 = vmatpush1.msra.mxu0 0.0
  %2251 = vmatprep.subr.mxu0 0.0
  %2252 = vmatpush1.msra.mxu0 0.0
  %2253 = vmatprep.subr.mxu0 0.0
  %2254 = vmatpush1.msra.mxu0 0.0
  %2255 = vmatprep.mubr.f32.mxu0 0.0
  %2256 = vmatmul.mubr.f32.gmra.mrb[0].mxu0 %v2186
  %v2257 = vpop.f32.mrb[0].mxu0
  %v2258 = vadd.f32 0.0, %v2257
  %v2259 = vpop.f32.mrb[0].mxu0
  %2260 = vmatprep.mubr.f32.mxu0 0.0
  %2261 = vmatmul.mubr.f32.gmra.mrb[0].mxu0 %v2189
  %v2262 = vpop.f32.mrb[0].mxu0
  %v2263 = vadd.f32 0.0, %v2262
  %v2264 = vpop.f32.mrb[0].mxu0
  %2265 = vdwg.mxu0
  %v2266 = vld [vmem:[%s39] sm:$0xff]
  %v2267 = vld [vmem:[%s39 + $0x8] sm:$0xff]
  %v2268 = vld [vmem:[%s41] sm:$0xff]
  %v2269 = vld [vmem:[%s41 + $0x8] sm:$0xff]
  %v2270 = vld [vmem:[%s43] sm:$0xf]
  %v2271 = vld [vmem:[%s43 + $0x4] sm:$0xf]
  %v2272 = vld [vmem:[%s45] sm:$0xff]
  %v2273 = vld [vmem:[%s45 + $0x8] sm:$0xff]
  %v2274 = vld [vmem:[%s47] sm:$0xff]
  %v2275 = vld [vmem:[%s47 + $0x8] sm:$0xff]
  %v2276 = vld [vmem:[%s49] sm:$0xff]
  %vm2277 = vcmask 64512
  %v2278 = vsel %vm2277, %v2258, 0.0
  %2279 = vadd.xlane.f32.xlu0 %v2278
  %v2280 = vpop.xlane.xlu0 %2279
  %v2281 = vsel %vm2277, %v2263, 0.0
  %2282 = vadd.xlane.f32.xlu0 %v2281
  %v2283 = vpop.xlane.xlu0 %2282
  %v2284 = vrcp.pop 8.0
  %v2285 = vmul.f32 %v2280, %v2284
  %v2286 = vmul.f32 %v2283, %v2284
  %v2287 = vmul.f32 %v2258, %v2258
  %v2288 = vmul.f32 %v2263, %v2263
  %v2289 = vsel %vm2277, %v2287, 0.0
  %2290 = vadd.xlane.f32.xlu0 %v2289
  %v2291 = vpop.xlane.xlu0 %2290
  %v2292 = vsel %vm2277, %v2288, 0.0
  %2293 = vadd.xlane.f32.xlu0 %v2292
  %v2294 = vpop.xlane.xlu0 %2293
  %v2295 = vmul.f32 %v2291, %v2284
  %v2296 = vmul.f32 %v2294, %v2284
  %v2297 = vmul.f32 %v2285, %v2285
  %v2298 = vmul.f32 %v2286, %v2286
  %v2299 = vsub.f32 %v2295, %v2297
  %v2300 = vsub.f32 %v2296, %v2298
  %v2301 = vadd.f32 %v2299, 1e-05
  %v2302 = vadd.f32 %v2300, 1e-05
  %v2303 = vrsqrt.pop %v2301
  %v2304 = vrsqrt.pop %v2302
  %v2305 = vmul.f32 %v2266, %v2303
  %v2306 = vmul.f32 %v2267, %v2304
  %2308 = vset.pattern.permute.xlu0 0
  %2309 = vperm.xlu0 %2308, %v2305
  %v2310 = vpop.permute.xlu0 %2309
  %2313 = vset.pattern.permute.xlu0 0
  %2314 = vperm.xlu0 %2313, %v2306
  %v2315 = vpop.permute.xlu0 %2314
  %v2317 = vmul.f32 %v2258, %v2310
  %v2318 = vmul.f32 %v2263, %v2315
  %v2319 = vmul.f32 %v2285, %v2305
  %v2320 = vmul.f32 %v2286, %v2306
  %v2321 = vsub.f32 %v2268, %v2319
  %v2322 = vsub.f32 %v2269, %v2320
  %2324 = vset.pattern.permute.xlu0 0
  %2325 = vperm.xlu0 %2324, %v2321
  %v2326 = vpop.permute.xlu0 %2325
  %2329 = vset.pattern.permute.xlu0 0
  %2330 = vperm.xlu0 %2329, %v2322
  %v2331 = vpop.permute.xlu0 %2330
  %v2333 = vadd.f32 %v2317, %v2326
  %v2334 = vadd.f32 %v2318, %v2331
  %v2335 = vmax.f32 %v2333, 0.0
  %v2336 = vmax.f32 %v2334, 0.0
  %v2337 = vpack.c.bf16 %v2336, %v2335
  %v2340 = vunpack.c.l.b16 %v2270
  %v2341 = vunpack.c.l.b16 %v2271
  %v2342 = vpack.c.b16 %v2341, %v2340
  %v2344 = vsel %vm230, %v2342, 0
  %2346 = vmatprep.subr.bf16.mxu0 0
  %2347 = vmatpush1.bf16.msra.mxu0 %v2337
  %2348 = vmatprep.subr.bf16.mxu0 0
  %2349 = vmatpush1.bf16.msra.mxu0 0
  %2350 = vmatprep.subr.bf16.mxu0 0
  %2351 = vmatpush1.bf16.msra.mxu0 0
  %2352 = vmatprep.subr.bf16.mxu0 0
  %2353 = vmatpush1.bf16.msra.mxu0 0
  %2354 = vmatprep.subr.bf16.mxu0 0
  %2355 = vmatpush1.bf16.msra.mxu0 0
  %2356 = vmatprep.subr.bf16.mxu0 0
  %2357 = vmatpush1.bf16.msra.mxu0 0
  %2358 = vmatprep.subr.bf16.mxu0 0
  %2359 = vmatpush1.bf16.msra.mxu0 0
  %2360 = vmatprep.subr.bf16.mxu0 0
  %2361 = vmatpush1.bf16.msra.mxu0 0
  %2362 = vmatprep.subr.bf16.mxu0 0
  %2363 = vmatpush1.bf16.msra.mxu0 0
  %2364 = vmatprep.subr.bf16.mxu0 0
  %2365 = vmatpush1.bf16.msra.mxu0 0
  %2366 = vmatprep.subr.bf16.mxu0 0
  %2367 = vmatpush1.bf16.msra.mxu0 0
  %2368 = vmatprep.subr.bf16.mxu0 0
  %2369 = vmatpush1.bf16.msra.mxu0 0
  %2370 = vmatprep.subr.bf16.mxu0 0
  %2371 = vmatpush1.bf16.msra.mxu0 0
  %2372 = vmatprep.subr.bf16.mxu0 0
  %2373 = vmatpush1.bf16.msra.mxu0 0
  %2374 = vmatprep.subr.bf16.mxu0 0
  %2375 = vmatpush1.bf16.msra.mxu0 0
  %2376 = vmatprep.subr.bf16.mxu0 0
  %2377 = vmatpush1.bf16.msra.mxu0 0
  %2378 = vmatprep.mubr.bf16.mxu0 0
  %2379 = vmatmul.mubr.bf16.gmra.mrb[0].mxu0 %v2344
  %v2380 = vpop.f32.mrb[0].mxu0
  %v2381 = vadd.f32 0.0, %v2380
  %v2382 = vpop.f32.mrb[0].mxu0
  %v2383 = vpop.f32.mrb[0].mxu0
  %v2384 = vadd.f32 0.0, %v2383
  %v2385 = vpop.f32.mrb[0].mxu0
  %2386 = vdwg.mxu0
  %v2387 = vsel %vm2277, %v2381, 0.0
  %2388 = vadd.xlane.f32.xlu0 %v2387
  %v2389 = vpop.xlane.xlu0 %2388
  %v2390 = vsel %vm2277, %v2384, 0.0
  %2391 = vadd.xlane.f32.xlu0 %v2390
  %v2392 = vpop.xlane.xlu0 %2391
  %v2393 = vmul.f32 %v2389, %v2284
  %v2394 = vmul.f32 %v2392, %v2284
  %v2395 = vmul.f32 %v2381, %v2381
  %v2396 = vmul.f32 %v2384, %v2384
  %v2397 = vsel %vm2277, %v2395, 0.0
  %2398 = vadd.xlane.f32.xlu0 %v2397
  %v2399 = vpop.xlane.xlu0 %2398
  %v2400 = vsel %vm2277, %v2396, 0.0
  %2401 = vadd.xlane.f32.xlu0 %v2400
  %v2402 = vpop.xlane.xlu0 %2401
  %v2403 = vmul.f32 %v2399, %v2284
  %v2404 = vmul.f32 %v2402, %v2284
  %v2405 = vmul.f32 %v2393, %v2393
  %v2406 = vmul.f32 %v2394, %v2394
  %v2407 = vsub.f32 %v2403, %v2405
  %v2408 = vsub.f32 %v2404, %v2406
  %v2409 = vadd.f32 %v2407, 1e-05
  %v2410 = vadd.f32 %v2408, 1e-05
  %v2411 = vrsqrt.pop %v2409
  %v2412 = vrsqrt.pop %v2410
  %v2413 = vmul.f32 %v2272, %v2411
  %v2414 = vmul.f32 %v2273, %v2412
  %2416 = vset.pattern.permute.xlu0 0
  %2417 = vperm.xlu0 %2416, %v2413
  %v2418 = vpop.permute.xlu0 %2417
  %2421 = vset.pattern.permute.xlu0 0
  %2422 = vperm.xlu0 %2421, %v2414
  %v2423 = vpop.permute.xlu0 %2422
  %v2425 = vmul.f32 %v2381, %v2418
  %v2426 = vmul.f32 %v2384, %v2423
  %v2427 = vmul.f32 %v2393, %v2413
  %v2428 = vmul.f32 %v2394, %v2414
  %v2429 = vsub.f32 %v2274, %v2427
  %v2430 = vsub.f32 %v2275, %v2428
  %2432 = vset.pattern.permute.xlu0 0
  %2433 = vperm.xlu0 %2432, %v2429
  %v2434 = vpop.permute.xlu0 %2433
  %2437 = vset.pattern.permute.xlu0 0
  %2438 = vperm.xlu0 %2437, %v2430
  %v2439 = vpop.permute.xlu0 %2438
  %v2441 = vadd.f32 %v2425, %v2434
  %v2442 = vadd.f32 %v2426, %v2439
  %v2443 = vmax.f32 %v2441, 0.0
  %v2444 = vmax.f32 %v2442, 0.0
  %v2445 = vld [vmem:[%s37] sm:$0xff]
  %v2447 = vsel %vm2277, %v2443, 0
  %v2450 = vsel %vm2277, %v2444, 0
  %2452 = vmatprep.subr.mxu0 0.0
  %2453 = vmatpush1.msra.mxu0 %v2445
  %2454 = vmatprep.subr.mxu0 0.0
  %2455 = vmatpush1.msra.mxu0 0.0
  %2456 = vmatprep.subr.mxu0 0.0
  %2457 = vmatpush1.msra.mxu0 0.0
  %2458 = vmatprep.subr.mxu0 0.0
  %2459 = vmatpush1.msra.mxu0 0.0
  %2460 = vmatprep.subr.mxu0 0.0
  %2461 = vmatpush1.msra.mxu0 0.0
  %2462 = vmatprep.subr.mxu0 0.0
  %2463 = vmatpush1.msra.mxu0 0.0
  %2464 = vmatprep.subr.mxu0 0.0
  %2465 = vmatpush1.msra.mxu0 0.0
  %2466 = vmatprep.subr.mxu0 0.0
  %2467 = vmatpush1.msra.mxu0 0.0
  %2468 = vmatprep.subr.mxu0 0.0
  %2469 = vmatpush1.msra.mxu0 0.0
  %2470 = vmatprep.subr.mxu0 0.0
  %2471 = vmatpush1.msra.mxu0 0.0
  %2472 = vmatprep.subr.mxu0 0.0
  %2473 = vmatpush1.msra.mxu0 0.0
  %2474 = vmatprep.subr.mxu0 0.0
  %2475 = vmatpush1.msra.mxu0 0.0
  %2476 = vmatprep.subr.mxu0 0.0
  %2477 = vmatpush1.msra.mxu0 0.0
  %2478 = vmatprep.subr.mxu0 0.0
  %2479 = vmatpush1.msra.mxu0 0.0
  %2480 = vmatprep.subr.mxu0 0.0
  %2481 = vmatpush1.msra.mxu0 0.0
  %2482 = vmatprep.subr.mxu0 0.0
  %2483 = vmatpush1.msra.mxu0 0.0
  %2484 = vmatprep.subr.mxu0 0.0
  %2485 = vmatpush1.msra.mxu0 0.0
  %2486 = vmatprep.subr.mxu0 0.0
  %2487 = vmatpush1.msra.mxu0 0.0
  %2488 = vmatprep.subr.mxu0 0.0
  %2489 = vmatpush1.msra.mxu0 0.0
  %2490 = vmatprep.subr.mxu0 0.0
  %2491 = vmatpush1.msra.mxu0 0.0
  %2492 = vmatprep.subr.mxu0 0.0
  %2493 = vmatpush1.msra.mxu0 0.0
  %2494 = vmatprep.subr.mxu0 0.0
  %2495 = vmatpush1.msra.mxu0 0.0
  %2496 = vmatprep.subr.mxu0 0.0
  %2497 = vmatpush1.msra.mxu0 0.0
  %2498 = vmatprep.subr.mxu0 0.0
  %2499 = vmatpush1.msra.mxu0 0.0
  %2500 = vmatprep.subr.mxu0 0.0
  %2501 = vmatpush1.msra.mxu0 0.0
  %2502 = vmatprep.subr.mxu0 0.0
  %2503 = vmatpush1.msra.mxu0 0.0
  %2504 = vmatprep.subr.mxu0 0.0
  %2505 = vmatpush1.msra.mxu0 0.0
  %2506 = vmatprep.subr.mxu0 0.0
  %2507 = vmatpush1.msra.mxu0 0.0
  %2508 = vmatprep.subr.mxu0 0.0
  %2509 = vmatpush1.msra.mxu0 0.0
  %2510 = vmatprep.subr.mxu0 0.0
  %2511 = vmatpush1.msra.mxu0 0.0
  %2512 = vmatprep.subr.mxu0 0.0
  %2513 = vmatpush1.msra.mxu0 0.0
  %2514 = vmatprep.subr.mxu0 0.0
  %2515 = vmatpush1.msra.mxu0 0.0
  %2516 = vmatprep.mubr.f32.mxu0 0.0
  %2517 = vmatmul.mubr.f32.gmra.mrb[0].mxu0 %v2447
  %v2518 = vpop.f32.mrb[0].mxu0
  %v2519 = vadd.f32 0.0, %v2518
  %v2520 = vpop.f32.mrb[0].mxu0
  %2521 = vmatprep.mubr.f32.mxu0 0.0
  %2522 = vmatmul.mubr.f32.gmra.mrb[0].mxu0 %v2450
  %v2523 = vpop.f32.mrb[0].mxu0
  %v2524 = vadd.f32 0.0, %v2523
  %v2525 = vpop.f32.mrb[0].mxu0
  %2526 = vdwg.mxu0
  %v2527 = vpack.c.bf16 %v2524, %v2519
  %s2528 = scalar_lea.vmem %s37, 8
  %v2529 = vld [vmem:[%s2528] sm:$0xff]
  %2530 = vmatprep.subr.mxu0 0.0
  %2531 = vmatpush1.msra.mxu0 %v2529
  %2532 = vmatprep.subr.mxu0 0.0
  %2533 = vmatpush1.msra.mxu0 0.0
  %2534 = vmatprep.subr.mxu0 0.0
  %2535 = vmatpush1.msra.mxu0 0.0
  %2536 = vmatprep.subr.mxu0 0.0
  %2537 = vmatpush1.msra.mxu0 0.0
  %2538 = vmatprep.subr.mxu0 0.0
  %2539 = vmatpush1.msra.mxu0 0.0
  %2540 = vmatprep.subr.mxu0 0.0
  %2541 = vmatpush1.msra.mxu0 0.0
  %2542 = vmatprep.subr.mxu0 0.0
  %2543 = vmatpush1.msra.mxu0 0.0
  %2544 = vmatprep.subr.mxu0 0.0
  %2545 = vmatpush1.msra.mxu0 0.0
  %2546 = vmatprep.subr.mxu0 0.0
  %2547 = vmatpush1.msra.mxu0 0.0
  %2548 = vmatprep.subr.mxu0 0.0
  %2549 = vmatpush1.msra.mxu0 0.0
  %2550 = vmatprep.subr.mxu0 0.0
  %2551 = vmatpush1.msra.mxu0 0.0
  %2552 = vmatprep.subr.mxu0 0.0
  %2553 = vmatpush1.msra.mxu0 0.0
  %2554 = vmatprep.subr.mxu0 0.0
  %2555 = vmatpush1.msra.mxu0 0.0
  %2556 = vmatprep.subr.mxu0 0.0
  %2557 = vmatpush1.msra.mxu0 0.0
  %2558 = vmatprep.subr.mxu0 0.0
  %2559 = vmatpush1.msra.mxu0 0.0
  %2560 = vmatprep.subr.mxu0 0.0
  %2561 = vmatpush1.msra.mxu0 0.0
  %2562 = vmatprep.subr.mxu0 0.0
  %2563 = vmatpush1.msra.mxu0 0.0
  %2564 = vmatprep.subr.mxu0 0.0
  %2565 = vmatpush1.msra.mxu0 0.0
  %2566 = vmatprep.subr.mxu0 0.0
  %2567 = vmatpush1.msra.mxu0 0.0
  %2568 = vmatprep.subr.mxu0 0.0
  %2569 = vmatpush1.msra.mxu0 0.0
  %2570 = vmatprep.subr.mxu0 0.0
  %2571 = vmatpush1.msra.mxu0 0.0
  %2572 = vmatprep.subr.mxu0 0.0
  %2573 = vmatpush1.msra.mxu0 0.0
  %2574 = vmatprep.subr.mxu0 0.0
  %2575 = vmatpush1.msra.mxu0 0.0
  %2576 = vmatprep.subr.mxu0 0.0
  %2577 = vmatpush1.msra.mxu0 0.0
  %2578 = vmatprep.subr.mxu0 0.0
  %2579 = vmatpush1.msra.mxu0 0.0
  %2580 = vmatprep.subr.mxu0 0.0
  %2581 = vmatpush1.msra.mxu0 0.0
  %2582 = vmatprep.subr.mxu0 0.0
  %2583 = vmatpush1.msra.mxu0 0.0
  %2584 = vmatprep.subr.mxu0 0.0
  %2585 = vmatpush1.msra.mxu0 0.0
  %2586 = vmatprep.subr.mxu0 0.0
  %2587 = vmatpush1.msra.mxu0 0.0
  %2588 = vmatprep.subr.mxu0 0.0
  %2589 = vmatpush1.msra.mxu0 0.0
  %2590 = vmatprep.subr.mxu0 0.0
  %2591 = vmatpush1.msra.mxu0 0.0
  %2592 = vmatprep.subr.mxu0 0.0
  %2593 = vmatpush1.msra.mxu0 0.0
  %2594 = vmatprep.mubr.f32.mxu0 0.0
  %2595 = vmatmul.mubr.f32.gmra.mrb[0].mxu0 %v2447
  %v2596 = vpop.f32.mrb[0].mxu0
  %v2597 = vadd.f32 0.0, %v2596
  %v2598 = vpop.f32.mrb[0].mxu0
  %2599 = vmatprep.mubr.f32.mxu0 0.0
  %2600 = vmatmul.mubr.f32.gmra.mrb[0].mxu0 %v2450
  %v2601 = vpop.f32.mrb[0].mxu0
  %v2602 = vadd.f32 0.0, %v2601
  %v2603 = vpop.f32.mrb[0].mxu0
  %2604 = vdwg.mxu0
  %v2605 = vpack.c.bf16 %v2602, %v2597
  %s2606 = scalar_lea.vmem %s37, 16
  %v2607 = vld [vmem:[%s2606] sm:$0xff]
  %2608 = vmatprep.subr.mxu0 0.0
  %2609 = vmatpush1.msra.mxu0 %v2607
  %2610 = vmatprep.subr.mxu0 0.0
  %2611 = vmatpush1.msra.mxu0 0.0
  %2612 = vmatprep.subr.mxu0 0.0
  %2613 = vmatpush1.msra.mxu0 0.0
  %2614 = vmatprep.subr.mxu0 0.0
  %2615 = vmatpush1.msra.mxu0 0.0
  %2616 = vmatprep.subr.mxu0 0.0
  %2617 = vmatpush1.msra.mxu0 0.0
  %2618 = vmatprep.subr.mxu0 0.0
  %2619 = vmatpush1.msra.mxu0 0.0
  %2620 = vmatprep.subr.mxu0 0.0
  %2621 = vmatpush1.msra.mxu0 0.0
  %2622 = vmatprep.subr.mxu0 0.0
  %2623 = vmatpush1.msra.mxu0 0.0
  %2624 = vmatprep.subr.mxu0 0.0
  %2625 = vmatpush1.msra.mxu0 0.0
  %2626 = vmatprep.subr.mxu0 0.0
  %2627 = vmatpush1.msra.mxu0 0.0
  %2628 = vmatprep.subr.mxu0 0.0
  %2629 = vmatpush1.msra.mxu0 0.0
  %2630 = vmatprep.subr.mxu0 0.0
  %2631 = vmatpush1.msra.mxu0 0.0
  %2632 = vmatprep.subr.mxu0 0.0
  %2633 = vmatpush1.msra.mxu0 0.0
  %2634 = vmatprep.subr.mxu0 0.0
  %2635 = vmatpush1.msra.mxu0 0.0
  %2636 = vmatprep.subr.mxu0 0.0
  %2637 = vmatpush1.msra.mxu0 0.0
  %2638 = vmatprep.subr.mxu0 0.0
  %2639 = vmatpush1.msra.mxu0 0.0
  %2640 = vmatprep.subr.mxu0 0.0
  %2641 = vmatpush1.msra.mxu0 0.0
  %2642 = vmatprep.subr.mxu0 0.0
  %2643 = vmatpush1.msra.mxu0 0.0
  %2644 = vmatprep.subr.mxu0 0.0
  %2645 = vmatpush1.msra.mxu0 0.0
  %2646 = vmatprep.subr.mxu0 0.0
  %2647 = vmatpush1.msra.mxu0 0.0
  %2648 = vmatprep.subr.mxu0 0.0
  %2649 = vmatpush1.msra.mxu0 0.0
  %2650 = vmatprep.subr.mxu0 0.0
  %2651 = vmatpush1.msra.mxu0 0.0
  %2652 = vmatprep.subr.mxu0 0.0
  %2653 = vmatpush1.msra.mxu0 0.0
  %2654 = vmatprep.subr.mxu0 0.0
  %2655 = vmatpush1.msra.mxu0 0.0
  %2656 = vmatprep.subr.mxu0 0.0
  %2657 = vmatpush1.msra.mxu0 0.0
  %2658 = vmatprep.subr.mxu0 0.0
  %2659 = vmatpush1.msra.mxu0 0.0
  %2660 = vmatprep.subr.mxu0 0.0
  %2661 = vmatpush1.msra.mxu0 0.0
  %2662 = vmatprep.subr.mxu0 0.0
  %2663 = vmatpush1.msra.mxu0 0.0
  %2664 = vmatprep.subr.mxu0 0.0
  %2665 = vmatpush1.msra.mxu0 0.0
  %2666 = vmatprep.subr.mxu0 0.0
  %2667 = vmatpush1.msra.mxu0 0.0
  %2668 = vmatprep.subr.mxu0 0.0
  %2669 = vmatpush1.msra.mxu0 0.0
  %2670 = vmatprep.subr.mxu0 0.0
  %2671 = vmatpush1.msra.mxu0 0.0
  %2672 = vmatprep.mubr.f32.mxu0 0.0
  %2673 = vmatmul.mubr.f32.gmra.mrb[0].mxu0 %v2447
  %v2674 = vpop.f32.mrb[0].mxu0
  %v2675 = vadd.f32 0.0, %v2674
  %v2676 = vpop.f32.mrb[0].mxu0
  %2677 = vmatprep.mubr.f32.mxu0 0.0
  %2678 = vmatmul.mubr.f32.gmra.mrb[0].mxu0 %v2450
  %v2679 = vpop.f32.mrb[0].mxu0
  %v2680 = vadd.f32 0.0, %v2679
  %v2681 = vpop.f32.mrb[0].mxu0
  %2682 = vdwg.mxu0
  %v2683 = vpack.c.bf16 %v2680, %v2675
  %s2684 = scalar_lea.vmem %s37, 24
  %v2685 = vld [vmem:[%s2684] sm:$0xff]
  %2686 = vmatprep.subr.mxu0 0.0
  %2687 = vmatpush1.msra.mxu0 %v2685
  %2688 = vmatprep.subr.mxu0 0.0
  %2689 = vmatpush1.msra.mxu0 0.0
  %2690 = vmatprep.subr.mxu0 0.0
  %2691 = vmatpush1.msra.mxu0 0.0
  %2692 = vmatprep.subr.mxu0 0.0
  %2693 = vmatpush1.msra.mxu0 0.0
  %2694 = vmatprep.subr.mxu0 0.0
  %2695 = vmatpush1.msra.mxu0 0.0
  %2696 = vmatprep.subr.mxu0 0.0
  %2697 = vmatpush1.msra.mxu0 0.0
  %2698 = vmatprep.subr.mxu0 0.0
  %2699 = vmatpush1.msra.mxu0 0.0
  %2700 = vmatprep.subr.mxu0 0.0
  %2701 = vmatpush1.msra.mxu0 0.0
  %2702 = vmatprep.subr.mxu0 0.0
  %2703 = vmatpush1.msra.mxu0 0.0
  %2704 = vmatprep.subr.mxu0 0.0
  %2705 = vmatpush1.msra.mxu0 0.0
  %2706 = vmatprep.subr.mxu0 0.0
  %2707 = vmatpush1.msra.mxu0 0.0
  %2708 = vmatprep.subr.mxu0 0.0
  %2709 = vmatpush1.msra.mxu0 0.0
  %2710 = vmatprep.subr.mxu0 0.0
  %2711 = vmatpush1.msra.mxu0 0.0
  %2712 = vmatprep.subr.mxu0 0.0
  %2713 = vmatpush1.msra.mxu0 0.0
  %2714 = vmatprep.subr.mxu0 0.0
  %2715 = vmatpush1.msra.mxu0 0.0
  %2716 = vmatprep.subr.mxu0 0.0
  %2717 = vmatpush1.msra.mxu0 0.0
  %2718 = vmatprep.subr.mxu0 0.0
  %2719 = vmatpush1.msra.mxu0 0.0
  %2720 = vmatprep.subr.mxu0 0.0
  %2721 = vmatpush1.msra.mxu0 0.0
  %2722 = vmatprep.subr.mxu0 0.0
  %2723 = vmatpush1.msra.mxu0 0.0
  %2724 = vmatprep.subr.mxu0 0.0
  %2725 = vmatpush1.msra.mxu0 0.0
  %2726 = vmatprep.subr.mxu0 0.0
  %2727 = vmatpush1.msra.mxu0 0.0
  %2728 = vmatprep.subr.mxu0 0.0
  %2729 = vmatpush1.msra.mxu0 0.0
  %2730 = vmatprep.subr.mxu0 0.0
  %2731 = vmatpush1.msra.mxu0 0.0
  %2732 = vmatprep.subr.mxu0 0.0
  %2733 = vmatpush1.msra.mxu0 0.0
  %2734 = vmatprep.subr.mxu0 0.0
  %2735 = vmatpush1.msra.mxu0 0.0
  %2736 = vmatprep.subr.mxu0 0.0
  %2737 = vmatpush1.msra.mxu0 0.0
  %2738 = vmatprep.subr.mxu0 0.0
  %2739 = vmatpush1.msra.mxu0 0.0
  %2740 = vmatprep.subr.mxu0 0.0
  %2741 = vmatpush1.msra.mxu0 0.0
  %2742 = vmatprep.subr.mxu0 0.0
  %2743 = vmatpush1.msra.mxu0 0.0
  %2744 = vmatprep.subr.mxu0 0.0
  %2745 = vmatpush1.msra.mxu0 0.0
  %2746 = vmatprep.subr.mxu0 0.0
  %2747 = vmatpush1.msra.mxu0 0.0
  %2748 = vmatprep.subr.mxu0 0.0
  %2749 = vmatpush1.msra.mxu0 0.0
  %2750 = vmatprep.mubr.f32.mxu0 0.0
  %2751 = vmatmul.mubr.f32.gmra.mrb[0].mxu0 %v2447
  %v2752 = vpop.f32.mrb[0].mxu0
  %v2753 = vadd.f32 0.0, %v2752
  %v2754 = vpop.f32.mrb[0].mxu0
  %2755 = vmatprep.mubr.f32.mxu0 0.0
  %2756 = vmatmul.mubr.f32.gmra.mrb[0].mxu0 %v2450
  %v2757 = vpop.f32.mrb[0].mxu0
  %v2758 = vadd.f32 0.0, %v2757
  %v2759 = vpop.f32.mrb[0].mxu0
  %2760 = vdwg.mxu0
  %v2761 = vpack.c.bf16 %v2758, %v2753
  %s2762 = scalar_lea.vmem %s37, 32
  %v2763 = vld [vmem:[%s2762] sm:$0xff]
  %2764 = vmatprep.subr.mxu0 0.0
  %2765 = vmatpush1.msra.mxu0 %v2763
  %2766 = vmatprep.subr.mxu0 0.0
  %2767 = vmatpush1.msra.mxu0 0.0
  %2768 = vmatprep.subr.mxu0 0.0
  %2769 = vmatpush1.msra.mxu0 0.0
  %2770 = vmatprep.subr.mxu0 0.0
  %2771 = vmatpush1.msra.mxu0 0.0
  %2772 = vmatprep.subr.mxu0 0.0
  %2773 = vmatpush1.msra.mxu0 0.0
  %2774 = vmatprep.subr.mxu0 0.0
  %2775 = vmatpush1.msra.mxu0 0.0
  %2776 = vmatprep.subr.mxu0 0.0
  %2777 = vmatpush1.msra.mxu0 0.0
  %2778 = vmatprep.subr.mxu0 0.0
  %2779 = vmatpush1.msra.mxu0 0.0
  %2780 = vmatprep.subr.mxu0 0.0
  %2781 = vmatpush1.msra.mxu0 0.0
  %2782 = vmatprep.subr.mxu0 0.0
  %2783 = vmatpush1.msra.mxu0 0.0
  %2784 = vmatprep.subr.mxu0 0.0
  %2785 = vmatpush1.msra.mxu0 0.0
  %2786 = vmatprep.subr.mxu0 0.0
  %2787 = vmatpush1.msra.mxu0 0.0
  %2788 = vmatprep.subr.mxu0 0.0
  %2789 = vmatpush1.msra.mxu0 0.0
  %2790 = vmatprep.subr.mxu0 0.0
  %2791 = vmatpush1.msra.mxu0 0.0
  %2792 = vmatprep.subr.mxu0 0.0
  %2793 = vmatpush1.msra.mxu0 0.0
  %2794 = vmatprep.subr.mxu0 0.0
  %2795 = vmatpush1.msra.mxu0 0.0
  %2796 = vmatprep.subr.mxu0 0.0
  %2797 = vmatpush1.msra.mxu0 0.0
  %2798 = vmatprep.subr.mxu0 0.0
  %2799 = vmatpush1.msra.mxu0 0.0
  %2800 = vmatprep.subr.mxu0 0.0
  %2801 = vmatpush1.msra.mxu0 0.0
  %2802 = vmatprep.subr.mxu0 0.0
  %2803 = vmatpush1.msra.mxu0 0.0
  %2804 = vmatprep.subr.mxu0 0.0
  %2805 = vmatpush1.msra.mxu0 0.0
  %2806 = vmatprep.subr.mxu0 0.0
  %2807 = vmatpush1.msra.mxu0 0.0
  %2808 = vmatprep.subr.mxu0 0.0
  %2809 = vmatpush1.msra.mxu0 0.0
  %2810 = vmatprep.subr.mxu0 0.0
  %2811 = vmatpush1.msra.mxu0 0.0
  %2812 = vmatprep.subr.mxu0 0.0
  %2813 = vmatpush1.msra.mxu0 0.0
  %2814 = vmatprep.subr.mxu0 0.0
  %2815 = vmatpush1.msra.mxu0 0.0
  %2816 = vmatprep.subr.mxu0 0.0
  %2817 = vmatpush1.msra.mxu0 0.0
  %2818 = vmatprep.subr.mxu0 0.0
  %2819 = vmatpush1.msra.mxu0 0.0
  %2820 = vmatprep.subr.mxu0 0.0
  %2821 = vmatpush1.msra.mxu0 0.0
  %2822 = vmatprep.subr.mxu0 0.0
  %2823 = vmatpush1.msra.mxu0 0.0
  %2824 = vmatprep.subr.mxu0 0.0
  %2825 = vmatpush1.msra.mxu0 0.0
  %2826 = vmatprep.subr.mxu0 0.0
  %2827 = vmatpush1.msra.mxu0 0.0
  %2828 = vmatprep.mubr.f32.mxu0 0.0
  %2829 = vmatmul.mubr.f32.gmra.mrb[0].mxu0 %v2447
  %v2830 = vpop.f32.mrb[0].mxu0
  %v2831 = vadd.f32 0.0, %v2830
  %v2832 = vpop.f32.mrb[0].mxu0
  %2833 = vmatprep.mubr.f32.mxu0 0.0
  %2834 = vmatmul.mubr.f32.gmra.mrb[0].mxu0 %v2450
  %v2835 = vpop.f32.mrb[0].mxu0
  %v2836 = vadd.f32 0.0, %v2835
  %v2837 = vpop.f32.mrb[0].mxu0
  %2838 = vdwg.mxu0
  %v2839 = vpack.c.bf16 %v2836, %v2831
  %s2840 = scalar_lea.vmem %s37, 40
  %v2841 = vld [vmem:[%s2840] sm:$0xff]
  %2842 = vmatprep.subr.mxu0 0.0
  %2843 = vmatpush1.msra.mxu0 %v2841
  %2844 = vmatprep.subr.mxu0 0.0
  %2845 = vmatpush1.msra.mxu0 0.0
  %2846 = vmatprep.subr.mxu0 0.0
  %2847 = vmatpush1.msra.mxu0 0.0
  %2848 = vmatprep.subr.mxu0 0.0
  %2849 = vmatpush1.msra.mxu0 0.0
  %2850 = vmatprep.subr.mxu0 0.0
  %2851 = vmatpush1.msra.mxu0 0.0
  %2852 = vmatprep.subr.mxu0 0.0
  %2853 = vmatpush1.msra.mxu0 0.0
  %2854 = vmatprep.subr.mxu0 0.0
  %2855 = vmatpush1.msra.mxu0 0.0
  %2856 = vmatprep.subr.mxu0 0.0
  %2857 = vmatpush1.msra.mxu0 0.0
  %2858 = vmatprep.subr.mxu0 0.0
  %2859 = vmatpush1.msra.mxu0 0.0
  %2860 = vmatprep.subr.mxu0 0.0
  %2861 = vmatpush1.msra.mxu0 0.0
  %2862 = vmatprep.subr.mxu0 0.0
  %2863 = vmatpush1.msra.mxu0 0.0
  %2864 = vmatprep.subr.mxu0 0.0
  %2865 = vmatpush1.msra.mxu0 0.0
  %2866 = vmatprep.subr.mxu0 0.0
  %2867 = vmatpush1.msra.mxu0 0.0
  %2868 = vmatprep.subr.mxu0 0.0
  %2869 = vmatpush1.msra.mxu0 0.0
  %2870 = vmatprep.subr.mxu0 0.0
  %2871 = vmatpush1.msra.mxu0 0.0
  %2872 = vmatprep.subr.mxu0 0.0
  %2873 = vmatpush1.msra.mxu0 0.0
  %2874 = vmatprep.subr.mxu0 0.0
  %2875 = vmatpush1.msra.mxu0 0.0
  %2876 = vmatprep.subr.mxu0 0.0
  %2877 = vmatpush1.msra.mxu0 0.0
  %2878 = vmatprep.subr.mxu0 0.0
  %2879 = vmatpush1.msra.mxu0 0.0
  %2880 = vmatprep.subr.mxu0 0.0
  %2881 = vmatpush1.msra.mxu0 0.0
  %2882 = vmatprep.subr.mxu0 0.0
  %2883 = vmatpush1.msra.mxu0 0.0
  %2884 = vmatprep.subr.mxu0 0.0
  %2885 = vmatpush1.msra.mxu0 0.0
  %2886 = vmatprep.subr.mxu0 0.0
  %2887 = vmatpush1.msra.mxu0 0.0
  %2888 = vmatprep.subr.mxu0 0.0
  %2889 = vmatpush1.msra.mxu0 0.0
  %2890 = vmatprep.subr.mxu0 0.0
  %2891 = vmatpush1.msra.mxu0 0.0
  %2892 = vmatprep.subr.mxu0 0.0
  %2893 = vmatpush1.msra.mxu0 0.0
  %2894 = vmatprep.subr.mxu0 0.0
  %2895 = vmatpush1.msra.mxu0 0.0
  %2896 = vmatprep.subr.mxu0 0.0
  %2897 = vmatpush1.msra.mxu0 0.0
  %2898 = vmatprep.subr.mxu0 0.0
  %2899 = vmatpush1.msra.mxu0 0.0
  %2900 = vmatprep.subr.mxu0 0.0
  %2901 = vmatpush1.msra.mxu0 0.0
  %2902 = vmatprep.subr.mxu0 0.0
  %2903 = vmatpush1.msra.mxu0 0.0
  %2904 = vmatprep.subr.mxu0 0.0
  %2905 = vmatpush1.msra.mxu0 0.0
  %2906 = vmatprep.mubr.f32.mxu0 0.0
  %2907 = vmatmul.mubr.f32.gmra.mrb[0].mxu0 %v2447
  %v2908 = vpop.f32.mrb[0].mxu0
  %v2909 = vadd.f32 0.0, %v2908
  %v2910 = vpop.f32.mrb[0].mxu0
  %2911 = vmatprep.mubr.f32.mxu0 0.0
  %2912 = vmatmul.mubr.f32.gmra.mrb[0].mxu0 %v2450
  %v2913 = vpop.f32.mrb[0].mxu0
  %v2914 = vadd.f32 0.0, %v2913
  %v2915 = vpop.f32.mrb[0].mxu0
  %2916 = vdwg.mxu0
  %v2917 = vpack.c.bf16 %v2914, %v2909
  %s2918 = scalar_lea.vmem %s37, 48
  %v2919 = vld [vmem:[%s2918] sm:$0xff]
  %2920 = vmatprep.subr.mxu0 0.0
  %2921 = vmatpush1.msra.mxu0 %v2919
  %2922 = vmatprep.subr.mxu0 0.0
  %2923 = vmatpush1.msra.mxu0 0.0
  %2924 = vmatprep.subr.mxu0 0.0
  %2925 = vmatpush1.msra.mxu0 0.0
  %2926 = vmatprep.subr.mxu0 0.0
  %2927 = vmatpush1.msra.mxu0 0.0
  %2928 = vmatprep.subr.mxu0 0.0
  %2929 = vmatpush1.msra.mxu0 0.0
  %2930 = vmatprep.subr.mxu0 0.0
  %2931 = vmatpush1.msra.mxu0 0.0
  %2932 = vmatprep.subr.mxu0 0.0
  %2933 = vmatpush1.msra.mxu0 0.0
  %2934 = vmatprep.subr.mxu0 0.0
  %2935 = vmatpush1.msra.mxu0 0.0
  %2936 = vmatprep.subr.mxu0 0.0
  %2937 = vmatpush1.msra.mxu0 0.0
  %2938 = vmatprep.subr.mxu0 0.0
  %2939 = vmatpush1.msra.mxu0 0.0
  %2940 = vmatprep.subr.mxu0 0.0
  %2941 = vmatpush1.msra.mxu0 0.0
  %2942 = vmatprep.subr.mxu0 0.0
  %2943 = vmatpush1.msra.mxu0 0.0
  %2944 = vmatprep.subr.mxu0 0.0
  %2945 = vmatpush1.msra.mxu0 0.0
  %2946 = vmatprep.subr.mxu0 0.0
  %2947 = vmatpush1.msra.mxu0 0.0
  %2948 = vmatprep.subr.mxu0 0.0
  %2949 = vmatpush1.msra.mxu0 0.0
  %2950 = vmatprep.subr.mxu0 0.0
  %2951 = vmatpush1.msra.mxu0 0.0
  %2952 = vmatprep.subr.mxu0 0.0
  %2953 = vmatpush1.msra.mxu0 0.0
  %2954 = vmatprep.subr.mxu0 0.0
  %2955 = vmatpush1.msra.mxu0 0.0
  %2956 = vmatprep.subr.mxu0 0.0
  %2957 = vmatpush1.msra.mxu0 0.0
  %2958 = vmatprep.subr.mxu0 0.0
  %2959 = vmatpush1.msra.mxu0 0.0
  %2960 = vmatprep.subr.mxu0 0.0
  %2961 = vmatpush1.msra.mxu0 0.0
  %2962 = vmatprep.subr.mxu0 0.0
  %2963 = vmatpush1.msra.mxu0 0.0
  %2964 = vmatprep.subr.mxu0 0.0
  %2965 = vmatpush1.msra.mxu0 0.0
  %2966 = vmatprep.subr.mxu0 0.0
  %2967 = vmatpush1.msra.mxu0 0.0
  %2968 = vmatprep.subr.mxu0 0.0
  %2969 = vmatpush1.msra.mxu0 0.0
  %2970 = vmatprep.subr.mxu0 0.0
  %2971 = vmatpush1.msra.mxu0 0.0
  %2972 = vmatprep.subr.mxu0 0.0
  %2973 = vmatpush1.msra.mxu0 0.0
  %2974 = vmatprep.subr.mxu0 0.0
  %2975 = vmatpush1.msra.mxu0 0.0
  %2976 = vmatprep.subr.mxu0 0.0
  %2977 = vmatpush1.msra.mxu0 0.0
  %2978 = vmatprep.subr.mxu0 0.0
  %2979 = vmatpush1.msra.mxu0 0.0
  %2980 = vmatprep.subr.mxu0 0.0
  %2981 = vmatpush1.msra.mxu0 0.0
  %2982 = vmatprep.subr.mxu0 0.0
  %2983 = vmatpush1.msra.mxu0 0.0
  %2984 = vmatprep.mubr.f32.mxu0 0.0
  %2985 = vmatmul.mubr.f32.gmra.mrb[0].mxu0 %v2447
  %v2986 = vpop.f32.mrb[0].mxu0
  %v2987 = vadd.f32 0.0, %v2986
  %v2988 = vpop.f32.mrb[0].mxu0
  %2989 = vmatprep.mubr.f32.mxu0 0.0
  %2990 = vmatmul.mubr.f32.gmra.mrb[0].mxu0 %v2450
  %v2991 = vpop.f32.mrb[0].mxu0
  %v2992 = vadd.f32 0.0, %v2991
  %v2993 = vpop.f32.mrb[0].mxu0
  %2994 = vdwg.mxu0
  %v2995 = vpack.c.bf16 %v2992, %v2987
  %s2996 = scalar_lea.vmem %s37, 56
  %v2997 = vld [vmem:[%s2996] sm:$0xff]
  %2998 = vmatprep.subr.mxu0 0.0
  %2999 = vmatpush1.msra.mxu0 %v2997
  %3000 = vmatprep.subr.mxu0 0.0
  %3001 = vmatpush1.msra.mxu0 0.0
  %3002 = vmatprep.subr.mxu0 0.0
  %3003 = vmatpush1.msra.mxu0 0.0
  %3004 = vmatprep.subr.mxu0 0.0
  %3005 = vmatpush1.msra.mxu0 0.0
  %3006 = vmatprep.subr.mxu0 0.0
  %3007 = vmatpush1.msra.mxu0 0.0
  %3008 = vmatprep.subr.mxu0 0.0
  %3009 = vmatpush1.msra.mxu0 0.0
  %3010 = vmatprep.subr.mxu0 0.0
  %3011 = vmatpush1.msra.mxu0 0.0
  %3012 = vmatprep.subr.mxu0 0.0
  %3013 = vmatpush1.msra.mxu0 0.0
  %3014 = vmatprep.subr.mxu0 0.0
  %3015 = vmatpush1.msra.mxu0 0.0
  %3016 = vmatprep.subr.mxu0 0.0
  %3017 = vmatpush1.msra.mxu0 0.0
  %3018 = vmatprep.subr.mxu0 0.0
  %3019 = vmatpush1.msra.mxu0 0.0
  %3020 = vmatprep.subr.mxu0 0.0
  %3021 = vmatpush1.msra.mxu0 0.0
  %3022 = vmatprep.subr.mxu0 0.0
  %3023 = vmatpush1.msra.mxu0 0.0
  %3024 = vmatprep.subr.mxu0 0.0
  %3025 = vmatpush1.msra.mxu0 0.0
  %3026 = vmatprep.subr.mxu0 0.0
  %3027 = vmatpush1.msra.mxu0 0.0
  %3028 = vmatprep.subr.mxu0 0.0
  %3029 = vmatpush1.msra.mxu0 0.0
  %3030 = vmatprep.subr.mxu0 0.0
  %3031 = vmatpush1.msra.mxu0 0.0
  %3032 = vmatprep.subr.mxu0 0.0
  %3033 = vmatpush1.msra.mxu0 0.0
  %3034 = vmatprep.subr.mxu0 0.0
  %3035 = vmatpush1.msra.mxu0 0.0
  %3036 = vmatprep.subr.mxu0 0.0
  %3037 = vmatpush1.msra.mxu0 0.0
  %3038 = vmatprep.subr.mxu0 0.0
  %3039 = vmatpush1.msra.mxu0 0.0
  %3040 = vmatprep.subr.mxu0 0.0
  %3041 = vmatpush1.msra.mxu0 0.0
  %3042 = vmatprep.subr.mxu0 0.0
  %3043 = vmatpush1.msra.mxu0 0.0
  %3044 = vmatprep.subr.mxu0 0.0
  %3045 = vmatpush1.msra.mxu0 0.0
  %3046 = vmatprep.subr.mxu0 0.0
  %3047 = vmatpush1.msra.mxu0 0.0
  %3048 = vmatprep.subr.mxu0 0.0
  %3049 = vmatpush1.msra.mxu0 0.0
  %3050 = vmatprep.subr.mxu0 0.0
  %3051 = vmatpush1.msra.mxu0 0.0
  %3052 = vmatprep.subr.mxu0 0.0
  %3053 = vmatpush1.msra.mxu0 0.0
  %3054 = vmatprep.subr.mxu0 0.0
  %3055 = vmatpush1.msra.mxu0 0.0
  %3056 = vmatprep.subr.mxu0 0.0
  %3057 = vmatpush1.msra.mxu0 0.0
  %3058 = vmatprep.subr.mxu0 0.0
  %3059 = vmatpush1.msra.mxu0 0.0
  %3060 = vmatprep.subr.mxu0 0.0
  %3061 = vmatpush1.msra.mxu0 0.0
  %3062 = vmatprep.mubr.f32.mxu0 0.0
  %3063 = vmatmul.mubr.f32.gmra.mrb[0].mxu0 %v2447
  %v3064 = vpop.f32.mrb[0].mxu0
  %v3065 = vadd.f32 0.0, %v3064
  %v3066 = vpop.f32.mrb[0].mxu0
  %3067 = vmatprep.mubr.f32.mxu0 0.0
  %3068 = vmatmul.mubr.f32.gmra.mrb[0].mxu0 %v2450
  %v3069 = vpop.f32.mrb[0].mxu0
  %v3070 = vadd.f32 0.0, %v3069
  %v3071 = vpop.f32.mrb[0].mxu0
  %3072 = vdwg.mxu0
  %v3073 = vpack.c.bf16 %v3070, %v3065
  %s3074 = scalar_lea.vmem %s37, 64
  %v3075 = vld [vmem:[%s3074] sm:$0xff]
  %3076 = vmatprep.subr.mxu0 0.0
  %3077 = vmatpush1.msra.mxu0 %v3075
  %3078 = vmatprep.subr.mxu0 0.0
  %3079 = vmatpush1.msra.mxu0 0.0
  %3080 = vmatprep.subr.mxu0 0.0
  %3081 = vmatpush1.msra.mxu0 0.0
  %3082 = vmatprep.subr.mxu0 0.0
  %3083 = vmatpush1.msra.mxu0 0.0
  %3084 = vmatprep.subr.mxu0 0.0
  %3085 = vmatpush1.msra.mxu0 0.0
  %3086 = vmatprep.subr.mxu0 0.0
  %3087 = vmatpush1.msra.mxu0 0.0
  %3088 = vmatprep.subr.mxu0 0.0
  %3089 = vmatpush1.msra.mxu0 0.0
  %3090 = vmatprep.subr.mxu0 0.0
  %3091 = vmatpush1.msra.mxu0 0.0
  %3092 = vmatprep.subr.mxu0 0.0
  %3093 = vmatpush1.msra.mxu0 0.0
  %3094 = vmatprep.subr.mxu0 0.0
  %3095 = vmatpush1.msra.mxu0 0.0
  %3096 = vmatprep.subr.mxu0 0.0
  %3097 = vmatpush1.msra.mxu0 0.0
  %3098 = vmatprep.subr.mxu0 0.0
  %3099 = vmatpush1.msra.mxu0 0.0
  %3100 = vmatprep.subr.mxu0 0.0
  %3101 = vmatpush1.msra.mxu0 0.0
  %3102 = vmatprep.subr.mxu0 0.0
  %3103 = vmatpush1.msra.mxu0 0.0
  %3104 = vmatprep.subr.mxu0 0.0
  %3105 = vmatpush1.msra.mxu0 0.0
  %3106 = vmatprep.subr.mxu0 0.0
  %3107 = vmatpush1.msra.mxu0 0.0
  %3108 = vmatprep.subr.mxu0 0.0
  %3109 = vmatpush1.msra.mxu0 0.0
  %3110 = vmatprep.subr.mxu0 0.0
  %3111 = vmatpush1.msra.mxu0 0.0
  %3112 = vmatprep.subr.mxu0 0.0
  %3113 = vmatpush1.msra.mxu0 0.0
  %3114 = vmatprep.subr.mxu0 0.0
  %3115 = vmatpush1.msra.mxu0 0.0
  %3116 = vmatprep.subr.mxu0 0.0
  %3117 = vmatpush1.msra.mxu0 0.0
  %3118 = vmatprep.subr.mxu0 0.0
  %3119 = vmatpush1.msra.mxu0 0.0
  %3120 = vmatprep.subr.mxu0 0.0
  %3121 = vmatpush1.msra.mxu0 0.0
  %3122 = vmatprep.subr.mxu0 0.0
  %3123 = vmatpush1.msra.mxu0 0.0
  %3124 = vmatprep.subr.mxu0 0.0
  %3125 = vmatpush1.msra.mxu0 0.0
  %3126 = vmatprep.subr.mxu0 0.0
  %3127 = vmatpush1.msra.mxu0 0.0
  %3128 = vmatprep.subr.mxu0 0.0
  %3129 = vmatpush1.msra.mxu0 0.0
  %3130 = vmatprep.subr.mxu0 0.0
  %3131 = vmatpush1.msra.mxu0 0.0
  %3132 = vmatprep.subr.mxu0 0.0
  %3133 = vmatpush1.msra.mxu0 0.0
  %3134 = vmatprep.subr.mxu0 0.0
  %3135 = vmatpush1.msra.mxu0 0.0
  %3136 = vmatprep.subr.mxu0 0.0
  %3137 = vmatpush1.msra.mxu0 0.0
  %3138 = vmatprep.subr.mxu0 0.0
  %3139 = vmatpush1.msra.mxu0 0.0
  %3140 = vmatprep.mubr.f32.mxu0 0.0
  %3141 = vmatmul.mubr.f32.gmra.mrb[0].mxu0 %v2447
  %v3142 = vpop.f32.mrb[0].mxu0
  %v3143 = vadd.f32 0.0, %v3142
  %v3144 = vpop.f32.mrb[0].mxu0
  %3145 = vmatprep.mubr.f32.mxu0 0.0
  %3146 = vmatmul.mubr.f32.gmra.mrb[0].mxu0 %v2450
  %v3147 = vpop.f32.mrb[0].mxu0
  %v3148 = vadd.f32 0.0, %v3147
  %v3149 = vpop.f32.mrb[0].mxu0
  %3150 = vdwg.mxu0
  %v3151 = vpack.c.bf16 %v3148, %v3143
  %v3153 = vunpack.c.l.b16 %v2276
  %v3154 = vunpack.c.h.b16 %v2276
  %v3155 = vpack.c.b16 %v3153, %v3153
  %v3156 = vpack.c.b16 %v3154, %v3154
  %v3159 = vsel %vm230, %v3156, 0
  %3161 = vmatprep.subr.bf16.mxu0 0
  %3162 = vmatpush1.bf16.msra.mxu0 %v2527
  %3163 = vmatprep.subr.bf16.mxu0 0
  %3164 = vmatpush1.bf16.msra.mxu0 %v2605
  %3165 = vmatprep.subr.bf16.mxu0 0
  %3166 = vmatpush1.bf16.msra.mxu0 %v2683
  %3167 = vmatprep.subr.bf16.mxu0 0
  %3168 = vmatpush1.bf16.msra.mxu0 %v2761
  %3169 = vmatprep.subr.bf16.mxu0 0
  %3170 = vmatpush1.bf16.msra.mxu0 %v2839
  %3171 = vmatprep.subr.bf16.mxu0 0
  %3172 = vmatpush1.bf16.msra.mxu0 %v2917
  %3173 = vmatprep.subr.bf16.mxu0 0
  %3174 = vmatpush1.bf16.msra.mxu0 %v2995
  %3175 = vmatprep.subr.bf16.mxu0 0
  %3176 = vmatpush1.bf16.msra.mxu0 %v3073
  %3177 = vmatprep.subr.bf16.mxu0 0
  %3178 = vmatpush1.bf16.msra.mxu0 %v3151
  %3179 = vmatprep.subr.bf16.mxu0 0
  %3180 = vmatpush1.bf16.msra.mxu0 0
  %3181 = vmatprep.subr.bf16.mxu0 0
  %3182 = vmatpush1.bf16.msra.mxu0 0
  %3183 = vmatprep.subr.bf16.mxu0 0
  %3184 = vmatpush1.bf16.msra.mxu0 0
  %3185 = vmatprep.subr.bf16.mxu0 0
  %3186 = vmatpush1.bf16.msra.mxu0 0
  %3187 = vmatprep.subr.bf16.mxu0 0
  %3188 = vmatpush1.bf16.msra.mxu0 0
  %3189 = vmatprep.subr.bf16.mxu0 0
  %3190 = vmatpush1.bf16.msra.mxu0 0
  %3191 = vmatprep.subr.bf16.mxu0 0
  %3192 = vmatpush1.bf16.msra.mxu0 0
  %3193 = vmatprep.mubr.bf16.mxu0 %v3159
  %3194 = vmatmul.mubr.bf16.gmra.mrb[0].mxu0 %v3155
  %v3195 = vpop.f32.mrb[0].mxu0
  %v3196 = vadd.f32 0.0, %v3195
  %v3197 = vpop.f32.mrb[0].mxu0
  %v3198 = vpop.f32.mrb[0].mxu0
  %v3199 = vpop.f32.mrb[0].mxu0
  %3200 = vdwg.mxu0
  %v3201 = vld [vmem:[%s51] sm:$0xff]
  %v3202 = vld [vmem:[%s51 + $0x8] sm:$0xff]
  %v3203 = vld [vmem:[%s51 + $0x10] sm:$0xff]
  %v3204 = vld [vmem:[%s53] sm:$0xff]
  %v3205 = vld [vmem:[%s53 + $0x8] sm:$0xff]
  %v3206 = vld [vmem:[%s53 + $0x10] sm:$0xff]
  %v3207 = vld [vmem:[%s55] sm:$0xf]
  %v3208 = vld [vmem:[%s55 + $0x4] sm:$0xf]
  %v3209 = vld [vmem:[%s57] sm:$0xff]
  %v3210 = vld [vmem:[%s57 + $0x8] sm:$0xff]
  %v3211 = vld [vmem:[%s59] sm:$0xff]
  %v3212 = vld [vmem:[%s59 + $0x8] sm:$0xff]
  %v3213 = vld [vmem:[%s61] sm:$0xff]
  %v3214 = vsel %vm2277, %v3196, 0.0
  %3215 = vadd.xlane.f32.xlu0 %v3214
  %v3216 = vpop.xlane.xlu0 %3215
  %v3217 = vmul.f32 %v3216, %v2284
  %v3218 = vmul.f32 %v3196, %v3196
  %v3219 = vsel %vm2277, %v3218, 0.0
  %3220 = vadd.xlane.f32.xlu0 %v3219
  %v3221 = vpop.xlane.xlu0 %3220
  %v3222 = vmul.f32 %v3221, %v2284
  %v3223 = vmul.f32 %v3217, %v3217
  %v3224 = vsub.f32 %v3222, %v3223
  %v3225 = vadd.f32 %v3224, 1e-05
  %v3226 = vrsqrt.pop %v3225
  %v3227 = vmul.f32 %v3201, %v2303
  %v3228 = vmul.f32 %v3202, %v2304
  %v3229 = vmul.f32 %v3203, %v3226
  %3231 = vset.pattern.permute.xlu0 0
  %3232 = vperm.xlu0 %3231, %v3227
  %v3233 = vpop.permute.xlu0 %3232
  %3236 = vset.pattern.permute.xlu0 0
  %3237 = vperm.xlu0 %3236, %v3228
  %v3238 = vpop.permute.xlu0 %3237
  %3241 = vset.pattern.permute.xlu0 0
  %3242 = vperm.xlu0 %3241, %v3229
  %v3243 = vpop.permute.xlu0 %3242
  %v3245 = vmul.f32 %v2258, %v3233
  %v3246 = vmul.f32 %v2263, %v3238
  %v3247 = vmul.f32 %v3196, %v3243
  %v3248 = vmul.f32 %v2285, %v3227
  %v3249 = vmul.f32 %v2286, %v3228
  %v3250 = vmul.f32 %v3217, %v3229
  %v3251 = vsub.f32 %v3204, %v3248
  %v3252 = vsub.f32 %v3205, %v3249
  %v3253 = vsub.f32 %v3206, %v3250
  %3255 = vset.pattern.permute.xlu0 0
  %3256 = vperm.xlu0 %3255, %v3251
  %v3257 = vpop.permute.xlu0 %3256
  %3260 = vset.pattern.permute.xlu0 0
  %3261 = vperm.xlu0 %3260, %v3252
  %v3262 = vpop.permute.xlu0 %3261
  %3265 = vset.pattern.permute.xlu0 0
  %3266 = vperm.xlu0 %3265, %v3253
  %v3267 = vpop.permute.xlu0 %3266
  %v3269 = vadd.f32 %v3245, %v3257
  %v3270 = vadd.f32 %v3246, %v3262
  %v3271 = vadd.f32 %v3247, %v3267
  %v3272 = vmax.f32 %v3269, 0.0
  %v3273 = vmax.f32 %v3270, 0.0
  %v3274 = vmax.f32 %v3271, 0.0
  %v3275 = vpack.c.bf16 %v3273, %v3272
  %v3276 = vpack.c.bf16 %v3274, %v3274
  %v3279 = vunpack.c.l.b16 %v3207
  %v3280 = vunpack.c.l.b16 %v3208
  %v3281 = vpack.c.b16 %v3280, %v3279
  %v3283 = vsel %vm1197, %v3281, 0
  %v3286 = vsel %vm1201, %v3276, 0
  %3288 = vmatprep.subr.bf16.mxu0 0
  %3289 = vmatpush1.bf16.msra.mxu0 %v3275
  %3290 = vmatprep.subr.bf16.mxu0 0
  %3291 = vmatpush1.bf16.msra.mxu0 %v3286
  %3292 = vmatprep.subr.bf16.mxu0 0
  %3293 = vmatpush1.bf16.msra.mxu0 0
  %3294 = vmatprep.subr.bf16.mxu0 0
  %3295 = vmatpush1.bf16.msra.mxu0 0
  %3296 = vmatprep.subr.bf16.mxu0 0
  %3297 = vmatpush1.bf16.msra.mxu0 0
  %3298 = vmatprep.subr.bf16.mxu0 0
  %3299 = vmatpush1.bf16.msra.mxu0 0
  %3300 = vmatprep.subr.bf16.mxu0 0
  %3301 = vmatpush1.bf16.msra.mxu0 0
  %3302 = vmatprep.subr.bf16.mxu0 0
  %3303 = vmatpush1.bf16.msra.mxu0 0
  %3304 = vmatprep.subr.bf16.mxu0 0
  %3305 = vmatpush1.bf16.msra.mxu0 0
  %3306 = vmatprep.subr.bf16.mxu0 0
  %3307 = vmatpush1.bf16.msra.mxu0 0
  %3308 = vmatprep.subr.bf16.mxu0 0
  %3309 = vmatpush1.bf16.msra.mxu0 0
  %3310 = vmatprep.subr.bf16.mxu0 0
  %3311 = vmatpush1.bf16.msra.mxu0 0
  %3312 = vmatprep.subr.bf16.mxu0 0
  %3313 = vmatpush1.bf16.msra.mxu0 0
  %3314 = vmatprep.subr.bf16.mxu0 0
  %3315 = vmatpush1.bf16.msra.mxu0 0
  %3316 = vmatprep.subr.bf16.mxu0 0
  %3317 = vmatpush1.bf16.msra.mxu0 0
  %3318 = vmatprep.subr.bf16.mxu0 0
  %3319 = vmatpush1.bf16.msra.mxu0 0
  %3320 = vmatprep.mubr.bf16.mxu0 0
  %3321 = vmatmul.mubr.bf16.gmra.mrb[0].mxu0 %v3283
  %v3322 = vpop.f32.mrb[0].mxu0
  %v3323 = vadd.f32 0.0, %v3322
  %v3324 = vpop.f32.mrb[0].mxu0
  %v3325 = vpop.f32.mrb[0].mxu0
  %v3326 = vadd.f32 0.0, %v3325
  %v3327 = vpop.f32.mrb[0].mxu0
  %3328 = vdwg.mxu0
  %v3329 = vsel %vm2277, %v3323, 0.0
  %3330 = vadd.xlane.f32.xlu0 %v3329
  %v3331 = vpop.xlane.xlu0 %3330
  %v3332 = vsel %vm2277, %v3326, 0.0
  %3333 = vadd.xlane.f32.xlu0 %v3332
  %v3334 = vpop.xlane.xlu0 %3333
  %v3335 = vmul.f32 %v3331, %v2284
  %v3336 = vmul.f32 %v3334, %v2284
  %v3337 = vmul.f32 %v3323, %v3323
  %v3338 = vmul.f32 %v3326, %v3326
  %v3339 = vsel %vm2277, %v3337, 0.0
  %3340 = vadd.xlane.f32.xlu0 %v3339
  %v3341 = vpop.xlane.xlu0 %3340
  %v3342 = vsel %vm2277, %v3338, 0.0
  %3343 = vadd.xlane.f32.xlu0 %v3342
  %v3344 = vpop.xlane.xlu0 %3343
  %v3345 = vmul.f32 %v3341, %v2284
  %v3346 = vmul.f32 %v3344, %v2284
  %v3347 = vmul.f32 %v3335, %v3335
  %v3348 = vmul.f32 %v3336, %v3336
  %v3349 = vsub.f32 %v3345, %v3347
  %v3350 = vsub.f32 %v3346, %v3348
  %v3351 = vadd.f32 %v3349, 1e-05
  %v3352 = vadd.f32 %v3350, 1e-05
  %v3353 = vrsqrt.pop %v3351
  %v3354 = vrsqrt.pop %v3352
  %v3355 = vmul.f32 %v3209, %v3353
  %v3356 = vmul.f32 %v3210, %v3354
  %3358 = vset.pattern.permute.xlu0 0
  %3359 = vperm.xlu0 %3358, %v3355
  %v3360 = vpop.permute.xlu0 %3359
  %3363 = vset.pattern.permute.xlu0 0
  %3364 = vperm.xlu0 %3363, %v3356
  %v3365 = vpop.permute.xlu0 %3364
  %v3367 = vmul.f32 %v3323, %v3360
  %v3368 = vmul.f32 %v3326, %v3365
  %v3369 = vmul.f32 %v3335, %v3355
  %v3370 = vmul.f32 %v3336, %v3356
  %v3371 = vsub.f32 %v3211, %v3369
  %v3372 = vsub.f32 %v3212, %v3370
  %3374 = vset.pattern.permute.xlu0 0
  %3375 = vperm.xlu0 %3374, %v3371
  %v3376 = vpop.permute.xlu0 %3375
  %3379 = vset.pattern.permute.xlu0 0
  %3380 = vperm.xlu0 %3379, %v3372
  %v3381 = vpop.permute.xlu0 %3380
  %v3383 = vadd.f32 %v3367, %v3376
  %v3384 = vadd.f32 %v3368, %v3381
  %v3385 = vmax.f32 %v3383, 0.0
  %v3386 = vmax.f32 %v3384, 0.0
  %v3388 = vsel %vm2277, %v3385, 0
  %v3391 = vsel %vm2277, %v3386, 0
  %3393 = vmatprep.subr.mxu0 0.0
  %3394 = vmatpush1.msra.mxu0 %v2445
  %3395 = vmatprep.subr.mxu0 0.0
  %3396 = vmatpush1.msra.mxu0 0.0
  %3397 = vmatprep.subr.mxu0 0.0
  %3398 = vmatpush1.msra.mxu0 0.0
  %3399 = vmatprep.subr.mxu0 0.0
  %3400 = vmatpush1.msra.mxu0 0.0
  %3401 = vmatprep.subr.mxu0 0.0
  %3402 = vmatpush1.msra.mxu0 0.0
  %3403 = vmatprep.subr.mxu0 0.0
  %3404 = vmatpush1.msra.mxu0 0.0
  %3405 = vmatprep.subr.mxu0 0.0
  %3406 = vmatpush1.msra.mxu0 0.0
  %3407 = vmatprep.subr.mxu0 0.0
  %3408 = vmatpush1.msra.mxu0 0.0
  %3409 = vmatprep.subr.mxu0 0.0
  %3410 = vmatpush1.msra.mxu0 0.0
  %3411 = vmatprep.subr.mxu0 0.0
  %3412 = vmatpush1.msra.mxu0 0.0
  %3413 = vmatprep.subr.mxu0 0.0
  %3414 = vmatpush1.msra.mxu0 0.0
  %3415 = vmatprep.subr.mxu0 0.0
  %3416 = vmatpush1.msra.mxu0 0.0
  %3417 = vmatprep.subr.mxu0 0.0
  %3418 = vmatpush1.msra.mxu0 0.0
  %3419 = vmatprep.subr.mxu0 0.0
  %3420 = vmatpush1.msra.mxu0 0.0
  %3421 = vmatprep.subr.mxu0 0.0
  %3422 = vmatpush1.msra.mxu0 0.0
  %3423 = vmatprep.subr.mxu0 0.0
  %3424 = vmatpush1.msra.mxu0 0.0
  %3425 = vmatprep.subr.mxu0 0.0
  %3426 = vmatpush1.msra.mxu0 0.0
  %3427 = vmatprep.subr.mxu0 0.0
  %3428 = vmatpush1.msra.mxu0 0.0
  %3429 = vmatprep.subr.mxu0 0.0
  %3430 = vmatpush1.msra.mxu0 0.0
  %3431 = vmatprep.subr.mxu0 0.0
  %3432 = vmatpush1.msra.mxu0 0.0
  %3433 = vmatprep.subr.mxu0 0.0
  %3434 = vmatpush1.msra.mxu0 0.0
  %3435 = vmatprep.subr.mxu0 0.0
  %3436 = vmatpush1.msra.mxu0 0.0
  %3437 = vmatprep.subr.mxu0 0.0
  %3438 = vmatpush1.msra.mxu0 0.0
  %3439 = vmatprep.subr.mxu0 0.0
  %3440 = vmatpush1.msra.mxu0 0.0
  %3441 = vmatprep.subr.mxu0 0.0
  %3442 = vmatpush1.msra.mxu0 0.0
  %3443 = vmatprep.subr.mxu0 0.0
  %3444 = vmatpush1.msra.mxu0 0.0
  %3445 = vmatprep.subr.mxu0 0.0
  %3446 = vmatpush1.msra.mxu0 0.0
  %3447 = vmatprep.subr.mxu0 0.0
  %3448 = vmatpush1.msra.mxu0 0.0
  %3449 = vmatprep.subr.mxu0 0.0
  %3450 = vmatpush1.msra.mxu0 0.0
  %3451 = vmatprep.subr.mxu0 0.0
  %3452 = vmatpush1.msra.mxu0 0.0
  %3453 = vmatprep.subr.mxu0 0.0
  %3454 = vmatpush1.msra.mxu0 0.0
  %3455 = vmatprep.subr.mxu0 0.0
  %3456 = vmatpush1.msra.mxu0 0.0
  %3457 = vmatprep.mubr.f32.mxu0 0.0
  %3458 = vmatmul.mubr.f32.gmra.mrb[0].mxu0 %v3388
  %v3459 = vpop.f32.mrb[0].mxu0
  %v3460 = vadd.f32 0.0, %v3459
  %v3461 = vpop.f32.mrb[0].mxu0
  %3462 = vmatprep.mubr.f32.mxu0 0.0
  %3463 = vmatmul.mubr.f32.gmra.mrb[0].mxu0 %v3391
  %v3464 = vpop.f32.mrb[0].mxu0
  %v3465 = vadd.f32 0.0, %v3464
  %v3466 = vpop.f32.mrb[0].mxu0
  %3467 = vdwg.mxu0
  %v3468 = vpack.c.bf16 %v3465, %v3460
  %3469 = vmatprep.subr.mxu0 0.0
  %3470 = vmatpush1.msra.mxu0 %v2529
  %3471 = vmatprep.subr.mxu0 0.0
  %3472 = vmatpush1.msra.mxu0 0.0
  %3473 = vmatprep.subr.mxu0 0.0
  %3474 = vmatpush1.msra.mxu0 0.0
  %3475 = vmatprep.subr.mxu0 0.0
  %3476 = vmatpush1.msra.mxu0 0.0
  %3477 = vmatprep.subr.mxu0 0.0
  %3478 = vmatpush1.msra.mxu0 0.0
  %3479 = vmatprep.subr.mxu0 0.0
  %3480 = vmatpush1.msra.mxu0 0.0
  %3481 = vmatprep.subr.mxu0 0.0
  %3482 = vmatpush1.msra.mxu0 0.0
  %3483 = vmatprep.subr.mxu0 0.0
  %3484 = vmatpush1.msra.mxu0 0.0
  %3485 = vmatprep.subr.mxu0 0.0
  %3486 = vmatpush1.msra.mxu0 0.0
  %3487 = vmatprep.subr.mxu0 0.0
  %3488 = vmatpush1.msra.mxu0 0.0
  %3489 = vmatprep.subr.mxu0 0.0
  %3490 = vmatpush1.msra.mxu0 0.0
  %3491 = vmatprep.subr.mxu0 0.0
  %3492 = vmatpush1.msra.mxu0 0.0
  %3493 = vmatprep.subr.mxu0 0.0
  %3494 = vmatpush1.msra.mxu0 0.0
  %3495 = vmatprep.subr.mxu0 0.0
  %3496 = vmatpush1.msra.mxu0 0.0
  %3497 = vmatprep.subr.mxu0 0.0
  %3498 = vmatpush1.msra.mxu0 0.0
  %3499 = vmatprep.subr.mxu0 0.0
  %3500 = vmatpush1.msra.mxu0 0.0
  %3501 = vmatprep.subr.mxu0 0.0
  %3502 = vmatpush1.msra.mxu0 0.0
  %3503 = vmatprep.subr.mxu0 0.0
  %3504 = vmatpush1.msra.mxu0 0.0
  %3505 = vmatprep.subr.mxu0 0.0
  %3506 = vmatpush1.msra.mxu0 0.0
  %3507 = vmatprep.subr.mxu0 0.0
  %3508 = vmatpush1.msra.mxu0 0.0
  %3509 = vmatprep.subr.mxu0 0.0
  %3510 = vmatpush1.msra.mxu0 0.0
  %3511 = vmatprep.subr.mxu0 0.0
  %3512 = vmatpush1.msra.mxu0 0.0
  %3513 = vmatprep.subr.mxu0 0.0
  %3514 = vmatpush1.msra.mxu0 0.0
  %3515 = vmatprep.subr.mxu0 0.0
  %3516 = vmatpush1.msra.mxu0 0.0
  %3517 = vmatprep.subr.mxu0 0.0
  %3518 = vmatpush1.msra.mxu0 0.0
  %3519 = vmatprep.subr.mxu0 0.0
  %3520 = vmatpush1.msra.mxu0 0.0
  %3521 = vmatprep.subr.mxu0 0.0
  %3522 = vmatpush1.msra.mxu0 0.0
  %3523 = vmatprep.subr.mxu0 0.0
  %3524 = vmatpush1.msra.mxu0 0.0
  %3525 = vmatprep.subr.mxu0 0.0
  %3526 = vmatpush1.msra.mxu0 0.0
  %3527 = vmatprep.subr.mxu0 0.0
  %3528 = vmatpush1.msra.mxu0 0.0
  %3529 = vmatprep.subr.mxu0 0.0
  %3530 = vmatpush1.msra.mxu0 0.0
  %3531 = vmatprep.subr.mxu0 0.0
  %3532 = vmatpush1.msra.mxu0 0.0
  %3533 = vmatprep.mubr.f32.mxu0 0.0
  %3534 = vmatmul.mubr.f32.gmra.mrb[0].mxu0 %v3388
  %v3535 = vpop.f32.mrb[0].mxu0
  %v3536 = vadd.f32 0.0, %v3535
  %v3537 = vpop.f32.mrb[0].mxu0
  %3538 = vmatprep.mubr.f32.mxu0 0.0
  %3539 = vmatmul.mubr.f32.gmra.mrb[0].mxu0 %v3391
  %v3540 = vpop.f32.mrb[0].mxu0
  %v3541 = vadd.f32 0.0, %v3540
  %v3542 = vpop.f32.mrb[0].mxu0
  %3543 = vdwg.mxu0
  %v3544 = vpack.c.bf16 %v3541, %v3536
  %3545 = vmatprep.subr.mxu0 0.0
  %3546 = vmatpush1.msra.mxu0 %v2607
  %3547 = vmatprep.subr.mxu0 0.0
  %3548 = vmatpush1.msra.mxu0 0.0
  %3549 = vmatprep.subr.mxu0 0.0
  %3550 = vmatpush1.msra.mxu0 0.0
  %3551 = vmatprep.subr.mxu0 0.0
  %3552 = vmatpush1.msra.mxu0 0.0
  %3553 = vmatprep.subr.mxu0 0.0
  %3554 = vmatpush1.msra.mxu0 0.0
  %3555 = vmatprep.subr.mxu0 0.0
  %3556 = vmatpush1.msra.mxu0 0.0
  %3557 = vmatprep.subr.mxu0 0.0
  %3558 = vmatpush1.msra.mxu0 0.0
  %3559 = vmatprep.subr.mxu0 0.0
  %3560 = vmatpush1.msra.mxu0 0.0
  %3561 = vmatprep.subr.mxu0 0.0
  %3562 = vmatpush1.msra.mxu0 0.0
  %3563 = vmatprep.subr.mxu0 0.0
  %3564 = vmatpush1.msra.mxu0 0.0
  %3565 = vmatprep.subr.mxu0 0.0
  %3566 = vmatpush1.msra.mxu0 0.0
  %3567 = vmatprep.subr.mxu0 0.0
  %3568 = vmatpush1.msra.mxu0 0.0
  %3569 = vmatprep.subr.mxu0 0.0
  %3570 = vmatpush1.msra.mxu0 0.0
  %3571 = vmatprep.subr.mxu0 0.0
  %3572 = vmatpush1.msra.mxu0 0.0
  %3573 = vmatprep.subr.mxu0 0.0
  %3574 = vmatpush1.msra.mxu0 0.0
  %3575 = vmatprep.subr.mxu0 0.0
  %3576 = vmatpush1.msra.mxu0 0.0
  %3577 = vmatprep.subr.mxu0 0.0
  %3578 = vmatpush1.msra.mxu0 0.0
  %3579 = vmatprep.subr.mxu0 0.0
  %3580 = vmatpush1.msra.mxu0 0.0
  %3581 = vmatprep.subr.mxu0 0.0
  %3582 = vmatpush1.msra.mxu0 0.0
  %3583 = vmatprep.subr.mxu0 0.0
  %3584 = vmatpush1.msra.mxu0 0.0
  %3585 = vmatprep.subr.mxu0 0.0
  %3586 = vmatpush1.msra.mxu0 0.0
  %3587 = vmatprep.subr.mxu0 0.0
  %3588 = vmatpush1.msra.mxu0 0.0
  %3589 = vmatprep.subr.mxu0 0.0
  %3590 = vmatpush1.msra.mxu0 0.0
  %3591 = vmatprep.subr.mxu0 0.0
  %3592 = vmatpush1.msra.mxu0 0.0
  %3593 = vmatprep.subr.mxu0 0.0
  %3594 = vmatpush1.msra.mxu0 0.0
  %3595 = vmatprep.subr.mxu0 0.0
  %3596 = vmatpush1.msra.mxu0 0.0
  %3597 = vmatprep.subr.mxu0 0.0
  %3598 = vmatpush1.msra.mxu0 0.0
  %3599 = vmatprep.subr.mxu0 0.0
  %3600 = vmatpush1.msra.mxu0 0.0
  %3601 = vmatprep.subr.mxu0 0.0
  %3602 = vmatpush1.msra.mxu0 0.0
  %3603 = vmatprep.subr.mxu0 0.0
  %3604 = vmatpush1.msra.mxu0 0.0
  %3605 = vmatprep.subr.mxu0 0.0
  %3606 = vmatpush1.msra.mxu0 0.0
  %3607 = vmatprep.subr.mxu0 0.0
  %3608 = vmatpush1.msra.mxu0 0.0
  %3609 = vmatprep.mubr.f32.mxu0 0.0
  %3610 = vmatmul.mubr.f32.gmra.mrb[0].mxu0 %v3388
  %v3611 = vpop.f32.mrb[0].mxu0
  %v3612 = vadd.f32 0.0, %v3611
  %v3613 = vpop.f32.mrb[0].mxu0
  %3614 = vmatprep.mubr.f32.mxu0 0.0
  %3615 = vmatmul.mubr.f32.gmra.mrb[0].mxu0 %v3391
  %v3616 = vpop.f32.mrb[0].mxu0
  %v3617 = vadd.f32 0.0, %v3616
  %v3618 = vpop.f32.mrb[0].mxu0
  %3619 = vdwg.mxu0
  %v3620 = vpack.c.bf16 %v3617, %v3612
  %3621 = vmatprep.subr.mxu0 0.0
  %3622 = vmatpush1.msra.mxu0 %v2685
  %3623 = vmatprep.subr.mxu0 0.0
  %3624 = vmatpush1.msra.mxu0 0.0
  %3625 = vmatprep.subr.mxu0 0.0
  %3626 = vmatpush1.msra.mxu0 0.0
  %3627 = vmatprep.subr.mxu0 0.0
  %3628 = vmatpush1.msra.mxu0 0.0
  %3629 = vmatprep.subr.mxu0 0.0
  %3630 = vmatpush1.msra.mxu0 0.0
  %3631 = vmatprep.subr.mxu0 0.0
  %3632 = vmatpush1.msra.mxu0 0.0
  %3633 = vmatprep.subr.mxu0 0.0
  %3634 = vmatpush1.msra.mxu0 0.0
  %3635 = vmatprep.subr.mxu0 0.0
  %3636 = vmatpush1.msra.mxu0 0.0
  %3637 = vmatprep.subr.mxu0 0.0
  %3638 = vmatpush1.msra.mxu0 0.0
  %3639 = vmatprep.subr.mxu0 0.0
  %3640 = vmatpush1.msra.mxu0 0.0
  %3641 = vmatprep.subr.mxu0 0.0
  %3642 = vmatpush1.msra.mxu0 0.0
  %3643 = vmatprep.subr.mxu0 0.0
  %3644 = vmatpush1.msra.mxu0 0.0
  %3645 = vmatprep.subr.mxu0 0.0
  %3646 = vmatpush1.msra.mxu0 0.0
  %3647 = vmatprep.subr.mxu0 0.0
  %3648 = vmatpush1.msra.mxu0 0.0
  %3649 = vmatprep.subr.mxu0 0.0
  %3650 = vmatpush1.msra.mxu0 0.0
  %3651 = vmatprep.subr.mxu0 0.0
  %3652 = vmatpush1.msra.mxu0 0.0
  %3653 = vmatprep.subr.mxu0 0.0
  %3654 = vmatpush1.msra.mxu0 0.0
  %3655 = vmatprep.subr.mxu0 0.0
  %3656 = vmatpush1.msra.mxu0 0.0
  %3657 = vmatprep.subr.mxu0 0.0
  %3658 = vmatpush1.msra.mxu0 0.0
  %3659 = vmatprep.subr.mxu0 0.0
  %3660 = vmatpush1.msra.mxu0 0.0
  %3661 = vmatprep.subr.mxu0 0.0
  %3662 = vmatpush1.msra.mxu0 0.0
  %3663 = vmatprep.subr.mxu0 0.0
  %3664 = vmatpush1.msra.mxu0 0.0
  %3665 = vmatprep.subr.mxu0 0.0
  %3666 = vmatpush1.msra.mxu0 0.0
  %3667 = vmatprep.subr.mxu0 0.0
  %3668 = vmatpush1.msra.mxu0 0.0
  %3669 = vmatprep.subr.mxu0 0.0
  %3670 = vmatpush1.msra.mxu0 0.0
  %3671 = vmatprep.subr.mxu0 0.0
  %3672 = vmatpush1.msra.mxu0 0.0
  %3673 = vmatprep.subr.mxu0 0.0
  %3674 = vmatpush1.msra.mxu0 0.0
  %3675 = vmatprep.subr.mxu0 0.0
  %3676 = vmatpush1.msra.mxu0 0.0
  %3677 = vmatprep.subr.mxu0 0.0
  %3678 = vmatpush1.msra.mxu0 0.0
  %3679 = vmatprep.subr.mxu0 0.0
  %3680 = vmatpush1.msra.mxu0 0.0
  %3681 = vmatprep.subr.mxu0 0.0
  %3682 = vmatpush1.msra.mxu0 0.0
  %3683 = vmatprep.subr.mxu0 0.0
  %3684 = vmatpush1.msra.mxu0 0.0
  %3685 = vmatprep.mubr.f32.mxu0 0.0
  %3686 = vmatmul.mubr.f32.gmra.mrb[0].mxu0 %v3388
  %v3687 = vpop.f32.mrb[0].mxu0
  %v3688 = vadd.f32 0.0, %v3687
  %v3689 = vpop.f32.mrb[0].mxu0
  %3690 = vmatprep.mubr.f32.mxu0 0.0
  %3691 = vmatmul.mubr.f32.gmra.mrb[0].mxu0 %v3391
  %v3692 = vpop.f32.mrb[0].mxu0
  %v3693 = vadd.f32 0.0, %v3692
  %v3694 = vpop.f32.mrb[0].mxu0
  %3695 = vdwg.mxu0
  %v3696 = vpack.c.bf16 %v3693, %v3688
  %3697 = vmatprep.subr.mxu0 0.0
  %3698 = vmatpush1.msra.mxu0 %v2763
  %3699 = vmatprep.subr.mxu0 0.0
  %3700 = vmatpush1.msra.mxu0 0.0
  %3701 = vmatprep.subr.mxu0 0.0
  %3702 = vmatpush1.msra.mxu0 0.0
  %3703 = vmatprep.subr.mxu0 0.0
  %3704 = vmatpush1.msra.mxu0 0.0
  %3705 = vmatprep.subr.mxu0 0.0
  %3706 = vmatpush1.msra.mxu0 0.0
  %3707 = vmatprep.subr.mxu0 0.0
  %3708 = vmatpush1.msra.mxu0 0.0
  %3709 = vmatprep.subr.mxu0 0.0
  %3710 = vmatpush1.msra.mxu0 0.0
  %3711 = vmatprep.subr.mxu0 0.0
  %3712 = vmatpush1.msra.mxu0 0.0
  %3713 = vmatprep.subr.mxu0 0.0
  %3714 = vmatpush1.msra.mxu0 0.0
  %3715 = vmatprep.subr.mxu0 0.0
  %3716 = vmatpush1.msra.mxu0 0.0
  %3717 = vmatprep.subr.mxu0 0.0
  %3718 = vmatpush1.msra.mxu0 0.0
  %3719 = vmatprep.subr.mxu0 0.0
  %3720 = vmatpush1.msra.mxu0 0.0
  %3721 = vmatprep.subr.mxu0 0.0
  %3722 = vmatpush1.msra.mxu0 0.0
  %3723 = vmatprep.subr.mxu0 0.0
  %3724 = vmatpush1.msra.mxu0 0.0
  %3725 = vmatprep.subr.mxu0 0.0
  %3726 = vmatpush1.msra.mxu0 0.0
  %3727 = vmatprep.subr.mxu0 0.0
  %3728 = vmatpush1.msra.mxu0 0.0
  %3729 = vmatprep.subr.mxu0 0.0
  %3730 = vmatpush1.msra.mxu0 0.0
  %3731 = vmatprep.subr.mxu0 0.0
  %3732 = vmatpush1.msra.mxu0 0.0
  %3733 = vmatprep.subr.mxu0 0.0
  %3734 = vmatpush1.msra.mxu0 0.0
  %3735 = vmatprep.subr.mxu0 0.0
  %3736 = vmatpush1.msra.mxu0 0.0
  %3737 = vmatprep.subr.mxu0 0.0
  %3738 = vmatpush1.msra.mxu0 0.0
  %3739 = vmatprep.subr.mxu0 0.0
  %3740 = vmatpush1.msra.mxu0 0.0
  %3741 = vmatprep.subr.mxu0 0.0
  %3742 = vmatpush1.msra.mxu0 0.0
  %3743 = vmatprep.subr.mxu0 0.0
  %3744 = vmatpush1.msra.mxu0 0.0
  %3745 = vmatprep.subr.mxu0 0.0
  %3746 = vmatpush1.msra.mxu0 0.0
  %3747 = vmatprep.subr.mxu0 0.0
  %3748 = vmatpush1.msra.mxu0 0.0
  %3749 = vmatprep.subr.mxu0 0.0
  %3750 = vmatpush1.msra.mxu0 0.0
  %3751 = vmatprep.subr.mxu0 0.0
  %3752 = vmatpush1.msra.mxu0 0.0
  %3753 = vmatprep.subr.mxu0 0.0
  %3754 = vmatpush1.msra.mxu0 0.0
  %3755 = vmatprep.subr.mxu0 0.0
  %3756 = vmatpush1.msra.mxu0 0.0
  %3757 = vmatprep.subr.mxu0 0.0
  %3758 = vmatpush1.msra.mxu0 0.0
  %3759 = vmatprep.subr.mxu0 0.0
  %3760 = vmatpush1.msra.mxu0 0.0
  %3761 = vmatprep.mubr.f32.mxu0 0.0
  %3762 = vmatmul.mubr.f32.gmra.mrb[0].mxu0 %v3388
  %v3763 = vpop.f32.mrb[0].mxu0
  %v3764 = vadd.f32 0.0, %v3763
  %v3765 = vpop.f32.mrb[0].mxu0
  %3766 = vmatprep.mubr.f32.mxu0 0.0
  %3767 = vmatmul.mubr.f32.gmra.mrb[0].mxu0 %v3391
  %v3768 = vpop.f32.mrb[0].mxu0
  %v3769 = vadd.f32 0.0, %v3768
  %v3770 = vpop.f32.mrb[0].mxu0
  %3771 = vdwg.mxu0
  %v3772 = vpack.c.bf16 %v3769, %v3764
  %3773 = vmatprep.subr.mxu0 0.0
  %3774 = vmatpush1.msra.mxu0 %v2841
  %3775 = vmatprep.subr.mxu0 0.0
  %3776 = vmatpush1.msra.mxu0 0.0
  %3777 = vmatprep.subr.mxu0 0.0
  %3778 = vmatpush1.msra.mxu0 0.0
  %3779 = vmatprep.subr.mxu0 0.0
  %3780 = vmatpush1.msra.mxu0 0.0
  %3781 = vmatprep.subr.mxu0 0.0
  %3782 = vmatpush1.msra.mxu0 0.0
  %3783 = vmatprep.subr.mxu0 0.0
  %3784 = vmatpush1.msra.mxu0 0.0
  %3785 = vmatprep.subr.mxu0 0.0
  %3786 = vmatpush1.msra.mxu0 0.0
  %3787 = vmatprep.subr.mxu0 0.0
  %3788 = vmatpush1.msra.mxu0 0.0
  %3789 = vmatprep.subr.mxu0 0.0
  %3790 = vmatpush1.msra.mxu0 0.0
  %3791 = vmatprep.subr.mxu0 0.0
  %3792 = vmatpush1.msra.mxu0 0.0
  %3793 = vmatprep.subr.mxu0 0.0
  %3794 = vmatpush1.msra.mxu0 0.0
  %3795 = vmatprep.subr.mxu0 0.0
  %3796 = vmatpush1.msra.mxu0 0.0
  %3797 = vmatprep.subr.mxu0 0.0
  %3798 = vmatpush1.msra.mxu0 0.0
  %3799 = vmatprep.subr.mxu0 0.0
  %3800 = vmatpush1.msra.mxu0 0.0
  %3801 = vmatprep.subr.mxu0 0.0
  %3802 = vmatpush1.msra.mxu0 0.0
  %3803 = vmatprep.subr.mxu0 0.0
  %3804 = vmatpush1.msra.mxu0 0.0
  %3805 = vmatprep.subr.mxu0 0.0
  %3806 = vmatpush1.msra.mxu0 0.0
  %3807 = vmatprep.subr.mxu0 0.0
  %3808 = vmatpush1.msra.mxu0 0.0
  %3809 = vmatprep.subr.mxu0 0.0
  %3810 = vmatpush1.msra.mxu0 0.0
  %3811 = vmatprep.subr.mxu0 0.0
  %3812 = vmatpush1.msra.mxu0 0.0
  %3813 = vmatprep.subr.mxu0 0.0
  %3814 = vmatpush1.msra.mxu0 0.0
  %3815 = vmatprep.subr.mxu0 0.0
  %3816 = vmatpush1.msra.mxu0 0.0
  %3817 = vmatprep.subr.mxu0 0.0
  %3818 = vmatpush1.msra.mxu0 0.0
  %3819 = vmatprep.subr.mxu0 0.0
  %3820 = vmatpush1.msra.mxu0 0.0
  %3821 = vmatprep.subr.mxu0 0.0
  %3822 = vmatpush1.msra.mxu0 0.0
  %3823 = vmatprep.subr.mxu0 0.0
  %3824 = vmatpush1.msra.mxu0 0.0
  %3825 = vmatprep.subr.mxu0 0.0
  %3826 = vmatpush1.msra.mxu0 0.0
  %3827 = vmatprep.subr.mxu0 0.0
  %3828 = vmatpush1.msra.mxu0 0.0
  %3829 = vmatprep.subr.mxu0 0.0
  %3830 = vmatpush1.msra.mxu0 0.0
  %3831 = vmatprep.subr.mxu0 0.0
  %3832 = vmatpush1.msra.mxu0 0.0
  %3833 = vmatprep.subr.mxu0 0.0
  %3834 = vmatpush1.msra.mxu0 0.0
  %3835 = vmatprep.subr.mxu0 0.0
  %3836 = vmatpush1.msra.mxu0 0.0
  %3837 = vmatprep.mubr.f32.mxu0 0.0
  %3838 = vmatmul.mubr.f32.gmra.mrb[0].mxu0 %v3388
  %v3839 = vpop.f32.mrb[0].mxu0
  %v3840 = vadd.f32 0.0, %v3839
  %v3841 = vpop.f32.mrb[0].mxu0
  %3842 = vmatprep.mubr.f32.mxu0 0.0
  %3843 = vmatmul.mubr.f32.gmra.mrb[0].mxu0 %v3391
  %v3844 = vpop.f32.mrb[0].mxu0
  %v3845 = vadd.f32 0.0, %v3844
  %v3846 = vpop.f32.mrb[0].mxu0
  %3847 = vdwg.mxu0
  %v3848 = vpack.c.bf16 %v3845, %v3840
  %3849 = vmatprep.subr.mxu0 0.0
  %3850 = vmatpush1.msra.mxu0 %v2919
  %3851 = vmatprep.subr.mxu0 0.0
  %3852 = vmatpush1.msra.mxu0 0.0
  %3853 = vmatprep.subr.mxu0 0.0
  %3854 = vmatpush1.msra.mxu0 0.0
  %3855 = vmatprep.subr.mxu0 0.0
  %3856 = vmatpush1.msra.mxu0 0.0
  %3857 = vmatprep.subr.mxu0 0.0
  %3858 = vmatpush1.msra.mxu0 0.0
  %3859 = vmatprep.subr.mxu0 0.0
  %3860 = vmatpush1.msra.mxu0 0.0
  %3861 = vmatprep.subr.mxu0 0.0
  %3862 = vmatpush1.msra.mxu0 0.0
  %3863 = vmatprep.subr.mxu0 0.0
  %3864 = vmatpush1.msra.mxu0 0.0
  %3865 = vmatprep.subr.mxu0 0.0
  %3866 = vmatpush1.msra.mxu0 0.0
  %3867 = vmatprep.subr.mxu0 0.0
  %3868 = vmatpush1.msra.mxu0 0.0
  %3869 = vmatprep.subr.mxu0 0.0
  %3870 = vmatpush1.msra.mxu0 0.0
  %3871 = vmatprep.subr.mxu0 0.0
  %3872 = vmatpush1.msra.mxu0 0.0
  %3873 = vmatprep.subr.mxu0 0.0
  %3874 = vmatpush1.msra.mxu0 0.0
  %3875 = vmatprep.subr.mxu0 0.0
  %3876 = vmatpush1.msra.mxu0 0.0
  %3877 = vmatprep.subr.mxu0 0.0
  %3878 = vmatpush1.msra.mxu0 0.0
  %3879 = vmatprep.subr.mxu0 0.0
  %3880 = vmatpush1.msra.mxu0 0.0
  %3881 = vmatprep.subr.mxu0 0.0
  %3882 = vmatpush1.msra.mxu0 0.0
  %3883 = vmatprep.subr.mxu0 0.0
  %3884 = vmatpush1.msra.mxu0 0.0
  %3885 = vmatprep.subr.mxu0 0.0
  %3886 = vmatpush1.msra.mxu0 0.0
  %3887 = vmatprep.subr.mxu0 0.0
  %3888 = vmatpush1.msra.mxu0 0.0
  %3889 = vmatprep.subr.mxu0 0.0
  %3890 = vmatpush1.msra.mxu0 0.0
  %3891 = vmatprep.subr.mxu0 0.0
  %3892 = vmatpush1.msra.mxu0 0.0
  %3893 = vmatprep.subr.mxu0 0.0
  %3894 = vmatpush1.msra.mxu0 0.0
  %3895 = vmatprep.subr.mxu0 0.0
  %3896 = vmatpush1.msra.mxu0 0.0
  %3897 = vmatprep.subr.mxu0 0.0
  %3898 = vmatpush1.msra.mxu0 0.0
  %3899 = vmatprep.subr.mxu0 0.0
  %3900 = vmatpush1.msra.mxu0 0.0
  %3901 = vmatprep.subr.mxu0 0.0
  %3902 = vmatpush1.msra.mxu0 0.0
  %3903 = vmatprep.subr.mxu0 0.0
  %3904 = vmatpush1.msra.mxu0 0.0
  %3905 = vmatprep.subr.mxu0 0.0
  %3906 = vmatpush1.msra.mxu0 0.0
  %3907 = vmatprep.subr.mxu0 0.0
  %3908 = vmatpush1.msra.mxu0 0.0
  %3909 = vmatprep.subr.mxu0 0.0
  %3910 = vmatpush1.msra.mxu0 0.0
  %3911 = vmatprep.subr.mxu0 0.0
  %3912 = vmatpush1.msra.mxu0 0.0
  %3913 = vmatprep.mubr.f32.mxu0 0.0
  %3914 = vmatmul.mubr.f32.gmra.mrb[0].mxu0 %v3388
  %v3915 = vpop.f32.mrb[0].mxu0
  %v3916 = vadd.f32 0.0, %v3915
  %v3917 = vpop.f32.mrb[0].mxu0
  %3918 = vmatprep.mubr.f32.mxu0 0.0
  %3919 = vmatmul.mubr.f32.gmra.mrb[0].mxu0 %v3391
  %v3920 = vpop.f32.mrb[0].mxu0
  %v3921 = vadd.f32 0.0, %v3920
  %v3922 = vpop.f32.mrb[0].mxu0
  %3923 = vdwg.mxu0
  %v3924 = vpack.c.bf16 %v3921, %v3916
  %3925 = vmatprep.subr.mxu0 0.0
  %3926 = vmatpush1.msra.mxu0 %v2997
  %3927 = vmatprep.subr.mxu0 0.0
  %3928 = vmatpush1.msra.mxu0 0.0
  %3929 = vmatprep.subr.mxu0 0.0
  %3930 = vmatpush1.msra.mxu0 0.0
  %3931 = vmatprep.subr.mxu0 0.0
  %3932 = vmatpush1.msra.mxu0 0.0
  %3933 = vmatprep.subr.mxu0 0.0
  %3934 = vmatpush1.msra.mxu0 0.0
  %3935 = vmatprep.subr.mxu0 0.0
  %3936 = vmatpush1.msra.mxu0 0.0
  %3937 = vmatprep.subr.mxu0 0.0
  %3938 = vmatpush1.msra.mxu0 0.0
  %3939 = vmatprep.subr.mxu0 0.0
  %3940 = vmatpush1.msra.mxu0 0.0
  %3941 = vmatprep.subr.mxu0 0.0
  %3942 = vmatpush1.msra.mxu0 0.0
  %3943 = vmatprep.subr.mxu0 0.0
  %3944 = vmatpush1.msra.mxu0 0.0
  %3945 = vmatprep.subr.mxu0 0.0
  %3946 = vmatpush1.msra.mxu0 0.0
  %3947 = vmatprep.subr.mxu0 0.0
  %3948 = vmatpush1.msra.mxu0 0.0
  %3949 = vmatprep.subr.mxu0 0.0
  %3950 = vmatpush1.msra.mxu0 0.0
  %3951 = vmatprep.subr.mxu0 0.0
  %3952 = vmatpush1.msra.mxu0 0.0
  %3953 = vmatprep.subr.mxu0 0.0
  %3954 = vmatpush1.msra.mxu0 0.0
  %3955 = vmatprep.subr.mxu0 0.0
  %3956 = vmatpush1.msra.mxu0 0.0
  %3957 = vmatprep.subr.mxu0 0.0
  %3958 = vmatpush1.msra.mxu0 0.0
  %3959 = vmatprep.subr.mxu0 0.0
  %3960 = vmatpush1.msra.mxu0 0.0
  %3961 = vmatprep.subr.mxu0 0.0
  %3962 = vmatpush1.msra.mxu0 0.0
  %3963 = vmatprep.subr.mxu0 0.0
  %3964 = vmatpush1.msra.mxu0 0.0
  %3965 = vmatprep.subr.mxu0 0.0
  %3966 = vmatpush1.msra.mxu0 0.0
  %3967 = vmatprep.subr.mxu0 0.0
  %3968 = vmatpush1.msra.mxu0 0.0
  %3969 = vmatprep.subr.mxu0 0.0
  %3970 = vmatpush1.msra.mxu0 0.0
  %3971 = vmatprep.subr.mxu0 0.0
  %3972 = vmatpush1.msra.mxu0 0.0
  %3973 = vmatprep.subr.mxu0 0.0
  %3974 = vmatpush1.msra.mxu0 0.0
  %3975 = vmatprep.subr.mxu0 0.0
  %3976 = vmatpush1.msra.mxu0 0.0
  %3977 = vmatprep.subr.mxu0 0.0
  %3978 = vmatpush1.msra.mxu0 0.0
  %3979 = vmatprep.subr.mxu0 0.0
  %3980 = vmatpush1.msra.mxu0 0.0
  %3981 = vmatprep.subr.mxu0 0.0
  %3982 = vmatpush1.msra.mxu0 0.0
  %3983 = vmatprep.subr.mxu0 0.0
  %3984 = vmatpush1.msra.mxu0 0.0
  %3985 = vmatprep.subr.mxu0 0.0
  %3986 = vmatpush1.msra.mxu0 0.0
  %3987 = vmatprep.subr.mxu0 0.0
  %3988 = vmatpush1.msra.mxu0 0.0
  %3989 = vmatprep.mubr.f32.mxu0 0.0
  %3990 = vmatmul.mubr.f32.gmra.mrb[0].mxu0 %v3388
  %v3991 = vpop.f32.mrb[0].mxu0
  %v3992 = vadd.f32 0.0, %v3991
  %v3993 = vpop.f32.mrb[0].mxu0
  %3994 = vmatprep.mubr.f32.mxu0 0.0
  %3995 = vmatmul.mubr.f32.gmra.mrb[0].mxu0 %v3391
  %v3996 = vpop.f32.mrb[0].mxu0
  %v3997 = vadd.f32 0.0, %v3996
  %v3998 = vpop.f32.mrb[0].mxu0
  %3999 = vdwg.mxu0
  %v4000 = vpack.c.bf16 %v3997, %v3992
  %4001 = vmatprep.subr.mxu0 0.0
  %4002 = vmatpush1.msra.mxu0 %v3075
  %4003 = vmatprep.subr.mxu0 0.0
  %4004 = vmatpush1.msra.mxu0 0.0
  %4005 = vmatprep.subr.mxu0 0.0
  %4006 = vmatpush1.msra.mxu0 0.0
  %4007 = vmatprep.subr.mxu0 0.0
  %4008 = vmatpush1.msra.mxu0 0.0
  %4009 = vmatprep.subr.mxu0 0.0
  %4010 = vmatpush1.msra.mxu0 0.0
  %4011 = vmatprep.subr.mxu0 0.0
  %4012 = vmatpush1.msra.mxu0 0.0
  %4013 = vmatprep.subr.mxu0 0.0
  %4014 = vmatpush1.msra.mxu0 0.0
  %4015 = vmatprep.subr.mxu0 0.0
  %4016 = vmatpush1.msra.mxu0 0.0
  %4017 = vmatprep.subr.mxu0 0.0
  %4018 = vmatpush1.msra.mxu0 0.0
  %4019 = vmatprep.subr.mxu0 0.0
  %4020 = vmatpush1.msra.mxu0 0.0
  %4021 = vmatprep.subr.mxu0 0.0
  %4022 = vmatpush1.msra.mxu0 0.0
  %4023 = vmatprep.subr.mxu0 0.0
  %4024 = vmatpush1.msra.mxu0 0.0
  %4025 = vmatprep.subr.mxu0 0.0
  %4026 = vmatpush1.msra.mxu0 0.0
  %4027 = vmatprep.subr.mxu0 0.0
  %4028 = vmatpush1.msra.mxu0 0.0
  %4029 = vmatprep.subr.mxu0 0.0
  %4030 = vmatpush1.msra.mxu0 0.0
  %4031 = vmatprep.subr.mxu0 0.0
  %4032 = vmatpush1.msra.mxu0 0.0
  %4033 = vmatprep.subr.mxu0 0.0
  %4034 = vmatpush1.msra.mxu0 0.0
  %4035 = vmatprep.subr.mxu0 0.0
  %4036 = vmatpush1.msra.mxu0 0.0
  %4037 = vmatprep.subr.mxu0 0.0
  %4038 = vmatpush1.msra.mxu0 0.0
  %4039 = vmatprep.subr.mxu0 0.0
  %4040 = vmatpush1.msra.mxu0 0.0
  %4041 = vmatprep.subr.mxu0 0.0
  %4042 = vmatpush1.msra.mxu0 0.0
  %4043 = vmatprep.subr.mxu0 0.0
  %4044 = vmatpush1.msra.mxu0 0.0
  %4045 = vmatprep.subr.mxu0 0.0
  %4046 = vmatpush1.msra.mxu0 0.0
  %4047 = vmatprep.subr.mxu0 0.0
  %4048 = vmatpush1.msra.mxu0 0.0
  %4049 = vmatprep.subr.mxu0 0.0
  %4050 = vmatpush1.msra.mxu0 0.0
  %4051 = vmatprep.subr.mxu0 0.0
  %4052 = vmatpush1.msra.mxu0 0.0
  %4053 = vmatprep.subr.mxu0 0.0
  %4054 = vmatpush1.msra.mxu0 0.0
  %4055 = vmatprep.subr.mxu0 0.0
  %4056 = vmatpush1.msra.mxu0 0.0
  %4057 = vmatprep.subr.mxu0 0.0
  %4058 = vmatpush1.msra.mxu0 0.0
  %4059 = vmatprep.subr.mxu0 0.0
  %4060 = vmatpush1.msra.mxu0 0.0
  %4061 = vmatprep.subr.mxu0 0.0
  %4062 = vmatpush1.msra.mxu0 0.0
  %4063 = vmatprep.subr.mxu0 0.0
  %4064 = vmatpush1.msra.mxu0 0.0
  %4065 = vmatprep.mubr.f32.mxu0 0.0
  %4066 = vmatmul.mubr.f32.gmra.mrb[0].mxu0 %v3388
  %v4067 = vpop.f32.mrb[0].mxu0
  %v4068 = vadd.f32 0.0, %v4067
  %v4069 = vpop.f32.mrb[0].mxu0
  %4070 = vmatprep.mubr.f32.mxu0 0.0
  %4071 = vmatmul.mubr.f32.gmra.mrb[0].mxu0 %v3391
  %v4072 = vpop.f32.mrb[0].mxu0
  %v4073 = vadd.f32 0.0, %v4072
  %v4074 = vpop.f32.mrb[0].mxu0
  %4075 = vdwg.mxu0
  %v4076 = vpack.c.bf16 %v4073, %v4068
  %v4078 = vunpack.c.l.b16 %v3213
  %v4079 = vunpack.c.h.b16 %v3213
  %v4080 = vpack.c.b16 %v4078, %v4078
  %v4081 = vpack.c.b16 %v4079, %v4079
  %v4084 = vsel %vm230, %v4081, 0
  %4086 = vmatprep.subr.bf16.mxu0 0
  %4087 = vmatpush1.bf16.msra.mxu0 %v3468
  %4088 = vmatprep.subr.bf16.mxu0 0
  %4089 = vmatpush1.bf16.msra.mxu0 %v3544
  %4090 = vmatprep.subr.bf16.mxu0 0
  %4091 = vmatpush1.bf16.msra.mxu0 %v3620
  %4092 = vmatprep.subr.bf16.mxu0 0
  %4093 = vmatpush1.bf16.msra.mxu0 %v3696
  %4094 = vmatprep.subr.bf16.mxu0 0
  %4095 = vmatpush1.bf16.msra.mxu0 %v3772
  %4096 = vmatprep.subr.bf16.mxu0 0
  %4097 = vmatpush1.bf16.msra.mxu0 %v3848
  %4098 = vmatprep.subr.bf16.mxu0 0
  %4099 = vmatpush1.bf16.msra.mxu0 %v3924
  %4100 = vmatprep.subr.bf16.mxu0 0
  %4101 = vmatpush1.bf16.msra.mxu0 %v4000
  %4102 = vmatprep.subr.bf16.mxu0 0
  %4103 = vmatpush1.bf16.msra.mxu0 %v4076
  %4104 = vmatprep.subr.bf16.mxu0 0
  %4105 = vmatpush1.bf16.msra.mxu0 0
  %4106 = vmatprep.subr.bf16.mxu0 0
  %4107 = vmatpush1.bf16.msra.mxu0 0
  %4108 = vmatprep.subr.bf16.mxu0 0
  %4109 = vmatpush1.bf16.msra.mxu0 0
  %4110 = vmatprep.subr.bf16.mxu0 0
  %4111 = vmatpush1.bf16.msra.mxu0 0
  %4112 = vmatprep.subr.bf16.mxu0 0
  %4113 = vmatpush1.bf16.msra.mxu0 0
  %4114 = vmatprep.subr.bf16.mxu0 0
  %4115 = vmatpush1.bf16.msra.mxu0 0
  %4116 = vmatprep.subr.bf16.mxu0 0
  %4117 = vmatpush1.bf16.msra.mxu0 0
  %4118 = vmatprep.mubr.bf16.mxu0 %v4084
  %4119 = vmatmul.mubr.bf16.gmra.mrb[0].mxu0 %v4080
  %v4120 = vpop.f32.mrb[0].mxu0
  %v4121 = vadd.f32 0.0, %v4120
  %v4122 = vpop.f32.mrb[0].mxu0
  %v4123 = vpop.f32.mrb[0].mxu0
  %v4124 = vpop.f32.mrb[0].mxu0
  %4125 = vdwg.mxu0
  %v4126 = vld [vmem:[%s63] sm:$0xff]
  %v4127 = vld [vmem:[%s63 + $0x8] sm:$0xff]
  %v4128 = vld [vmem:[%s63 + $0x10] sm:$0xff]
  %v4129 = vld [vmem:[%s63 + $0x18] sm:$0xff]
  %v4130 = vld [vmem:[%s65] sm:$0xff]
  %v4131 = vld [vmem:[%s65 + $0x8] sm:$0xff]
  %v4132 = vld [vmem:[%s65 + $0x10] sm:$0xff]
  %v4133 = vld [vmem:[%s65 + $0x18] sm:$0xff]
  %v4134 = vld [vmem:[%s67] sm:$0xff]
  %v4135 = vld [vmem:[%s69] sm:$0xff]
  %v4136 = vld [vmem:[%s69 + $0x8] sm:$0x3]
  %v4137 = vld [vmem:[%s71] sm:$0xff]
  %v4138 = vld [vmem:[%s71 + $0x8] sm:$0x3]
  %v4139 = vsel %vm2277, %v4121, 0.0
  %4140 = vadd.xlane.f32.xlu0 %v4139
  %v4141 = vpop.xlane.xlu0 %4140
  %v4142 = vmul.f32 %v4141, %v2284
  %v4143 = vmul.f32 %v4121, %v4121
  %v4144 = vsel %vm2277, %v4143, 0.0
  %4145 = vadd.xlane.f32.xlu0 %v4144
  %v4146 = vpop.xlane.xlu0 %4145
  %v4147 = vmul.f32 %v4146, %v2284
  %v4148 = vmul.f32 %v4142, %v4142
  %v4149 = vsub.f32 %v4147, %v4148
  %v4150 = vadd.f32 %v4149, 1e-05
  %v4151 = vrsqrt.pop %v4150
  %v4152 = vmul.f32 %v4126, %v2303
  %v4153 = vmul.f32 %v4127, %v2304
  %v4154 = vmul.f32 %v4128, %v3226
  %v4155 = vmul.f32 %v4129, %v4151
  %4157 = vset.pattern.permute.xlu0 0
  %4158 = vperm.xlu0 %4157, %v4152
  %v4159 = vpop.permute.xlu0 %4158
  %4162 = vset.pattern.permute.xlu0 0
  %4163 = vperm.xlu0 %4162, %v4153
  %v4164 = vpop.permute.xlu0 %4163
  %4167 = vset.pattern.permute.xlu0 0
  %4168 = vperm.xlu0 %4167, %v4154
  %v4169 = vpop.permute.xlu0 %4168
  %4172 = vset.pattern.permute.xlu0 0
  %4173 = vperm.xlu0 %4172, %v4155
  %v4174 = vpop.permute.xlu0 %4173
  %v4176 = vmul.f32 %v2258, %v4159
  %v4177 = vmul.f32 %v2263, %v4164
  %v4178 = vmul.f32 %v3196, %v4169
  %v4179 = vmul.f32 %v4121, %v4174
  %v4180 = vmul.f32 %v2285, %v4152
  %v4181 = vmul.f32 %v2286, %v4153
  %v4182 = vmul.f32 %v3217, %v4154
  %v4183 = vmul.f32 %v4142, %v4155
  %v4184 = vsub.f32 %v4130, %v4180
  %v4185 = vsub.f32 %v4131, %v4181
  %v4186 = vsub.f32 %v4132, %v4182
  %v4187 = vsub.f32 %v4133, %v4183
  %4189 = vset.pattern.permute.xlu0 0
  %4190 = vperm.xlu0 %4189, %v4184
  %v4191 = vpop.permute.xlu0 %4190
  %4194 = vset.pattern.permute.xlu0 0
  %4195 = vperm.xlu0 %4194, %v4185
  %v4196 = vpop.permute.xlu0 %4195
  %4199 = vset.pattern.permute.xlu0 0
  %4200 = vperm.xlu0 %4199, %v4186
  %v4201 = vpop.permute.xlu0 %4200
  %4204 = vset.pattern.permute.xlu0 0
  %4205 = vperm.xlu0 %4204, %v4187
  %v4206 = vpop.permute.xlu0 %4205
  %v4208 = vadd.f32 %v4176, %v4191
  %v4209 = vadd.f32 %v4177, %v4196
  %v4210 = vadd.f32 %v4178, %v4201
  %v4211 = vadd.f32 %v4179, %v4206
  %v4212 = vmax.f32 %v4208, 0.0
  %v4213 = vmax.f32 %v4209, 0.0
  %v4214 = vmax.f32 %v4210, 0.0
  %v4215 = vmax.f32 %v4211, 0.0
  %v4217 = vsel %vm2277, %v4212, 0
  %v4220 = vsel %vm2277, %v4213, 0
  %v4223 = vsel %vm2277, %v4214, 0
  %v4226 = vsel %vm2277, %v4215, 0
  %4228 = vmatprep.subr.mxu0 0.0
  %4229 = vmatpush1.msra.mxu0 %v4134
  %4230 = vmatprep.subr.mxu0 0.0
  %4231 = vmatpush1.msra.mxu0 0.0
  %4232 = vmatprep.subr.mxu0 0.0
  %4233 = vmatpush1.msra.mxu0 0.0
  %4234 = vmatprep.subr.mxu0 0.0
  %4235 = vmatpush1.msra.mxu0 0.0
  %4236 = vmatprep.subr.mxu0 0.0
  %4237 = vmatpush1.msra.mxu0 0.0
  %4238 = vmatprep.subr.mxu0 0.0
  %4239 = vmatpush1.msra.mxu0 0.0
  %4240 = vmatprep.subr.mxu0 0.0
  %4241 = vmatpush1.msra.mxu0 0.0
  %4242 = vmatprep.subr.mxu0 0.0
  %4243 = vmatpush1.msra.mxu0 0.0
  %4244 = vmatprep.subr.mxu0 0.0
  %4245 = vmatpush1.msra.mxu0 0.0
  %4246 = vmatprep.subr.mxu0 0.0
  %4247 = vmatpush1.msra.mxu0 0.0
  %4248 = vmatprep.subr.mxu0 0.0
  %4249 = vmatpush1.msra.mxu0 0.0
  %4250 = vmatprep.subr.mxu0 0.0
  %4251 = vmatpush1.msra.mxu0 0.0
  %4252 = vmatprep.subr.mxu0 0.0
  %4253 = vmatpush1.msra.mxu0 0.0
  %4254 = vmatprep.subr.mxu0 0.0
  %4255 = vmatpush1.msra.mxu0 0.0
  %4256 = vmatprep.subr.mxu0 0.0
  %4257 = vmatpush1.msra.mxu0 0.0
  %4258 = vmatprep.subr.mxu0 0.0
  %4259 = vmatpush1.msra.mxu0 0.0
  %4260 = vmatprep.subr.mxu0 0.0
  %4261 = vmatpush1.msra.mxu0 0.0
  %4262 = vmatprep.subr.mxu0 0.0
  %4263 = vmatpush1.msra.mxu0 0.0
  %4264 = vmatprep.subr.mxu0 0.0
  %4265 = vmatpush1.msra.mxu0 0.0
  %4266 = vmatprep.subr.mxu0 0.0
  %4267 = vmatpush1.msra.mxu0 0.0
  %4268 = vmatprep.subr.mxu0 0.0
  %4269 = vmatpush1.msra.mxu0 0.0
  %4270 = vmatprep.subr.mxu0 0.0
  %4271 = vmatpush1.msra.mxu0 0.0
  %4272 = vmatprep.subr.mxu0 0.0
  %4273 = vmatpush1.msra.mxu0 0.0
  %4274 = vmatprep.subr.mxu0 0.0
  %4275 = vmatpush1.msra.mxu0 0.0
  %4276 = vmatprep.subr.mxu0 0.0
  %4277 = vmatpush1.msra.mxu0 0.0
  %4278 = vmatprep.subr.mxu0 0.0
  %4279 = vmatpush1.msra.mxu0 0.0
  %4280 = vmatprep.subr.mxu0 0.0
  %4281 = vmatpush1.msra.mxu0 0.0
  %4282 = vmatprep.subr.mxu0 0.0
  %4283 = vmatpush1.msra.mxu0 0.0
  %4284 = vmatprep.subr.mxu0 0.0
  %4285 = vmatpush1.msra.mxu0 0.0
  %4286 = vmatprep.subr.mxu0 0.0
  %4287 = vmatpush1.msra.mxu0 0.0
  %4288 = vmatprep.subr.mxu0 0.0
  %4289 = vmatpush1.msra.mxu0 0.0
  %4290 = vmatprep.subr.mxu0 0.0
  %4291 = vmatpush1.msra.mxu0 0.0
  %4292 = vmatprep.mubr.f32.mxu0 0.0
  %4293 = vmatmul.mubr.f32.gmra.mrb[0].mxu0 %v4217
  %v4294 = vpop.f32.mrb[0].mxu0
  %v4295 = vadd.f32 0.0, %v4294
  %v4296 = vpop.f32.mrb[0].mxu0
  %4297 = vmatprep.mubr.f32.mxu0 0.0
  %4298 = vmatmul.mubr.f32.gmra.mrb[0].mxu0 %v4220
  %v4299 = vpop.f32.mrb[0].mxu0
  %v4300 = vadd.f32 0.0, %v4299
  %v4301 = vpop.f32.mrb[0].mxu0
  %4302 = vmatprep.mubr.f32.mxu0 0.0
  %4303 = vmatmul.mubr.f32.gmra.mrb[0].mxu0 %v4223
  %v4304 = vpop.f32.mrb[0].mxu0
  %v4305 = vadd.f32 0.0, %v4304
  %v4306 = vpop.f32.mrb[0].mxu0
  %4307 = vmatprep.mubr.f32.mxu0 0.0
  %4308 = vmatmul.mubr.f32.gmra.mrb[0].mxu0 %v4226
  %v4309 = vpop.f32.mrb[0].mxu0
  %v4310 = vadd.f32 0.0, %v4309
  %v4311 = vpop.f32.mrb[0].mxu0
  %4312 = vdwg.mxu0
  %4314 = vset.pattern.permute.xlu0 0
  %4315 = vperm.xlu0 %4314, %v4137
  %v4316 = vpop.permute.xlu0 %4315
  %4319 = vset.pattern.permute.xlu0 0
  %4320 = vperm.xlu0 %4319, %v4138
  %v4321 = vpop.permute.xlu0 %4320
  %v4324 = vsel %vm164, %v4135, 0
  %v4327 = vsel %vm164, %v4136, 0
  %4329 = vmatprep.subr.mxu0 0.0
  %4330 = vmatpush1.msra.mxu0 %v4295
  %4331 = vmatprep.subr.mxu0 0.0
  %4332 = vmatpush1.msra.mxu0 %v4300
  %4333 = vmatprep.subr.mxu0 0.0
  %4334 = vmatpush1.msra.mxu0 %v4305
  %4335 = vmatprep.subr.mxu0 0.0
  %4336 = vmatpush1.msra.mxu0 %v4310
  %4337 = vmatprep.subr.mxu0 0.0
  %4338 = vmatpush1.msra.mxu0 0.0
  %4339 = vmatprep.subr.mxu0 0.0
  %4340 = vmatpush1.msra.mxu0 0.0
  %4341 = vmatprep.subr.mxu0 0.0
  %4342 = vmatpush1.msra.mxu0 0.0
  %4343 = vmatprep.subr.mxu0 0.0
  %4344 = vmatpush1.msra.mxu0 0.0
  %4345 = vmatprep.subr.mxu0 0.0
  %4346 = vmatpush1.msra.mxu0 0.0
  %4347 = vmatprep.subr.mxu0 0.0
  %4348 = vmatpush1.msra.mxu0 0.0
  %4349 = vmatprep.subr.mxu0 0.0
  %4350 = vmatpush1.msra.mxu0 0.0
  %4351 = vmatprep.subr.mxu0 0.0
  %4352 = vmatpush1.msra.mxu0 0.0
  %4353 = vmatprep.subr.mxu0 0.0
  %4354 = vmatpush1.msra.mxu0 0.0
  %4355 = vmatprep.subr.mxu0 0.0
  %4356 = vmatpush1.msra.mxu0 0.0
  %4357 = vmatprep.subr.mxu0 0.0
  %4358 = vmatpush1.msra.mxu0 0.0
  %4359 = vmatprep.subr.mxu0 0.0
  %4360 = vmatpush1.msra.mxu0 0.0
  %4361 = vmatprep.subr.mxu0 0.0
  %4362 = vmatpush1.msra.mxu0 0.0
  %4363 = vmatprep.subr.mxu0 0.0
  %4364 = vmatpush1.msra.mxu0 0.0
  %4365 = vmatprep.subr.mxu0 0.0
  %4366 = vmatpush1.msra.mxu0 0.0
  %4367 = vmatprep.subr.mxu0 0.0
  %4368 = vmatpush1.msra.mxu0 0.0
  %4369 = vmatprep.subr.mxu0 0.0
  %4370 = vmatpush1.msra.mxu0 0.0
  %4371 = vmatprep.subr.mxu0 0.0
  %4372 = vmatpush1.msra.mxu0 0.0
  %4373 = vmatprep.subr.mxu0 0.0
  %4374 = vmatpush1.msra.mxu0 0.0
  %4375 = vmatprep.subr.mxu0 0.0
  %4376 = vmatpush1.msra.mxu0 0.0
  %4377 = vmatprep.subr.mxu0 0.0
  %4378 = vmatpush1.msra.mxu0 0.0
  %4379 = vmatprep.subr.mxu0 0.0
  %4380 = vmatpush1.msra.mxu0 0.0
  %4381 = vmatprep.subr.mxu0 0.0
  %4382 = vmatpush1.msra.mxu0 0.0
  %4383 = vmatprep.subr.mxu0 0.0
  %4384 = vmatpush1.msra.mxu0 0.0
  %4385 = vmatprep.subr.mxu0 0.0
  %4386 = vmatpush1.msra.mxu0 0.0
  %4387 = vmatprep.subr.mxu0 0.0
  %4388 = vmatpush1.msra.mxu0 0.0
  %4389 = vmatprep.subr.mxu0 0.0
  %4390 = vmatpush1.msra.mxu0 0.0
  %4391 = vmatprep.subr.mxu0 0.0
  %4392 = vmatpush1.msra.mxu0 0.0
  %4393 = vmatprep.mubr.f32.mxu0 0.0
  %4394 = vmatmul.mubr.f32.gmra.mrb[0].mxu0 %v4324
  %v4395 = vpop.f32.mrb[0].mxu0
  %v4396 = vadd.f32 %v4316, %v4395
  %v4397 = vpop.f32.mrb[0].mxu0
  %4398 = vmatprep.mubr.f32.mxu0 0.0
  %4399 = vmatmul.mubr.f32.gmra.mrb[0].mxu0 %v4327
  %v4400 = vpop.f32.mrb[0].mxu0
  %v4401 = vadd.f32 %v4321, %v4400
  %v4402 = vpop.f32.mrb[0].mxu0
  %4403 = vdwg.mxu0
  %vm4404 = vcmask 15360
  %4405 = vst.msk [vmem:[%s73] sm:$0xff] %vm4404, %v4396
  %vm4406 = vcmask 9216
  %4407 = vst.msk [vmem:[%s73 + $0x8] sm:$0x3] %vm4406, %v4401
  // Predicated region
  $region146: #{densenet_forward.5} parent=0 // pred_check
    _
  $region147: #{densenet_forward.5} parent=0 // pred_check_branch
    %4409 = sbr.rel (0) target = $region149
  $region148: #{densenet_forward.5} parent=0 // pred_region
    _
  $region149: #{densenet_forward.5} parent=0 // pred_fallthru
    _
  // Predicated region
  $region150: #{densenet_forward.5} parent=0 // pred_check
    _
  $region151: #{densenet_forward.5} parent=0 // pred_check_branch
    %4411 = sbr.rel (0) target = $region153
  $region152: #{densenet_forward.5} parent=0 // pred_region
    _
  $region153: #{densenet_forward.5} parent=0 // pred_fallthru
    _

</llo_original>
